<compile_context>
chip_gen: v7x
topology: tpu7x:2x2x1
jax: 0.10.0
libtpu: 0.0.40
codegen_flags: <defaults>
</compile_context>

<pallas_src>
import jax
import jax.numpy as jnp
import numpy as np
from jax import lax
from jax.experimental import pallas as pl
from jax.experimental.pallas import tpu as pltpu

# ---------------------------------------------------------------------------
# Model topology (BoundedGridLocNet)
# ---------------------------------------------------------------------------
TPS_POINTS = 8                 # 2 x 4 grid of control points
IN_C, H_IN, W_IN = 1, 16, 16
C1, K1 = 8, 5                  # conv1: 1 -> 8, 5x5
C2, K2 = 16, 3                 # conv2: 8 -> 16, 3x3
OH1 = OW1 = H_IN - K1 + 1      # 12
P1 = OH1 // 2                  # 6
OH2 = OW2 = P1 - K2 + 1        # 4
P2 = OH2 // 2                  # 2
FLAT = C2 * P2 * P2            # 64
FC1_OUT = 32
N_OUT = 2 * TPS_POINTS         # 16


# ---------------------------------------------------------------------------
# Fused Pallas kernel (batch in the lane dim)
# ---------------------------------------------------------------------------
def _tps_fused_kernel(x_ref, w1_ref, b1_ref, w2_ref, b2_ref,
                      wf1_ref, bf1_ref, wf2_ref, bf2_ref,
                      o_ref, p1_ref, p2_ref, feat_ref):
    tb = x_ref.shape[-1]                     # lanes = batch tile (mult of 128)
    f32 = jnp.float32

    # ---- conv1 5x5 (1->8) + ReLU + 2x2 maxpool ------------------------------
    # fori over output channels: only SMEM scalar indices and the leading
    # store index are dynamic; all vector loads use static offsets.
    def conv1_body(c, carry):
        acc = jnp.zeros((OH1, OW1, tb), f32)
        for t in range(K1 * K1):                               # static taps
            i, j = divmod(t, K1)
            acc = acc + x_ref[i:i + OH1, j:j + OW1, :] * w1_ref[t * C1 + c]
        y = jnp.maximum(acc + b1_ref[c], 0.0)                  # (12, 12, tb)
        y = y.reshape(OH1 // 2, 2, OW1, tb).max(axis=1)        # pool H (lead)
        y = y.reshape(OH1 // 2, OW1 // 2, 2, tb).max(axis=2)   # pool W (sub)
        p1_ref[c] = y                                          # (6, 6, tb)
        return carry

    lax.fori_loop(0, C1, conv1_body, 0)

    # ---- conv2 3x3 (8->16) + ReLU + 2x2 maxpool -----------------------------
    def conv2_body(d, carry):
        acc = jnp.zeros((OH2, OW2, tb), f32)
        for c in range(C1):                                    # static slices
            for i in range(K2):
                for j in range(K2):
                    w = w2_ref[(c * K2 * K2 + i * K2 + j) * C2 + d]
                    acc = acc + p1_ref[c, i:i + OH2, j:j + OW2, :] * w
        z = jnp.maximum(acc + b2_ref[d], 0.0)                  # (4, 4, tb)
        z = z.reshape(OH2 // 2, 2, OW2, tb).max(axis=1)        # (2, 4, tb)
        z = z.reshape(OH2 // 2, OW2 // 2, 2, tb).max(axis=2)   # (2, 2, tb)
        p2_ref[d] = z
        return carry

    lax.fori_loop(0, C2, conv2_body, 0)

    # ---- flatten in PyTorch NCHW order: row = c*4 + h*2 + w ----------------
    for d in range(C2):                                        # static offsets
        feat_ref[4 * d:4 * d + 2, :] = p2_ref[d, 0]            # h = 0
        feat_ref[4 * d + 2:4 * d + 4, :] = p2_ref[d, 1]        # h = 1

    # ---- fc1 + ReLU, fc2 + tanh; batch stays in lanes (N = tb on the MXU) --
    feat = feat_ref[...]                                       # (64, tb)
    h = jnp.dot(wf1_ref[...], feat, preferred_element_type=f32) + bf1_ref[...]
    h = jnp.maximum(h, 0.0)
    # TODO(synk): F.dropout between fc1 and fc2 is identity in eval mode.
    out = jnp.dot(wf2_ref[...], h, preferred_element_type=f32) + bf2_ref[...]
    o_ref[...] = jnp.tanh(out)                                 # (N_OUT, tb)


# ---------------------------------------------------------------------------
# Wrapper
# ---------------------------------------------------------------------------
def tps_model_forward(params, x_nchw, *, tile_b=None):
    """x_nchw: (B, 1, 16, 16) float32 -> (B, TPS_POINTS, 2) in (-1, 1)."""
    B = x_nchw.shape[0]
    if tile_b is None:
        tile_b = 128 if B <= 256 else 256     # lane-dense batch tiles
    assert tile_b % 128 == 0
    n_tiles = max(2, -(-B // tile_b))         # >= 2 grid steps (v7x: 2 TCs)
    bp = n_tiles * tile_b

    # NCHW (B,1,16,16) -> (H, W, B): batch in the minor/lane dim, dense DMA
    # (the size-1 channel dim is dropped so the input block is (16,16,tile_b)).
    x = jnp.transpose(x_nchw.astype(jnp.float32).reshape(B, H_IN, W_IN),
                      (1, 2, 0))
    if bp != B:
        x = jnp.pad(x, ((0, 0), (0, 0), (0, bp - B)))

    # Conv weights -> flat SMEM scalar tables; fc weights -> (out, in) VMEM.
    w1 = params["w_conv1"].reshape(-1).astype(jnp.float32)          # (t, c)
    b1 = params["b_conv1"].astype(jnp.float32)
    w2 = (params["w_conv2"].reshape(K2, K2, C1, C2)
          .transpose(2, 0, 1, 3).reshape(-1).astype(jnp.float32))   # (c,i,j,d)
    b2 = params["b_conv2"].astype(jnp.float32)
    wf1 = params["w_fc1"].T.astype(jnp.float32)                     # (32, 64)
    bf1 = params["b_fc1"].reshape(FC1_OUT, 1).astype(jnp.float32)
    wf2 = params["w_fc2"].T.astype(jnp.float32)                     # (16, 32)
    bf2 = params["b_fc2"].reshape(N_OUT, 1).astype(jnp.float32)

    smem = pl.BlockSpec(memory_space=pltpu.MemorySpace.SMEM)

    def full(shape):
        return pl.BlockSpec(shape, lambda i: (0,) * len(shape))

    out = pl.pallas_call(
        _tps_fused_kernel,
        out_shape=jax.ShapeDtypeStruct((N_OUT, bp), jnp.float32),
        grid=(n_tiles,),
        in_specs=[
            pl.BlockSpec((H_IN, W_IN, tile_b), lambda i: (0, 0, i)),
            smem, smem, smem, smem,
            full((FC1_OUT, FLAT)), full((FC1_OUT, 1)),
            full((N_OUT, FC1_OUT)), full((N_OUT, 1)),
        ],
        out_specs=pl.BlockSpec((N_OUT, tile_b), lambda i: (0, i)),
        scratch_shapes=[
            pltpu.VMEM((C1, P1, P1, tile_b), jnp.float32),   # pool1 output
            pltpu.VMEM((C2, P2, P2, tile_b), jnp.float32),   # pool2 output
            pltpu.VMEM((FLAT, tile_b), jnp.float32),         # flattened feats
        ],
        compiler_params=pltpu.CompilerParams(
            dimension_semantics=("parallel",),
            vmem_limit_bytes=32 * 1024 * 1024),
    )(x, w1, b1, w2, b2, wf1, bf1, wf2, bf2)

    return out[:, :B].T.reshape(B, TPS_POINTS, 2)


# ---------------------------------------------------------------------------
# Parameters (BoundedGridLocNet init) + pure-JAX reference
# ---------------------------------------------------------------------------
def init_params(key):
    k1, k2, k3, k4 = jax.random.split(key, 4)

    def uinit(k, shape, fan_in):
        bound = 1.0 / np.sqrt(fan_in)
        return jax.random.uniform(k, shape, jnp.float32, -bound, bound)

    params = {
        "w_conv1": uinit(k1, (K1 * K1 * IN_C, C1), K1 * K1 * IN_C),
        "b_conv1": jnp.zeros((C1,), jnp.float32),
        "w_conv2": uinit(k2, (K2 * K2 * C1, C2), K2 * K2 * C1),
        "b_conv2": jnp.zeros((C2,), jnp.float32),
        "w_fc1": uinit(k3, (FLAT, FC1_OUT), FLAT),
        "b_fc1": jnp.zeros((FC1_OUT,), jnp.float32),
        # BoundedGridLocNet: last fc weight = 0, bias = arctanh(target points)
        "w_fc2": uinit(k4, (FC1_OUT, N_OUT), FC1_OUT) * 0.0,
    }
    ys = np.linspace(-0.9, 0.9, 2)
    xs = np.linspace(-0.9, 0.9, 4)
    tgt = np.stack(np.meshgrid(xs, ys), axis=-1).reshape(-1, 2)   # (8, 2)
    params["b_fc2"] = jnp.asarray(np.arctanh(tgt).reshape(-1), jnp.float32)
    return params


def tps_model_forward_ref(params, x_nchw):
    """Pure-JAX f32 reference mirroring the PyTorch module semantics."""
    B = x_nchw.shape[0]
    x = jnp.transpose(x_nchw.astype(jnp.float32), (0, 2, 3, 1))

    def conv_relu(x, w, b, k):
        n, hh, ww, c = x.shape
        oh, ow = hh - k + 1, ww - k + 1
        cols = [x[:, i:i + oh, j:j + ow, :] for i in range(k) for j in range(k)]
        p = jnp.concatenate(cols, axis=-1).reshape(n * oh * ow, k * k * c)
        return jnp.maximum(p @ w + b, 0.0).reshape(n, oh, ow, w.shape[1])

    def pool(x):
        n, hh, ww, c = x.shape
        return jnp.max(x.reshape(n, hh // 2, 2, ww // 2, 2, c), axis=(2, 4))

    y = pool(conv_relu(x, params["w_conv1"], params["b_conv1"], K1))
    y = pool(conv_relu(y, params["w_conv2"], params["b_conv2"], K2))
    feat = jnp.transpose(y, (0, 3, 1, 2)).reshape(B, -1)          # NCHW flatten
    h = jnp.maximum(feat @ params["w_fc1"] + params["b_fc1"], 0.0)
    out = jnp.tanh(h @ params["w_fc2"] + params["b_fc2"])
    return out.reshape(B, TPS_POINTS, 2)


# ---------------------------------------------------------------------------
if __name__ == "__main__":
    key = jax.random.PRNGKey(0)
    pkey, xkey, wkey = jax.random.split(key, 3)
    params = init_params(pkey)
    x = jax.random.normal(xkey, (2, IN_C, H_IN, W_IN), jnp.float32)

    fwd = jax.jit(tps_model_forward)
    out = jax.block_until_ready(fwd(params, x))

    assert out.shape == (2, TPS_POINTS, 2), out.shape
    assert bool(jnp.all(jnp.isfinite(out)))
    assert bool(jnp.all(jnp.abs(out) <= 1.0))      # bounded (tanh) points

    # Numerical cross-check vs the pure-JAX reference with a randomized fc2
    # (exercises the whole conv/pool/fc path, not just the tanh bias).
    params_rnd = dict(params)
    params_rnd["w_fc2"] = jax.random.uniform(
        wkey, (FC1_OUT, N_OUT), jnp.float32, -0.2, 0.2)
    got = jax.block_until_ready(fwd(params_rnd, x))
    want = tps_model_forward_ref(params_rnd, x)
    err = float(jnp.max(jnp.abs(got - want)))
    assert err < 3e-2, err

    print("KERNEL_OK")
</pallas_src>

<mosaic_0001>
module attributes {stable_mosaic.version = 11 : i64} {
  func.func @_tps_fused_kernel(%arg0: i32, %arg1: memref<16x16x128xf32, #tpu.memory_space<vmem>>, %arg2: memref<200xf32, #tpu.memory_space<smem>>, %arg3: memref<8xf32, #tpu.memory_space<smem>>, %arg4: memref<1152xf32, #tpu.memory_space<smem>>, %arg5: memref<16xf32, #tpu.memory_space<smem>>, %arg6: memref<32x64xf32, #tpu.memory_space<vmem>>, %arg7: memref<32x1xf32, #tpu.memory_space<vmem>>, %arg8: memref<16x32xf32, #tpu.memory_space<vmem>>, %arg9: memref<16x1xf32, #tpu.memory_space<vmem>>, %arg10: memref<16x128xf32, #tpu.memory_space<vmem>>, %arg11: memref<8x6x6x128xf32, #tpu.memory_space<vmem>>, %arg12: memref<16x2x2x128xf32, #tpu.memory_space<vmem>>, %arg13: memref<64x128xf32, #tpu.memory_space<vmem>>) attributes {dimension_semantics = [#tpu.dimension_semantics<parallel>], iteration_bounds = array<i64: 2>, scalar_prefetch = 0 : i64, scratch_operands = 3 : i64, tpu.core_type = #tpu.core_type<tc>, window_params = [{transform_indices = @transform_0, window_bounds = array<i64: 16, 16, 128>}, {transform_indices = @transform_1, window_bounds = array<i64: 200>}, {transform_indices = @transform_2, window_bounds = array<i64: 8>}, {transform_indices = @transform_3, window_bounds = array<i64: 1152>}, {transform_indices = @transform_4, window_bounds = array<i64: 16>}, {pipeline_mode = #tpu.pipeline_mode<synchronous>, transform_indices = @transform_5, window_bounds = array<i64: 32, 64>}, {pipeline_mode = #tpu.pipeline_mode<synchronous>, transform_indices = @transform_6, window_bounds = array<i64: 32, 1>}, {pipeline_mode = #tpu.pipeline_mode<synchronous>, transform_indices = @transform_7, window_bounds = array<i64: 16, 32>}, {pipeline_mode = #tpu.pipeline_mode<synchronous>, transform_indices = @transform_8, window_bounds = array<i64: 16, 1>}, {transform_indices = @transform_9, window_bounds = array<i64: 16, 128>}]} {
    %c0_i32 = arith.constant 0 : i32
    %c8_i32 = arith.constant 8 : i32
    %0 = arith.addi %c0_i32, %c8_i32 : i32
    %c1_i32 = arith.constant 1 : i32
    scf.for %arg14 = %c0_i32 to %0 step %c1_i32  : i32 {
      %cst_170 = arith.constant 0.000000e+00 : f32
      %113 = vector.broadcast %cst_170 : f32 to vector<12x12x128xf32>
      %c0_171 = arith.constant 0 : index
      %c0_172 = arith.constant 0 : index
      %c0_173 = arith.constant 0 : index
      %114 = vector.load %arg1[%c0_171, %c0_172, %c0_173] : memref<16x16x128xf32, #tpu.memory_space<vmem>>, vector<12x12x128xf32>
      %c0_i32_174 = arith.constant 0 : i32
      %115 = arith.addi %c0_i32_174, %arg14 : i32
      %116 = arith.index_cast %115 : i32 to index
      %117 = memref.load %arg2[%116] : memref<200xf32, #tpu.memory_space<smem>>
      %118 = vector.broadcast %117 : f32 to vector<12x12x128xf32>
      %119 = arith.mulf %114, %118 : vector<12x12x128xf32>
      %120 = arith.addf %113, %119 : vector<12x12x128xf32>
      %c0_175 = arith.constant 0 : index
      %c1_176 = arith.constant 1 : index
      %c0_177 = arith.constant 0 : index
      %121 = vector.load %arg1[%c0_175, %c1_176, %c0_177] : memref<16x16x128xf32, #tpu.memory_space<vmem>>, vector<12x12x128xf32>
      %c8_i32_178 = arith.constant 8 : i32
      %122 = arith.addi %c8_i32_178, %arg14 : i32
      %123 = arith.index_cast %122 : i32 to index
      %124 = memref.load %arg2[%123] : memref<200xf32, #tpu.memory_space<smem>>
      %125 = vector.broadcast %124 : f32 to vector<12x12x128xf32>
      %126 = arith.mulf %121, %125 : vector<12x12x128xf32>
      %127 = arith.addf %120, %126 : vector<12x12x128xf32>
      %c0_179 = arith.constant 0 : index
      %c2_180 = arith.constant 2 : index
      %c0_181 = arith.constant 0 : index
      %128 = vector.load %arg1[%c0_179, %c2_180, %c0_181] : memref<16x16x128xf32, #tpu.memory_space<vmem>>, vector<12x12x128xf32>
      %c16_i32_182 = arith.constant 16 : i32
      %129 = arith.addi %c16_i32_182, %arg14 : i32
      %130 = arith.index_cast %129 : i32 to index
      %131 = memref.load %arg2[%130] : memref<200xf32, #tpu.memory_space<smem>>
      %132 = vector.broadcast %131 : f32 to vector<12x12x128xf32>
      %133 = arith.mulf %128, %132 : vector<12x12x128xf32>
      %134 = arith.addf %127, %133 : vector<12x12x128xf32>
      %c0_183 = arith.constant 0 : index
      %c3_184 = arith.constant 3 : index
      %c0_185 = arith.constant 0 : index
      %135 = vector.load %arg1[%c0_183, %c3_184, %c0_185] : memref<16x16x128xf32, #tpu.memory_space<vmem>>, vector<12x12x128xf32>
      %c24_i32 = arith.constant 24 : i32
      %136 = arith.addi %c24_i32, %arg14 : i32
      %137 = arith.index_cast %136 : i32 to index
      %138 = memref.load %arg2[%137] : memref<200xf32, #tpu.memory_space<smem>>
      %139 = vector.broadcast %138 : f32 to vector<12x12x128xf32>
      %140 = arith.mulf %135, %139 : vector<12x12x128xf32>
      %141 = arith.addf %134, %140 : vector<12x12x128xf32>
      %c0_186 = arith.constant 0 : index
      %c4_187 = arith.constant 4 : index
      %c0_188 = arith.constant 0 : index
      %142 = vector.load %arg1[%c0_186, %c4_187, %c0_188] : memref<16x16x128xf32, #tpu.memory_space<vmem>>, vector<12x12x128xf32>
      %c32_i32 = arith.constant 32 : i32
      %143 = arith.addi %c32_i32, %arg14 : i32
      %144 = arith.index_cast %143 : i32 to index
      %145 = memref.load %arg2[%144] : memref<200xf32, #tpu.memory_space<smem>>
      %146 = vector.broadcast %145 : f32 to vector<12x12x128xf32>
      %147 = arith.mulf %142, %146 : vector<12x12x128xf32>
      %148 = arith.addf %141, %147 : vector<12x12x128xf32>
      %c1_189 = arith.constant 1 : index
      %c0_190 = arith.constant 0 : index
      %c0_191 = arith.constant 0 : index
      %149 = vector.load %arg1[%c1_189, %c0_190, %c0_191] : memref<16x16x128xf32, #tpu.memory_space<vmem>>, vector<12x12x128xf32>
      %c40_i32 = arith.constant 40 : i32
      %150 = arith.addi %c40_i32, %arg14 : i32
      %151 = arith.index_cast %150 : i32 to index
      %152 = memref.load %arg2[%151] : memref<200xf32, #tpu.memory_space<smem>>
      %153 = vector.broadcast %152 : f32 to vector<12x12x128xf32>
      %154 = arith.mulf %149, %153 : vector<12x12x128xf32>
      %155 = arith.addf %148, %154 : vector<12x12x128xf32>
      %c1_192 = arith.constant 1 : index
      %c1_193 = arith.constant 1 : index
      %c0_194 = arith.constant 0 : index
      %156 = vector.load %arg1[%c1_192, %c1_193, %c0_194] : memref<16x16x128xf32, #tpu.memory_space<vmem>>, vector<12x12x128xf32>
      %c48_i32 = arith.constant 48 : i32
      %157 = arith.addi %c48_i32, %arg14 : i32
      %158 = arith.index_cast %157 : i32 to index
      %159 = memref.load %arg2[%158] : memref<200xf32, #tpu.memory_space<smem>>
      %160 = vector.broadcast %159 : f32 to vector<12x12x128xf32>
      %161 = arith.mulf %156, %160 : vector<12x12x128xf32>
      %162 = arith.addf %155, %161 : vector<12x12x128xf32>
      %c1_195 = arith.constant 1 : index
      %c2_196 = arith.constant 2 : index
      %c0_197 = arith.constant 0 : index
      %163 = vector.load %arg1[%c1_195, %c2_196, %c0_197] : memref<16x16x128xf32, #tpu.memory_space<vmem>>, vector<12x12x128xf32>
      %c56_i32 = arith.constant 56 : i32
      %164 = arith.addi %c56_i32, %arg14 : i32
      %165 = arith.index_cast %164 : i32 to index
      %166 = memref.load %arg2[%165] : memref<200xf32, #tpu.memory_space<smem>>
      %167 = vector.broadcast %166 : f32 to vector<12x12x128xf32>
      %168 = arith.mulf %163, %167 : vector<12x12x128xf32>
      %169 = arith.addf %162, %168 : vector<12x12x128xf32>
      %c1_198 = arith.constant 1 : index
      %c3_199 = arith.constant 3 : index
      %c0_200 = arith.constant 0 : index
      %170 = vector.load %arg1[%c1_198, %c3_199, %c0_200] : memref<16x16x128xf32, #tpu.memory_space<vmem>>, vector<12x12x128xf32>
      %c64_i32 = arith.constant 64 : i32
      %171 = arith.addi %c64_i32, %arg14 : i32
      %172 = arith.index_cast %171 : i32 to index
      %173 = memref.load %arg2[%172] : memref<200xf32, #tpu.memory_space<smem>>
      %174 = vector.broadcast %173 : f32 to vector<12x12x128xf32>
      %175 = arith.mulf %170, %174 : vector<12x12x128xf32>
      %176 = arith.addf %169, %175 : vector<12x12x128xf32>
      %c1_201 = arith.constant 1 : index
      %c4_202 = arith.constant 4 : index
      %c0_203 = arith.constant 0 : index
      %177 = vector.load %arg1[%c1_201, %c4_202, %c0_203] : memref<16x16x128xf32, #tpu.memory_space<vmem>>, vector<12x12x128xf32>
      %c72_i32 = arith.constant 72 : i32
      %178 = arith.addi %c72_i32, %arg14 : i32
      %179 = arith.index_cast %178 : i32 to index
      %180 = memref.load %arg2[%179] : memref<200xf32, #tpu.memory_space<smem>>
      %181 = vector.broadcast %180 : f32 to vector<12x12x128xf32>
      %182 = arith.mulf %177, %181 : vector<12x12x128xf32>
      %183 = arith.addf %176, %182 : vector<12x12x128xf32>
      %c2_204 = arith.constant 2 : index
      %c0_205 = arith.constant 0 : index
      %c0_206 = arith.constant 0 : index
      %184 = vector.load %arg1[%c2_204, %c0_205, %c0_206] : memref<16x16x128xf32, #tpu.memory_space<vmem>>, vector<12x12x128xf32>
      %c80_i32 = arith.constant 80 : i32
      %185 = arith.addi %c80_i32, %arg14 : i32
      %186 = arith.index_cast %185 : i32 to index
      %187 = memref.load %arg2[%186] : memref<200xf32, #tpu.memory_space<smem>>
      %188 = vector.broadcast %187 : f32 to vector<12x12x128xf32>
      %189 = arith.mulf %184, %188 : vector<12x12x128xf32>
      %190 = arith.addf %183, %189 : vector<12x12x128xf32>
      %c2_207 = arith.constant 2 : index
      %c1_208 = arith.constant 1 : index
      %c0_209 = arith.constant 0 : index
      %191 = vector.load %arg1[%c2_207, %c1_208, %c0_209] : memref<16x16x128xf32, #tpu.memory_space<vmem>>, vector<12x12x128xf32>
      %c88_i32 = arith.constant 88 : i32
      %192 = arith.addi %c88_i32, %arg14 : i32
      %193 = arith.index_cast %192 : i32 to index
      %194 = memref.load %arg2[%193] : memref<200xf32, #tpu.memory_space<smem>>
      %195 = vector.broadcast %194 : f32 to vector<12x12x128xf32>
      %196 = arith.mulf %191, %195 : vector<12x12x128xf32>
      %197 = arith.addf %190, %196 : vector<12x12x128xf32>
      %c2_210 = arith.constant 2 : index
      %c2_211 = arith.constant 2 : index
      %c0_212 = arith.constant 0 : index
      %198 = vector.load %arg1[%c2_210, %c2_211, %c0_212] : memref<16x16x128xf32, #tpu.memory_space<vmem>>, vector<12x12x128xf32>
      %c96_i32 = arith.constant 96 : i32
      %199 = arith.addi %c96_i32, %arg14 : i32
      %200 = arith.index_cast %199 : i32 to index
      %201 = memref.load %arg2[%200] : memref<200xf32, #tpu.memory_space<smem>>
      %202 = vector.broadcast %201 : f32 to vector<12x12x128xf32>
      %203 = arith.mulf %198, %202 : vector<12x12x128xf32>
      %204 = arith.addf %197, %203 : vector<12x12x128xf32>
      %c2_213 = arith.constant 2 : index
      %c3_214 = arith.constant 3 : index
      %c0_215 = arith.constant 0 : index
      %205 = vector.load %arg1[%c2_213, %c3_214, %c0_215] : memref<16x16x128xf32, #tpu.memory_space<vmem>>, vector<12x12x128xf32>
      %c104_i32 = arith.constant 104 : i32
      %206 = arith.addi %c104_i32, %arg14 : i32
      %207 = arith.index_cast %206 : i32 to index
      %208 = memref.load %arg2[%207] : memref<200xf32, #tpu.memory_space<smem>>
      %209 = vector.broadcast %208 : f32 to vector<12x12x128xf32>
      %210 = arith.mulf %205, %209 : vector<12x12x128xf32>
      %211 = arith.addf %204, %210 : vector<12x12x128xf32>
      %c2_216 = arith.constant 2 : index
      %c4_217 = arith.constant 4 : index
      %c0_218 = arith.constant 0 : index
      %212 = vector.load %arg1[%c2_216, %c4_217, %c0_218] : memref<16x16x128xf32, #tpu.memory_space<vmem>>, vector<12x12x128xf32>
      %c112_i32 = arith.constant 112 : i32
      %213 = arith.addi %c112_i32, %arg14 : i32
      %214 = arith.index_cast %213 : i32 to index
      %215 = memref.load %arg2[%214] : memref<200xf32, #tpu.memory_space<smem>>
      %216 = vector.broadcast %215 : f32 to vector<12x12x128xf32>
      %217 = arith.mulf %212, %216 : vector<12x12x128xf32>
      %218 = arith.addf %211, %217 : vector<12x12x128xf32>
      %c3_219 = arith.constant 3 : index
      %c0_220 = arith.constant 0 : index
      %c0_221 = arith.constant 0 : index
      %219 = vector.load %arg1[%c3_219, %c0_220, %c0_221] : memref<16x16x128xf32, #tpu.memory_space<vmem>>, vector<12x12x128xf32>
      %c120_i32 = arith.constant 120 : i32
      %220 = arith.addi %c120_i32, %arg14 : i32
      %221 = arith.index_cast %220 : i32 to index
      %222 = memref.load %arg2[%221] : memref<200xf32, #tpu.memory_space<smem>>
      %223 = vector.broadcast %222 : f32 to vector<12x12x128xf32>
      %224 = arith.mulf %219, %223 : vector<12x12x128xf32>
      %225 = arith.addf %218, %224 : vector<12x12x128xf32>
      %c3_222 = arith.constant 3 : index
      %c1_223 = arith.constant 1 : index
      %c0_224 = arith.constant 0 : index
      %226 = vector.load %arg1[%c3_222, %c1_223, %c0_224] : memref<16x16x128xf32, #tpu.memory_space<vmem>>, vector<12x12x128xf32>
      %c128_i32 = arith.constant 128 : i32
      %227 = arith.addi %c128_i32, %arg14 : i32
      %228 = arith.index_cast %227 : i32 to index
      %229 = memref.load %arg2[%228] : memref<200xf32, #tpu.memory_space<smem>>
      %230 = vector.broadcast %229 : f32 to vector<12x12x128xf32>
      %231 = arith.mulf %226, %230 : vector<12x12x128xf32>
      %232 = arith.addf %225, %231 : vector<12x12x128xf32>
      %c3_225 = arith.constant 3 : index
      %c2_226 = arith.constant 2 : index
      %c0_227 = arith.constant 0 : index
      %233 = vector.load %arg1[%c3_225, %c2_226, %c0_227] : memref<16x16x128xf32, #tpu.memory_space<vmem>>, vector<12x12x128xf32>
      %c136_i32 = arith.constant 136 : i32
      %234 = arith.addi %c136_i32, %arg14 : i32
      %235 = arith.index_cast %234 : i32 to index
      %236 = memref.load %arg2[%235] : memref<200xf32, #tpu.memory_space<smem>>
      %237 = vector.broadcast %236 : f32 to vector<12x12x128xf32>
      %238 = arith.mulf %233, %237 : vector<12x12x128xf32>
      %239 = arith.addf %232, %238 : vector<12x12x128xf32>
      %c3_228 = arith.constant 3 : index
      %c3_229 = arith.constant 3 : index
      %c0_230 = arith.constant 0 : index
      %240 = vector.load %arg1[%c3_228, %c3_229, %c0_230] : memref<16x16x128xf32, #tpu.memory_space<vmem>>, vector<12x12x128xf32>
      %c144_i32 = arith.constant 144 : i32
      %241 = arith.addi %c144_i32, %arg14 : i32
      %242 = arith.index_cast %241 : i32 to index
      %243 = memref.load %arg2[%242] : memref<200xf32, #tpu.memory_space<smem>>
      %244 = vector.broadcast %243 : f32 to vector<12x12x128xf32>
      %245 = arith.mulf %240, %244 : vector<12x12x128xf32>
      %246 = arith.addf %239, %245 : vector<12x12x128xf32>
      %c3_231 = arith.constant 3 : index
      %c4_232 = arith.constant 4 : index
      %c0_233 = arith.constant 0 : index
      %247 = vector.load %arg1[%c3_231, %c4_232, %c0_233] : memref<16x16x128xf32, #tpu.memory_space<vmem>>, vector<12x12x128xf32>
      %c152_i32 = arith.constant 152 : i32
      %248 = arith.addi %c152_i32, %arg14 : i32
      %249 = arith.index_cast %248 : i32 to index
      %250 = memref.load %arg2[%249] : memref<200xf32, #tpu.memory_space<smem>>
      %251 = vector.broadcast %250 : f32 to vector<12x12x128xf32>
      %252 = arith.mulf %247, %251 : vector<12x12x128xf32>
      %253 = arith.addf %246, %252 : vector<12x12x128xf32>
      %c4_234 = arith.constant 4 : index
      %c0_235 = arith.constant 0 : index
      %c0_236 = arith.constant 0 : index
      %254 = vector.load %arg1[%c4_234, %c0_235, %c0_236] : memref<16x16x128xf32, #tpu.memory_space<vmem>>, vector<12x12x128xf32>
      %c160_i32 = arith.constant 160 : i32
      %255 = arith.addi %c160_i32, %arg14 : i32
      %256 = arith.index_cast %255 : i32 to index
      %257 = memref.load %arg2[%256] : memref<200xf32, #tpu.memory_space<smem>>
      %258 = vector.broadcast %257 : f32 to vector<12x12x128xf32>
      %259 = arith.mulf %254, %258 : vector<12x12x128xf32>
      %260 = arith.addf %253, %259 : vector<12x12x128xf32>
      %c4_237 = arith.constant 4 : index
      %c1_238 = arith.constant 1 : index
      %c0_239 = arith.constant 0 : index
      %261 = vector.load %arg1[%c4_237, %c1_238, %c0_239] : memref<16x16x128xf32, #tpu.memory_space<vmem>>, vector<12x12x128xf32>
      %c168_i32 = arith.constant 168 : i32
      %262 = arith.addi %c168_i32, %arg14 : i32
      %263 = arith.index_cast %262 : i32 to index
      %264 = memref.load %arg2[%263] : memref<200xf32, #tpu.memory_space<smem>>
      %265 = vector.broadcast %264 : f32 to vector<12x12x128xf32>
      %266 = arith.mulf %261, %265 : vector<12x12x128xf32>
      %267 = arith.addf %260, %266 : vector<12x12x128xf32>
      %c4_240 = arith.constant 4 : index
      %c2_241 = arith.constant 2 : index
      %c0_242 = arith.constant 0 : index
      %268 = vector.load %arg1[%c4_240, %c2_241, %c0_242] : memref<16x16x128xf32, #tpu.memory_space<vmem>>, vector<12x12x128xf32>
      %c176_i32 = arith.constant 176 : i32
      %269 = arith.addi %c176_i32, %arg14 : i32
      %270 = arith.index_cast %269 : i32 to index
      %271 = memref.load %arg2[%270] : memref<200xf32, #tpu.memory_space<smem>>
      %272 = vector.broadcast %271 : f32 to vector<12x12x128xf32>
      %273 = arith.mulf %268, %272 : vector<12x12x128xf32>
      %274 = arith.addf %267, %273 : vector<12x12x128xf32>
      %c4_243 = arith.constant 4 : index
      %c3_244 = arith.constant 3 : index
      %c0_245 = arith.constant 0 : index
      %275 = vector.load %arg1[%c4_243, %c3_244, %c0_245] : memref<16x16x128xf32, #tpu.memory_space<vmem>>, vector<12x12x128xf32>
      %c184_i32 = arith.constant 184 : i32
      %276 = arith.addi %c184_i32, %arg14 : i32
      %277 = arith.index_cast %276 : i32 to index
      %278 = memref.load %arg2[%277] : memref<200xf32, #tpu.memory_space<smem>>
      %279 = vector.broadcast %278 : f32 to vector<12x12x128xf32>
      %280 = arith.mulf %275, %279 : vector<12x12x128xf32>
      %281 = arith.addf %274, %280 : vector<12x12x128xf32>
      %c4_246 = arith.constant 4 : index
      %c4_247 = arith.constant 4 : index
      %c0_248 = arith.constant 0 : index
      %282 = vector.load %arg1[%c4_246, %c4_247, %c0_248] : memref<16x16x128xf32, #tpu.memory_space<vmem>>, vector<12x12x128xf32>
      %c192_i32 = arith.constant 192 : i32
      %283 = arith.addi %c192_i32, %arg14 : i32
      %284 = arith.index_cast %283 : i32 to index
      %285 = memref.load %arg2[%284] : memref<200xf32, #tpu.memory_space<smem>>
      %286 = vector.broadcast %285 : f32 to vector<12x12x128xf32>
      %287 = arith.mulf %282, %286 : vector<12x12x128xf32>
      %288 = arith.addf %281, %287 : vector<12x12x128xf32>
      %289 = arith.index_cast %arg14 : i32 to index
      %290 = memref.load %arg3[%289] : memref<8xf32, #tpu.memory_space<smem>>
      %291 = vector.broadcast %290 : f32 to vector<12x12x128xf32>
      %292 = arith.addf %288, %291 : vector<12x12x128xf32>
      %cst_249 = arith.constant 0.000000e+00 : f32
      %293 = vector.broadcast %cst_249 : f32 to vector<12x12x128xf32>
      %294 = arith.maximumf %292, %293 : vector<12x12x128xf32>
      %295 = vector.shape_cast %294 : vector<12x12x128xf32> to vector<6x2x12x128xf32>
      %cst_250 = arith.constant dense<0xFF800000> : vector<6x12x128xf32>
      %296 = vector.multi_reduction <maximumf>, %295, %cst_250 [1] : vector<6x2x12x128xf32> to vector<6x12x128xf32>
      %297 = vector.shape_cast %296 : vector<6x12x128xf32> to vector<6x6x2x128xf32>
      %cst_251 = arith.constant dense<0xFF800000> : vector<6x6x128xf32>
      %298 = vector.multi_reduction <maximumf>, %297, %cst_251 [2] : vector<6x6x2x128xf32> to vector<6x6x128xf32>
      %299 = arith.index_cast %arg14 : i32 to index
      %c0_252 = arith.constant 0 : index
      %c0_253 = arith.constant 0 : index
      %c0_254 = arith.constant 0 : index
      %300 = vector.load %arg11[%299, %c0_252, %c0_253, %c0_254] : memref<8x6x6x128xf32, #tpu.memory_space<vmem>>, vector<1x6x6x128xf32>
      %301 = vector.shape_cast %300 : vector<1x6x6x128xf32> to vector<6x6x128xf32>
      %302 = vector.shape_cast %298 : vector<6x6x128xf32> to vector<1x6x6x128xf32>
      tpu.vector_store %arg11[%299, %c0_252, %c0_253, %c0_254], %302 {strides = array<i32>} : memref<8x6x6x128xf32, #tpu.memory_space<vmem>>, vector<1x6x6x128xf32>,
    }
    %c8_i32_0 = arith.constant 8 : i32
    %c0_i32_1 = arith.constant 0 : i32
    %c16_i32 = arith.constant 16 : i32
    %1 = arith.addi %c0_i32_1, %c16_i32 : i32
    %c1_i32_2 = arith.constant 1 : i32
    scf.for %arg14 = %c0_i32_1 to %1 step %c1_i32_2  : i32 {
      %cst_170 = arith.constant 0.000000e+00 : f32
      %113 = vector.broadcast %cst_170 : f32 to vector<4x4x128xf32>
      %c0_i32_171 = arith.constant 0 : i32
      %114 = arith.addi %c0_i32_171, %arg14 : i32
      %115 = arith.index_cast %114 : i32 to index
      %116 = memref.load %arg4[%115] : memref<1152xf32, #tpu.memory_space<smem>>
      %c0_172 = arith.constant 0 : index
      %c0_173 = arith.constant 0 : index
      %c0_174 = arith.constant 0 : index
      %c0_175 = arith.constant 0 : index
      %117 = vector.load %arg11[%c0_172, %c0_173, %c0_174, %c0_175] : memref<8x6x6x128xf32, #tpu.memory_space<vmem>>, vector<1x4x4x128xf32>
      %118 = vector.shape_cast %117 : vector<1x4x4x128xf32> to vector<4x4x128xf32>
      %119 = vector.broadcast %116 : f32 to vector<4x4x128xf32>
      %120 = arith.mulf %118, %119 : vector<4x4x128xf32>
      %121 = arith.addf %113, %120 : vector<4x4x128xf32>
      %c16_i32_176 = arith.constant 16 : i32
      %122 = arith.addi %c16_i32_176, %arg14 : i32
      %123 = arith.index_cast %122 : i32 to index
      %124 = memref.load %arg4[%123] : memref<1152xf32, #tpu.memory_space<smem>>
      %c0_177 = arith.constant 0 : index
      %c0_178 = arith.constant 0 : index
      %c1_179 = arith.constant 1 : index
      %c0_180 = arith.constant 0 : index
      %125 = vector.load %arg11[%c0_177, %c0_178, %c1_179, %c0_180] : memref<8x6x6x128xf32, #tpu.memory_space<vmem>>, vector<1x4x4x128xf32>
      %126 = vector.shape_cast %125 : vector<1x4x4x128xf32> to vector<4x4x128xf32>
      %127 = vector.broadcast %124 : f32 to vector<4x4x128xf32>
      %128 = arith.mulf %126, %127 : vector<4x4x128xf32>
      %129 = arith.addf %121, %128 : vector<4x4x128xf32>
      %c32_i32 = arith.constant 32 : i32
      %130 = arith.addi %c32_i32, %arg14 : i32
      %131 = arith.index_cast %130 : i32 to index
      %132 = memref.load %arg4[%131] : memref<1152xf32, #tpu.memory_space<smem>>
      %c0_181 = arith.constant 0 : index
      %c0_182 = arith.constant 0 : index
      %c2_183 = arith.constant 2 : index
      %c0_184 = arith.constant 0 : index
      %133 = vector.load %arg11[%c0_181, %c0_182, %c2_183, %c0_184] : memref<8x6x6x128xf32, #tpu.memory_space<vmem>>, vector<1x4x4x128xf32>
      %134 = vector.shape_cast %133 : vector<1x4x4x128xf32> to vector<4x4x128xf32>
      %135 = vector.broadcast %132 : f32 to vector<4x4x128xf32>
      %136 = arith.mulf %134, %135 : vector<4x4x128xf32>
      %137 = arith.addf %129, %136 : vector<4x4x128xf32>
      %c48_i32 = arith.constant 48 : i32
      %138 = arith.addi %c48_i32, %arg14 : i32
      %139 = arith.index_cast %138 : i32 to index
      %140 = memref.load %arg4[%139] : memref<1152xf32, #tpu.memory_space<smem>>
      %c0_185 = arith.constant 0 : index
      %c1_186 = arith.constant 1 : index
      %c0_187 = arith.constant 0 : index
      %c0_188 = arith.constant 0 : index
      %141 = vector.load %arg11[%c0_185, %c1_186, %c0_187, %c0_188] : memref<8x6x6x128xf32, #tpu.memory_space<vmem>>, vector<1x4x4x128xf32>
      %142 = vector.shape_cast %141 : vector<1x4x4x128xf32> to vector<4x4x128xf32>
      %143 = vector.broadcast %140 : f32 to vector<4x4x128xf32>
      %144 = arith.mulf %142, %143 : vector<4x4x128xf32>
      %145 = arith.addf %137, %144 : vector<4x4x128xf32>
      %c64_i32 = arith.constant 64 : i32
      %146 = arith.addi %c64_i32, %arg14 : i32
      %147 = arith.index_cast %146 : i32 to index
      %148 = memref.load %arg4[%147] : memref<1152xf32, #tpu.memory_space<smem>>
      %c0_189 = arith.constant 0 : index
      %c1_190 = arith.constant 1 : index
      %c1_191 = arith.constant 1 : index
      %c0_192 = arith.constant 0 : index
      %149 = vector.load %arg11[%c0_189, %c1_190, %c1_191, %c0_192] : memref<8x6x6x128xf32, #tpu.memory_space<vmem>>, vector<1x4x4x128xf32>
      %150 = vector.shape_cast %149 : vector<1x4x4x128xf32> to vector<4x4x128xf32>
      %151 = vector.broadcast %148 : f32 to vector<4x4x128xf32>
      %152 = arith.mulf %150, %151 : vector<4x4x128xf32>
      %153 = arith.addf %145, %152 : vector<4x4x128xf32>
      %c80_i32 = arith.constant 80 : i32
      %154 = arith.addi %c80_i32, %arg14 : i32
      %155 = arith.index_cast %154 : i32 to index
      %156 = memref.load %arg4[%155] : memref<1152xf32, #tpu.memory_space<smem>>
      %c0_193 = arith.constant 0 : index
      %c1_194 = arith.constant 1 : index
      %c2_195 = arith.constant 2 : index
      %c0_196 = arith.constant 0 : index
      %157 = vector.load %arg11[%c0_193, %c1_194, %c2_195, %c0_196] : memref<8x6x6x128xf32, #tpu.memory_space<vmem>>, vector<1x4x4x128xf32>
      %158 = vector.shape_cast %157 : vector<1x4x4x128xf32> to vector<4x4x128xf32>
      %159 = vector.broadcast %156 : f32 to vector<4x4x128xf32>
      %160 = arith.mulf %158, %159 : vector<4x4x128xf32>
      %161 = arith.addf %153, %160 : vector<4x4x128xf32>
      %c96_i32 = arith.constant 96 : i32
      %162 = arith.addi %c96_i32, %arg14 : i32
      %163 = arith.index_cast %162 : i32 to index
      %164 = memref.load %arg4[%163] : memref<1152xf32, #tpu.memory_space<smem>>
      %c0_197 = arith.constant 0 : index
      %c2_198 = arith.constant 2 : index
      %c0_199 = arith.constant 0 : index
      %c0_200 = arith.constant 0 : index
      %165 = vector.load %arg11[%c0_197, %c2_198, %c0_199, %c0_200] : memref<8x6x6x128xf32, #tpu.memory_space<vmem>>, vector<1x4x4x128xf32>
      %166 = vector.shape_cast %165 : vector<1x4x4x128xf32> to vector<4x4x128xf32>
      %167 = vector.broadcast %164 : f32 to vector<4x4x128xf32>
      %168 = arith.mulf %166, %167 : vector<4x4x128xf32>
      %169 = arith.addf %161, %168 : vector<4x4x128xf32>
      %c112_i32 = arith.constant 112 : i32
      %170 = arith.addi %c112_i32, %arg14 : i32
      %171 = arith.index_cast %170 : i32 to index
      %172 = memref.load %arg4[%171] : memref<1152xf32, #tpu.memory_space<smem>>
      %c0_201 = arith.constant 0 : index
      %c2_202 = arith.constant 2 : index
      %c1_203 = arith.constant 1 : index
      %c0_204 = arith.constant 0 : index
      %173 = vector.load %arg11[%c0_201, %c2_202, %c1_203, %c0_204] : memref<8x6x6x128xf32, #tpu.memory_space<vmem>>, vector<1x4x4x128xf32>
      %174 = vector.shape_cast %173 : vector<1x4x4x128xf32> to vector<4x4x128xf32>
      %175 = vector.broadcast %172 : f32 to vector<4x4x128xf32>
      %176 = arith.mulf %174, %175 : vector<4x4x128xf32>
      %177 = arith.addf %169, %176 : vector<4x4x128xf32>
      %c128_i32 = arith.constant 128 : i32
      %178 = arith.addi %c128_i32, %arg14 : i32
      %179 = arith.index_cast %178 : i32 to index
      %180 = memref.load %arg4[%179] : memref<1152xf32, #tpu.memory_space<smem>>
      %c0_205 = arith.constant 0 : index
      %c2_206 = arith.constant 2 : index
      %c2_207 = arith.constant 2 : index
      %c0_208 = arith.constant 0 : index
      %181 = vector.load %arg11[%c0_205, %c2_206, %c2_207, %c0_208] : memref<8x6x6x128xf32, #tpu.memory_space<vmem>>, vector<1x4x4x128xf32>
      %182 = vector.shape_cast %181 : vector<1x4x4x128xf32> to vector<4x4x128xf32>
      %183 = vector.broadcast %180 : f32 to vector<4x4x128xf32>
      %184 = arith.mulf %182, %183 : vector<4x4x128xf32>
      %185 = arith.addf %177, %184 : vector<4x4x128xf32>
      %c144_i32 = arith.constant 144 : i32
      %186 = arith.addi %c144_i32, %arg14 : i32
      %187 = arith.index_cast %186 : i32 to index
      %188 = memref.load %arg4[%187] : memref<1152xf32, #tpu.memory_space<smem>>
      %c1_209 = arith.constant 1 : index
      %c0_210 = arith.constant 0 : index
      %c0_211 = arith.constant 0 : index
      %c0_212 = arith.constant 0 : index
      %189 = vector.load %arg11[%c1_209, %c0_210, %c0_211, %c0_212] : memref<8x6x6x128xf32, #tpu.memory_space<vmem>>, vector<1x4x4x128xf32>
      %190 = vector.shape_cast %189 : vector<1x4x4x128xf32> to vector<4x4x128xf32>
      %191 = vector.broadcast %188 : f32 to vector<4x4x128xf32>
      %192 = arith.mulf %190, %191 : vector<4x4x128xf32>
      %193 = arith.addf %185, %192 : vector<4x4x128xf32>
      %c160_i32 = arith.constant 160 : i32
      %194 = arith.addi %c160_i32, %arg14 : i32
      %195 = arith.index_cast %194 : i32 to index
      %196 = memref.load %arg4[%195] : memref<1152xf32, #tpu.memory_space<smem>>
      %c1_213 = arith.constant 1 : index
      %c0_214 = arith.constant 0 : index
      %c1_215 = arith.constant 1 : index
      %c0_216 = arith.constant 0 : index
      %197 = vector.load %arg11[%c1_213, %c0_214, %c1_215, %c0_216] : memref<8x6x6x128xf32, #tpu.memory_space<vmem>>, vector<1x4x4x128xf32>
      %198 = vector.shape_cast %197 : vector<1x4x4x128xf32> to vector<4x4x128xf32>
      %199 = vector.broadcast %196 : f32 to vector<4x4x128xf32>
      %200 = arith.mulf %198, %199 : vector<4x4x128xf32>
      %201 = arith.addf %193, %200 : vector<4x4x128xf32>
      %c176_i32 = arith.constant 176 : i32
      %202 = arith.addi %c176_i32, %arg14 : i32
      %203 = arith.index_cast %202 : i32 to index
      %204 = memref.load %arg4[%203] : memref<1152xf32, #tpu.memory_space<smem>>
      %c1_217 = arith.constant 1 : index
      %c0_218 = arith.constant 0 : index
      %c2_219 = arith.constant 2 : index
      %c0_220 = arith.constant 0 : index
      %205 = vector.load %arg11[%c1_217, %c0_218, %c2_219, %c0_220] : memref<8x6x6x128xf32, #tpu.memory_space<vmem>>, vector<1x4x4x128xf32>
      %206 = vector.shape_cast %205 : vector<1x4x4x128xf32> to vector<4x4x128xf32>
      %207 = vector.broadcast %204 : f32 to vector<4x4x128xf32>
      %208 = arith.mulf %206, %207 : vector<4x4x128xf32>
      %209 = arith.addf %201, %208 : vector<4x4x128xf32>
      %c192_i32 = arith.constant 192 : i32
      %210 = arith.addi %c192_i32, %arg14 : i32
      %211 = arith.index_cast %210 : i32 to index
      %212 = memref.load %arg4[%211] : memref<1152xf32, #tpu.memory_space<smem>>
      %c1_221 = arith.constant 1 : index
      %c1_222 = arith.constant 1 : index
      %c0_223 = arith.constant 0 : index
      %c0_224 = arith.constant 0 : index
      %213 = vector.load %arg11[%c1_221, %c1_222, %c0_223, %c0_224] : memref<8x6x6x128xf32, #tpu.memory_space<vmem>>, vector<1x4x4x128xf32>
      %214 = vector.shape_cast %213 : vector<1x4x4x128xf32> to vector<4x4x128xf32>
      %215 = vector.broadcast %212 : f32 to vector<4x4x128xf32>
      %216 = arith.mulf %214, %215 : vector<4x4x128xf32>
      %217 = arith.addf %209, %216 : vector<4x4x128xf32>
      %c208_i32 = arith.constant 208 : i32
      %218 = arith.addi %c208_i32, %arg14 : i32
      %219 = arith.index_cast %218 : i32 to index
      %220 = memref.load %arg4[%219] : memref<1152xf32, #tpu.memory_space<smem>>
      %c1_225 = arith.constant 1 : index
      %c1_226 = arith.constant 1 : index
      %c1_227 = arith.constant 1 : index
      %c0_228 = arith.constant 0 : index
      %221 = vector.load %arg11[%c1_225, %c1_226, %c1_227, %c0_228] : memref<8x6x6x128xf32, #tpu.memory_space<vmem>>, vector<1x4x4x128xf32>
      %222 = vector.shape_cast %221 : vector<1x4x4x128xf32> to vector<4x4x128xf32>
      %223 = vector.broadcast %220 : f32 to vector<4x4x128xf32>
      %224 = arith.mulf %222, %223 : vector<4x4x128xf32>
      %225 = arith.addf %217, %224 : vector<4x4x128xf32>
      %c224_i32 = arith.constant 224 : i32
      %226 = arith.addi %c224_i32, %arg14 : i32
      %227 = arith.index_cast %226 : i32 to index
      %228 = memref.load %arg4[%227] : memref<1152xf32, #tpu.memory_space<smem>>
      %c1_229 = arith.constant 1 : index
      %c1_230 = arith.constant 1 : index
      %c2_231 = arith.constant 2 : index
      %c0_232 = arith.constant 0 : index
      %229 = vector.load %arg11[%c1_229, %c1_230, %c2_231, %c0_232] : memref<8x6x6x128xf32, #tpu.memory_space<vmem>>, vector<1x4x4x128xf32>
      %230 = vector.shape_cast %229 : vector<1x4x4x128xf32> to vector<4x4x128xf32>
      %231 = vector.broadcast %228 : f32 to vector<4x4x128xf32>
      %232 = arith.mulf %230, %231 : vector<4x4x128xf32>
      %233 = arith.addf %225, %232 : vector<4x4x128xf32>
      %c240_i32 = arith.constant 240 : i32
      %234 = arith.addi %c240_i32, %arg14 : i32
      %235 = arith.index_cast %234 : i32 to index
      %236 = memref.load %arg4[%235] : memref<1152xf32, #tpu.memory_space<smem>>
      %c1_233 = arith.constant 1 : index
      %c2_234 = arith.constant 2 : index
      %c0_235 = arith.constant 0 : index
      %c0_236 = arith.constant 0 : index
      %237 = vector.load %arg11[%c1_233, %c2_234, %c0_235, %c0_236] : memref<8x6x6x128xf32, #tpu.memory_space<vmem>>, vector<1x4x4x128xf32>
      %238 = vector.shape_cast %237 : vector<1x4x4x128xf32> to vector<4x4x128xf32>
      %239 = vector.broadcast %236 : f32 to vector<4x4x128xf32>
      %240 = arith.mulf %238, %239 : vector<4x4x128xf32>
      %241 = arith.addf %233, %240 : vector<4x4x128xf32>
      %c256_i32 = arith.constant 256 : i32
      %242 = arith.addi %c256_i32, %arg14 : i32
      %243 = arith.index_cast %242 : i32 to index
      %244 = memref.load %arg4[%243] : memref<1152xf32, #tpu.memory_space<smem>>
      %c1_237 = arith.constant 1 : index
      %c2_238 = arith.constant 2 : index
      %c1_239 = arith.constant 1 : index
      %c0_240 = arith.constant 0 : index
      %245 = vector.load %arg11[%c1_237, %c2_238, %c1_239, %c0_240] : memref<8x6x6x128xf32, #tpu.memory_space<vmem>>, vector<1x4x4x128xf32>
      %246 = vector.shape_cast %245 : vector<1x4x4x128xf32> to vector<4x4x128xf32>
      %247 = vector.broadcast %244 : f32 to vector<4x4x128xf32>
      %248 = arith.mulf %246, %247 : vector<4x4x128xf32>
      %249 = arith.addf %241, %248 : vector<4x4x128xf32>
      %c272_i32 = arith.constant 272 : i32
      %250 = arith.addi %c272_i32, %arg14 : i32
      %251 = arith.index_cast %250 : i32 to index
      %252 = memref.load %arg4[%251] : memref<1152xf32, #tpu.memory_space<smem>>
      %c1_241 = arith.constant 1 : index
      %c2_242 = arith.constant 2 : index
      %c2_243 = arith.constant 2 : index
      %c0_244 = arith.constant 0 : index
      %253 = vector.load %arg11[%c1_241, %c2_242, %c2_243, %c0_244] : memref<8x6x6x128xf32, #tpu.memory_space<vmem>>, vector<1x4x4x128xf32>
      %254 = vector.shape_cast %253 : vector<1x4x4x128xf32> to vector<4x4x128xf32>
      %255 = vector.broadcast %252 : f32 to vector<4x4x128xf32>
      %256 = arith.mulf %254, %255 : vector<4x4x128xf32>
      %257 = arith.addf %249, %256 : vector<4x4x128xf32>
      %c288_i32 = arith.constant 288 : i32
      %258 = arith.addi %c288_i32, %arg14 : i32
      %259 = arith.index_cast %258 : i32 to index
      %260 = memref.load %arg4[%259] : memref<1152xf32, #tpu.memory_space<smem>>
      %c2_245 = arith.constant 2 : index
      %c0_246 = arith.constant 0 : index
      %c0_247 = arith.constant 0 : index
      %c0_248 = arith.constant 0 : index
      %261 = vector.load %arg11[%c2_245, %c0_246, %c0_247, %c0_248] : memref<8x6x6x128xf32, #tpu.memory_space<vmem>>, vector<1x4x4x128xf32>
      %262 = vector.shape_cast %261 : vector<1x4x4x128xf32> to vector<4x4x128xf32>
      %263 = vector.broadcast %260 : f32 to vector<4x4x128xf32>
      %264 = arith.mulf %262, %263 : vector<4x4x128xf32>
      %265 = arith.addf %257, %264 : vector<4x4x128xf32>
      %c304_i32 = arith.constant 304 : i32
      %266 = arith.addi %c304_i32, %arg14 : i32
      %267 = arith.index_cast %266 : i32 to index
      %268 = memref.load %arg4[%267] : memref<1152xf32, #tpu.memory_space<smem>>
      %c2_249 = arith.constant 2 : index
      %c0_250 = arith.constant 0 : index
      %c1_251 = arith.constant 1 : index
      %c0_252 = arith.constant 0 : index
      %269 = vector.load %arg11[%c2_249, %c0_250, %c1_251, %c0_252] : memref<8x6x6x128xf32, #tpu.memory_space<vmem>>, vector<1x4x4x128xf32>
      %270 = vector.shape_cast %269 : vector<1x4x4x128xf32> to vector<4x4x128xf32>
      %271 = vector.broadcast %268 : f32 to vector<4x4x128xf32>
      %272 = arith.mulf %270, %271 : vector<4x4x128xf32>
      %273 = arith.addf %265, %272 : vector<4x4x128xf32>
      %c320_i32 = arith.constant 320 : i32
      %274 = arith.addi %c320_i32, %arg14 : i32
      %275 = arith.index_cast %274 : i32 to index
      %276 = memref.load %arg4[%275] : memref<1152xf32, #tpu.memory_space<smem>>
      %c2_253 = arith.constant 2 : index
      %c0_254 = arith.constant 0 : index
      %c2_255 = arith.constant 2 : index
      %c0_256 = arith.constant 0 : index
      %277 = vector.load %arg11[%c2_253, %c0_254, %c2_255, %c0_256] : memref<8x6x6x128xf32, #tpu.memory_space<vmem>>, vector<1x4x4x128xf32>
      %278 = vector.shape_cast %277 : vector<1x4x4x128xf32> to vector<4x4x128xf32>
      %279 = vector.broadcast %276 : f32 to vector<4x4x128xf32>
      %280 = arith.mulf %278, %279 : vector<4x4x128xf32>
      %281 = arith.addf %273, %280 : vector<4x4x128xf32>
      %c336_i32 = arith.constant 336 : i32
      %282 = arith.addi %c336_i32, %arg14 : i32
      %283 = arith.index_cast %282 : i32 to index
      %284 = memref.load %arg4[%283] : memref<1152xf32, #tpu.memory_space<smem>>
      %c2_257 = arith.constant 2 : index
      %c1_258 = arith.constant 1 : index
      %c0_259 = arith.constant 0 : index
      %c0_260 = arith.constant 0 : index
      %285 = vector.load %arg11[%c2_257, %c1_258, %c0_259, %c0_260] : memref<8x6x6x128xf32, #tpu.memory_space<vmem>>, vector<1x4x4x128xf32>
      %286 = vector.shape_cast %285 : vector<1x4x4x128xf32> to vector<4x4x128xf32>
      %287 = vector.broadcast %284 : f32 to vector<4x4x128xf32>
      %288 = arith.mulf %286, %287 : vector<4x4x128xf32>
      %289 = arith.addf %281, %288 : vector<4x4x128xf32>
      %c352_i32 = arith.constant 352 : i32
      %290 = arith.addi %c352_i32, %arg14 : i32
      %291 = arith.index_cast %290 : i32 to index
      %292 = memref.load %arg4[%291] : memref<1152xf32, #tpu.memory_space<smem>>
      %c2_261 = arith.constant 2 : index
      %c1_262 = arith.constant 1 : index
      %c1_263 = arith.constant 1 : index
      %c0_264 = arith.constant 0 : index
      %293 = vector.load %arg11[%c2_261, %c1_262, %c1_263, %c0_264] : memref<8x6x6x128xf32, #tpu.memory_space<vmem>>, vector<1x4x4x128xf32>
      %294 = vector.shape_cast %293 : vector<1x4x4x128xf32> to vector<4x4x128xf32>
      %295 = vector.broadcast %292 : f32 to vector<4x4x128xf32>
      %296 = arith.mulf %294, %295 : vector<4x4x128xf32>
      %297 = arith.addf %289, %296 : vector<4x4x128xf32>
      %c368_i32 = arith.constant 368 : i32
      %298 = arith.addi %c368_i32, %arg14 : i32
      %299 = arith.index_cast %298 : i32 to index
      %300 = memref.load %arg4[%299] : memref<1152xf32, #tpu.memory_space<smem>>
      %c2_265 = arith.constant 2 : index
      %c1_266 = arith.constant 1 : index
      %c2_267 = arith.constant 2 : index
      %c0_268 = arith.constant 0 : index
      %301 = vector.load %arg11[%c2_265, %c1_266, %c2_267, %c0_268] : memref<8x6x6x128xf32, #tpu.memory_space<vmem>>, vector<1x4x4x128xf32>
      %302 = vector.shape_cast %301 : vector<1x4x4x128xf32> to vector<4x4x128xf32>
      %303 = vector.broadcast %300 : f32 to vector<4x4x128xf32>
      %304 = arith.mulf %302, %303 : vector<4x4x128xf32>
      %305 = arith.addf %297, %304 : vector<4x4x128xf32>
      %c384_i32 = arith.constant 384 : i32
      %306 = arith.addi %c384_i32, %arg14 : i32
      %307 = arith.index_cast %306 : i32 to index
      %308 = memref.load %arg4[%307] : memref<1152xf32, #tpu.memory_space<smem>>
      %c2_269 = arith.constant 2 : index
      %c2_270 = arith.constant 2 : index
      %c0_271 = arith.constant 0 : index
      %c0_272 = arith.constant 0 : index
      %309 = vector.load %arg11[%c2_269, %c2_270, %c0_271, %c0_272] : memref<8x6x6x128xf32, #tpu.memory_space<vmem>>, vector<1x4x4x128xf32>
      %310 = vector.shape_cast %309 : vector<1x4x4x128xf32> to vector<4x4x128xf32>
      %311 = vector.broadcast %308 : f32 to vector<4x4x128xf32>
      %312 = arith.mulf %310, %311 : vector<4x4x128xf32>
      %313 = arith.addf %305, %312 : vector<4x4x128xf32>
      %c400_i32 = arith.constant 400 : i32
      %314 = arith.addi %c400_i32, %arg14 : i32
      %315 = arith.index_cast %314 : i32 to index
      %316 = memref.load %arg4[%315] : memref<1152xf32, #tpu.memory_space<smem>>
      %c2_273 = arith.constant 2 : index
      %c2_274 = arith.constant 2 : index
      %c1_275 = arith.constant 1 : index
      %c0_276 = arith.constant 0 : index
      %317 = vector.load %arg11[%c2_273, %c2_274, %c1_275, %c0_276] : memref<8x6x6x128xf32, #tpu.memory_space<vmem>>, vector<1x4x4x128xf32>
      %318 = vector.shape_cast %317 : vector<1x4x4x128xf32> to vector<4x4x128xf32>
      %319 = vector.broadcast %316 : f32 to vector<4x4x128xf32>
      %320 = arith.mulf %318, %319 : vector<4x4x128xf32>
      %321 = arith.addf %313, %320 : vector<4x4x128xf32>
      %c416_i32 = arith.constant 416 : i32
      %322 = arith.addi %c416_i32, %arg14 : i32
      %323 = arith.index_cast %322 : i32 to index
      %324 = memref.load %arg4[%323] : memref<1152xf32, #tpu.memory_space<smem>>
      %c2_277 = arith.constant 2 : index
      %c2_278 = arith.constant 2 : index
      %c2_279 = arith.constant 2 : index
      %c0_280 = arith.constant 0 : index
      %325 = vector.load %arg11[%c2_277, %c2_278, %c2_279, %c0_280] : memref<8x6x6x128xf32, #tpu.memory_space<vmem>>, vector<1x4x4x128xf32>
      %326 = vector.shape_cast %325 : vector<1x4x4x128xf32> to vector<4x4x128xf32>
      %327 = vector.broadcast %324 : f32 to vector<4x4x128xf32>
      %328 = arith.mulf %326, %327 : vector<4x4x128xf32>
      %329 = arith.addf %321, %328 : vector<4x4x128xf32>
      %c432_i32 = arith.constant 432 : i32
      %330 = arith.addi %c432_i32, %arg14 : i32
      %331 = arith.index_cast %330 : i32 to index
      %332 = memref.load %arg4[%331] : memref<1152xf32, #tpu.memory_space<smem>>
      %c3_281 = arith.constant 3 : index
      %c0_282 = arith.constant 0 : index
      %c0_283 = arith.constant 0 : index
      %c0_284 = arith.constant 0 : index
      %333 = vector.load %arg11[%c3_281, %c0_282, %c0_283, %c0_284] : memref<8x6x6x128xf32, #tpu.memory_space<vmem>>, vector<1x4x4x128xf32>
      %334 = vector.shape_cast %333 : vector<1x4x4x128xf32> to vector<4x4x128xf32>
      %335 = vector.broadcast %332 : f32 to vector<4x4x128xf32>
      %336 = arith.mulf %334, %335 : vector<4x4x128xf32>
      %337 = arith.addf %329, %336 : vector<4x4x128xf32>
      %c448_i32 = arith.constant 448 : i32
      %338 = arith.addi %c448_i32, %arg14 : i32
      %339 = arith.index_cast %338 : i32 to index
      %340 = memref.load %arg4[%339] : memref<1152xf32, #tpu.memory_space<smem>>
      %c3_285 = arith.constant 3 : index
      %c0_286 = arith.constant 0 : index
      %c1_287 = arith.constant 1 : index
      %c0_288 = arith.constant 0 : index
      %341 = vector.load %arg11[%c3_285, %c0_286, %c1_287, %c0_288] : memref<8x6x6x128xf32, #tpu.memory_space<vmem>>, vector<1x4x4x128xf32>
      %342 = vector.shape_cast %341 : vector<1x4x4x128xf32> to vector<4x4x128xf32>
      %343 = vector.broadcast %340 : f32 to vector<4x4x128xf32>
      %344 = arith.mulf %342, %343 : vector<4x4x128xf32>
      %345 = arith.addf %337, %344 : vector<4x4x128xf32>
      %c464_i32 = arith.constant 464 : i32
      %346 = arith.addi %c464_i32, %arg14 : i32
      %347 = arith.index_cast %346 : i32 to index
      %348 = memref.load %arg4[%347] : memref<1152xf32, #tpu.memory_space<smem>>
      %c3_289 = arith.constant 3 : index
      %c0_290 = arith.constant 0 : index
      %c2_291 = arith.constant 2 : index
      %c0_292 = arith.constant 0 : index
      %349 = vector.load %arg11[%c3_289, %c0_290, %c2_291, %c0_292] : memref<8x6x6x128xf32, #tpu.memory_space<vmem>>, vector<1x4x4x128xf32>
      %350 = vector.shape_cast %349 : vector<1x4x4x128xf32> to vector<4x4x128xf32>
      %351 = vector.broadcast %348 : f32 to vector<4x4x128xf32>
      %352 = arith.mulf %350, %351 : vector<4x4x128xf32>
      %353 = arith.addf %345, %352 : vector<4x4x128xf32>
      %c480_i32 = arith.constant 480 : i32
      %354 = arith.addi %c480_i32, %arg14 : i32
      %355 = arith.index_cast %354 : i32 to index
      %356 = memref.load %arg4[%355] : memref<1152xf32, #tpu.memory_space<smem>>
      %c3_293 = arith.constant 3 : index
      %c1_294 = arith.constant 1 : index
      %c0_295 = arith.constant 0 : index
      %c0_296 = arith.constant 0 : index
      %357 = vector.load %arg11[%c3_293, %c1_294, %c0_295, %c0_296] : memref<8x6x6x128xf32, #tpu.memory_space<vmem>>, vector<1x4x4x128xf32>
      %358 = vector.shape_cast %357 : vector<1x4x4x128xf32> to vector<4x4x128xf32>
      %359 = vector.broadcast %356 : f32 to vector<4x4x128xf32>
      %360 = arith.mulf %358, %359 : vector<4x4x128xf32>
      %361 = arith.addf %353, %360 : vector<4x4x128xf32>
      %c496_i32 = arith.constant 496 : i32
      %362 = arith.addi %c496_i32, %arg14 : i32
      %363 = arith.index_cast %362 : i32 to index
      %364 = memref.load %arg4[%363] : memref<1152xf32, #tpu.memory_space<smem>>
      %c3_297 = arith.constant 3 : index
      %c1_298 = arith.constant 1 : index
      %c1_299 = arith.constant 1 : index
      %c0_300 = arith.constant 0 : index
      %365 = vector.load %arg11[%c3_297, %c1_298, %c1_299, %c0_300] : memref<8x6x6x128xf32, #tpu.memory_space<vmem>>, vector<1x4x4x128xf32>
      %366 = vector.shape_cast %365 : vector<1x4x4x128xf32> to vector<4x4x128xf32>
      %367 = vector.broadcast %364 : f32 to vector<4x4x128xf32>
      %368 = arith.mulf %366, %367 : vector<4x4x128xf32>
      %369 = arith.addf %361, %368 : vector<4x4x128xf32>
      %c512_i32 = arith.constant 512 : i32
      %370 = arith.addi %c512_i32, %arg14 : i32
      %371 = arith.index_cast %370 : i32 to index
      %372 = memref.load %arg4[%371] : memref<1152xf32, #tpu.memory_space<smem>>
      %c3_301 = arith.constant 3 : index
      %c1_302 = arith.constant 1 : index
      %c2_303 = arith.constant 2 : index
      %c0_304 = arith.constant 0 : index
      %373 = vector.load %arg11[%c3_301, %c1_302, %c2_303, %c0_304] : memref<8x6x6x128xf32, #tpu.memory_space<vmem>>, vector<1x4x4x128xf32>
      %374 = vector.shape_cast %373 : vector<1x4x4x128xf32> to vector<4x4x128xf32>
      %375 = vector.broadcast %372 : f32 to vector<4x4x128xf32>
      %376 = arith.mulf %374, %375 : vector<4x4x128xf32>
      %377 = arith.addf %369, %376 : vector<4x4x128xf32>
      %c528_i32 = arith.constant 528 : i32
      %378 = arith.addi %c528_i32, %arg14 : i32
      %379 = arith.index_cast %378 : i32 to index
      %380 = memref.load %arg4[%379] : memref<1152xf32, #tpu.memory_space<smem>>
      %c3_305 = arith.constant 3 : index
      %c2_306 = arith.constant 2 : index
      %c0_307 = arith.constant 0 : index
      %c0_308 = arith.constant 0 : index
      %381 = vector.load %arg11[%c3_305, %c2_306, %c0_307, %c0_308] : memref<8x6x6x128xf32, #tpu.memory_space<vmem>>, vector<1x4x4x128xf32>
      %382 = vector.shape_cast %381 : vector<1x4x4x128xf32> to vector<4x4x128xf32>
      %383 = vector.broadcast %380 : f32 to vector<4x4x128xf32>
      %384 = arith.mulf %382, %383 : vector<4x4x128xf32>
      %385 = arith.addf %377, %384 : vector<4x4x128xf32>
      %c544_i32 = arith.constant 544 : i32
      %386 = arith.addi %c544_i32, %arg14 : i32
      %387 = arith.index_cast %386 : i32 to index
      %388 = memref.load %arg4[%387] : memref<1152xf32, #tpu.memory_space<smem>>
      %c3_309 = arith.constant 3 : index
      %c2_310 = arith.constant 2 : index
      %c1_311 = arith.constant 1 : index
      %c0_312 = arith.constant 0 : index
      %389 = vector.load %arg11[%c3_309, %c2_310, %c1_311, %c0_312] : memref<8x6x6x128xf32, #tpu.memory_space<vmem>>, vector<1x4x4x128xf32>
      %390 = vector.shape_cast %389 : vector<1x4x4x128xf32> to vector<4x4x128xf32>
      %391 = vector.broadcast %388 : f32 to vector<4x4x128xf32>
      %392 = arith.mulf %390, %391 : vector<4x4x128xf32>
      %393 = arith.addf %385, %392 : vector<4x4x128xf32>
      %c560_i32 = arith.constant 560 : i32
      %394 = arith.addi %c560_i32, %arg14 : i32
      %395 = arith.index_cast %394 : i32 to index
      %396 = memref.load %arg4[%395] : memref<1152xf32, #tpu.memory_space<smem>>
      %c3_313 = arith.constant 3 : index
      %c2_314 = arith.constant 2 : index
      %c2_315 = arith.constant 2 : index
      %c0_316 = arith.constant 0 : index
      %397 = vector.load %arg11[%c3_313, %c2_314, %c2_315, %c0_316] : memref<8x6x6x128xf32, #tpu.memory_space<vmem>>, vector<1x4x4x128xf32>
      %398 = vector.shape_cast %397 : vector<1x4x4x128xf32> to vector<4x4x128xf32>
      %399 = vector.broadcast %396 : f32 to vector<4x4x128xf32>
      %400 = arith.mulf %398, %399 : vector<4x4x128xf32>
      %401 = arith.addf %393, %400 : vector<4x4x128xf32>
      %c576_i32 = arith.constant 576 : i32
      %402 = arith.addi %c576_i32, %arg14 : i32
      %403 = arith.index_cast %402 : i32 to index
      %404 = memref.load %arg4[%403] : memref<1152xf32, #tpu.memory_space<smem>>
      %c4_317 = arith.constant 4 : index
      %c0_318 = arith.constant 0 : index
      %c0_319 = arith.constant 0 : index
      %c0_320 = arith.constant 0 : index
      %405 = vector.load %arg11[%c4_317, %c0_318, %c0_319, %c0_320] : memref<8x6x6x128xf32, #tpu.memory_space<vmem>>, vector<1x4x4x128xf32>
      %406 = vector.shape_cast %405 : vector<1x4x4x128xf32> to vector<4x4x128xf32>
      %407 = vector.broadcast %404 : f32 to vector<4x4x128xf32>
      %408 = arith.mulf %406, %407 : vector<4x4x128xf32>
      %409 = arith.addf %401, %408 : vector<4x4x128xf32>
      %c592_i32 = arith.constant 592 : i32
      %410 = arith.addi %c592_i32, %arg14 : i32
      %411 = arith.index_cast %410 : i32 to index
      %412 = memref.load %arg4[%411] : memref<1152xf32, #tpu.memory_space<smem>>
      %c4_321 = arith.constant 4 : index
      %c0_322 = arith.constant 0 : index
      %c1_323 = arith.constant 1 : index
      %c0_324 = arith.constant 0 : index
      %413 = vector.load %arg11[%c4_321, %c0_322, %c1_323, %c0_324] : memref<8x6x6x128xf32, #tpu.memory_space<vmem>>, vector<1x4x4x128xf32>
      %414 = vector.shape_cast %413 : vector<1x4x4x128xf32> to vector<4x4x128xf32>
      %415 = vector.broadcast %412 : f32 to vector<4x4x128xf32>
      %416 = arith.mulf %414, %415 : vector<4x4x128xf32>
      %417 = arith.addf %409, %416 : vector<4x4x128xf32>
      %c608_i32 = arith.constant 608 : i32
      %418 = arith.addi %c608_i32, %arg14 : i32
      %419 = arith.index_cast %418 : i32 to index
      %420 = memref.load %arg4[%419] : memref<1152xf32, #tpu.memory_space<smem>>
      %c4_325 = arith.constant 4 : index
      %c0_326 = arith.constant 0 : index
      %c2_327 = arith.constant 2 : index
      %c0_328 = arith.constant 0 : index
      %421 = vector.load %arg11[%c4_325, %c0_326, %c2_327, %c0_328] : memref<8x6x6x128xf32, #tpu.memory_space<vmem>>, vector<1x4x4x128xf32>
      %422 = vector.shape_cast %421 : vector<1x4x4x128xf32> to vector<4x4x128xf32>
      %423 = vector.broadcast %420 : f32 to vector<4x4x128xf32>
      %424 = arith.mulf %422, %423 : vector<4x4x128xf32>
      %425 = arith.addf %417, %424 : vector<4x4x128xf32>
      %c624_i32 = arith.constant 624 : i32
      %426 = arith.addi %c624_i32, %arg14 : i32
      %427 = arith.index_cast %426 : i32 to index
      %428 = memref.load %arg4[%427] : memref<1152xf32, #tpu.memory_space<smem>>
      %c4_329 = arith.constant 4 : index
      %c1_330 = arith.constant 1 : index
      %c0_331 = arith.constant 0 : index
      %c0_332 = arith.constant 0 : index
      %429 = vector.load %arg11[%c4_329, %c1_330, %c0_331, %c0_332] : memref<8x6x6x128xf32, #tpu.memory_space<vmem>>, vector<1x4x4x128xf32>
      %430 = vector.shape_cast %429 : vector<1x4x4x128xf32> to vector<4x4x128xf32>
      %431 = vector.broadcast %428 : f32 to vector<4x4x128xf32>
      %432 = arith.mulf %430, %431 : vector<4x4x128xf32>
      %433 = arith.addf %425, %432 : vector<4x4x128xf32>
      %c640_i32 = arith.constant 640 : i32
      %434 = arith.addi %c640_i32, %arg14 : i32
      %435 = arith.index_cast %434 : i32 to index
      %436 = memref.load %arg4[%435] : memref<1152xf32, #tpu.memory_space<smem>>
      %c4_333 = arith.constant 4 : index
      %c1_334 = arith.constant 1 : index
      %c1_335 = arith.constant 1 : index
      %c0_336 = arith.constant 0 : index
      %437 = vector.load %arg11[%c4_333, %c1_334, %c1_335, %c0_336] : memref<8x6x6x128xf32, #tpu.memory_space<vmem>>, vector<1x4x4x128xf32>
      %438 = vector.shape_cast %437 : vector<1x4x4x128xf32> to vector<4x4x128xf32>
      %439 = vector.broadcast %436 : f32 to vector<4x4x128xf32>
      %440 = arith.mulf %438, %439 : vector<4x4x128xf32>
      %441 = arith.addf %433, %440 : vector<4x4x128xf32>
      %c656_i32 = arith.constant 656 : i32
      %442 = arith.addi %c656_i32, %arg14 : i32
      %443 = arith.index_cast %442 : i32 to index
      %444 = memref.load %arg4[%443] : memref<1152xf32, #tpu.memory_space<smem>>
      %c4_337 = arith.constant 4 : index
      %c1_338 = arith.constant 1 : index
      %c2_339 = arith.constant 2 : index
      %c0_340 = arith.constant 0 : index
      %445 = vector.load %arg11[%c4_337, %c1_338, %c2_339, %c0_340] : memref<8x6x6x128xf32, #tpu.memory_space<vmem>>, vector<1x4x4x128xf32>
      %446 = vector.shape_cast %445 : vector<1x4x4x128xf32> to vector<4x4x128xf32>
      %447 = vector.broadcast %444 : f32 to vector<4x4x128xf32>
      %448 = arith.mulf %446, %447 : vector<4x4x128xf32>
      %449 = arith.addf %441, %448 : vector<4x4x128xf32>
      %c672_i32 = arith.constant 672 : i32
      %450 = arith.addi %c672_i32, %arg14 : i32
      %451 = arith.index_cast %450 : i32 to index
      %452 = memref.load %arg4[%451] : memref<1152xf32, #tpu.memory_space<smem>>
      %c4_341 = arith.constant 4 : index
      %c2_342 = arith.constant 2 : index
      %c0_343 = arith.constant 0 : index
      %c0_344 = arith.constant 0 : index
      %453 = vector.load %arg11[%c4_341, %c2_342, %c0_343, %c0_344] : memref<8x6x6x128xf32, #tpu.memory_space<vmem>>, vector<1x4x4x128xf32>
      %454 = vector.shape_cast %453 : vector<1x4x4x128xf32> to vector<4x4x128xf32>
      %455 = vector.broadcast %452 : f32 to vector<4x4x128xf32>
      %456 = arith.mulf %454, %455 : vector<4x4x128xf32>
      %457 = arith.addf %449, %456 : vector<4x4x128xf32>
      %c688_i32 = arith.constant 688 : i32
      %458 = arith.addi %c688_i32, %arg14 : i32
      %459 = arith.index_cast %458 : i32 to index
      %460 = memref.load %arg4[%459] : memref<1152xf32, #tpu.memory_space<smem>>
      %c4_345 = arith.constant 4 : index
      %c2_346 = arith.constant 2 : index
      %c1_347 = arith.constant 1 : index
      %c0_348 = arith.constant 0 : index
      %461 = vector.load %arg11[%c4_345, %c2_346, %c1_347, %c0_348] : memref<8x6x6x128xf32, #tpu.memory_space<vmem>>, vector<1x4x4x128xf32>
      %462 = vector.shape_cast %461 : vector<1x4x4x128xf32> to vector<4x4x128xf32>
      %463 = vector.broadcast %460 : f32 to vector<4x4x128xf32>
      %464 = arith.mulf %462, %463 : vector<4x4x128xf32>
      %465 = arith.addf %457, %464 : vector<4x4x128xf32>
      %c704_i32 = arith.constant 704 : i32
      %466 = arith.addi %c704_i32, %arg14 : i32
      %467 = arith.index_cast %466 : i32 to index
      %468 = memref.load %arg4[%467] : memref<1152xf32, #tpu.memory_space<smem>>
      %c4_349 = arith.constant 4 : index
      %c2_350 = arith.constant 2 : index
      %c2_351 = arith.constant 2 : index
      %c0_352 = arith.constant 0 : index
      %469 = vector.load %arg11[%c4_349, %c2_350, %c2_351, %c0_352] : memref<8x6x6x128xf32, #tpu.memory_space<vmem>>, vector<1x4x4x128xf32>
      %470 = vector.shape_cast %469 : vector<1x4x4x128xf32> to vector<4x4x128xf32>
      %471 = vector.broadcast %468 : f32 to vector<4x4x128xf32>
      %472 = arith.mulf %470, %471 : vector<4x4x128xf32>
      %473 = arith.addf %465, %472 : vector<4x4x128xf32>
      %c720_i32 = arith.constant 720 : i32
      %474 = arith.addi %c720_i32, %arg14 : i32
      %475 = arith.index_cast %474 : i32 to index
      %476 = memref.load %arg4[%475] : memref<1152xf32, #tpu.memory_space<smem>>
      %c5_353 = arith.constant 5 : index
      %c0_354 = arith.constant 0 : index
      %c0_355 = arith.constant 0 : index
      %c0_356 = arith.constant 0 : index
      %477 = vector.load %arg11[%c5_353, %c0_354, %c0_355, %c0_356] : memref<8x6x6x128xf32, #tpu.memory_space<vmem>>, vector<1x4x4x128xf32>
      %478 = vector.shape_cast %477 : vector<1x4x4x128xf32> to vector<4x4x128xf32>
      %479 = vector.broadcast %476 : f32 to vector<4x4x128xf32>
      %480 = arith.mulf %478, %479 : vector<4x4x128xf32>
      %481 = arith.addf %473, %480 : vector<4x4x128xf32>
      %c736_i32 = arith.constant 736 : i32
      %482 = arith.addi %c736_i32, %arg14 : i32
      %483 = arith.index_cast %482 : i32 to index
      %484 = memref.load %arg4[%483] : memref<1152xf32, #tpu.memory_space<smem>>
      %c5_357 = arith.constant 5 : index
      %c0_358 = arith.constant 0 : index
      %c1_359 = arith.constant 1 : index
      %c0_360 = arith.constant 0 : index
      %485 = vector.load %arg11[%c5_357, %c0_358, %c1_359, %c0_360] : memref<8x6x6x128xf32, #tpu.memory_space<vmem>>, vector<1x4x4x128xf32>
      %486 = vector.shape_cast %485 : vector<1x4x4x128xf32> to vector<4x4x128xf32>
      %487 = vector.broadcast %484 : f32 to vector<4x4x128xf32>
      %488 = arith.mulf %486, %487 : vector<4x4x128xf32>
      %489 = arith.addf %481, %488 : vector<4x4x128xf32>
      %c752_i32 = arith.constant 752 : i32
      %490 = arith.addi %c752_i32, %arg14 : i32
      %491 = arith.index_cast %490 : i32 to index
      %492 = memref.load %arg4[%491] : memref<1152xf32, #tpu.memory_space<smem>>
      %c5_361 = arith.constant 5 : index
      %c0_362 = arith.constant 0 : index
      %c2_363 = arith.constant 2 : index
      %c0_364 = arith.constant 0 : index
      %493 = vector.load %arg11[%c5_361, %c0_362, %c2_363, %c0_364] : memref<8x6x6x128xf32, #tpu.memory_space<vmem>>, vector<1x4x4x128xf32>
      %494 = vector.shape_cast %493 : vector<1x4x4x128xf32> to vector<4x4x128xf32>
      %495 = vector.broadcast %492 : f32 to vector<4x4x128xf32>
      %496 = arith.mulf %494, %495 : vector<4x4x128xf32>
      %497 = arith.addf %489, %496 : vector<4x4x128xf32>
      %c768_i32 = arith.constant 768 : i32
      %498 = arith.addi %c768_i32, %arg14 : i32
      %499 = arith.index_cast %498 : i32 to index
      %500 = memref.load %arg4[%499] : memref<1152xf32, #tpu.memory_space<smem>>
      %c5_365 = arith.constant 5 : index
      %c1_366 = arith.constant 1 : index
      %c0_367 = arith.constant 0 : index
      %c0_368 = arith.constant 0 : index
      %501 = vector.load %arg11[%c5_365, %c1_366, %c0_367, %c0_368] : memref<8x6x6x128xf32, #tpu.memory_space<vmem>>, vector<1x4x4x128xf32>
      %502 = vector.shape_cast %501 : vector<1x4x4x128xf32> to vector<4x4x128xf32>
      %503 = vector.broadcast %500 : f32 to vector<4x4x128xf32>
      %504 = arith.mulf %502, %503 : vector<4x4x128xf32>
      %505 = arith.addf %497, %504 : vector<4x4x128xf32>
      %c784_i32 = arith.constant 784 : i32
      %506 = arith.addi %c784_i32, %arg14 : i32
      %507 = arith.index_cast %506 : i32 to index
      %508 = memref.load %arg4[%507] : memref<1152xf32, #tpu.memory_space<smem>>
      %c5_369 = arith.constant 5 : index
      %c1_370 = arith.constant 1 : index
      %c1_371 = arith.constant 1 : index
      %c0_372 = arith.constant 0 : index
      %509 = vector.load %arg11[%c5_369, %c1_370, %c1_371, %c0_372] : memref<8x6x6x128xf32, #tpu.memory_space<vmem>>, vector<1x4x4x128xf32>
      %510 = vector.shape_cast %509 : vector<1x4x4x128xf32> to vector<4x4x128xf32>
      %511 = vector.broadcast %508 : f32 to vector<4x4x128xf32>
      %512 = arith.mulf %510, %511 : vector<4x4x128xf32>
      %513 = arith.addf %505, %512 : vector<4x4x128xf32>
      %c800_i32 = arith.constant 800 : i32
      %514 = arith.addi %c800_i32, %arg14 : i32
      %515 = arith.index_cast %514 : i32 to index
      %516 = memref.load %arg4[%515] : memref<1152xf32, #tpu.memory_space<smem>>
      %c5_373 = arith.constant 5 : index
      %c1_374 = arith.constant 1 : index
      %c2_375 = arith.constant 2 : index
      %c0_376 = arith.constant 0 : index
      %517 = vector.load %arg11[%c5_373, %c1_374, %c2_375, %c0_376] : memref<8x6x6x128xf32, #tpu.memory_space<vmem>>, vector<1x4x4x128xf32>
      %518 = vector.shape_cast %517 : vector<1x4x4x128xf32> to vector<4x4x128xf32>
      %519 = vector.broadcast %516 : f32 to vector<4x4x128xf32>
      %520 = arith.mulf %518, %519 : vector<4x4x128xf32>
      %521 = arith.addf %513, %520 : vector<4x4x128xf32>
      %c816_i32 = arith.constant 816 : i32
      %522 = arith.addi %c816_i32, %arg14 : i32
      %523 = arith.index_cast %522 : i32 to index
      %524 = memref.load %arg4[%523] : memref<1152xf32, #tpu.memory_space<smem>>
      %c5_377 = arith.constant 5 : index
      %c2_378 = arith.constant 2 : index
      %c0_379 = arith.constant 0 : index
      %c0_380 = arith.constant 0 : index
      %525 = vector.load %arg11[%c5_377, %c2_378, %c0_379, %c0_380] : memref<8x6x6x128xf32, #tpu.memory_space<vmem>>, vector<1x4x4x128xf32>
      %526 = vector.shape_cast %525 : vector<1x4x4x128xf32> to vector<4x4x128xf32>
      %527 = vector.broadcast %524 : f32 to vector<4x4x128xf32>
      %528 = arith.mulf %526, %527 : vector<4x4x128xf32>
      %529 = arith.addf %521, %528 : vector<4x4x128xf32>
      %c832_i32 = arith.constant 832 : i32
      %530 = arith.addi %c832_i32, %arg14 : i32
      %531 = arith.index_cast %530 : i32 to index
      %532 = memref.load %arg4[%531] : memref<1152xf32, #tpu.memory_space<smem>>
      %c5_381 = arith.constant 5 : index
      %c2_382 = arith.constant 2 : index
      %c1_383 = arith.constant 1 : index
      %c0_384 = arith.constant 0 : index
      %533 = vector.load %arg11[%c5_381, %c2_382, %c1_383, %c0_384] : memref<8x6x6x128xf32, #tpu.memory_space<vmem>>, vector<1x4x4x128xf32>
      %534 = vector.shape_cast %533 : vector<1x4x4x128xf32> to vector<4x4x128xf32>
      %535 = vector.broadcast %532 : f32 to vector<4x4x128xf32>
      %536 = arith.mulf %534, %535 : vector<4x4x128xf32>
      %537 = arith.addf %529, %536 : vector<4x4x128xf32>
      %c848_i32 = arith.constant 848 : i32
      %538 = arith.addi %c848_i32, %arg14 : i32
      %539 = arith.index_cast %538 : i32 to index
      %540 = memref.load %arg4[%539] : memref<1152xf32, #tpu.memory_space<smem>>
      %c5_385 = arith.constant 5 : index
      %c2_386 = arith.constant 2 : index
      %c2_387 = arith.constant 2 : index
      %c0_388 = arith.constant 0 : index
      %541 = vector.load %arg11[%c5_385, %c2_386, %c2_387, %c0_388] : memref<8x6x6x128xf32, #tpu.memory_space<vmem>>, vector<1x4x4x128xf32>
      %542 = vector.shape_cast %541 : vector<1x4x4x128xf32> to vector<4x4x128xf32>
      %543 = vector.broadcast %540 : f32 to vector<4x4x128xf32>
      %544 = arith.mulf %542, %543 : vector<4x4x128xf32>
      %545 = arith.addf %537, %544 : vector<4x4x128xf32>
      %c864_i32 = arith.constant 864 : i32
      %546 = arith.addi %c864_i32, %arg14 : i32
      %547 = arith.index_cast %546 : i32 to index
      %548 = memref.load %arg4[%547] : memref<1152xf32, #tpu.memory_space<smem>>
      %c6_389 = arith.constant 6 : index
      %c0_390 = arith.constant 0 : index
      %c0_391 = arith.constant 0 : index
      %c0_392 = arith.constant 0 : index
      %549 = vector.load %arg11[%c6_389, %c0_390, %c0_391, %c0_392] : memref<8x6x6x128xf32, #tpu.memory_space<vmem>>, vector<1x4x4x128xf32>
      %550 = vector.shape_cast %549 : vector<1x4x4x128xf32> to vector<4x4x128xf32>
      %551 = vector.broadcast %548 : f32 to vector<4x4x128xf32>
      %552 = arith.mulf %550, %551 : vector<4x4x128xf32>
      %553 = arith.addf %545, %552 : vector<4x4x128xf32>
      %c880_i32 = arith.constant 880 : i32
      %554 = arith.addi %c880_i32, %arg14 : i32
      %555 = arith.index_cast %554 : i32 to index
      %556 = memref.load %arg4[%555] : memref<1152xf32, #tpu.memory_space<smem>>
      %c6_393 = arith.constant 6 : index
      %c0_394 = arith.constant 0 : index
      %c1_395 = arith.constant 1 : index
      %c0_396 = arith.constant 0 : index
      %557 = vector.load %arg11[%c6_393, %c0_394, %c1_395, %c0_396] : memref<8x6x6x128xf32, #tpu.memory_space<vmem>>, vector<1x4x4x128xf32>
      %558 = vector.shape_cast %557 : vector<1x4x4x128xf32> to vector<4x4x128xf32>
      %559 = vector.broadcast %556 : f32 to vector<4x4x128xf32>
      %560 = arith.mulf %558, %559 : vector<4x4x128xf32>
      %561 = arith.addf %553, %560 : vector<4x4x128xf32>
      %c896_i32 = arith.constant 896 : i32
      %562 = arith.addi %c896_i32, %arg14 : i32
      %563 = arith.index_cast %562 : i32 to index
      %564 = memref.load %arg4[%563] : memref<1152xf32, #tpu.memory_space<smem>>
      %c6_397 = arith.constant 6 : index
      %c0_398 = arith.constant 0 : index
      %c2_399 = arith.constant 2 : index
      %c0_400 = arith.constant 0 : index
      %565 = vector.load %arg11[%c6_397, %c0_398, %c2_399, %c0_400] : memref<8x6x6x128xf32, #tpu.memory_space<vmem>>, vector<1x4x4x128xf32>
      %566 = vector.shape_cast %565 : vector<1x4x4x128xf32> to vector<4x4x128xf32>
      %567 = vector.broadcast %564 : f32 to vector<4x4x128xf32>
      %568 = arith.mulf %566, %567 : vector<4x4x128xf32>
      %569 = arith.addf %561, %568 : vector<4x4x128xf32>
      %c912_i32 = arith.constant 912 : i32
      %570 = arith.addi %c912_i32, %arg14 : i32
      %571 = arith.index_cast %570 : i32 to index
      %572 = memref.load %arg4[%571] : memref<1152xf32, #tpu.memory_space<smem>>
      %c6_401 = arith.constant 6 : index
      %c1_402 = arith.constant 1 : index
      %c0_403 = arith.constant 0 : index
      %c0_404 = arith.constant 0 : index
      %573 = vector.load %arg11[%c6_401, %c1_402, %c0_403, %c0_404] : memref<8x6x6x128xf32, #tpu.memory_space<vmem>>, vector<1x4x4x128xf32>
      %574 = vector.shape_cast %573 : vector<1x4x4x128xf32> to vector<4x4x128xf32>
      %575 = vector.broadcast %572 : f32 to vector<4x4x128xf32>
      %576 = arith.mulf %574, %575 : vector<4x4x128xf32>
      %577 = arith.addf %569, %576 : vector<4x4x128xf32>
      %c928_i32 = arith.constant 928 : i32
      %578 = arith.addi %c928_i32, %arg14 : i32
      %579 = arith.index_cast %578 : i32 to index
      %580 = memref.load %arg4[%579] : memref<1152xf32, #tpu.memory_space<smem>>
      %c6_405 = arith.constant 6 : index
      %c1_406 = arith.constant 1 : index
      %c1_407 = arith.constant 1 : index
      %c0_408 = arith.constant 0 : index
      %581 = vector.load %arg11[%c6_405, %c1_406, %c1_407, %c0_408] : memref<8x6x6x128xf32, #tpu.memory_space<vmem>>, vector<1x4x4x128xf32>
      %582 = vector.shape_cast %581 : vector<1x4x4x128xf32> to vector<4x4x128xf32>
      %583 = vector.broadcast %580 : f32 to vector<4x4x128xf32>
      %584 = arith.mulf %582, %583 : vector<4x4x128xf32>
      %585 = arith.addf %577, %584 : vector<4x4x128xf32>
      %c944_i32 = arith.constant 944 : i32
      %586 = arith.addi %c944_i32, %arg14 : i32
      %587 = arith.index_cast %586 : i32 to index
      %588 = memref.load %arg4[%587] : memref<1152xf32, #tpu.memory_space<smem>>
      %c6_409 = arith.constant 6 : index
      %c1_410 = arith.constant 1 : index
      %c2_411 = arith.constant 2 : index
      %c0_412 = arith.constant 0 : index
      %589 = vector.load %arg11[%c6_409, %c1_410, %c2_411, %c0_412] : memref<8x6x6x128xf32, #tpu.memory_space<vmem>>, vector<1x4x4x128xf32>
      %590 = vector.shape_cast %589 : vector<1x4x4x128xf32> to vector<4x4x128xf32>
      %591 = vector.broadcast %588 : f32 to vector<4x4x128xf32>
      %592 = arith.mulf %590, %591 : vector<4x4x128xf32>
      %593 = arith.addf %585, %592 : vector<4x4x128xf32>
      %c960_i32 = arith.constant 960 : i32
      %594 = arith.addi %c960_i32, %arg14 : i32
      %595 = arith.index_cast %594 : i32 to index
      %596 = memref.load %arg4[%595] : memref<1152xf32, #tpu.memory_space<smem>>
      %c6_413 = arith.constant 6 : index
      %c2_414 = arith.constant 2 : index
      %c0_415 = arith.constant 0 : index
      %c0_416 = arith.constant 0 : index
      %597 = vector.load %arg11[%c6_413, %c2_414, %c0_415, %c0_416] : memref<8x6x6x128xf32, #tpu.memory_space<vmem>>, vector<1x4x4x128xf32>
      %598 = vector.shape_cast %597 : vector<1x4x4x128xf32> to vector<4x4x128xf32>
      %599 = vector.broadcast %596 : f32 to vector<4x4x128xf32>
      %600 = arith.mulf %598, %599 : vector<4x4x128xf32>
      %601 = arith.addf %593, %600 : vector<4x4x128xf32>
      %c976_i32 = arith.constant 976 : i32
      %602 = arith.addi %c976_i32, %arg14 : i32
      %603 = arith.index_cast %602 : i32 to index
      %604 = memref.load %arg4[%603] : memref<1152xf32, #tpu.memory_space<smem>>
      %c6_417 = arith.constant 6 : index
      %c2_418 = arith.constant 2 : index
      %c1_419 = arith.constant 1 : index
      %c0_420 = arith.constant 0 : index
      %605 = vector.load %arg11[%c6_417, %c2_418, %c1_419, %c0_420] : memref<8x6x6x128xf32, #tpu.memory_space<vmem>>, vector<1x4x4x128xf32>
      %606 = vector.shape_cast %605 : vector<1x4x4x128xf32> to vector<4x4x128xf32>
      %607 = vector.broadcast %604 : f32 to vector<4x4x128xf32>
      %608 = arith.mulf %606, %607 : vector<4x4x128xf32>
      %609 = arith.addf %601, %608 : vector<4x4x128xf32>
      %c992_i32 = arith.constant 992 : i32
      %610 = arith.addi %c992_i32, %arg14 : i32
      %611 = arith.index_cast %610 : i32 to index
      %612 = memref.load %arg4[%611] : memref<1152xf32, #tpu.memory_space<smem>>
      %c6_421 = arith.constant 6 : index
      %c2_422 = arith.constant 2 : index
      %c2_423 = arith.constant 2 : index
      %c0_424 = arith.constant 0 : index
      %613 = vector.load %arg11[%c6_421, %c2_422, %c2_423, %c0_424] : memref<8x6x6x128xf32, #tpu.memory_space<vmem>>, vector<1x4x4x128xf32>
      %614 = vector.shape_cast %613 : vector<1x4x4x128xf32> to vector<4x4x128xf32>
      %615 = vector.broadcast %612 : f32 to vector<4x4x128xf32>
      %616 = arith.mulf %614, %615 : vector<4x4x128xf32>
      %617 = arith.addf %609, %616 : vector<4x4x128xf32>
      %c1008_i32 = arith.constant 1008 : i32
      %618 = arith.addi %c1008_i32, %arg14 : i32
      %619 = arith.index_cast %618 : i32 to index
      %620 = memref.load %arg4[%619] : memref<1152xf32, #tpu.memory_space<smem>>
      %c7_425 = arith.constant 7 : index
      %c0_426 = arith.constant 0 : index
      %c0_427 = arith.constant 0 : index
      %c0_428 = arith.constant 0 : index
      %621 = vector.load %arg11[%c7_425, %c0_426, %c0_427, %c0_428] : memref<8x6x6x128xf32, #tpu.memory_space<vmem>>, vector<1x4x4x128xf32>
      %622 = vector.shape_cast %621 : vector<1x4x4x128xf32> to vector<4x4x128xf32>
      %623 = vector.broadcast %620 : f32 to vector<4x4x128xf32>
      %624 = arith.mulf %622, %623 : vector<4x4x128xf32>
      %625 = arith.addf %617, %624 : vector<4x4x128xf32>
      %c1024_i32 = arith.constant 1024 : i32
      %626 = arith.addi %c1024_i32, %arg14 : i32
      %627 = arith.index_cast %626 : i32 to index
      %628 = memref.load %arg4[%627] : memref<1152xf32, #tpu.memory_space<smem>>
      %c7_429 = arith.constant 7 : index
      %c0_430 = arith.constant 0 : index
      %c1_431 = arith.constant 1 : index
      %c0_432 = arith.constant 0 : index
      %629 = vector.load %arg11[%c7_429, %c0_430, %c1_431, %c0_432] : memref<8x6x6x128xf32, #tpu.memory_space<vmem>>, vector<1x4x4x128xf32>
      %630 = vector.shape_cast %629 : vector<1x4x4x128xf32> to vector<4x4x128xf32>
      %631 = vector.broadcast %628 : f32 to vector<4x4x128xf32>
      %632 = arith.mulf %630, %631 : vector<4x4x128xf32>
      %633 = arith.addf %625, %632 : vector<4x4x128xf32>
      %c1040_i32 = arith.constant 1040 : i32
      %634 = arith.addi %c1040_i32, %arg14 : i32
      %635 = arith.index_cast %634 : i32 to index
      %636 = memref.load %arg4[%635] : memref<1152xf32, #tpu.memory_space<smem>>
      %c7_433 = arith.constant 7 : index
      %c0_434 = arith.constant 0 : index
      %c2_435 = arith.constant 2 : index
      %c0_436 = arith.constant 0 : index
      %637 = vector.load %arg11[%c7_433, %c0_434, %c2_435, %c0_436] : memref<8x6x6x128xf32, #tpu.memory_space<vmem>>, vector<1x4x4x128xf32>
      %638 = vector.shape_cast %637 : vector<1x4x4x128xf32> to vector<4x4x128xf32>
      %639 = vector.broadcast %636 : f32 to vector<4x4x128xf32>
      %640 = arith.mulf %638, %639 : vector<4x4x128xf32>
      %641 = arith.addf %633, %640 : vector<4x4x128xf32>
      %c1056_i32 = arith.constant 1056 : i32
      %642 = arith.addi %c1056_i32, %arg14 : i32
      %643 = arith.index_cast %642 : i32 to index
      %644 = memref.load %arg4[%643] : memref<1152xf32, #tpu.memory_space<smem>>
      %c7_437 = arith.constant 7 : index
      %c1_438 = arith.constant 1 : index
      %c0_439 = arith.constant 0 : index
      %c0_440 = arith.constant 0 : index
      %645 = vector.load %arg11[%c7_437, %c1_438, %c0_439, %c0_440] : memref<8x6x6x128xf32, #tpu.memory_space<vmem>>, vector<1x4x4x128xf32>
      %646 = vector.shape_cast %645 : vector<1x4x4x128xf32> to vector<4x4x128xf32>
      %647 = vector.broadcast %644 : f32 to vector<4x4x128xf32>
      %648 = arith.mulf %646, %647 : vector<4x4x128xf32>
      %649 = arith.addf %641, %648 : vector<4x4x128xf32>
      %c1072_i32 = arith.constant 1072 : i32
      %650 = arith.addi %c1072_i32, %arg14 : i32
      %651 = arith.index_cast %650 : i32 to index
      %652 = memref.load %arg4[%651] : memref<1152xf32, #tpu.memory_space<smem>>
      %c7_441 = arith.constant 7 : index
      %c1_442 = arith.constant 1 : index
      %c1_443 = arith.constant 1 : index
      %c0_444 = arith.constant 0 : index
      %653 = vector.load %arg11[%c7_441, %c1_442, %c1_443, %c0_444] : memref<8x6x6x128xf32, #tpu.memory_space<vmem>>, vector<1x4x4x128xf32>
      %654 = vector.shape_cast %653 : vector<1x4x4x128xf32> to vector<4x4x128xf32>
      %655 = vector.broadcast %652 : f32 to vector<4x4x128xf32>
      %656 = arith.mulf %654, %655 : vector<4x4x128xf32>
      %657 = arith.addf %649, %656 : vector<4x4x128xf32>
      %c1088_i32 = arith.constant 1088 : i32
      %658 = arith.addi %c1088_i32, %arg14 : i32
      %659 = arith.index_cast %658 : i32 to index
      %660 = memref.load %arg4[%659] : memref<1152xf32, #tpu.memory_space<smem>>
      %c7_445 = arith.constant 7 : index
      %c1_446 = arith.constant 1 : index
      %c2_447 = arith.constant 2 : index
      %c0_448 = arith.constant 0 : index
      %661 = vector.load %arg11[%c7_445, %c1_446, %c2_447, %c0_448] : memref<8x6x6x128xf32, #tpu.memory_space<vmem>>, vector<1x4x4x128xf32>
      %662 = vector.shape_cast %661 : vector<1x4x4x128xf32> to vector<4x4x128xf32>
      %663 = vector.broadcast %660 : f32 to vector<4x4x128xf32>
      %664 = arith.mulf %662, %663 : vector<4x4x128xf32>
      %665 = arith.addf %657, %664 : vector<4x4x128xf32>
      %c1104_i32 = arith.constant 1104 : i32
      %666 = arith.addi %c1104_i32, %arg14 : i32
      %667 = arith.index_cast %666 : i32 to index
      %668 = memref.load %arg4[%667] : memref<1152xf32, #tpu.memory_space<smem>>
      %c7_449 = arith.constant 7 : index
      %c2_450 = arith.constant 2 : index
      %c0_451 = arith.constant 0 : index
      %c0_452 = arith.constant 0 : index
      %669 = vector.load %arg11[%c7_449, %c2_450, %c0_451, %c0_452] : memref<8x6x6x128xf32, #tpu.memory_space<vmem>>, vector<1x4x4x128xf32>
      %670 = vector.shape_cast %669 : vector<1x4x4x128xf32> to vector<4x4x128xf32>
      %671 = vector.broadcast %668 : f32 to vector<4x4x128xf32>
      %672 = arith.mulf %670, %671 : vector<4x4x128xf32>
      %673 = arith.addf %665, %672 : vector<4x4x128xf32>
      %c1120_i32 = arith.constant 1120 : i32
      %674 = arith.addi %c1120_i32, %arg14 : i32
      %675 = arith.index_cast %674 : i32 to index
      %676 = memref.load %arg4[%675] : memref<1152xf32, #tpu.memory_space<smem>>
      %c7_453 = arith.constant 7 : index
      %c2_454 = arith.constant 2 : index
      %c1_455 = arith.constant 1 : index
      %c0_456 = arith.constant 0 : index
      %677 = vector.load %arg11[%c7_453, %c2_454, %c1_455, %c0_456] : memref<8x6x6x128xf32, #tpu.memory_space<vmem>>, vector<1x4x4x128xf32>
      %678 = vector.shape_cast %677 : vector<1x4x4x128xf32> to vector<4x4x128xf32>
      %679 = vector.broadcast %676 : f32 to vector<4x4x128xf32>
      %680 = arith.mulf %678, %679 : vector<4x4x128xf32>
      %681 = arith.addf %673, %680 : vector<4x4x128xf32>
      %c1136_i32 = arith.constant 1136 : i32
      %682 = arith.addi %c1136_i32, %arg14 : i32
      %683 = arith.index_cast %682 : i32 to index
      %684 = memref.load %arg4[%683] : memref<1152xf32, #tpu.memory_space<smem>>
      %c7_457 = arith.constant 7 : index
      %c2_458 = arith.constant 2 : index
      %c2_459 = arith.constant 2 : index
      %c0_460 = arith.constant 0 : index
      %685 = vector.load %arg11[%c7_457, %c2_458, %c2_459, %c0_460] : memref<8x6x6x128xf32, #tpu.memory_space<vmem>>, vector<1x4x4x128xf32>
      %686 = vector.shape_cast %685 : vector<1x4x4x128xf32> to vector<4x4x128xf32>
      %687 = vector.broadcast %684 : f32 to vector<4x4x128xf32>
      %688 = arith.mulf %686, %687 : vector<4x4x128xf32>
      %689 = arith.addf %681, %688 : vector<4x4x128xf32>
      %690 = arith.index_cast %arg14 : i32 to index
      %691 = memref.load %arg5[%690] : memref<16xf32, #tpu.memory_space<smem>>
      %692 = vector.broadcast %691 : f32 to vector<4x4x128xf32>
      %693 = arith.addf %689, %692 : vector<4x4x128xf32>
      %cst_461 = arith.constant 0.000000e+00 : f32
      %694 = vector.broadcast %cst_461 : f32 to vector<4x4x128xf32>
      %695 = arith.maximumf %693, %694 : vector<4x4x128xf32>
      %696 = vector.shape_cast %695 : vector<4x4x128xf32> to vector<2x2x4x128xf32>
      %cst_462 = arith.constant dense<0xFF800000> : vector<2x4x128xf32>
      %697 = vector.multi_reduction <maximumf>, %696, %cst_462 [1] : vector<2x2x4x128xf32> to vector<2x4x128xf32>
      %698 = vector.shape_cast %697 : vector<2x4x128xf32> to vector<2x2x2x128xf32>
      %cst_463 = arith.constant dense<0xFF800000> : vector<2x2x128xf32>
      %699 = vector.multi_reduction <maximumf>, %698, %cst_463 [2] : vector<2x2x2x128xf32> to vector<2x2x128xf32>
      %700 = arith.index_cast %arg14 : i32 to index
      %c0_464 = arith.constant 0 : index
      %c0_465 = arith.constant 0 : index
      %c0_466 = arith.constant 0 : index
      %701 = vector.load %arg12[%700, %c0_464, %c0_465, %c0_466] : memref<16x2x2x128xf32, #tpu.memory_space<vmem>>, vector<1x2x2x128xf32>
      %702 = vector.shape_cast %701 : vector<1x2x2x128xf32> to vector<2x2x128xf32>
      %703 = vector.shape_cast %699 : vector<2x2x128xf32> to vector<1x2x2x128xf32>
      tpu.vector_store %arg12[%700, %c0_464, %c0_465, %c0_466], %703 {strides = array<i32>} : memref<16x2x2x128xf32, #tpu.memory_space<vmem>>, vector<1x2x2x128xf32>,
    }
    %c16_i32_3 = arith.constant 16 : i32
    %c0 = arith.constant 0 : index
    %c0_4 = arith.constant 0 : index
    %c0_5 = arith.constant 0 : index
    %c0_6 = arith.constant 0 : index
    %2 = vector.load %arg12[%c0, %c0_4, %c0_5, %c0_6] : memref<16x2x2x128xf32, #tpu.memory_space<vmem>>, vector<1x1x2x128xf32>
    %3 = vector.shape_cast %2 : vector<1x1x2x128xf32> to vector<2x128xf32>
    %c0_7 = arith.constant 0 : index
    %c0_8 = arith.constant 0 : index
    %4 = vector.load %arg13[%c0_7, %c0_8] : memref<64x128xf32, #tpu.memory_space<vmem>>, vector<2x128xf32>
    tpu.vector_store %arg13[%c0_7, %c0_8], %3 {strides = array<i32>} : memref<64x128xf32, #tpu.memory_space<vmem>>, vector<2x128xf32>,
    %c0_9 = arith.constant 0 : index
    %c1 = arith.constant 1 : index
    %c0_10 = arith.constant 0 : index
    %c0_11 = arith.constant 0 : index
    %5 = vector.load %arg12[%c0_9, %c1, %c0_10, %c0_11] : memref<16x2x2x128xf32, #tpu.memory_space<vmem>>, vector<1x1x2x128xf32>
    %6 = vector.shape_cast %5 : vector<1x1x2x128xf32> to vector<2x128xf32>
    %c2 = arith.constant 2 : index
    %c0_12 = arith.constant 0 : index
    %7 = vector.load %arg13[%c2, %c0_12] : memref<64x128xf32, #tpu.memory_space<vmem>>, vector<2x128xf32>
    tpu.vector_store %arg13[%c2, %c0_12], %6 {strides = array<i32>} : memref<64x128xf32, #tpu.memory_space<vmem>>, vector<2x128xf32>,
    %c1_13 = arith.constant 1 : index
    %c0_14 = arith.constant 0 : index
    %c0_15 = arith.constant 0 : index
    %c0_16 = arith.constant 0 : index
    %8 = vector.load %arg12[%c1_13, %c0_14, %c0_15, %c0_16] : memref<16x2x2x128xf32, #tpu.memory_space<vmem>>, vector<1x1x2x128xf32>
    %9 = vector.shape_cast %8 : vector<1x1x2x128xf32> to vector<2x128xf32>
    %c4 = arith.constant 4 : index
    %c0_17 = arith.constant 0 : index
    %10 = vector.load %arg13[%c4, %c0_17] : memref<64x128xf32, #tpu.memory_space<vmem>>, vector<2x128xf32>
    tpu.vector_store %arg13[%c4, %c0_17], %9 {strides = array<i32>} : memref<64x128xf32, #tpu.memory_space<vmem>>, vector<2x128xf32>,
    %c1_18 = arith.constant 1 : index
    %c1_19 = arith.constant 1 : index
    %c0_20 = arith.constant 0 : index
    %c0_21 = arith.constant 0 : index
    %11 = vector.load %arg12[%c1_18, %c1_19, %c0_20, %c0_21] : memref<16x2x2x128xf32, #tpu.memory_space<vmem>>, vector<1x1x2x128xf32>
    %12 = vector.shape_cast %11 : vector<1x1x2x128xf32> to vector<2x128xf32>
    %c6 = arith.constant 6 : index
    %c0_22 = arith.constant 0 : index
    %13 = vector.load %arg13[%c6, %c0_22] : memref<64x128xf32, #tpu.memory_space<vmem>>, vector<2x128xf32>
    tpu.vector_store %arg13[%c6, %c0_22], %12 {strides = array<i32>} : memref<64x128xf32, #tpu.memory_space<vmem>>, vector<2x128xf32>,
    %c2_23 = arith.constant 2 : index
    %c0_24 = arith.constant 0 : index
    %c0_25 = arith.constant 0 : index
    %c0_26 = arith.constant 0 : index
    %14 = vector.load %arg12[%c2_23, %c0_24, %c0_25, %c0_26] : memref<16x2x2x128xf32, #tpu.memory_space<vmem>>, vector<1x1x2x128xf32>
    %15 = vector.shape_cast %14 : vector<1x1x2x128xf32> to vector<2x128xf32>
    %c8 = arith.constant 8 : index
    %c0_27 = arith.constant 0 : index
    %16 = vector.load %arg13[%c8, %c0_27] : memref<64x128xf32, #tpu.memory_space<vmem>>, vector<2x128xf32>
    tpu.vector_store %arg13[%c8, %c0_27], %15 {strides = array<i32>} : memref<64x128xf32, #tpu.memory_space<vmem>>, vector<2x128xf32>,
    %c2_28 = arith.constant 2 : index
    %c1_29 = arith.constant 1 : index
    %c0_30 = arith.constant 0 : index
    %c0_31 = arith.constant 0 : index
    %17 = vector.load %arg12[%c2_28, %c1_29, %c0_30, %c0_31] : memref<16x2x2x128xf32, #tpu.memory_space<vmem>>, vector<1x1x2x128xf32>
    %18 = vector.shape_cast %17 : vector<1x1x2x128xf32> to vector<2x128xf32>
    %c10 = arith.constant 10 : index
    %c0_32 = arith.constant 0 : index
    %19 = vector.load %arg13[%c10, %c0_32] : memref<64x128xf32, #tpu.memory_space<vmem>>, vector<2x128xf32>
    tpu.vector_store %arg13[%c10, %c0_32], %18 {strides = array<i32>} : memref<64x128xf32, #tpu.memory_space<vmem>>, vector<2x128xf32>,
    %c3 = arith.constant 3 : index
    %c0_33 = arith.constant 0 : index
    %c0_34 = arith.constant 0 : index
    %c0_35 = arith.constant 0 : index
    %20 = vector.load %arg12[%c3, %c0_33, %c0_34, %c0_35] : memref<16x2x2x128xf32, #tpu.memory_space<vmem>>, vector<1x1x2x128xf32>
    %21 = vector.shape_cast %20 : vector<1x1x2x128xf32> to vector<2x128xf32>
    %c12 = arith.constant 12 : index
    %c0_36 = arith.constant 0 : index
    %22 = vector.load %arg13[%c12, %c0_36] : memref<64x128xf32, #tpu.memory_space<vmem>>, vector<2x128xf32>
    tpu.vector_store %arg13[%c12, %c0_36], %21 {strides = array<i32>} : memref<64x128xf32, #tpu.memory_space<vmem>>, vector<2x128xf32>,
    %c3_37 = arith.constant 3 : index
    %c1_38 = arith.constant 1 : index
    %c0_39 = arith.constant 0 : index
    %c0_40 = arith.constant 0 : index
    %23 = vector.load %arg12[%c3_37, %c1_38, %c0_39, %c0_40] : memref<16x2x2x128xf32, #tpu.memory_space<vmem>>, vector<1x1x2x128xf32>
    %24 = vector.shape_cast %23 : vector<1x1x2x128xf32> to vector<2x128xf32>
    %c14 = arith.constant 14 : index
    %c0_41 = arith.constant 0 : index
    %25 = vector.load %arg13[%c14, %c0_41] : memref<64x128xf32, #tpu.memory_space<vmem>>, vector<2x128xf32>
    tpu.vector_store %arg13[%c14, %c0_41], %24 {strides = array<i32>} : memref<64x128xf32, #tpu.memory_space<vmem>>, vector<2x128xf32>,
    %c4_42 = arith.constant 4 : index
    %c0_43 = arith.constant 0 : index
    %c0_44 = arith.constant 0 : index
    %c0_45 = arith.constant 0 : index
    %26 = vector.load %arg12[%c4_42, %c0_43, %c0_44, %c0_45] : memref<16x2x2x128xf32, #tpu.memory_space<vmem>>, vector<1x1x2x128xf32>
    %27 = vector.shape_cast %26 : vector<1x1x2x128xf32> to vector<2x128xf32>
    %c16 = arith.constant 16 : index
    %c0_46 = arith.constant 0 : index
    %28 = vector.load %arg13[%c16, %c0_46] : memref<64x128xf32, #tpu.memory_space<vmem>>, vector<2x128xf32>
    tpu.vector_store %arg13[%c16, %c0_46], %27 {strides = array<i32>} : memref<64x128xf32, #tpu.memory_space<vmem>>, vector<2x128xf32>,
    %c4_47 = arith.constant 4 : index
    %c1_48 = arith.constant 1 : index
    %c0_49 = arith.constant 0 : index
    %c0_50 = arith.constant 0 : index
    %29 = vector.load %arg12[%c4_47, %c1_48, %c0_49, %c0_50] : memref<16x2x2x128xf32, #tpu.memory_space<vmem>>, vector<1x1x2x128xf32>
    %30 = vector.shape_cast %29 : vector<1x1x2x128xf32> to vector<2x128xf32>
    %c18 = arith.constant 18 : index
    %c0_51 = arith.constant 0 : index
    %31 = vector.load %arg13[%c18, %c0_51] : memref<64x128xf32, #tpu.memory_space<vmem>>, vector<2x128xf32>
    tpu.vector_store %arg13[%c18, %c0_51], %30 {strides = array<i32>} : memref<64x128xf32, #tpu.memory_space<vmem>>, vector<2x128xf32>,
    %c5 = arith.constant 5 : index
    %c0_52 = arith.constant 0 : index
    %c0_53 = arith.constant 0 : index
    %c0_54 = arith.constant 0 : index
    %32 = vector.load %arg12[%c5, %c0_52, %c0_53, %c0_54] : memref<16x2x2x128xf32, #tpu.memory_space<vmem>>, vector<1x1x2x128xf32>
    %33 = vector.shape_cast %32 : vector<1x1x2x128xf32> to vector<2x128xf32>
    %c20 = arith.constant 20 : index
    %c0_55 = arith.constant 0 : index
    %34 = vector.load %arg13[%c20, %c0_55] : memref<64x128xf32, #tpu.memory_space<vmem>>, vector<2x128xf32>
    tpu.vector_store %arg13[%c20, %c0_55], %33 {strides = array<i32>} : memref<64x128xf32, #tpu.memory_space<vmem>>, vector<2x128xf32>,
    %c5_56 = arith.constant 5 : index
    %c1_57 = arith.constant 1 : index
    %c0_58 = arith.constant 0 : index
    %c0_59 = arith.constant 0 : index
    %35 = vector.load %arg12[%c5_56, %c1_57, %c0_58, %c0_59] : memref<16x2x2x128xf32, #tpu.memory_space<vmem>>, vector<1x1x2x128xf32>
    %36 = vector.shape_cast %35 : vector<1x1x2x128xf32> to vector<2x128xf32>
    %c22 = arith.constant 22 : index
    %c0_60 = arith.constant 0 : index
    %37 = vector.load %arg13[%c22, %c0_60] : memref<64x128xf32, #tpu.memory_space<vmem>>, vector<2x128xf32>
    tpu.vector_store %arg13[%c22, %c0_60], %36 {strides = array<i32>} : memref<64x128xf32, #tpu.memory_space<vmem>>, vector<2x128xf32>,
    %c6_61 = arith.constant 6 : index
    %c0_62 = arith.constant 0 : index
    %c0_63 = arith.constant 0 : index
    %c0_64 = arith.constant 0 : index
    %38 = vector.load %arg12[%c6_61, %c0_62, %c0_63, %c0_64] : memref<16x2x2x128xf32, #tpu.memory_space<vmem>>, vector<1x1x2x128xf32>
    %39 = vector.shape_cast %38 : vector<1x1x2x128xf32> to vector<2x128xf32>
    %c24 = arith.constant 24 : index
    %c0_65 = arith.constant 0 : index
    %40 = vector.load %arg13[%c24, %c0_65] : memref<64x128xf32, #tpu.memory_space<vmem>>, vector<2x128xf32>
    tpu.vector_store %arg13[%c24, %c0_65], %39 {strides = array<i32>} : memref<64x128xf32, #tpu.memory_space<vmem>>, vector<2x128xf32>,
    %c6_66 = arith.constant 6 : index
    %c1_67 = arith.constant 1 : index
    %c0_68 = arith.constant 0 : index
    %c0_69 = arith.constant 0 : index
    %41 = vector.load %arg12[%c6_66, %c1_67, %c0_68, %c0_69] : memref<16x2x2x128xf32, #tpu.memory_space<vmem>>, vector<1x1x2x128xf32>
    %42 = vector.shape_cast %41 : vector<1x1x2x128xf32> to vector<2x128xf32>
    %c26 = arith.constant 26 : index
    %c0_70 = arith.constant 0 : index
    %43 = vector.load %arg13[%c26, %c0_70] : memref<64x128xf32, #tpu.memory_space<vmem>>, vector<2x128xf32>
    tpu.vector_store %arg13[%c26, %c0_70], %42 {strides = array<i32>} : memref<64x128xf32, #tpu.memory_space<vmem>>, vector<2x128xf32>,
    %c7 = arith.constant 7 : index
    %c0_71 = arith.constant 0 : index
    %c0_72 = arith.constant 0 : index
    %c0_73 = arith.constant 0 : index
    %44 = vector.load %arg12[%c7, %c0_71, %c0_72, %c0_73] : memref<16x2x2x128xf32, #tpu.memory_space<vmem>>, vector<1x1x2x128xf32>
    %45 = vector.shape_cast %44 : vector<1x1x2x128xf32> to vector<2x128xf32>
    %c28 = arith.constant 28 : index
    %c0_74 = arith.constant 0 : index
    %46 = vector.load %arg13[%c28, %c0_74] : memref<64x128xf32, #tpu.memory_space<vmem>>, vector<2x128xf32>
    tpu.vector_store %arg13[%c28, %c0_74], %45 {strides = array<i32>} : memref<64x128xf32, #tpu.memory_space<vmem>>, vector<2x128xf32>,
    %c7_75 = arith.constant 7 : index
    %c1_76 = arith.constant 1 : index
    %c0_77 = arith.constant 0 : index
    %c0_78 = arith.constant 0 : index
    %47 = vector.load %arg12[%c7_75, %c1_76, %c0_77, %c0_78] : memref<16x2x2x128xf32, #tpu.memory_space<vmem>>, vector<1x1x2x128xf32>
    %48 = vector.shape_cast %47 : vector<1x1x2x128xf32> to vector<2x128xf32>
    %c30 = arith.constant 30 : index
    %c0_79 = arith.constant 0 : index
    %49 = vector.load %arg13[%c30, %c0_79] : memref<64x128xf32, #tpu.memory_space<vmem>>, vector<2x128xf32>
    tpu.vector_store %arg13[%c30, %c0_79], %48 {strides = array<i32>} : memref<64x128xf32, #tpu.memory_space<vmem>>, vector<2x128xf32>,
    %c8_80 = arith.constant 8 : index
    %c0_81 = arith.constant 0 : index
    %c0_82 = arith.constant 0 : index
    %c0_83 = arith.constant 0 : index
    %50 = vector.load %arg12[%c8_80, %c0_81, %c0_82, %c0_83] : memref<16x2x2x128xf32, #tpu.memory_space<vmem>>, vector<1x1x2x128xf32>
    %51 = vector.shape_cast %50 : vector<1x1x2x128xf32> to vector<2x128xf32>
    %c32 = arith.constant 32 : index
    %c0_84 = arith.constant 0 : index
    %52 = vector.load %arg13[%c32, %c0_84] : memref<64x128xf32, #tpu.memory_space<vmem>>, vector<2x128xf32>
    tpu.vector_store %arg13[%c32, %c0_84], %51 {strides = array<i32>} : memref<64x128xf32, #tpu.memory_space<vmem>>, vector<2x128xf32>,
    %c8_85 = arith.constant 8 : index
    %c1_86 = arith.constant 1 : index
    %c0_87 = arith.constant 0 : index
    %c0_88 = arith.constant 0 : index
    %53 = vector.load %arg12[%c8_85, %c1_86, %c0_87, %c0_88] : memref<16x2x2x128xf32, #tpu.memory_space<vmem>>, vector<1x1x2x128xf32>
    %54 = vector.shape_cast %53 : vector<1x1x2x128xf32> to vector<2x128xf32>
    %c34 = arith.constant 34 : index
    %c0_89 = arith.constant 0 : index
    %55 = vector.load %arg13[%c34, %c0_89] : memref<64x128xf32, #tpu.memory_space<vmem>>, vector<2x128xf32>
    tpu.vector_store %arg13[%c34, %c0_89], %54 {strides = array<i32>} : memref<64x128xf32, #tpu.memory_space<vmem>>, vector<2x128xf32>,
    %c9 = arith.constant 9 : index
    %c0_90 = arith.constant 0 : index
    %c0_91 = arith.constant 0 : index
    %c0_92 = arith.constant 0 : index
    %56 = vector.load %arg12[%c9, %c0_90, %c0_91, %c0_92] : memref<16x2x2x128xf32, #tpu.memory_space<vmem>>, vector<1x1x2x128xf32>
    %57 = vector.shape_cast %56 : vector<1x1x2x128xf32> to vector<2x128xf32>
    %c36 = arith.constant 36 : index
    %c0_93 = arith.constant 0 : index
    %58 = vector.load %arg13[%c36, %c0_93] : memref<64x128xf32, #tpu.memory_space<vmem>>, vector<2x128xf32>
    tpu.vector_store %arg13[%c36, %c0_93], %57 {strides = array<i32>} : memref<64x128xf32, #tpu.memory_space<vmem>>, vector<2x128xf32>,
    %c9_94 = arith.constant 9 : index
    %c1_95 = arith.constant 1 : index
    %c0_96 = arith.constant 0 : index
    %c0_97 = arith.constant 0 : index
    %59 = vector.load %arg12[%c9_94, %c1_95, %c0_96, %c0_97] : memref<16x2x2x128xf32, #tpu.memory_space<vmem>>, vector<1x1x2x128xf32>
    %60 = vector.shape_cast %59 : vector<1x1x2x128xf32> to vector<2x128xf32>
    %c38 = arith.constant 38 : index
    %c0_98 = arith.constant 0 : index
    %61 = vector.load %arg13[%c38, %c0_98] : memref<64x128xf32, #tpu.memory_space<vmem>>, vector<2x128xf32>
    tpu.vector_store %arg13[%c38, %c0_98], %60 {strides = array<i32>} : memref<64x128xf32, #tpu.memory_space<vmem>>, vector<2x128xf32>,
    %c10_99 = arith.constant 10 : index
    %c0_100 = arith.constant 0 : index
    %c0_101 = arith.constant 0 : index
    %c0_102 = arith.constant 0 : index
    %62 = vector.load %arg12[%c10_99, %c0_100, %c0_101, %c0_102] : memref<16x2x2x128xf32, #tpu.memory_space<vmem>>, vector<1x1x2x128xf32>
    %63 = vector.shape_cast %62 : vector<1x1x2x128xf32> to vector<2x128xf32>
    %c40 = arith.constant 40 : index
    %c0_103 = arith.constant 0 : index
    %64 = vector.load %arg13[%c40, %c0_103] : memref<64x128xf32, #tpu.memory_space<vmem>>, vector<2x128xf32>
    tpu.vector_store %arg13[%c40, %c0_103], %63 {strides = array<i32>} : memref<64x128xf32, #tpu.memory_space<vmem>>, vector<2x128xf32>,
    %c10_104 = arith.constant 10 : index
    %c1_105 = arith.constant 1 : index
    %c0_106 = arith.constant 0 : index
    %c0_107 = arith.constant 0 : index
    %65 = vector.load %arg12[%c10_104, %c1_105, %c0_106, %c0_107] : memref<16x2x2x128xf32, #tpu.memory_space<vmem>>, vector<1x1x2x128xf32>
    %66 = vector.shape_cast %65 : vector<1x1x2x128xf32> to vector<2x128xf32>
    %c42 = arith.constant 42 : index
    %c0_108 = arith.constant 0 : index
    %67 = vector.load %arg13[%c42, %c0_108] : memref<64x128xf32, #tpu.memory_space<vmem>>, vector<2x128xf32>
    tpu.vector_store %arg13[%c42, %c0_108], %66 {strides = array<i32>} : memref<64x128xf32, #tpu.memory_space<vmem>>, vector<2x128xf32>,
    %c11 = arith.constant 11 : index
    %c0_109 = arith.constant 0 : index
    %c0_110 = arith.constant 0 : index
    %c0_111 = arith.constant 0 : index
    %68 = vector.load %arg12[%c11, %c0_109, %c0_110, %c0_111] : memref<16x2x2x128xf32, #tpu.memory_space<vmem>>, vector<1x1x2x128xf32>
    %69 = vector.shape_cast %68 : vector<1x1x2x128xf32> to vector<2x128xf32>
    %c44 = arith.constant 44 : index
    %c0_112 = arith.constant 0 : index
    %70 = vector.load %arg13[%c44, %c0_112] : memref<64x128xf32, #tpu.memory_space<vmem>>, vector<2x128xf32>
    tpu.vector_store %arg13[%c44, %c0_112], %69 {strides = array<i32>} : memref<64x128xf32, #tpu.memory_space<vmem>>, vector<2x128xf32>,
    %c11_113 = arith.constant 11 : index
    %c1_114 = arith.constant 1 : index
    %c0_115 = arith.constant 0 : index
    %c0_116 = arith.constant 0 : index
    %71 = vector.load %arg12[%c11_113, %c1_114, %c0_115, %c0_116] : memref<16x2x2x128xf32, #tpu.memory_space<vmem>>, vector<1x1x2x128xf32>
    %72 = vector.shape_cast %71 : vector<1x1x2x128xf32> to vector<2x128xf32>
    %c46 = arith.constant 46 : index
    %c0_117 = arith.constant 0 : index
    %73 = vector.load %arg13[%c46, %c0_117] : memref<64x128xf32, #tpu.memory_space<vmem>>, vector<2x128xf32>
    tpu.vector_store %arg13[%c46, %c0_117], %72 {strides = array<i32>} : memref<64x128xf32, #tpu.memory_space<vmem>>, vector<2x128xf32>,
    %c12_118 = arith.constant 12 : index
    %c0_119 = arith.constant 0 : index
    %c0_120 = arith.constant 0 : index
    %c0_121 = arith.constant 0 : index
    %74 = vector.load %arg12[%c12_118, %c0_119, %c0_120, %c0_121] : memref<16x2x2x128xf32, #tpu.memory_space<vmem>>, vector<1x1x2x128xf32>
    %75 = vector.shape_cast %74 : vector<1x1x2x128xf32> to vector<2x128xf32>
    %c48 = arith.constant 48 : index
    %c0_122 = arith.constant 0 : index
    %76 = vector.load %arg13[%c48, %c0_122] : memref<64x128xf32, #tpu.memory_space<vmem>>, vector<2x128xf32>
    tpu.vector_store %arg13[%c48, %c0_122], %75 {strides = array<i32>} : memref<64x128xf32, #tpu.memory_space<vmem>>, vector<2x128xf32>,
    %c12_123 = arith.constant 12 : index
    %c1_124 = arith.constant 1 : index
    %c0_125 = arith.constant 0 : index
    %c0_126 = arith.constant 0 : index
    %77 = vector.load %arg12[%c12_123, %c1_124, %c0_125, %c0_126] : memref<16x2x2x128xf32, #tpu.memory_space<vmem>>, vector<1x1x2x128xf32>
    %78 = vector.shape_cast %77 : vector<1x1x2x128xf32> to vector<2x128xf32>
    %c50 = arith.constant 50 : index
    %c0_127 = arith.constant 0 : index
    %79 = vector.load %arg13[%c50, %c0_127] : memref<64x128xf32, #tpu.memory_space<vmem>>, vector<2x128xf32>
    tpu.vector_store %arg13[%c50, %c0_127], %78 {strides = array<i32>} : memref<64x128xf32, #tpu.memory_space<vmem>>, vector<2x128xf32>,
    %c13 = arith.constant 13 : index
    %c0_128 = arith.constant 0 : index
    %c0_129 = arith.constant 0 : index
    %c0_130 = arith.constant 0 : index
    %80 = vector.load %arg12[%c13, %c0_128, %c0_129, %c0_130] : memref<16x2x2x128xf32, #tpu.memory_space<vmem>>, vector<1x1x2x128xf32>
    %81 = vector.shape_cast %80 : vector<1x1x2x128xf32> to vector<2x128xf32>
    %c52 = arith.constant 52 : index
    %c0_131 = arith.constant 0 : index
    %82 = vector.load %arg13[%c52, %c0_131] : memref<64x128xf32, #tpu.memory_space<vmem>>, vector<2x128xf32>
    tpu.vector_store %arg13[%c52, %c0_131], %81 {strides = array<i32>} : memref<64x128xf32, #tpu.memory_space<vmem>>, vector<2x128xf32>,
    %c13_132 = arith.constant 13 : index
    %c1_133 = arith.constant 1 : index
    %c0_134 = arith.constant 0 : index
    %c0_135 = arith.constant 0 : index
    %83 = vector.load %arg12[%c13_132, %c1_133, %c0_134, %c0_135] : memref<16x2x2x128xf32, #tpu.memory_space<vmem>>, vector<1x1x2x128xf32>
    %84 = vector.shape_cast %83 : vector<1x1x2x128xf32> to vector<2x128xf32>
    %c54 = arith.constant 54 : index
    %c0_136 = arith.constant 0 : index
    %85 = vector.load %arg13[%c54, %c0_136] : memref<64x128xf32, #tpu.memory_space<vmem>>, vector<2x128xf32>
    tpu.vector_store %arg13[%c54, %c0_136], %84 {strides = array<i32>} : memref<64x128xf32, #tpu.memory_space<vmem>>, vector<2x128xf32>,
    %c14_137 = arith.constant 14 : index
    %c0_138 = arith.constant 0 : index
    %c0_139 = arith.constant 0 : index
    %c0_140 = arith.constant 0 : index
    %86 = vector.load %arg12[%c14_137, %c0_138, %c0_139, %c0_140] : memref<16x2x2x128xf32, #tpu.memory_space<vmem>>, vector<1x1x2x128xf32>
    %87 = vector.shape_cast %86 : vector<1x1x2x128xf32> to vector<2x128xf32>
    %c56 = arith.constant 56 : index
    %c0_141 = arith.constant 0 : index
    %88 = vector.load %arg13[%c56, %c0_141] : memref<64x128xf32, #tpu.memory_space<vmem>>, vector<2x128xf32>
    tpu.vector_store %arg13[%c56, %c0_141], %87 {strides = array<i32>} : memref<64x128xf32, #tpu.memory_space<vmem>>, vector<2x128xf32>,
    %c14_142 = arith.constant 14 : index
    %c1_143 = arith.constant 1 : index
    %c0_144 = arith.constant 0 : index
    %c0_145 = arith.constant 0 : index
    %89 = vector.load %arg12[%c14_142, %c1_143, %c0_144, %c0_145] : memref<16x2x2x128xf32, #tpu.memory_space<vmem>>, vector<1x1x2x128xf32>
    %90 = vector.shape_cast %89 : vector<1x1x2x128xf32> to vector<2x128xf32>
    %c58 = arith.constant 58 : index
    %c0_146 = arith.constant 0 : index
    %91 = vector.load %arg13[%c58, %c0_146] : memref<64x128xf32, #tpu.memory_space<vmem>>, vector<2x128xf32>
    tpu.vector_store %arg13[%c58, %c0_146], %90 {strides = array<i32>} : memref<64x128xf32, #tpu.memory_space<vmem>>, vector<2x128xf32>,
    %c15 = arith.constant 15 : index
    %c0_147 = arith.constant 0 : index
    %c0_148 = arith.constant 0 : index
    %c0_149 = arith.constant 0 : index
    %92 = vector.load %arg12[%c15, %c0_147, %c0_148, %c0_149] : memref<16x2x2x128xf32, #tpu.memory_space<vmem>>, vector<1x1x2x128xf32>
    %93 = vector.shape_cast %92 : vector<1x1x2x128xf32> to vector<2x128xf32>
    %c60 = arith.constant 60 : index
    %c0_150 = arith.constant 0 : index
    %94 = vector.load %arg13[%c60, %c0_150] : memref<64x128xf32, #tpu.memory_space<vmem>>, vector<2x128xf32>
    tpu.vector_store %arg13[%c60, %c0_150], %93 {strides = array<i32>} : memref<64x128xf32, #tpu.memory_space<vmem>>, vector<2x128xf32>,
    %c15_151 = arith.constant 15 : index
    %c1_152 = arith.constant 1 : index
    %c0_153 = arith.constant 0 : index
    %c0_154 = arith.constant 0 : index
    %95 = vector.load %arg12[%c15_151, %c1_152, %c0_153, %c0_154] : memref<16x2x2x128xf32, #tpu.memory_space<vmem>>, vector<1x1x2x128xf32>
    %96 = vector.shape_cast %95 : vector<1x1x2x128xf32> to vector<2x128xf32>
    %c62 = arith.constant 62 : index
    %c0_155 = arith.constant 0 : index
    %97 = vector.load %arg13[%c62, %c0_155] : memref<64x128xf32, #tpu.memory_space<vmem>>, vector<2x128xf32>
    tpu.vector_store %arg13[%c62, %c0_155], %96 {strides = array<i32>} : memref<64x128xf32, #tpu.memory_space<vmem>>, vector<2x128xf32>,
    %c0_156 = arith.constant 0 : index
    %c0_157 = arith.constant 0 : index
    %98 = vector.load %arg13[%c0_156, %c0_157] : memref<64x128xf32, #tpu.memory_space<vmem>>, vector<64x128xf32>
    %c0_158 = arith.constant 0 : index
    %c0_159 = arith.constant 0 : index
    %99 = vector.load %arg6[%c0_158, %c0_159] : memref<32x64xf32, #tpu.memory_space<vmem>>, vector<32x64xf32>
    %cst = arith.constant dense<0.000000e+00> : vector<32x128xf32>
    %100 = tpu.matmul %99, %98, %cst {dimension_numbers = #tpu.dot_dimension_numbers<[1], [0], [0], [1], [0, 0, 1, 1], [], []>} : vector<32x64xf32>, vector<64x128xf32>, vector<32x128xf32> -> vector<32x128xf32>
    %c0_160 = arith.constant 0 : index
    %c0_161 = arith.constant 0 : index
    %101 = vector.load %arg7[%c0_160, %c0_161] : memref<32x1xf32, #tpu.memory_space<vmem>>, vector<32x1xf32>
    %102 = vector.broadcast %101 : vector<32x1xf32> to vector<32x128xf32>
    %103 = arith.addf %100, %102 : vector<32x128xf32>
    %cst_162 = arith.constant 0.000000e+00 : f32
    %104 = vector.broadcast %cst_162 : f32 to vector<32x128xf32>
    %105 = arith.maximumf %103, %104 : vector<32x128xf32>
    %c0_163 = arith.constant 0 : index
    %c0_164 = arith.constant 0 : index
    %106 = vector.load %arg8[%c0_163, %c0_164] : memref<16x32xf32, #tpu.memory_space<vmem>>, vector<16x32xf32>
    %cst_165 = arith.constant dense<0.000000e+00> : vector<16x128xf32>
    %107 = tpu.matmul %106, %105, %cst_165 {dimension_numbers = #tpu.dot_dimension_numbers<[1], [0], [0], [1], [0, 0, 1, 1], [], []>} : vector<16x32xf32>, vector<32x128xf32>, vector<16x128xf32> -> vector<16x128xf32>
    %c0_166 = arith.constant 0 : index
    %c0_167 = arith.constant 0 : index
    %108 = vector.load %arg9[%c0_166, %c0_167] : memref<16x1xf32, #tpu.memory_space<vmem>>, vector<16x1xf32>
    %109 = vector.broadcast %108 : vector<16x1xf32> to vector<16x128xf32>
    %110 = arith.addf %107, %109 : vector<16x128xf32>
    %111 = math.tanh %110 : vector<16x128xf32>
    %c0_168 = arith.constant 0 : index
    %c0_169 = arith.constant 0 : index
    %112 = vector.load %arg10[%c0_168, %c0_169] : memref<16x128xf32, #tpu.memory_space<vmem>>, vector<16x128xf32>
    tpu.vector_store %arg10[%c0_168, %c0_169], %111 {strides = array<i32>} : memref<16x128xf32, #tpu.memory_space<vmem>>, vector<16x128xf32>,
    return
  }
  func.func @transform_0(%arg0: i32) -> (i32, i32, i32) {
    %c0_i32 = arith.constant 0 : i32
    %c0_i32_0 = arith.constant 0 : i32
    %c0_i32_1 = arith.constant 0 : i32
    return %c0_i32, %c0_i32_0, %arg0 : i32, i32, i32
  }
  func.func @transform_1(%arg0: i32) -> i32 {
    %c0_i32 = arith.constant 0 : i32
    %c0_i32_0 = arith.constant 0 : i32
    return %c0_i32 : i32
  }
  func.func @transform_2(%arg0: i32) -> i32 {
    %c0_i32 = arith.constant 0 : i32
    %c0_i32_0 = arith.constant 0 : i32
    return %c0_i32 : i32
  }
  func.func @transform_3(%arg0: i32) -> i32 {
    %c0_i32 = arith.constant 0 : i32
    %c0_i32_0 = arith.constant 0 : i32
    return %c0_i32 : i32
  }
  func.func @transform_4(%arg0: i32) -> i32 {
    %c0_i32 = arith.constant 0 : i32
    %c0_i32_0 = arith.constant 0 : i32
    return %c0_i32 : i32
  }
  func.func @transform_5(%arg0: i32) -> (i32, i32) {
    %c0_i32 = arith.constant 0 : i32
    %c0_i32_0 = arith.constant 0 : i32
    %c0_i32_1 = arith.constant 0 : i32
    return %c0_i32, %c0_i32_0 : i32, i32
  }
  func.func @transform_6(%arg0: i32) -> (i32, i32) {
    %c0_i32 = arith.constant 0 : i32
    %c0_i32_0 = arith.constant 0 : i32
    %c0_i32_1 = arith.constant 0 : i32
    return %c0_i32, %c0_i32_0 : i32, i32
  }
  func.func @transform_7(%arg0: i32) -> (i32, i32) {
    %c0_i32 = arith.constant 0 : i32
    %c0_i32_0 = arith.constant 0 : i32
    %c0_i32_1 = arith.constant 0 : i32
    return %c0_i32, %c0_i32_0 : i32, i32
  }
  func.func @transform_8(%arg0: i32) -> (i32, i32) {
    %c0_i32 = arith.constant 0 : i32
    %c0_i32_0 = arith.constant 0 : i32
    %c0_i32_1 = arith.constant 0 : i32
    return %c0_i32, %c0_i32_0 : i32, i32
  }
  func.func @transform_9(%arg0: i32) -> (i32, i32) {
    %c0_i32 = arith.constant 0 : i32
    %c0_i32_0 = arith.constant 0 : i32
    return %c0_i32, %arg0 : i32, i32
  }
}

</mosaic_0001>

<llo_original>
// kernel: tps_model_forward.1
$region0: #{tps_model_forward.1}
  #allocation0 [shape = 'u32[]', space=smem, size = 0x4, offset = 0x4, fixed_abs, tag = 'smem constant byte address 0x4 - core index']
  #allocation1 [shape = 'u32[144,128]{1,0:T(1,128)}', space=vmem, size = 0x12000, scoped, tag = 'internal scratch']
  #allocation2 [shape = 'f32[8,6,6,128]{3,2,1,0:T(8,128)}', space=vmem, size = 0x30000, scoped, tag = 'scratch operand']
  #allocation3 [shape = 'f32[16,2,2,128]{3,2,1,0:T(2,128)}', space=vmem, size = 0x8000, scoped, tag = 'scratch operand']
  #allocation4 [shape = 'f32[64,128]{1,0:T(8,128)}', space=vmem, size = 0x8000, scoped, tag = 'scratch operand']
  %s0 = inlined_call_operand.vmem [shape: f32[16,16,256], index: 0, kind: input, shape index: {}]
  %s1 = inlined_call_operand.vmem [shape: f32[200], index: 1, kind: input, shape index: {}]
  %s2 = inlined_call_operand.vmem [shape: f32[8], index: 2, kind: input, shape index: {}]
  %s3 = inlined_call_operand.vmem [shape: f32[1152], index: 3, kind: input, shape index: {}]
  %s4 = inlined_call_operand.vmem [shape: f32[16], index: 4, kind: input, shape index: {}]
  %s5 = inlined_call_operand.vmem [shape: f32[32,64], index: 5, kind: input, shape index: {}]
  %s6 = inlined_call_operand.vmem [shape: f32[32,1], index: 6, kind: input, shape index: {}]
  %s7 = inlined_call_operand.vmem [shape: f32[16,32], index: 7, kind: input, shape index: {}]
  %s8 = inlined_call_operand.vmem [shape: f32[16,1], index: 8, kind: input, shape index: {}]
  %s9 = inlined_call_operand.vmem [shape: f32[16,256], index: 9, kind: output, shape index: {}]
  %s10 = sld [smem:[#allocation0]]
  $region171: #{tps_model_forward.1} parent=0
    _
  %s12 = ssub.s32 1, %s10
  %s13 = scalar_select 0, %s12, %s10
  $region1: #{tps_model_forward.1} parent=0
    #allocation5 [shape = 'u8[262144]{0}', space=vmem, size = 0x40000, scoped, tag = 'input window, operand 0']
    #allocation6 [shape = 'u8[1024]{0}', space=smem, size = 0x400, scoped, tag = 'input window, operand 1, single buffered']
    #allocation7 [shape = 's32[2]{0}', space=sflag, size = 0x8, scoped, tag = 'scoped memory for tps_model_forward.1']
    #allocation8 [shape = 'u8[512]{0}', space=smem, size = 0x200, scoped, tag = 'input window, operand 2, single buffered']
    #allocation9 [shape = 's32[1]{0}', space=sflag, size = 0x4, scoped, tag = 'scoped memory for tps_model_forward.1']
    #allocation10 [shape = 'u8[4608]{0}', space=smem, size = 0x1200, scoped, tag = 'input window, operand 3, single buffered']
    #allocation11 [shape = 'u8[512]{0}', space=smem, size = 0x200, scoped, tag = 'input window, operand 4, single buffered']
    #allocation12 [shape = 's32[1]{0}', space=sflag, size = 0x4, scoped, tag = 'scoped memory for tps_model_forward.1']
    #allocation13 [shape = 'u8[16384]{0}', space=vmem, size = 0x4000, scoped, tag = 'output window, operand 0']
    %14 = vsyncpa [#allocation7], 0
    %15 = vsyncpa [#allocation9], 0
    %16 = vsyncpa [#allocation12], 0
    loop: start=0, step=1, limit=4
    $region2: #{tps_model_forward.1} parent=1 // loop_pre_header
      _
    $region3: #{tps_model_forward.1} parent=1 // loop_header
      %s18 = sphi 0, %s22
      %p19 = scmp.ge.s32.totalorder %s18, 4
      %s28 = sphi 0, %s30
      %s31 = sphi 0, %s28
      %s32 = sphi 0, %s31
      %s48 = sphi 0, %s32
      %s52 = sphi 0, %s52
      %s54 = sphi 0, %s52
      %s55 = sphi 0, %s54
      %s69 = sphi 0, %s55
      %s73 = sphi 0, %s73
      %s75 = sphi 0, %s73
      %s76 = sphi 0, %s75
      %s90 = sphi 0, %s76
      %s94 = sphi 0, %s94
      %s96 = sphi 0, %s94
      %s97 = sphi 0, %s96
      %s111 = sphi 0, %s97
      %s115 = sphi 0, %s115
      %s117 = sphi 0, %s115
      %s118 = sphi 0, %s117
      %s132 = sphi 0, %s118
      %s136 = sphi 0, %s136
      %s138 = sphi 0, %s136
      %s139 = sphi 0, %s138
      %s153 = sphi 0, %s139
      %s157 = sphi 0, %s157
      %s159 = sphi 0, %s157
      %s160 = sphi 0, %s159
      %s174 = sphi 0, %s160
      %s178 = sphi 0, %s178
      %s180 = sphi 0, %s178
      %s181 = sphi 0, %s180
      %s195 = sphi 0, %s181
      %s199 = sphi 0, %s199
      %s201 = sphi 0, %s199
      %s202 = sphi 0, %s201
      %s216 = sphi 0, %s202
      %s222 = sphi 0, %s224
      %s225 = sphi 0, %s222
      %s226 = sphi 0, %s225
      %s242 = sphi 0, %s226
    $region4: #{tps_model_forward.1} parent=1 // loop_header_branch
      %21 = sbr.rel (%p19) target = $region8
    $region5: #{tps_model_forward.1} parent=1 // loop_body
      %s23 = ssub.s32 %s18, 1
      %s24 = ssub.s32 %s18, 2
      %s25 = sadd.s32 %s18, 1
      %s26 = ssub.s32 %s18, %s25
      %p27 = scmp.eq.s32.totalorder %s26, 0
      %s29 = sadd.s32 %s28, 1
      %s30 = scalar_select %p27, %s28, %s29
      %p33 = pneg %p27
      %p34 = scmp.eq.s32.totalorder %s18, 1
      %p35 = por %p33, %p34
      %p36 = scmp.ne.s32.totalorder %s28, %s31
      %p37 = scmp.eq.s32.totalorder %s18, 0
      %p38 = por %p36, %p37
      %p39 = scmp.ne.s32.totalorder %s28, %s31
      %p40 = scmp.eq.s32.totalorder %s23, 1
      %p41 = por %p39, %p40
      %p42 = scmp.ne.s32.totalorder %s31, %s32
      %p43 = scmp.eq.s32.totalorder %s23, 0
      %p44 = por %p42, %p43
      %p45 = scmp.ne.s32.totalorder %s31, %s32
      %p46 = scmp.eq.s32.totalorder %s24, 1
      %p47 = por %p45, %p46
      %p49 = scmp.ne.s32.totalorder %s32, %s48
      %p50 = scmp.eq.s32.totalorder %s24, 0
      %p51 = por %p49, %p50
      %s53 = sadd.s32 %s52, 1
      %p56 = scmp.eq.s32.totalorder %s18, 1
      %p57 = scmp.ne.s32.totalorder %s52, %s54
      %p58 = scmp.eq.s32.totalorder %s18, 0
      %p59 = por %p57, %p58
      %p60 = scmp.ne.s32.totalorder %s52, %s54
      %p61 = scmp.eq.s32.totalorder %s23, 1
      %p62 = por %p60, %p61
      %p63 = scmp.ne.s32.totalorder %s54, %s55
      %p64 = scmp.eq.s32.totalorder %s23, 0
      %p65 = por %p63, %p64
      %p66 = scmp.ne.s32.totalorder %s54, %s55
      %p67 = scmp.eq.s32.totalorder %s24, 1
      %p68 = por %p66, %p67
      %p70 = scmp.ne.s32.totalorder %s55, %s69
      %p71 = scmp.eq.s32.totalorder %s24, 0
      %p72 = por %p70, %p71
      %s74 = sadd.s32 %s73, 1
      %p77 = scmp.eq.s32.totalorder %s18, 1
      %p78 = scmp.ne.s32.totalorder %s73, %s75
      %p79 = scmp.eq.s32.totalorder %s18, 0
      %p80 = por %p78, %p79
      %p81 = scmp.ne.s32.totalorder %s73, %s75
      %p82 = scmp.eq.s32.totalorder %s23, 1
      %p83 = por %p81, %p82
      %p84 = scmp.ne.s32.totalorder %s75, %s76
      %p85 = scmp.eq.s32.totalorder %s23, 0
      %p86 = por %p84, %p85
      %p87 = scmp.ne.s32.totalorder %s75, %s76
      %p88 = scmp.eq.s32.totalorder %s24, 1
      %p89 = por %p87, %p88
      %p91 = scmp.ne.s32.totalorder %s76, %s90
      %p92 = scmp.eq.s32.totalorder %s24, 0
      %p93 = por %p91, %p92
      %s95 = sadd.s32 %s94, 1
      %p98 = scmp.eq.s32.totalorder %s18, 1
      %p99 = scmp.ne.s32.totalorder %s94, %s96
      %p100 = scmp.eq.s32.totalorder %s18, 0
      %p101 = por %p99, %p100
      %p102 = scmp.ne.s32.totalorder %s94, %s96
      %p103 = scmp.eq.s32.totalorder %s23, 1
      %p104 = por %p102, %p103
      %p105 = scmp.ne.s32.totalorder %s96, %s97
      %p106 = scmp.eq.s32.totalorder %s23, 0
      %p107 = por %p105, %p106
      %p108 = scmp.ne.s32.totalorder %s96, %s97
      %p109 = scmp.eq.s32.totalorder %s24, 1
      %p110 = por %p108, %p109
      %p112 = scmp.ne.s32.totalorder %s97, %s111
      %p113 = scmp.eq.s32.totalorder %s24, 0
      %p114 = por %p112, %p113
      %s116 = sadd.s32 %s115, 1
      %p119 = scmp.eq.s32.totalorder %s18, 1
      %p120 = scmp.ne.s32.totalorder %s115, %s117
      %p121 = scmp.eq.s32.totalorder %s18, 0
      %p122 = por %p120, %p121
      %p123 = scmp.ne.s32.totalorder %s115, %s117
      %p124 = scmp.eq.s32.totalorder %s23, 1
      %p125 = por %p123, %p124
      %p126 = scmp.ne.s32.totalorder %s117, %s118
      %p127 = scmp.eq.s32.totalorder %s23, 0
      %p128 = por %p126, %p127
      %p129 = scmp.ne.s32.totalorder %s117, %s118
      %p130 = scmp.eq.s32.totalorder %s24, 1
      %p131 = por %p129, %p130
      %p133 = scmp.ne.s32.totalorder %s118, %s132
      %p134 = scmp.eq.s32.totalorder %s24, 0
      %p135 = por %p133, %p134
      %s137 = sadd.s32 %s136, 1
      %p140 = scmp.eq.s32.totalorder %s18, 1
      %p141 = scmp.ne.s32.totalorder %s136, %s138
      %p142 = scmp.eq.s32.totalorder %s18, 0
      %p143 = por %p141, %p142
      %p144 = scmp.ne.s32.totalorder %s136, %s138
      %p145 = scmp.eq.s32.totalorder %s23, 1
      %p146 = por %p144, %p145
      %p147 = scmp.ne.s32.totalorder %s138, %s139
      %p148 = scmp.eq.s32.totalorder %s23, 0
      %p149 = por %p147, %p148
      %p150 = scmp.ne.s32.totalorder %s138, %s139
      %p151 = scmp.eq.s32.totalorder %s24, 1
      %p152 = por %p150, %p151
      %p154 = scmp.ne.s32.totalorder %s139, %s153
      %p155 = scmp.eq.s32.totalorder %s24, 0
      %p156 = por %p154, %p155
      %s158 = sadd.s32 %s157, 1
      %p161 = scmp.eq.s32.totalorder %s18, 1
      %p162 = scmp.ne.s32.totalorder %s157, %s159
      %p163 = scmp.eq.s32.totalorder %s18, 0
      %p164 = por %p162, %p163
      %p165 = scmp.ne.s32.totalorder %s157, %s159
      %p166 = scmp.eq.s32.totalorder %s23, 1
      %p167 = por %p165, %p166
      %p168 = scmp.ne.s32.totalorder %s159, %s160
      %p169 = scmp.eq.s32.totalorder %s23, 0
      %p170 = por %p168, %p169
      %p171 = scmp.ne.s32.totalorder %s159, %s160
      %p172 = scmp.eq.s32.totalorder %s24, 1
      %p173 = por %p171, %p172
      %p175 = scmp.ne.s32.totalorder %s160, %s174
      %p176 = scmp.eq.s32.totalorder %s24, 0
      %p177 = por %p175, %p176
      %s179 = sadd.s32 %s178, 1
      %p182 = scmp.eq.s32.totalorder %s18, 1
      %p183 = scmp.ne.s32.totalorder %s178, %s180
      %p184 = scmp.eq.s32.totalorder %s18, 0
      %p185 = por %p183, %p184
      %p186 = scmp.ne.s32.totalorder %s178, %s180
      %p187 = scmp.eq.s32.totalorder %s23, 1
      %p188 = por %p186, %p187
      %p189 = scmp.ne.s32.totalorder %s180, %s181
      %p190 = scmp.eq.s32.totalorder %s23, 0
      %p191 = por %p189, %p190
      %p192 = scmp.ne.s32.totalorder %s180, %s181
      %p193 = scmp.eq.s32.totalorder %s24, 1
      %p194 = por %p192, %p193
      %p196 = scmp.ne.s32.totalorder %s181, %s195
      %p197 = scmp.eq.s32.totalorder %s24, 0
      %p198 = por %p196, %p197
      %s200 = sadd.s32 %s199, 1
      %p203 = scmp.eq.s32.totalorder %s18, 1
      %p204 = scmp.ne.s32.totalorder %s199, %s201
      %p205 = scmp.eq.s32.totalorder %s18, 0
      %p206 = por %p204, %p205
      %p207 = scmp.ne.s32.totalorder %s199, %s201
      %p208 = scmp.eq.s32.totalorder %s23, 1
      %p209 = por %p207, %p208
      %p210 = scmp.ne.s32.totalorder %s201, %s202
      %p211 = scmp.eq.s32.totalorder %s23, 0
      %p212 = por %p210, %p211
      %p213 = scmp.ne.s32.totalorder %s201, %s202
      %p214 = scmp.eq.s32.totalorder %s24, 1
      %p215 = por %p213, %p214
      %p217 = scmp.ne.s32.totalorder %s202, %s216
      %p218 = scmp.eq.s32.totalorder %s24, 0
      %p219 = por %p217, %p218
      %s220 = ssub.s32 %s18, %s25
      %p221 = scmp.eq.s32.totalorder %s220, 0
      %s223 = sadd.s32 %s222, 1
      %s224 = scalar_select %p221, %s222, %s223
      %p227 = pneg %p221
      %p228 = scmp.eq.s32.totalorder %s18, 1
      %p229 = por %p227, %p228
      %p230 = scmp.ne.s32.totalorder %s222, %s225
      %p231 = scmp.eq.s32.totalorder %s18, 0
      %p232 = por %p230, %p231
      %p233 = scmp.ne.s32.totalorder %s222, %s225
      %p234 = scmp.eq.s32.totalorder %s23, 1
      %p235 = por %p233, %p234
      %p236 = scmp.ne.s32.totalorder %s225, %s226
      %p237 = scmp.eq.s32.totalorder %s23, 0
      %p238 = por %p236, %p237
      %p239 = scmp.ne.s32.totalorder %s225, %s226
      %p240 = scmp.eq.s32.totalorder %s24, 1
      %p241 = por %p239, %p240
      %p243 = scmp.ne.s32.totalorder %s226, %s242
      %p244 = scmp.eq.s32.totalorder %s24, 0
      %p245 = por %p243, %p244
      %p246 = scmp.le.s32.totalorder 1, %s18
      %p247 = scmp.lt.s32.totalorder %s18, 3
      %p248 = pnand %p246, %p247
      %p249 = pneg %p248
      // Predicated region
      $region9: #{tps_model_forward.1} parent=5 // pred_check
        _
      $region10: #{tps_model_forward.1} parent=5 // pred_check_branch
        %251 = sbr.rel (%p248) target = $region12
      $region11: #{tps_model_forward.1} parent=5 // pred_region
        %s252 = ssub.s32 %s18, 1
        // Predicated region
        $region13: #{tps_model_forward.1} parent=11 // pred_check
          %p253 = pneg %p65
        $region14: #{tps_model_forward.1} parent=11 // pred_check_branch
          %255 = sbr.rel (%p253) target = $region16
        $region15: #{tps_model_forward.1} parent=11 // pred_region
          %s257 = ssub.s32 32, 32
          %258 = vsyncadd [#allocation7], %s257
          %s260 = sshll.u32 %s1, 4
          %s261 = int_to_ptr.vmem [resolvable:$true] %s260
          %263 = dma.vmem_to_smem %s261, 32, [#allocation6], [#allocation7]
        $region16: #{tps_model_forward.1} parent=11 // pred_fallthru
          _
        // Predicated region
        $region17: #{tps_model_forward.1} parent=11 // pred_check
          %p264 = pneg %p86
        $region18: #{tps_model_forward.1} parent=11 // pred_check_branch
          %266 = sbr.rel (%p264) target = $region20
        $region19: #{tps_model_forward.1} parent=11 // pred_region
          %s268 = ssub.s32 16, 16
          %269 = vsyncadd [#allocation9], %s268
          %s271 = sshll.u32 %s2, 4
          %s272 = int_to_ptr.vmem [resolvable:$true] %s271
          %274 = dma.vmem_to_smem %s272, 16, [#allocation8], [#allocation9]
        $region20: #{tps_model_forward.1} parent=11 // pred_fallthru
          _
        // Predicated region
        $region21: #{tps_model_forward.1} parent=11 // pred_check
          %p275 = pneg %p107
        $region22: #{tps_model_forward.1} parent=11 // pred_check_branch
          %277 = sbr.rel (%p275) target = $region24
        $region23: #{tps_model_forward.1} parent=11 // pred_region
          %s279 = ssub.s32 144, 144
          %280 = vsyncadd [#allocation9], %s279
          %s282 = sshll.u32 %s3, 4
          %s283 = int_to_ptr.vmem [resolvable:$true] %s282
          %285 = dma.vmem_to_smem %s283, 144, [#allocation10], [#allocation9]
        $region24: #{tps_model_forward.1} parent=11 // pred_fallthru
          _
        // Predicated region
        $region25: #{tps_model_forward.1} parent=11 // pred_check
          %p286 = pneg %p128
        $region26: #{tps_model_forward.1} parent=11 // pred_check_branch
          %288 = sbr.rel (%p286) target = $region28
        $region27: #{tps_model_forward.1} parent=11 // pred_region
          %s290 = ssub.s32 16, 16
          %291 = vsyncadd [#allocation12], %s290
          %s293 = sshll.u32 %s4, 4
          %s294 = int_to_ptr.vmem [resolvable:$true] %s293
          %296 = dma.vmem_to_smem %s294, 16, [#allocation11], [#allocation12]
        $region28: #{tps_model_forward.1} parent=11 // pred_fallthru
          _
        // Predicated region
        $region29: #{tps_model_forward.1} parent=11 // pred_check
          %p297 = pneg %p149
        $region30: #{tps_model_forward.1} parent=11 // pred_check_branch
          %299 = sbr.rel (%p297) target = $region32
        $region31: #{tps_model_forward.1} parent=11 // pred_region
          _
        $region32: #{tps_model_forward.1} parent=11 // pred_fallthru
          _
        // Predicated region
        $region33: #{tps_model_forward.1} parent=11 // pred_check
          %p300 = pneg %p170
        $region34: #{tps_model_forward.1} parent=11 // pred_check_branch
          %302 = sbr.rel (%p300) target = $region36
        $region35: #{tps_model_forward.1} parent=11 // pred_region
          _
        $region36: #{tps_model_forward.1} parent=11 // pred_fallthru
          _
        // Predicated region
        $region37: #{tps_model_forward.1} parent=11 // pred_check
          %p303 = pneg %p191
        $region38: #{tps_model_forward.1} parent=11 // pred_check_branch
          %305 = sbr.rel (%p303) target = $region40
        $region39: #{tps_model_forward.1} parent=11 // pred_region
          _
        $region40: #{tps_model_forward.1} parent=11 // pred_fallthru
          _
        // Predicated region
        $region41: #{tps_model_forward.1} parent=11 // pred_check
          %p306 = pneg %p212
        $region42: #{tps_model_forward.1} parent=11 // pred_check_branch
          %308 = sbr.rel (%p306) target = $region44
        $region43: #{tps_model_forward.1} parent=11 // pred_region
          _
        $region44: #{tps_model_forward.1} parent=11 // pred_fallthru
          _
      $region12: #{tps_model_forward.1} parent=5 // pred_fallthru
        _
      %p309 = scmp.lt.s32.totalorder %s18, 2
      // Predicated region
      $region45: #{tps_model_forward.1} parent=5 // pred_check
        %p310 = pneg %p309
      $region46: #{tps_model_forward.1} parent=5 // pred_check_branch
        %312 = sbr.rel (%p310) target = $region48
      $region47: #{tps_model_forward.1} parent=5 // pred_region
        // Predicated region
        $region49: #{tps_model_forward.1} parent=47 // pred_check
          %p313 = pneg %p38
        $region50: #{tps_model_forward.1} parent=47 // pred_check_branch
          %315 = sbr.rel (%p313) target = $region52
        $region51: #{tps_model_forward.1} parent=47 // pred_region
          %s316 = sand.u32 %s28, 1
          %s317 = sand.u32 %s28, 1
          %s318 = smul.addr %s317, 256
          %s319 = scalar_lea.vmem [#allocation5], %s318
          %s320 = smul.addr %s18, 8
          %s321 = scalar_lea.vmem %s0, %s320
          // Predicated region
          $region53: #{tps_model_forward.1} parent=51 // pred_check
            _
          $region54: #{tps_model_forward.1} parent=51 // pred_check_branch
            %323 = sbr.rel (0) target = $region56
          $region55: #{tps_model_forward.1} parent=51 // pred_region
            // Predicated region
            $region57: #{tps_model_forward.1} parent=55 // pred_check
              _
            $region58: #{tps_model_forward.1} parent=55 // pred_check_branch
              %325 = sbr.rel (0) target = $region60
            $region59: #{tps_model_forward.1} parent=55 // pred_region
              // Predicated region
              $region72: #{tps_model_forward.1} parent=59 // pred_check
                _
              $region73: #{tps_model_forward.1} parent=59 // pred_check_branch
                %402 = sbr.rel (0) target = $region75
              $region74: #{tps_model_forward.1} parent=59 // pred_region
                loop: start=0, step=1, limit=1
                $region76: #{tps_model_forward.1} parent=74 // loop_pre_header
                  _
                $region77: #{tps_model_forward.1} parent=74 // loop_header
                  %s404 = sphi 0, %s408
                  %p405 = scmp.ge.s32.totalorder %s404, 1
                  %s409 = sphi %s321, %s321
                  %s410 = sphi %s319, %s319
                $region78: #{tps_model_forward.1} parent=74 // loop_header_branch
                  %407 = sbr.rel (%p405) target = $region82
                $region79: #{tps_model_forward.1} parent=74 // loop_body
                  %v411 = vld [vmem:[%s409] sm:$0xff]
                  %412 = vst [vmem:[%s410] sm:$0xff] %v411
                  %v413 = vld [vmem:[%s409 + $0x10] sm:$0xff]
                  %414 = vst [vmem:[%s410 + $0x8] sm:$0xff] %v413
                  %v415 = vld [vmem:[%s409 + $0x20] sm:$0xff]
                  %416 = vst [vmem:[%s410 + $0x10] sm:$0xff] %v415
                  %v417 = vld [vmem:[%s409 + $0x30] sm:$0xff]
                  %418 = vst [vmem:[%s410 + $0x18] sm:$0xff] %v417
                  %v419 = vld [vmem:[%s409 + $0x40] sm:$0xff]
                  %420 = vst [vmem:[%s410 + $0x20] sm:$0xff] %v419
                  %v421 = vld [vmem:[%s409 + $0x50] sm:$0xff]
                  %422 = vst [vmem:[%s410 + $0x28] sm:$0xff] %v421
                  %v423 = vld [vmem:[%s409 + $0x60] sm:$0xff]
                  %424 = vst [vmem:[%s410 + $0x30] sm:$0xff] %v423
                  %v425 = vld [vmem:[%s409 + $0x70] sm:$0xff]
                  %426 = vst [vmem:[%s410 + $0x38] sm:$0xff] %v425
                  %v427 = vld [vmem:[%s409 + $0x80] sm:$0xff]
                  %428 = vst [vmem:[%s410 + $0x40] sm:$0xff] %v427
                  %v429 = vld [vmem:[%s409 + $0x90] sm:$0xff]
                  %430 = vst [vmem:[%s410 + $0x48] sm:$0xff] %v429
                  %v431 = vld [vmem:[%s409 + $0xa0] sm:$0xff]
                  %432 = vst [vmem:[%s410 + $0x50] sm:$0xff] %v431
                  %v433 = vld [vmem:[%s409 + $0xb0] sm:$0xff]
                  %434 = vst [vmem:[%s410 + $0x58] sm:$0xff] %v433
                  %v435 = vld [vmem:[%s409 + $0xc0] sm:$0xff]
                  %436 = vst [vmem:[%s410 + $0x60] sm:$0xff] %v435
                  %v437 = vld [vmem:[%s409 + $0xd0] sm:$0xff]
                  %438 = vst [vmem:[%s410 + $0x68] sm:$0xff] %v437
                  %v439 = vld [vmem:[%s409 + $0xe0] sm:$0xff]
                  %440 = vst [vmem:[%s410 + $0x70] sm:$0xff] %v439
                  %v441 = vld [vmem:[%s409 + $0xf0] sm:$0xff]
                  %442 = vst [vmem:[%s410 + $0x78] sm:$0xff] %v441
                  %v443 = vld [vmem:[%s409 + $0x100] sm:$0xff]
                  %444 = vst [vmem:[%s410 + $0x80] sm:$0xff] %v443
                  %v445 = vld [vmem:[%s409 + $0x110] sm:$0xff]
                  %446 = vst [vmem:[%s410 + $0x88] sm:$0xff] %v445
                  %v447 = vld [vmem:[%s409 + $0x120] sm:$0xff]
                  %448 = vst [vmem:[%s410 + $0x90] sm:$0xff] %v447
                  %v449 = vld [vmem:[%s409 + $0x130] sm:$0xff]
                  %450 = vst [vmem:[%s410 + $0x98] sm:$0xff] %v449
                  %v451 = vld [vmem:[%s409 + $0x140] sm:$0xff]
                  %452 = vst [vmem:[%s410 + $0xa0] sm:$0xff] %v451
                  %v453 = vld [vmem:[%s409 + $0x150] sm:$0xff]
                  %454 = vst [vmem:[%s410 + $0xa8] sm:$0xff] %v453
                  %v455 = vld [vmem:[%s409 + $0x160] sm:$0xff]
                  %456 = vst [vmem:[%s410 + $0xb0] sm:$0xff] %v455
                  %v457 = vld [vmem:[%s409 + $0x170] sm:$0xff]
                  %458 = vst [vmem:[%s410 + $0xb8] sm:$0xff] %v457
                  %v459 = vld [vmem:[%s409 + $0x180] sm:$0xff]
                  %460 = vst [vmem:[%s410 + $0xc0] sm:$0xff] %v459
                  %v461 = vld [vmem:[%s409 + $0x190] sm:$0xff]
                  %462 = vst [vmem:[%s410 + $0xc8] sm:$0xff] %v461
                  %v463 = vld [vmem:[%s409 + $0x1a0] sm:$0xff]
                  %464 = vst [vmem:[%s410 + $0xd0] sm:$0xff] %v463
                  %v465 = vld [vmem:[%s409 + $0x1b0] sm:$0xff]
                  %466 = vst [vmem:[%s410 + $0xd8] sm:$0xff] %v465
                  %v467 = vld [vmem:[%s409 + $0x1c0] sm:$0xff]
                  %468 = vst [vmem:[%s410 + $0xe0] sm:$0xff] %v467
                  %v469 = vld [vmem:[%s409 + $0x1d0] sm:$0xff]
                  %470 = vst [vmem:[%s410 + $0xe8] sm:$0xff] %v469
                  %v471 = vld [vmem:[%s409 + $0x1e0] sm:$0xff]
                  %472 = vst [vmem:[%s410 + $0xf0] sm:$0xff] %v471
                  %v473 = vld [vmem:[%s409 + $0x1f0] sm:$0xff]
                  %474 = vst [vmem:[%s410 + $0xf8] sm:$0xff] %v473
                $region80: #{tps_model_forward.1} parent=74 // loop_footer
                  %s408 = sadd.s32 1, %s404
                $region81: #{tps_model_forward.1} parent=74 // loop_footer_branch
                  %403 = sbr.rel target = $region77
                $region82: #{tps_model_forward.1} parent=74 // loop_exit
                  _
              $region75: #{tps_model_forward.1} parent=59 // pred_fallthru
                _
              // Predicated region
              $region83: #{tps_model_forward.1} parent=59 // pred_check
                _
              $region84: #{tps_model_forward.1} parent=59 // pred_check_branch
                %476 = sbr.rel target = $region86
              $region85: #{tps_model_forward.1} parent=59 // pred_region
                _
              $region86: #{tps_model_forward.1} parent=59 // pred_fallthru
                _
            $region60: #{tps_model_forward.1} parent=55 // pred_fallthru
              _
            // Predicated region
            $region61: #{tps_model_forward.1} parent=55 // pred_check
              _
            $region62: #{tps_model_forward.1} parent=55 // pred_check_branch
              %327 = sbr.rel target = $region64
            $region63: #{tps_model_forward.1} parent=55 // pred_region
              loop: start=0, step=1, limit=1
              $region65: #{tps_model_forward.1} parent=63 // loop_pre_header
                _
              $region66: #{tps_model_forward.1} parent=63 // loop_header
                %s330 = sphi 0, %s334
                %p331 = scmp.ge.s32.totalorder %s330, 1
                %s335 = sphi %s321, %s321
                %s336 = sphi %s319, %s319
              $region67: #{tps_model_forward.1} parent=63 // loop_header_branch
                %333 = sbr.rel (%p331) target = $region71
              $region68: #{tps_model_forward.1} parent=63 // loop_body
                %v337 = vld [vmem:[%s335] sm:$0xff]
                %338 = vst [vmem:[%s336] sm:$0xff] %v337
                %v339 = vld [vmem:[%s335 + $0x10] sm:$0xff]
                %340 = vst [vmem:[%s336 + $0x8] sm:$0xff] %v339
                %v341 = vld [vmem:[%s335 + $0x20] sm:$0xff]
                %342 = vst [vmem:[%s336 + $0x10] sm:$0xff] %v341
                %v343 = vld [vmem:[%s335 + $0x30] sm:$0xff]
                %344 = vst [vmem:[%s336 + $0x18] sm:$0xff] %v343
                %v345 = vld [vmem:[%s335 + $0x40] sm:$0xff]
                %346 = vst [vmem:[%s336 + $0x20] sm:$0xff] %v345
                %v347 = vld [vmem:[%s335 + $0x50] sm:$0xff]
                %348 = vst [vmem:[%s336 + $0x28] sm:$0xff] %v347
                %v349 = vld [vmem:[%s335 + $0x60] sm:$0xff]
                %350 = vst [vmem:[%s336 + $0x30] sm:$0xff] %v349
                %v351 = vld [vmem:[%s335 + $0x70] sm:$0xff]
                %352 = vst [vmem:[%s336 + $0x38] sm:$0xff] %v351
                %v353 = vld [vmem:[%s335 + $0x80] sm:$0xff]
                %354 = vst [vmem:[%s336 + $0x40] sm:$0xff] %v353
                %v355 = vld [vmem:[%s335 + $0x90] sm:$0xff]
                %356 = vst [vmem:[%s336 + $0x48] sm:$0xff] %v355
                %v357 = vld [vmem:[%s335 + $0xa0] sm:$0xff]
                %358 = vst [vmem:[%s336 + $0x50] sm:$0xff] %v357
                %v359 = vld [vmem:[%s335 + $0xb0] sm:$0xff]
                %360 = vst [vmem:[%s336 + $0x58] sm:$0xff] %v359
                %v361 = vld [vmem:[%s335 + $0xc0] sm:$0xff]
                %362 = vst [vmem:[%s336 + $0x60] sm:$0xff] %v361
                %v363 = vld [vmem:[%s335 + $0xd0] sm:$0xff]
                %364 = vst [vmem:[%s336 + $0x68] sm:$0xff] %v363
                %v365 = vld [vmem:[%s335 + $0xe0] sm:$0xff]
                %366 = vst [vmem:[%s336 + $0x70] sm:$0xff] %v365
                %v367 = vld [vmem:[%s335 + $0xf0] sm:$0xff]
                %368 = vst [vmem:[%s336 + $0x78] sm:$0xff] %v367
                %v369 = vld [vmem:[%s335 + $0x100] sm:$0xff]
                %370 = vst [vmem:[%s336 + $0x80] sm:$0xff] %v369
                %v371 = vld [vmem:[%s335 + $0x110] sm:$0xff]
                %372 = vst [vmem:[%s336 + $0x88] sm:$0xff] %v371
                %v373 = vld [vmem:[%s335 + $0x120] sm:$0xff]
                %374 = vst [vmem:[%s336 + $0x90] sm:$0xff] %v373
                %v375 = vld [vmem:[%s335 + $0x130] sm:$0xff]
                %376 = vst [vmem:[%s336 + $0x98] sm:$0xff] %v375
                %v377 = vld [vmem:[%s335 + $0x140] sm:$0xff]
                %378 = vst [vmem:[%s336 + $0xa0] sm:$0xff] %v377
                %v379 = vld [vmem:[%s335 + $0x150] sm:$0xff]
                %380 = vst [vmem:[%s336 + $0xa8] sm:$0xff] %v379
                %v381 = vld [vmem:[%s335 + $0x160] sm:$0xff]
                %382 = vst [vmem:[%s336 + $0xb0] sm:$0xff] %v381
                %v383 = vld [vmem:[%s335 + $0x170] sm:$0xff]
                %384 = vst [vmem:[%s336 + $0xb8] sm:$0xff] %v383
                %v385 = vld [vmem:[%s335 + $0x180] sm:$0xff]
                %386 = vst [vmem:[%s336 + $0xc0] sm:$0xff] %v385
                %v387 = vld [vmem:[%s335 + $0x190] sm:$0xff]
                %388 = vst [vmem:[%s336 + $0xc8] sm:$0xff] %v387
                %v389 = vld [vmem:[%s335 + $0x1a0] sm:$0xff]
                %390 = vst [vmem:[%s336 + $0xd0] sm:$0xff] %v389
                %v391 = vld [vmem:[%s335 + $0x1b0] sm:$0xff]
                %392 = vst [vmem:[%s336 + $0xd8] sm:$0xff] %v391
                %v393 = vld [vmem:[%s335 + $0x1c0] sm:$0xff]
                %394 = vst [vmem:[%s336 + $0xe0] sm:$0xff] %v393
                %v395 = vld [vmem:[%s335 + $0x1d0] sm:$0xff]
                %396 = vst [vmem:[%s336 + $0xe8] sm:$0xff] %v395
                %v397 = vld [vmem:[%s335 + $0x1e0] sm:$0xff]
                %398 = vst [vmem:[%s336 + $0xf0] sm:$0xff] %v397
                %v399 = vld [vmem:[%s335 + $0x1f0] sm:$0xff]
                %400 = vst [vmem:[%s336 + $0xf8] sm:$0xff] %v399
              $region69: #{tps_model_forward.1} parent=63 // loop_footer
                %s334 = sadd.s32 1, %s330
              $region70: #{tps_model_forward.1} parent=63 // loop_footer_branch
                %329 = sbr.rel target = $region66
              $region71: #{tps_model_forward.1} parent=63 // loop_exit
                _
            $region64: #{tps_model_forward.1} parent=55 // pred_fallthru
              _
          $region56: #{tps_model_forward.1} parent=51 // pred_fallthru
            _
          %477 = vnop
        $region52: #{tps_model_forward.1} parent=47 // pred_fallthru
          _
      $region48: #{tps_model_forward.1} parent=5 // pred_fallthru
        _
      %p478 = scmp.le.s32.totalorder 1, %s18
      %p479 = scmp.lt.s32.totalorder %s18, 3
      %p480 = pnand %p478, %p479
      %p481 = pneg %p480
      // Predicated region
      $region87: #{tps_model_forward.1} parent=5 // pred_check
        _
      $region88: #{tps_model_forward.1} parent=5 // pred_check_branch
        %483 = sbr.rel (%p480) target = $region90
      $region89: #{tps_model_forward.1} parent=5 // pred_region
        %s484 = ssub.s32 %s18, 1
        %s485 = sand.u32 %s31, 1
        %s486 = sand.u32 %s31, 1
        %s487 = smul.addr %s486, 256
        %s488 = scalar_lea.vmem [#allocation5], %s487
        // Predicated region
        $region91: #{tps_model_forward.1} parent=89 // pred_check
          %p489 = pneg %p44
        $region92: #{tps_model_forward.1} parent=89 // pred_check_branch
          %491 = sbr.rel (%p489) target = $region94
        $region93: #{tps_model_forward.1} parent=89 // pred_region
          _
        $region94: #{tps_model_forward.1} parent=89 // pred_fallthru
          _
        // Predicated region
        $region95: #{tps_model_forward.1} parent=89 // pred_check
          %p492 = pneg %p65
        $region96: #{tps_model_forward.1} parent=89 // pred_check_branch
          %494 = sbr.rel (%p492) target = $region98
        $region97: #{tps_model_forward.1} parent=89 // pred_region
          %495 = dma.done [#allocation7], 32
        $region98: #{tps_model_forward.1} parent=89 // pred_fallthru
          _
        // Predicated region
        $region99: #{tps_model_forward.1} parent=89 // pred_check
          %p496 = pneg %p86
        $region100: #{tps_model_forward.1} parent=89 // pred_check_branch
          %498 = sbr.rel (%p496) target = $region102
        $region101: #{tps_model_forward.1} parent=89 // pred_region
          %499 = dma.done [#allocation9], 16
        $region102: #{tps_model_forward.1} parent=89 // pred_fallthru
          _
        // Predicated region
        $region103: #{tps_model_forward.1} parent=89 // pred_check
          %p500 = pneg %p107
        $region104: #{tps_model_forward.1} parent=89 // pred_check_branch
          %502 = sbr.rel (%p500) target = $region106
        $region105: #{tps_model_forward.1} parent=89 // pred_region
          %503 = dma.done [#allocation9], 144
        $region106: #{tps_model_forward.1} parent=89 // pred_fallthru
          _
        // Predicated region
        $region107: #{tps_model_forward.1} parent=89 // pred_check
          %p504 = pneg %p128
        $region108: #{tps_model_forward.1} parent=89 // pred_check_branch
          %506 = sbr.rel (%p504) target = $region110
        $region109: #{tps_model_forward.1} parent=89 // pred_region
          %507 = dma.done [#allocation12], 16
        $region110: #{tps_model_forward.1} parent=89 // pred_fallthru
          _
        %508 = sfence
        %s509 = sand.u32 %s31, 1
        %s510 = sand.u32 %s31, 1
        %s511 = smul.addr %s510, 256
        %s512 = scalar_lea.vmem [#allocation5], %s511
        %p513 = pneg %p44
        %p514 = pneg %p41
        %p515 = pneg %p65
        %p516 = pneg %p62
        %p517 = pneg %p86
        %p518 = pneg %p83
        %p519 = pneg %p107
        %p520 = pneg %p104
        %p521 = pneg %p128
        %p522 = pneg %p125
        %p523 = pneg %p149
        %p524 = pneg %p146
        %p525 = pneg %p170
        %p526 = pneg %p167
        %p527 = pneg %p191
        %p528 = pneg %p188
        %p529 = pneg %p212
        %p530 = pneg %p209
        %p531 = pneg %p238
        %p532 = pneg %p235
        %s533 = sand.u32 %s225, 1
        %s534 = sand.u32 %s225, 1
        %s535 = smul.addr %s534, 16
        %s536 = scalar_lea.vmem [#allocation13], %s535
        loop: start=0, step=1, limit=8
        $region111: #{tps_model_forward.1} parent=89 // loop_pre_header
          _
        $region112: #{tps_model_forward.1} parent=89 // loop_header
          %s538 = sphi 0, %s542
          %p539 = scmp.ge.s32.totalorder %s538, 8
        $region113: #{tps_model_forward.1} parent=89 // loop_header_branch
          %541 = sbr.rel (%p539) target = $region117
        $region114: #{tps_model_forward.1} parent=89 // loop_body
          %v543 = vld [vmem:[%s488] sm:$0xff]
          %v544 = vld [vmem:[%s488 + $0x8] sm:$0xf]
          %v545 = vld [vmem:[%s488 + $0x10] sm:$0xff]
          %v546 = vld [vmem:[%s488 + $0x18] sm:$0xf]
          %v547 = vld [vmem:[%s488 + $0x20] sm:$0xff]
          %v548 = vld [vmem:[%s488 + $0x28] sm:$0xf]
          %v549 = vld [vmem:[%s488 + $0x30] sm:$0xff]
          %v550 = vld [vmem:[%s488 + $0x38] sm:$0xf]
          %v551 = vld [vmem:[%s488 + $0x40] sm:$0xff]
          %v552 = vld [vmem:[%s488 + $0x48] sm:$0xf]
          %v553 = vld [vmem:[%s488 + $0x50] sm:$0xff]
          %v554 = vld [vmem:[%s488 + $0x58] sm:$0xf]
          %v555 = vld [vmem:[%s488 + $0x60] sm:$0xff]
          %v556 = vld [vmem:[%s488 + $0x68] sm:$0xf]
          %v557 = vld [vmem:[%s488 + $0x70] sm:$0xff]
          %v558 = vld [vmem:[%s488 + $0x78] sm:$0xf]
          %v559 = vld [vmem:[%s488 + $0x80] sm:$0xff]
          %v560 = vld [vmem:[%s488 + $0x88] sm:$0xf]
          %v561 = vld [vmem:[%s488 + $0x90] sm:$0xff]
          %v562 = vld [vmem:[%s488 + $0x98] sm:$0xf]
          %v563 = vld [vmem:[%s488 + $0xa0] sm:$0xff]
          %v564 = vld [vmem:[%s488 + $0xa8] sm:$0xf]
          %v565 = vld [vmem:[%s488 + $0xb0] sm:$0xff]
          %v566 = vld [vmem:[%s488 + $0xb8] sm:$0xf]
          %s567 = sld [smem:[#allocation6 + %s538]]
          %v568 = vstv %s567
          %v569 = vmul.f32 %v543, %v568
          %v570 = vmul.f32 %v544, %v568
          %v571 = vmul.f32 %v545, %v568
          %v572 = vmul.f32 %v546, %v568
          %v573 = vmul.f32 %v547, %v568
          %v574 = vmul.f32 %v548, %v568
          %v575 = vmul.f32 %v549, %v568
          %v576 = vmul.f32 %v550, %v568
          %v577 = vmul.f32 %v551, %v568
          %v578 = vmul.f32 %v552, %v568
          %v579 = vmul.f32 %v553, %v568
          %v580 = vmul.f32 %v554, %v568
          %v581 = vmul.f32 %v555, %v568
          %v582 = vmul.f32 %v556, %v568
          %v583 = vmul.f32 %v557, %v568
          %v584 = vmul.f32 %v558, %v568
          %v585 = vmul.f32 %v559, %v568
          %v586 = vmul.f32 %v560, %v568
          %v587 = vmul.f32 %v561, %v568
          %v588 = vmul.f32 %v562, %v568
          %v589 = vmul.f32 %v563, %v568
          %v590 = vmul.f32 %v564, %v568
          %v591 = vmul.f32 %v565, %v568
          %v592 = vmul.f32 %v566, %v568
          %v593 = vadd.f32 %v569, 0.0
          %v594 = vadd.f32 %v570, 0.0
          %v595 = vadd.f32 %v571, 0.0
          %v596 = vadd.f32 %v572, 0.0
          %v597 = vadd.f32 %v573, 0.0
          %v598 = vadd.f32 %v574, 0.0
          %v599 = vadd.f32 %v575, 0.0
          %v600 = vadd.f32 %v576, 0.0
          %v601 = vadd.f32 %v577, 0.0
          %v602 = vadd.f32 %v578, 0.0
          %v603 = vadd.f32 %v579, 0.0
          %v604 = vadd.f32 %v580, 0.0
          %v605 = vadd.f32 %v581, 0.0
          %v606 = vadd.f32 %v582, 0.0
          %v607 = vadd.f32 %v583, 0.0
          %v608 = vadd.f32 %v584, 0.0
          %v609 = vadd.f32 %v585, 0.0
          %v610 = vadd.f32 %v586, 0.0
          %v611 = vadd.f32 %v587, 0.0
          %v612 = vadd.f32 %v588, 0.0
          %v613 = vadd.f32 %v589, 0.0
          %v614 = vadd.f32 %v590, 0.0
          %v615 = vadd.f32 %v591, 0.0
          %v616 = vadd.f32 %v592, 0.0
          %v617 = vld [vmem:[%s488 + $0x1] sm:$0xff]
          %v618 = vld [vmem:[%s488 + $0x9] sm:$0xf]
          %v619 = vld [vmem:[%s488 + $0x11] sm:$0xff]
          %v620 = vld [vmem:[%s488 + $0x19] sm:$0xf]
          %v621 = vld [vmem:[%s488 + $0x21] sm:$0xff]
          %v622 = vld [vmem:[%s488 + $0x29] sm:$0xf]
          %v623 = vld [vmem:[%s488 + $0x31] sm:$0xff]
          %v624 = vld [vmem:[%s488 + $0x39] sm:$0xf]
          %v625 = vld [vmem:[%s488 + $0x41] sm:$0xff]
          %v626 = vld [vmem:[%s488 + $0x49] sm:$0xf]
          %v627 = vld [vmem:[%s488 + $0x51] sm:$0xff]
          %v628 = vld [vmem:[%s488 + $0x59] sm:$0xf]
          %v629 = vld [vmem:[%s488 + $0x61] sm:$0xff]
          %v630 = vld [vmem:[%s488 + $0x69] sm:$0xf]
          %v631 = vld [vmem:[%s488 + $0x71] sm:$0xff]
          %v632 = vld [vmem:[%s488 + $0x79] sm:$0xf]
          %v633 = vld [vmem:[%s488 + $0x81] sm:$0xff]
          %v634 = vld [vmem:[%s488 + $0x89] sm:$0xf]
          %v635 = vld [vmem:[%s488 + $0x91] sm:$0xff]
          %v636 = vld [vmem:[%s488 + $0x99] sm:$0xf]
          %v637 = vld [vmem:[%s488 + $0xa1] sm:$0xff]
          %v638 = vld [vmem:[%s488 + $0xa9] sm:$0xf]
          %v639 = vld [vmem:[%s488 + $0xb1] sm:$0xff]
          %v640 = vld [vmem:[%s488 + $0xb9] sm:$0xf]
          %s641 = sadd.s32 %s538, 8
          %s642 = sld [smem:[#allocation6 + %s641]]
          %v643 = vstv %s642
          %v644 = vmul.f32 %v617, %v643
          %v645 = vmul.f32 %v618, %v643
          %v646 = vmul.f32 %v619, %v643
          %v647 = vmul.f32 %v620, %v643
          %v648 = vmul.f32 %v621, %v643
          %v649 = vmul.f32 %v622, %v643
          %v650 = vmul.f32 %v623, %v643
          %v651 = vmul.f32 %v624, %v643
          %v652 = vmul.f32 %v625, %v643
          %v653 = vmul.f32 %v626, %v643
          %v654 = vmul.f32 %v627, %v643
          %v655 = vmul.f32 %v628, %v643
          %v656 = vmul.f32 %v629, %v643
          %v657 = vmul.f32 %v630, %v643
          %v658 = vmul.f32 %v631, %v643
          %v659 = vmul.f32 %v632, %v643
          %v660 = vmul.f32 %v633, %v643
          %v661 = vmul.f32 %v634, %v643
          %v662 = vmul.f32 %v635, %v643
          %v663 = vmul.f32 %v636, %v643
          %v664 = vmul.f32 %v637, %v643
          %v665 = vmul.f32 %v638, %v643
          %v666 = vmul.f32 %v639, %v643
          %v667 = vmul.f32 %v640, %v643
          %v668 = vadd.f32 %v593, %v644
          %v669 = vadd.f32 %v594, %v645
          %v670 = vadd.f32 %v595, %v646
          %v671 = vadd.f32 %v596, %v647
          %v672 = vadd.f32 %v597, %v648
          %v673 = vadd.f32 %v598, %v649
          %v674 = vadd.f32 %v599, %v650
          %v675 = vadd.f32 %v600, %v651
          %v676 = vadd.f32 %v601, %v652
          %v677 = vadd.f32 %v602, %v653
          %v678 = vadd.f32 %v603, %v654
          %v679 = vadd.f32 %v604, %v655
          %v680 = vadd.f32 %v605, %v656
          %v681 = vadd.f32 %v606, %v657
          %v682 = vadd.f32 %v607, %v658
          %v683 = vadd.f32 %v608, %v659
          %v684 = vadd.f32 %v609, %v660
          %v685 = vadd.f32 %v610, %v661
          %v686 = vadd.f32 %v611, %v662
          %v687 = vadd.f32 %v612, %v663
          %v688 = vadd.f32 %v613, %v664
          %v689 = vadd.f32 %v614, %v665
          %v690 = vadd.f32 %v615, %v666
          %v691 = vadd.f32 %v616, %v667
          %v692 = vld [vmem:[%s488 + $0x2] sm:$0xff]
          %v693 = vld [vmem:[%s488 + $0xa] sm:$0xf]
          %v694 = vld [vmem:[%s488 + $0x12] sm:$0xff]
          %v695 = vld [vmem:[%s488 + $0x1a] sm:$0xf]
          %v696 = vld [vmem:[%s488 + $0x22] sm:$0xff]
          %v697 = vld [vmem:[%s488 + $0x2a] sm:$0xf]
          %v698 = vld [vmem:[%s488 + $0x32] sm:$0xff]
          %v699 = vld [vmem:[%s488 + $0x3a] sm:$0xf]
          %v700 = vld [vmem:[%s488 + $0x42] sm:$0xff]
          %v701 = vld [vmem:[%s488 + $0x4a] sm:$0xf]
          %v702 = vld [vmem:[%s488 + $0x52] sm:$0xff]
          %v703 = vld [vmem:[%s488 + $0x5a] sm:$0xf]
          %v704 = vld [vmem:[%s488 + $0x62] sm:$0xff]
          %v705 = vld [vmem:[%s488 + $0x6a] sm:$0xf]
          %v706 = vld [vmem:[%s488 + $0x72] sm:$0xff]
          %v707 = vld [vmem:[%s488 + $0x7a] sm:$0xf]
          %v708 = vld [vmem:[%s488 + $0x82] sm:$0xff]
          %v709 = vld [vmem:[%s488 + $0x8a] sm:$0xf]
          %v710 = vld [vmem:[%s488 + $0x92] sm:$0xff]
          %v711 = vld [vmem:[%s488 + $0x9a] sm:$0xf]
          %v712 = vld [vmem:[%s488 + $0xa2] sm:$0xff]
          %v713 = vld [vmem:[%s488 + $0xaa] sm:$0xf]
          %v714 = vld [vmem:[%s488 + $0xb2] sm:$0xff]
          %v715 = vld [vmem:[%s488 + $0xba] sm:$0xf]
          %s716 = sadd.s32 %s538, 16
          %s717 = sld [smem:[#allocation6 + %s716]]
          %v718 = vstv %s717
          %v719 = vmul.f32 %v692, %v718
          %v720 = vmul.f32 %v693, %v718
          %v721 = vmul.f32 %v694, %v718
          %v722 = vmul.f32 %v695, %v718
          %v723 = vmul.f32 %v696, %v718
          %v724 = vmul.f32 %v697, %v718
          %v725 = vmul.f32 %v698, %v718
          %v726 = vmul.f32 %v699, %v718
          %v727 = vmul.f32 %v700, %v718
          %v728 = vmul.f32 %v701, %v718
          %v729 = vmul.f32 %v702, %v718
          %v730 = vmul.f32 %v703, %v718
          %v731 = vmul.f32 %v704, %v718
          %v732 = vmul.f32 %v705, %v718
          %v733 = vmul.f32 %v706, %v718
          %v734 = vmul.f32 %v707, %v718
          %v735 = vmul.f32 %v708, %v718
          %v736 = vmul.f32 %v709, %v718
          %v737 = vmul.f32 %v710, %v718
          %v738 = vmul.f32 %v711, %v718
          %v739 = vmul.f32 %v712, %v718
          %v740 = vmul.f32 %v713, %v718
          %v741 = vmul.f32 %v714, %v718
          %v742 = vmul.f32 %v715, %v718
          %v743 = vadd.f32 %v668, %v719
          %v744 = vadd.f32 %v669, %v720
          %v745 = vadd.f32 %v670, %v721
          %v746 = vadd.f32 %v671, %v722
          %v747 = vadd.f32 %v672, %v723
          %v748 = vadd.f32 %v673, %v724
          %v749 = vadd.f32 %v674, %v725
          %v750 = vadd.f32 %v675, %v726
          %v751 = vadd.f32 %v676, %v727
          %v752 = vadd.f32 %v677, %v728
          %v753 = vadd.f32 %v678, %v729
          %v754 = vadd.f32 %v679, %v730
          %v755 = vadd.f32 %v680, %v731
          %v756 = vadd.f32 %v681, %v732
          %v757 = vadd.f32 %v682, %v733
          %v758 = vadd.f32 %v683, %v734
          %v759 = vadd.f32 %v684, %v735
          %v760 = vadd.f32 %v685, %v736
          %v761 = vadd.f32 %v686, %v737
          %v762 = vadd.f32 %v687, %v738
          %v763 = vadd.f32 %v688, %v739
          %v764 = vadd.f32 %v689, %v740
          %v765 = vadd.f32 %v690, %v741
          %v766 = vadd.f32 %v691, %v742
          %v767 = vld [vmem:[%s488 + $0x3] sm:$0xff]
          %v768 = vld [vmem:[%s488 + $0xb] sm:$0xf]
          %v769 = vld [vmem:[%s488 + $0x13] sm:$0xff]
          %v770 = vld [vmem:[%s488 + $0x1b] sm:$0xf]
          %v771 = vld [vmem:[%s488 + $0x23] sm:$0xff]
          %v772 = vld [vmem:[%s488 + $0x2b] sm:$0xf]
          %v773 = vld [vmem:[%s488 + $0x33] sm:$0xff]
          %v774 = vld [vmem:[%s488 + $0x3b] sm:$0xf]
          %v775 = vld [vmem:[%s488 + $0x43] sm:$0xff]
          %v776 = vld [vmem:[%s488 + $0x4b] sm:$0xf]
          %v777 = vld [vmem:[%s488 + $0x53] sm:$0xff]
          %v778 = vld [vmem:[%s488 + $0x5b] sm:$0xf]
          %v779 = vld [vmem:[%s488 + $0x63] sm:$0xff]
          %v780 = vld [vmem:[%s488 + $0x6b] sm:$0xf]
          %v781 = vld [vmem:[%s488 + $0x73] sm:$0xff]
          %v782 = vld [vmem:[%s488 + $0x7b] sm:$0xf]
          %v783 = vld [vmem:[%s488 + $0x83] sm:$0xff]
          %v784 = vld [vmem:[%s488 + $0x8b] sm:$0xf]
          %v785 = vld [vmem:[%s488 + $0x93] sm:$0xff]
          %v786 = vld [vmem:[%s488 + $0x9b] sm:$0xf]
          %v787 = vld [vmem:[%s488 + $0xa3] sm:$0xff]
          %v788 = vld [vmem:[%s488 + $0xab] sm:$0xf]
          %v789 = vld [vmem:[%s488 + $0xb3] sm:$0xff]
          %v790 = vld [vmem:[%s488 + $0xbb] sm:$0xf]
          %s791 = sadd.s32 %s538, 24
          %s792 = sld [smem:[#allocation6 + %s791]]
          %v793 = vstv %s792
          %v794 = vmul.f32 %v767, %v793
          %v795 = vmul.f32 %v768, %v793
          %v796 = vmul.f32 %v769, %v793
          %v797 = vmul.f32 %v770, %v793
          %v798 = vmul.f32 %v771, %v793
          %v799 = vmul.f32 %v772, %v793
          %v800 = vmul.f32 %v773, %v793
          %v801 = vmul.f32 %v774, %v793
          %v802 = vmul.f32 %v775, %v793
          %v803 = vmul.f32 %v776, %v793
          %v804 = vmul.f32 %v777, %v793
          %v805 = vmul.f32 %v778, %v793
          %v806 = vmul.f32 %v779, %v793
          %v807 = vmul.f32 %v780, %v793
          %v808 = vmul.f32 %v781, %v793
          %v809 = vmul.f32 %v782, %v793
          %v810 = vmul.f32 %v783, %v793
          %v811 = vmul.f32 %v784, %v793
          %v812 = vmul.f32 %v785, %v793
          %v813 = vmul.f32 %v786, %v793
          %v814 = vmul.f32 %v787, %v793
          %v815 = vmul.f32 %v788, %v793
          %v816 = vmul.f32 %v789, %v793
          %v817 = vmul.f32 %v790, %v793
          %v818 = vadd.f32 %v743, %v794
          %v819 = vadd.f32 %v744, %v795
          %v820 = vadd.f32 %v745, %v796
          %v821 = vadd.f32 %v746, %v797
          %v822 = vadd.f32 %v747, %v798
          %v823 = vadd.f32 %v748, %v799
          %v824 = vadd.f32 %v749, %v800
          %v825 = vadd.f32 %v750, %v801
          %v826 = vadd.f32 %v751, %v802
          %v827 = vadd.f32 %v752, %v803
          %v828 = vadd.f32 %v753, %v804
          %v829 = vadd.f32 %v754, %v805
          %v830 = vadd.f32 %v755, %v806
          %v831 = vadd.f32 %v756, %v807
          %v832 = vadd.f32 %v757, %v808
          %v833 = vadd.f32 %v758, %v809
          %v834 = vadd.f32 %v759, %v810
          %v835 = vadd.f32 %v760, %v811
          %v836 = vadd.f32 %v761, %v812
          %v837 = vadd.f32 %v762, %v813
          %v838 = vadd.f32 %v763, %v814
          %v839 = vadd.f32 %v764, %v815
          %v840 = vadd.f32 %v765, %v816
          %v841 = vadd.f32 %v766, %v817
          %v842 = vld [vmem:[%s488 + $0x4] sm:$0xff]
          %v843 = vld [vmem:[%s488 + $0xc] sm:$0xf]
          %v844 = vld [vmem:[%s488 + $0x14] sm:$0xff]
          %v845 = vld [vmem:[%s488 + $0x1c] sm:$0xf]
          %v846 = vld [vmem:[%s488 + $0x24] sm:$0xff]
          %v847 = vld [vmem:[%s488 + $0x2c] sm:$0xf]
          %v848 = vld [vmem:[%s488 + $0x34] sm:$0xff]
          %v849 = vld [vmem:[%s488 + $0x3c] sm:$0xf]
          %v850 = vld [vmem:[%s488 + $0x44] sm:$0xff]
          %v851 = vld [vmem:[%s488 + $0x4c] sm:$0xf]
          %v852 = vld [vmem:[%s488 + $0x54] sm:$0xff]
          %v853 = vld [vmem:[%s488 + $0x5c] sm:$0xf]
          %v854 = vld [vmem:[%s488 + $0x64] sm:$0xff]
          %v855 = vld [vmem:[%s488 + $0x6c] sm:$0xf]
          %v856 = vld [vmem:[%s488 + $0x74] sm:$0xff]
          %v857 = vld [vmem:[%s488 + $0x7c] sm:$0xf]
          %v858 = vld [vmem:[%s488 + $0x84] sm:$0xff]
          %v859 = vld [vmem:[%s488 + $0x8c] sm:$0xf]
          %v860 = vld [vmem:[%s488 + $0x94] sm:$0xff]
          %v861 = vld [vmem:[%s488 + $0x9c] sm:$0xf]
          %v862 = vld [vmem:[%s488 + $0xa4] sm:$0xff]
          %v863 = vld [vmem:[%s488 + $0xac] sm:$0xf]
          %v864 = vld [vmem:[%s488 + $0xb4] sm:$0xff]
          %v865 = vld [vmem:[%s488 + $0xbc] sm:$0xf]
          %s866 = sadd.s32 %s538, 32
          %s867 = sld [smem:[#allocation6 + %s866]]
          %v868 = vstv %s867
          %v869 = vmul.f32 %v842, %v868
          %v870 = vmul.f32 %v843, %v868
          %v871 = vmul.f32 %v844, %v868
          %v872 = vmul.f32 %v845, %v868
          %v873 = vmul.f32 %v846, %v868
          %v874 = vmul.f32 %v847, %v868
          %v875 = vmul.f32 %v848, %v868
          %v876 = vmul.f32 %v849, %v868
          %v877 = vmul.f32 %v850, %v868
          %v878 = vmul.f32 %v851, %v868
          %v879 = vmul.f32 %v852, %v868
          %v880 = vmul.f32 %v853, %v868
          %v881 = vmul.f32 %v854, %v868
          %v882 = vmul.f32 %v855, %v868
          %v883 = vmul.f32 %v856, %v868
          %v884 = vmul.f32 %v857, %v868
          %v885 = vmul.f32 %v858, %v868
          %v886 = vmul.f32 %v859, %v868
          %v887 = vmul.f32 %v860, %v868
          %v888 = vmul.f32 %v861, %v868
          %v889 = vmul.f32 %v862, %v868
          %v890 = vmul.f32 %v863, %v868
          %v891 = vmul.f32 %v864, %v868
          %v892 = vmul.f32 %v865, %v868
          %v893 = vadd.f32 %v818, %v869
          %v894 = vadd.f32 %v819, %v870
          %v895 = vadd.f32 %v820, %v871
          %v896 = vadd.f32 %v821, %v872
          %v897 = vadd.f32 %v822, %v873
          %v898 = vadd.f32 %v823, %v874
          %v899 = vadd.f32 %v824, %v875
          %v900 = vadd.f32 %v825, %v876
          %v901 = vadd.f32 %v826, %v877
          %v902 = vadd.f32 %v827, %v878
          %v903 = vadd.f32 %v828, %v879
          %v904 = vadd.f32 %v829, %v880
          %v905 = vadd.f32 %v830, %v881
          %v906 = vadd.f32 %v831, %v882
          %v907 = vadd.f32 %v832, %v883
          %v908 = vadd.f32 %v833, %v884
          %v909 = vadd.f32 %v834, %v885
          %v910 = vadd.f32 %v835, %v886
          %v911 = vadd.f32 %v836, %v887
          %v912 = vadd.f32 %v837, %v888
          %v913 = vadd.f32 %v838, %v889
          %v914 = vadd.f32 %v839, %v890
          %v915 = vadd.f32 %v840, %v891
          %v916 = vadd.f32 %v841, %v892
          %s917 = scalar_lea.vmem %s488, 16 [#allocation5]
          %v918 = vld [vmem:[%s917] sm:$0xff]
          %v919 = vld [vmem:[%s917 + $0x8] sm:$0xf]
          %v920 = vld [vmem:[%s917 + $0x10] sm:$0xff]
          %v921 = vld [vmem:[%s917 + $0x18] sm:$0xf]
          %v922 = vld [vmem:[%s917 + $0x20] sm:$0xff]
          %v923 = vld [vmem:[%s917 + $0x28] sm:$0xf]
          %v924 = vld [vmem:[%s917 + $0x30] sm:$0xff]
          %v925 = vld [vmem:[%s917 + $0x38] sm:$0xf]
          %v926 = vld [vmem:[%s917 + $0x40] sm:$0xff]
          %v927 = vld [vmem:[%s917 + $0x48] sm:$0xf]
          %v928 = vld [vmem:[%s917 + $0x50] sm:$0xff]
          %v929 = vld [vmem:[%s917 + $0x58] sm:$0xf]
          %v930 = vld [vmem:[%s917 + $0x60] sm:$0xff]
          %v931 = vld [vmem:[%s917 + $0x68] sm:$0xf]
          %v932 = vld [vmem:[%s917 + $0x70] sm:$0xff]
          %v933 = vld [vmem:[%s917 + $0x78] sm:$0xf]
          %v934 = vld [vmem:[%s917 + $0x80] sm:$0xff]
          %v935 = vld [vmem:[%s917 + $0x88] sm:$0xf]
          %v936 = vld [vmem:[%s917 + $0x90] sm:$0xff]
          %v937 = vld [vmem:[%s917 + $0x98] sm:$0xf]
          %v938 = vld [vmem:[%s917 + $0xa0] sm:$0xff]
          %v939 = vld [vmem:[%s917 + $0xa8] sm:$0xf]
          %v940 = vld [vmem:[%s917 + $0xb0] sm:$0xff]
          %v941 = vld [vmem:[%s917 + $0xb8] sm:$0xf]
          %s942 = sadd.s32 %s538, 40
          %s943 = sld [smem:[#allocation6 + %s942]]
          %v944 = vstv %s943
          %v945 = vmul.f32 %v918, %v944
          %v946 = vmul.f32 %v919, %v944
          %v947 = vmul.f32 %v920, %v944
          %v948 = vmul.f32 %v921, %v944
          %v949 = vmul.f32 %v922, %v944
          %v950 = vmul.f32 %v923, %v944
          %v951 = vmul.f32 %v924, %v944
          %v952 = vmul.f32 %v925, %v944
          %v953 = vmul.f32 %v926, %v944
          %v954 = vmul.f32 %v927, %v944
          %v955 = vmul.f32 %v928, %v944
          %v956 = vmul.f32 %v929, %v944
          %v957 = vmul.f32 %v930, %v944
          %v958 = vmul.f32 %v931, %v944
          %v959 = vmul.f32 %v932, %v944
          %v960 = vmul.f32 %v933, %v944
          %v961 = vmul.f32 %v934, %v944
          %v962 = vmul.f32 %v935, %v944
          %v963 = vmul.f32 %v936, %v944
          %v964 = vmul.f32 %v937, %v944
          %v965 = vmul.f32 %v938, %v944
          %v966 = vmul.f32 %v939, %v944
          %v967 = vmul.f32 %v940, %v944
          %v968 = vmul.f32 %v941, %v944
          %v969 = vadd.f32 %v893, %v945
          %v970 = vadd.f32 %v894, %v946
          %v971 = vadd.f32 %v895, %v947
          %v972 = vadd.f32 %v896, %v948
          %v973 = vadd.f32 %v897, %v949
          %v974 = vadd.f32 %v898, %v950
          %v975 = vadd.f32 %v899, %v951
          %v976 = vadd.f32 %v900, %v952
          %v977 = vadd.f32 %v901, %v953
          %v978 = vadd.f32 %v902, %v954
          %v979 = vadd.f32 %v903, %v955
          %v980 = vadd.f32 %v904, %v956
          %v981 = vadd.f32 %v905, %v957
          %v982 = vadd.f32 %v906, %v958
          %v983 = vadd.f32 %v907, %v959
          %v984 = vadd.f32 %v908, %v960
          %v985 = vadd.f32 %v909, %v961
          %v986 = vadd.f32 %v910, %v962
          %v987 = vadd.f32 %v911, %v963
          %v988 = vadd.f32 %v912, %v964
          %v989 = vadd.f32 %v913, %v965
          %v990 = vadd.f32 %v914, %v966
          %v991 = vadd.f32 %v915, %v967
          %v992 = vadd.f32 %v916, %v968
          %v993 = vld [vmem:[%s917 + $0x1] sm:$0xff]
          %v994 = vld [vmem:[%s917 + $0x9] sm:$0xf]
          %v995 = vld [vmem:[%s917 + $0x11] sm:$0xff]
          %v996 = vld [vmem:[%s917 + $0x19] sm:$0xf]
          %v997 = vld [vmem:[%s917 + $0x21] sm:$0xff]
          %v998 = vld [vmem:[%s917 + $0x29] sm:$0xf]
          %v999 = vld [vmem:[%s917 + $0x31] sm:$0xff]
          %v1000 = vld [vmem:[%s917 + $0x39] sm:$0xf]
          %v1001 = vld [vmem:[%s917 + $0x41] sm:$0xff]
          %v1002 = vld [vmem:[%s917 + $0x49] sm:$0xf]
          %v1003 = vld [vmem:[%s917 + $0x51] sm:$0xff]
          %v1004 = vld [vmem:[%s917 + $0x59] sm:$0xf]
          %v1005 = vld [vmem:[%s917 + $0x61] sm:$0xff]
          %v1006 = vld [vmem:[%s917 + $0x69] sm:$0xf]
          %v1007 = vld [vmem:[%s917 + $0x71] sm:$0xff]
          %v1008 = vld [vmem:[%s917 + $0x79] sm:$0xf]
          %v1009 = vld [vmem:[%s917 + $0x81] sm:$0xff]
          %v1010 = vld [vmem:[%s917 + $0x89] sm:$0xf]
          %v1011 = vld [vmem:[%s917 + $0x91] sm:$0xff]
          %v1012 = vld [vmem:[%s917 + $0x99] sm:$0xf]
          %v1013 = vld [vmem:[%s917 + $0xa1] sm:$0xff]
          %v1014 = vld [vmem:[%s917 + $0xa9] sm:$0xf]
          %v1015 = vld [vmem:[%s917 + $0xb1] sm:$0xff]
          %v1016 = vld [vmem:[%s917 + $0xb9] sm:$0xf]
          %s1017 = sadd.s32 %s538, 48
          %s1018 = sld [smem:[#allocation6 + %s1017]]
          %v1019 = vstv %s1018
          %v1020 = vmul.f32 %v993, %v1019
          %v1021 = vmul.f32 %v994, %v1019
          %v1022 = vmul.f32 %v995, %v1019
          %v1023 = vmul.f32 %v996, %v1019
          %v1024 = vmul.f32 %v997, %v1019
          %v1025 = vmul.f32 %v998, %v1019
          %v1026 = vmul.f32 %v999, %v1019
          %v1027 = vmul.f32 %v1000, %v1019
          %v1028 = vmul.f32 %v1001, %v1019
          %v1029 = vmul.f32 %v1002, %v1019
          %v1030 = vmul.f32 %v1003, %v1019
          %v1031 = vmul.f32 %v1004, %v1019
          %v1032 = vmul.f32 %v1005, %v1019
          %v1033 = vmul.f32 %v1006, %v1019
          %v1034 = vmul.f32 %v1007, %v1019
          %v1035 = vmul.f32 %v1008, %v1019
          %v1036 = vmul.f32 %v1009, %v1019
          %v1037 = vmul.f32 %v1010, %v1019
          %v1038 = vmul.f32 %v1011, %v1019
          %v1039 = vmul.f32 %v1012, %v1019
          %v1040 = vmul.f32 %v1013, %v1019
          %v1041 = vmul.f32 %v1014, %v1019
          %v1042 = vmul.f32 %v1015, %v1019
          %v1043 = vmul.f32 %v1016, %v1019
          %v1044 = vadd.f32 %v969, %v1020
          %v1045 = vadd.f32 %v970, %v1021
          %v1046 = vadd.f32 %v971, %v1022
          %v1047 = vadd.f32 %v972, %v1023
          %v1048 = vadd.f32 %v973, %v1024
          %v1049 = vadd.f32 %v974, %v1025
          %v1050 = vadd.f32 %v975, %v1026
          %v1051 = vadd.f32 %v976, %v1027
          %v1052 = vadd.f32 %v977, %v1028
          %v1053 = vadd.f32 %v978, %v1029
          %v1054 = vadd.f32 %v979, %v1030
          %v1055 = vadd.f32 %v980, %v1031
          %v1056 = vadd.f32 %v981, %v1032
          %v1057 = vadd.f32 %v982, %v1033
          %v1058 = vadd.f32 %v983, %v1034
          %v1059 = vadd.f32 %v984, %v1035
          %v1060 = vadd.f32 %v985, %v1036
          %v1061 = vadd.f32 %v986, %v1037
          %v1062 = vadd.f32 %v987, %v1038
          %v1063 = vadd.f32 %v988, %v1039
          %v1064 = vadd.f32 %v989, %v1040
          %v1065 = vadd.f32 %v990, %v1041
          %v1066 = vadd.f32 %v991, %v1042
          %v1067 = vadd.f32 %v992, %v1043
          %v1068 = vld [vmem:[%s917 + $0x2] sm:$0xff]
          %v1069 = vld [vmem:[%s917 + $0xa] sm:$0xf]
          %v1070 = vld [vmem:[%s917 + $0x12] sm:$0xff]
          %v1071 = vld [vmem:[%s917 + $0x1a] sm:$0xf]
          %v1072 = vld [vmem:[%s917 + $0x22] sm:$0xff]
          %v1073 = vld [vmem:[%s917 + $0x2a] sm:$0xf]
          %v1074 = vld [vmem:[%s917 + $0x32] sm:$0xff]
          %v1075 = vld [vmem:[%s917 + $0x3a] sm:$0xf]
          %v1076 = vld [vmem:[%s917 + $0x42] sm:$0xff]
          %v1077 = vld [vmem:[%s917 + $0x4a] sm:$0xf]
          %v1078 = vld [vmem:[%s917 + $0x52] sm:$0xff]
          %v1079 = vld [vmem:[%s917 + $0x5a] sm:$0xf]
          %v1080 = vld [vmem:[%s917 + $0x62] sm:$0xff]
          %v1081 = vld [vmem:[%s917 + $0x6a] sm:$0xf]
          %v1082 = vld [vmem:[%s917 + $0x72] sm:$0xff]
          %v1083 = vld [vmem:[%s917 + $0x7a] sm:$0xf]
          %v1084 = vld [vmem:[%s917 + $0x82] sm:$0xff]
          %v1085 = vld [vmem:[%s917 + $0x8a] sm:$0xf]
          %v1086 = vld [vmem:[%s917 + $0x92] sm:$0xff]
          %v1087 = vld [vmem:[%s917 + $0x9a] sm:$0xf]
          %v1088 = vld [vmem:[%s917 + $0xa2] sm:$0xff]
          %v1089 = vld [vmem:[%s917 + $0xaa] sm:$0xf]
          %v1090 = vld [vmem:[%s917 + $0xb2] sm:$0xff]
          %v1091 = vld [vmem:[%s917 + $0xba] sm:$0xf]
          %s1092 = sadd.s32 %s538, 56
          %s1093 = sld [smem:[#allocation6 + %s1092]]
          %v1094 = vstv %s1093
          %v1095 = vmul.f32 %v1068, %v1094
          %v1096 = vmul.f32 %v1069, %v1094
          %v1097 = vmul.f32 %v1070, %v1094
          %v1098 = vmul.f32 %v1071, %v1094
          %v1099 = vmul.f32 %v1072, %v1094
          %v1100 = vmul.f32 %v1073, %v1094
          %v1101 = vmul.f32 %v1074, %v1094
          %v1102 = vmul.f32 %v1075, %v1094
          %v1103 = vmul.f32 %v1076, %v1094
          %v1104 = vmul.f32 %v1077, %v1094
          %v1105 = vmul.f32 %v1078, %v1094
          %v1106 = vmul.f32 %v1079, %v1094
          %v1107 = vmul.f32 %v1080, %v1094
          %v1108 = vmul.f32 %v1081, %v1094
          %v1109 = vmul.f32 %v1082, %v1094
          %v1110 = vmul.f32 %v1083, %v1094
          %v1111 = vmul.f32 %v1084, %v1094
          %v1112 = vmul.f32 %v1085, %v1094
          %v1113 = vmul.f32 %v1086, %v1094
          %v1114 = vmul.f32 %v1087, %v1094
          %v1115 = vmul.f32 %v1088, %v1094
          %v1116 = vmul.f32 %v1089, %v1094
          %v1117 = vmul.f32 %v1090, %v1094
          %v1118 = vmul.f32 %v1091, %v1094
          %v1119 = vadd.f32 %v1044, %v1095
          %v1120 = vadd.f32 %v1045, %v1096
          %v1121 = vadd.f32 %v1046, %v1097
          %v1122 = vadd.f32 %v1047, %v1098
          %v1123 = vadd.f32 %v1048, %v1099
          %v1124 = vadd.f32 %v1049, %v1100
          %v1125 = vadd.f32 %v1050, %v1101
          %v1126 = vadd.f32 %v1051, %v1102
          %v1127 = vadd.f32 %v1052, %v1103
          %v1128 = vadd.f32 %v1053, %v1104
          %v1129 = vadd.f32 %v1054, %v1105
          %v1130 = vadd.f32 %v1055, %v1106
          %v1131 = vadd.f32 %v1056, %v1107
          %v1132 = vadd.f32 %v1057, %v1108
          %v1133 = vadd.f32 %v1058, %v1109
          %v1134 = vadd.f32 %v1059, %v1110
          %v1135 = vadd.f32 %v1060, %v1111
          %v1136 = vadd.f32 %v1061, %v1112
          %v1137 = vadd.f32 %v1062, %v1113
          %v1138 = vadd.f32 %v1063, %v1114
          %v1139 = vadd.f32 %v1064, %v1115
          %v1140 = vadd.f32 %v1065, %v1116
          %v1141 = vadd.f32 %v1066, %v1117
          %v1142 = vadd.f32 %v1067, %v1118
          %v1143 = vld [vmem:[%s917 + $0x3] sm:$0xff]
          %v1144 = vld [vmem:[%s917 + $0xb] sm:$0xf]
          %v1145 = vld [vmem:[%s917 + $0x13] sm:$0xff]
          %v1146 = vld [vmem:[%s917 + $0x1b] sm:$0xf]
          %v1147 = vld [vmem:[%s917 + $0x23] sm:$0xff]
          %v1148 = vld [vmem:[%s917 + $0x2b] sm:$0xf]
          %v1149 = vld [vmem:[%s917 + $0x33] sm:$0xff]
          %v1150 = vld [vmem:[%s917 + $0x3b] sm:$0xf]
          %v1151 = vld [vmem:[%s917 + $0x43] sm:$0xff]
          %v1152 = vld [vmem:[%s917 + $0x4b] sm:$0xf]
          %v1153 = vld [vmem:[%s917 + $0x53] sm:$0xff]
          %v1154 = vld [vmem:[%s917 + $0x5b] sm:$0xf]
          %v1155 = vld [vmem:[%s917 + $0x63] sm:$0xff]
          %v1156 = vld [vmem:[%s917 + $0x6b] sm:$0xf]
          %v1157 = vld [vmem:[%s917 + $0x73] sm:$0xff]
          %v1158 = vld [vmem:[%s917 + $0x7b] sm:$0xf]
          %v1159 = vld [vmem:[%s917 + $0x83] sm:$0xff]
          %v1160 = vld [vmem:[%s917 + $0x8b] sm:$0xf]
          %v1161 = vld [vmem:[%s917 + $0x93] sm:$0xff]
          %v1162 = vld [vmem:[%s917 + $0x9b] sm:$0xf]
          %v1163 = vld [vmem:[%s917 + $0xa3] sm:$0xff]
          %v1164 = vld [vmem:[%s917 + $0xab] sm:$0xf]
          %v1165 = vld [vmem:[%s917 + $0xb3] sm:$0xff]
          %v1166 = vld [vmem:[%s917 + $0xbb] sm:$0xf]
          %s1167 = sadd.s32 %s538, 64
          %s1168 = sld [smem:[#allocation6 + %s1167]]
          %v1169 = vstv %s1168
          %v1170 = vmul.f32 %v1143, %v1169
          %v1171 = vmul.f32 %v1144, %v1169
          %v1172 = vmul.f32 %v1145, %v1169
          %v1173 = vmul.f32 %v1146, %v1169
          %v1174 = vmul.f32 %v1147, %v1169
          %v1175 = vmul.f32 %v1148, %v1169
          %v1176 = vmul.f32 %v1149, %v1169
          %v1177 = vmul.f32 %v1150, %v1169
          %v1178 = vmul.f32 %v1151, %v1169
          %v1179 = vmul.f32 %v1152, %v1169
          %v1180 = vmul.f32 %v1153, %v1169
          %v1181 = vmul.f32 %v1154, %v1169
          %v1182 = vmul.f32 %v1155, %v1169
          %v1183 = vmul.f32 %v1156, %v1169
          %v1184 = vmul.f32 %v1157, %v1169
          %v1185 = vmul.f32 %v1158, %v1169
          %v1186 = vmul.f32 %v1159, %v1169
          %v1187 = vmul.f32 %v1160, %v1169
          %v1188 = vmul.f32 %v1161, %v1169
          %v1189 = vmul.f32 %v1162, %v1169
          %v1190 = vmul.f32 %v1163, %v1169
          %v1191 = vmul.f32 %v1164, %v1169
          %v1192 = vmul.f32 %v1165, %v1169
          %v1193 = vmul.f32 %v1166, %v1169
          %v1194 = vadd.f32 %v1119, %v1170
          %v1195 = vadd.f32 %v1120, %v1171
          %v1196 = vadd.f32 %v1121, %v1172
          %v1197 = vadd.f32 %v1122, %v1173
          %v1198 = vadd.f32 %v1123, %v1174
          %v1199 = vadd.f32 %v1124, %v1175
          %v1200 = vadd.f32 %v1125, %v1176
          %v1201 = vadd.f32 %v1126, %v1177
          %v1202 = vadd.f32 %v1127, %v1178
          %v1203 = vadd.f32 %v1128, %v1179
          %v1204 = vadd.f32 %v1129, %v1180
          %v1205 = vadd.f32 %v1130, %v1181
          %v1206 = vadd.f32 %v1131, %v1182
          %v1207 = vadd.f32 %v1132, %v1183
          %v1208 = vadd.f32 %v1133, %v1184
          %v1209 = vadd.f32 %v1134, %v1185
          %v1210 = vadd.f32 %v1135, %v1186
          %v1211 = vadd.f32 %v1136, %v1187
          %v1212 = vadd.f32 %v1137, %v1188
          %v1213 = vadd.f32 %v1138, %v1189
          %v1214 = vadd.f32 %v1139, %v1190
          %v1215 = vadd.f32 %v1140, %v1191
          %v1216 = vadd.f32 %v1141, %v1192
          %v1217 = vadd.f32 %v1142, %v1193
          %v1218 = vld [vmem:[%s917 + $0x4] sm:$0xff]
          %v1219 = vld [vmem:[%s917 + $0xc] sm:$0xf]
          %v1220 = vld [vmem:[%s917 + $0x14] sm:$0xff]
          %v1221 = vld [vmem:[%s917 + $0x1c] sm:$0xf]
          %v1222 = vld [vmem:[%s917 + $0x24] sm:$0xff]
          %v1223 = vld [vmem:[%s917 + $0x2c] sm:$0xf]
          %v1224 = vld [vmem:[%s917 + $0x34] sm:$0xff]
          %v1225 = vld [vmem:[%s917 + $0x3c] sm:$0xf]
          %v1226 = vld [vmem:[%s917 + $0x44] sm:$0xff]
          %v1227 = vld [vmem:[%s917 + $0x4c] sm:$0xf]
          %v1228 = vld [vmem:[%s917 + $0x54] sm:$0xff]
          %v1229 = vld [vmem:[%s917 + $0x5c] sm:$0xf]
          %v1230 = vld [vmem:[%s917 + $0x64] sm:$0xff]
          %v1231 = vld [vmem:[%s917 + $0x6c] sm:$0xf]
          %v1232 = vld [vmem:[%s917 + $0x74] sm:$0xff]
          %v1233 = vld [vmem:[%s917 + $0x7c] sm:$0xf]
          %v1234 = vld [vmem:[%s917 + $0x84] sm:$0xff]
          %v1235 = vld [vmem:[%s917 + $0x8c] sm:$0xf]
          %v1236 = vld [vmem:[%s917 + $0x94] sm:$0xff]
          %v1237 = vld [vmem:[%s917 + $0x9c] sm:$0xf]
          %v1238 = vld [vmem:[%s917 + $0xa4] sm:$0xff]
          %v1239 = vld [vmem:[%s917 + $0xac] sm:$0xf]
          %v1240 = vld [vmem:[%s917 + $0xb4] sm:$0xff]
          %v1241 = vld [vmem:[%s917 + $0xbc] sm:$0xf]
          %s1242 = sadd.s32 %s538, 72
          %s1243 = sld [smem:[#allocation6 + %s1242]]
          %v1244 = vstv %s1243
          %v1245 = vmul.f32 %v1218, %v1244
          %v1246 = vmul.f32 %v1219, %v1244
          %v1247 = vmul.f32 %v1220, %v1244
          %v1248 = vmul.f32 %v1221, %v1244
          %v1249 = vmul.f32 %v1222, %v1244
          %v1250 = vmul.f32 %v1223, %v1244
          %v1251 = vmul.f32 %v1224, %v1244
          %v1252 = vmul.f32 %v1225, %v1244
          %v1253 = vmul.f32 %v1226, %v1244
          %v1254 = vmul.f32 %v1227, %v1244
          %v1255 = vmul.f32 %v1228, %v1244
          %v1256 = vmul.f32 %v1229, %v1244
          %v1257 = vmul.f32 %v1230, %v1244
          %v1258 = vmul.f32 %v1231, %v1244
          %v1259 = vmul.f32 %v1232, %v1244
          %v1260 = vmul.f32 %v1233, %v1244
          %v1261 = vmul.f32 %v1234, %v1244
          %v1262 = vmul.f32 %v1235, %v1244
          %v1263 = vmul.f32 %v1236, %v1244
          %v1264 = vmul.f32 %v1237, %v1244
          %v1265 = vmul.f32 %v1238, %v1244
          %v1266 = vmul.f32 %v1239, %v1244
          %v1267 = vmul.f32 %v1240, %v1244
          %v1268 = vmul.f32 %v1241, %v1244
          %v1269 = vadd.f32 %v1194, %v1245
          %v1270 = vadd.f32 %v1195, %v1246
          %v1271 = vadd.f32 %v1196, %v1247
          %v1272 = vadd.f32 %v1197, %v1248
          %v1273 = vadd.f32 %v1198, %v1249
          %v1274 = vadd.f32 %v1199, %v1250
          %v1275 = vadd.f32 %v1200, %v1251
          %v1276 = vadd.f32 %v1201, %v1252
          %v1277 = vadd.f32 %v1202, %v1253
          %v1278 = vadd.f32 %v1203, %v1254
          %v1279 = vadd.f32 %v1204, %v1255
          %v1280 = vadd.f32 %v1205, %v1256
          %v1281 = vadd.f32 %v1206, %v1257
          %v1282 = vadd.f32 %v1207, %v1258
          %v1283 = vadd.f32 %v1208, %v1259
          %v1284 = vadd.f32 %v1209, %v1260
          %v1285 = vadd.f32 %v1210, %v1261
          %v1286 = vadd.f32 %v1211, %v1262
          %v1287 = vadd.f32 %v1212, %v1263
          %v1288 = vadd.f32 %v1213, %v1264
          %v1289 = vadd.f32 %v1214, %v1265
          %v1290 = vadd.f32 %v1215, %v1266
          %v1291 = vadd.f32 %v1216, %v1267
          %v1292 = vadd.f32 %v1217, %v1268
          %s1293 = scalar_lea.vmem %s488, 32 [#allocation5]
          %v1294 = vld [vmem:[%s1293] sm:$0xff]
          %v1295 = vld [vmem:[%s1293 + $0x8] sm:$0xf]
          %v1296 = vld [vmem:[%s1293 + $0x10] sm:$0xff]
          %v1297 = vld [vmem:[%s1293 + $0x18] sm:$0xf]
          %v1298 = vld [vmem:[%s1293 + $0x20] sm:$0xff]
          %v1299 = vld [vmem:[%s1293 + $0x28] sm:$0xf]
          %v1300 = vld [vmem:[%s1293 + $0x30] sm:$0xff]
          %v1301 = vld [vmem:[%s1293 + $0x38] sm:$0xf]
          %v1302 = vld [vmem:[%s1293 + $0x40] sm:$0xff]
          %v1303 = vld [vmem:[%s1293 + $0x48] sm:$0xf]
          %v1304 = vld [vmem:[%s1293 + $0x50] sm:$0xff]
          %v1305 = vld [vmem:[%s1293 + $0x58] sm:$0xf]
          %v1306 = vld [vmem:[%s1293 + $0x60] sm:$0xff]
          %v1307 = vld [vmem:[%s1293 + $0x68] sm:$0xf]
          %v1308 = vld [vmem:[%s1293 + $0x70] sm:$0xff]
          %v1309 = vld [vmem:[%s1293 + $0x78] sm:$0xf]
          %v1310 = vld [vmem:[%s1293 + $0x80] sm:$0xff]
          %v1311 = vld [vmem:[%s1293 + $0x88] sm:$0xf]
          %v1312 = vld [vmem:[%s1293 + $0x90] sm:$0xff]
          %v1313 = vld [vmem:[%s1293 + $0x98] sm:$0xf]
          %v1314 = vld [vmem:[%s1293 + $0xa0] sm:$0xff]
          %v1315 = vld [vmem:[%s1293 + $0xa8] sm:$0xf]
          %v1316 = vld [vmem:[%s1293 + $0xb0] sm:$0xff]
          %v1317 = vld [vmem:[%s1293 + $0xb8] sm:$0xf]
          %s1318 = sadd.s32 %s538, 80
          %s1319 = sld [smem:[#allocation6 + %s1318]]
          %v1320 = vstv %s1319
          %v1321 = vmul.f32 %v1294, %v1320
          %v1322 = vmul.f32 %v1295, %v1320
          %v1323 = vmul.f32 %v1296, %v1320
          %v1324 = vmul.f32 %v1297, %v1320
          %v1325 = vmul.f32 %v1298, %v1320
          %v1326 = vmul.f32 %v1299, %v1320
          %v1327 = vmul.f32 %v1300, %v1320
          %v1328 = vmul.f32 %v1301, %v1320
          %v1329 = vmul.f32 %v1302, %v1320
          %v1330 = vmul.f32 %v1303, %v1320
          %v1331 = vmul.f32 %v1304, %v1320
          %v1332 = vmul.f32 %v1305, %v1320
          %v1333 = vmul.f32 %v1306, %v1320
          %v1334 = vmul.f32 %v1307, %v1320
          %v1335 = vmul.f32 %v1308, %v1320
          %v1336 = vmul.f32 %v1309, %v1320
          %v1337 = vmul.f32 %v1310, %v1320
          %v1338 = vmul.f32 %v1311, %v1320
          %v1339 = vmul.f32 %v1312, %v1320
          %v1340 = vmul.f32 %v1313, %v1320
          %v1341 = vmul.f32 %v1314, %v1320
          %v1342 = vmul.f32 %v1315, %v1320
          %v1343 = vmul.f32 %v1316, %v1320
          %v1344 = vmul.f32 %v1317, %v1320
          %v1345 = vadd.f32 %v1269, %v1321
          %v1346 = vadd.f32 %v1270, %v1322
          %v1347 = vadd.f32 %v1271, %v1323
          %v1348 = vadd.f32 %v1272, %v1324
          %v1349 = vadd.f32 %v1273, %v1325
          %v1350 = vadd.f32 %v1274, %v1326
          %v1351 = vadd.f32 %v1275, %v1327
          %v1352 = vadd.f32 %v1276, %v1328
          %v1353 = vadd.f32 %v1277, %v1329
          %v1354 = vadd.f32 %v1278, %v1330
          %v1355 = vadd.f32 %v1279, %v1331
          %v1356 = vadd.f32 %v1280, %v1332
          %v1357 = vadd.f32 %v1281, %v1333
          %v1358 = vadd.f32 %v1282, %v1334
          %v1359 = vadd.f32 %v1283, %v1335
          %v1360 = vadd.f32 %v1284, %v1336
          %v1361 = vadd.f32 %v1285, %v1337
          %v1362 = vadd.f32 %v1286, %v1338
          %v1363 = vadd.f32 %v1287, %v1339
          %v1364 = vadd.f32 %v1288, %v1340
          %v1365 = vadd.f32 %v1289, %v1341
          %v1366 = vadd.f32 %v1290, %v1342
          %v1367 = vadd.f32 %v1291, %v1343
          %v1368 = vadd.f32 %v1292, %v1344
          %v1369 = vld [vmem:[%s1293 + $0x1] sm:$0xff]
          %v1370 = vld [vmem:[%s1293 + $0x9] sm:$0xf]
          %v1371 = vld [vmem:[%s1293 + $0x11] sm:$0xff]
          %v1372 = vld [vmem:[%s1293 + $0x19] sm:$0xf]
          %v1373 = vld [vmem:[%s1293 + $0x21] sm:$0xff]
          %v1374 = vld [vmem:[%s1293 + $0x29] sm:$0xf]
          %v1375 = vld [vmem:[%s1293 + $0x31] sm:$0xff]
          %v1376 = vld [vmem:[%s1293 + $0x39] sm:$0xf]
          %v1377 = vld [vmem:[%s1293 + $0x41] sm:$0xff]
          %v1378 = vld [vmem:[%s1293 + $0x49] sm:$0xf]
          %v1379 = vld [vmem:[%s1293 + $0x51] sm:$0xff]
          %v1380 = vld [vmem:[%s1293 + $0x59] sm:$0xf]
          %v1381 = vld [vmem:[%s1293 + $0x61] sm:$0xff]
          %v1382 = vld [vmem:[%s1293 + $0x69] sm:$0xf]
          %v1383 = vld [vmem:[%s1293 + $0x71] sm:$0xff]
          %v1384 = vld [vmem:[%s1293 + $0x79] sm:$0xf]
          %v1385 = vld [vmem:[%s1293 + $0x81] sm:$0xff]
          %v1386 = vld [vmem:[%s1293 + $0x89] sm:$0xf]
          %v1387 = vld [vmem:[%s1293 + $0x91] sm:$0xff]
          %v1388 = vld [vmem:[%s1293 + $0x99] sm:$0xf]
          %v1389 = vld [vmem:[%s1293 + $0xa1] sm:$0xff]
          %v1390 = vld [vmem:[%s1293 + $0xa9] sm:$0xf]
          %v1391 = vld [vmem:[%s1293 + $0xb1] sm:$0xff]
          %v1392 = vld [vmem:[%s1293 + $0xb9] sm:$0xf]
          %s1393 = sadd.s32 %s538, 88
          %s1394 = sld [smem:[#allocation6 + %s1393]]
          %v1395 = vstv %s1394
          %v1396 = vmul.f32 %v1369, %v1395
          %v1397 = vmul.f32 %v1370, %v1395
          %v1398 = vmul.f32 %v1371, %v1395
          %v1399 = vmul.f32 %v1372, %v1395
          %v1400 = vmul.f32 %v1373, %v1395
          %v1401 = vmul.f32 %v1374, %v1395
          %v1402 = vmul.f32 %v1375, %v1395
          %v1403 = vmul.f32 %v1376, %v1395
          %v1404 = vmul.f32 %v1377, %v1395
          %v1405 = vmul.f32 %v1378, %v1395
          %v1406 = vmul.f32 %v1379, %v1395
          %v1407 = vmul.f32 %v1380, %v1395
          %v1408 = vmul.f32 %v1381, %v1395
          %v1409 = vmul.f32 %v1382, %v1395
          %v1410 = vmul.f32 %v1383, %v1395
          %v1411 = vmul.f32 %v1384, %v1395
          %v1412 = vmul.f32 %v1385, %v1395
          %v1413 = vmul.f32 %v1386, %v1395
          %v1414 = vmul.f32 %v1387, %v1395
          %v1415 = vmul.f32 %v1388, %v1395
          %v1416 = vmul.f32 %v1389, %v1395
          %v1417 = vmul.f32 %v1390, %v1395
          %v1418 = vmul.f32 %v1391, %v1395
          %v1419 = vmul.f32 %v1392, %v1395
          %v1420 = vadd.f32 %v1345, %v1396
          %v1421 = vadd.f32 %v1346, %v1397
          %v1422 = vadd.f32 %v1347, %v1398
          %v1423 = vadd.f32 %v1348, %v1399
          %v1424 = vadd.f32 %v1349, %v1400
          %v1425 = vadd.f32 %v1350, %v1401
          %v1426 = vadd.f32 %v1351, %v1402
          %v1427 = vadd.f32 %v1352, %v1403
          %v1428 = vadd.f32 %v1353, %v1404
          %v1429 = vadd.f32 %v1354, %v1405
          %v1430 = vadd.f32 %v1355, %v1406
          %v1431 = vadd.f32 %v1356, %v1407
          %v1432 = vadd.f32 %v1357, %v1408
          %v1433 = vadd.f32 %v1358, %v1409
          %v1434 = vadd.f32 %v1359, %v1410
          %v1435 = vadd.f32 %v1360, %v1411
          %v1436 = vadd.f32 %v1361, %v1412
          %v1437 = vadd.f32 %v1362, %v1413
          %v1438 = vadd.f32 %v1363, %v1414
          %v1439 = vadd.f32 %v1364, %v1415
          %v1440 = vadd.f32 %v1365, %v1416
          %v1441 = vadd.f32 %v1366, %v1417
          %v1442 = vadd.f32 %v1367, %v1418
          %v1443 = vadd.f32 %v1368, %v1419
          %v1444 = vld [vmem:[%s1293 + $0x2] sm:$0xff]
          %v1445 = vld [vmem:[%s1293 + $0xa] sm:$0xf]
          %v1446 = vld [vmem:[%s1293 + $0x12] sm:$0xff]
          %v1447 = vld [vmem:[%s1293 + $0x1a] sm:$0xf]
          %v1448 = vld [vmem:[%s1293 + $0x22] sm:$0xff]
          %v1449 = vld [vmem:[%s1293 + $0x2a] sm:$0xf]
          %v1450 = vld [vmem:[%s1293 + $0x32] sm:$0xff]
          %v1451 = vld [vmem:[%s1293 + $0x3a] sm:$0xf]
          %v1452 = vld [vmem:[%s1293 + $0x42] sm:$0xff]
          %v1453 = vld [vmem:[%s1293 + $0x4a] sm:$0xf]
          %v1454 = vld [vmem:[%s1293 + $0x52] sm:$0xff]
          %v1455 = vld [vmem:[%s1293 + $0x5a] sm:$0xf]
          %v1456 = vld [vmem:[%s1293 + $0x62] sm:$0xff]
          %v1457 = vld [vmem:[%s1293 + $0x6a] sm:$0xf]
          %v1458 = vld [vmem:[%s1293 + $0x72] sm:$0xff]
          %v1459 = vld [vmem:[%s1293 + $0x7a] sm:$0xf]
          %v1460 = vld [vmem:[%s1293 + $0x82] sm:$0xff]
          %v1461 = vld [vmem:[%s1293 + $0x8a] sm:$0xf]
          %v1462 = vld [vmem:[%s1293 + $0x92] sm:$0xff]
          %v1463 = vld [vmem:[%s1293 + $0x9a] sm:$0xf]
          %v1464 = vld [vmem:[%s1293 + $0xa2] sm:$0xff]
          %v1465 = vld [vmem:[%s1293 + $0xaa] sm:$0xf]
          %v1466 = vld [vmem:[%s1293 + $0xb2] sm:$0xff]
          %v1467 = vld [vmem:[%s1293 + $0xba] sm:$0xf]
          %s1468 = sadd.s32 %s538, 96
          %s1469 = sld [smem:[#allocation6 + %s1468]]
          %v1470 = vstv %s1469
          %v1471 = vmul.f32 %v1444, %v1470
          %v1472 = vmul.f32 %v1445, %v1470
          %v1473 = vmul.f32 %v1446, %v1470
          %v1474 = vmul.f32 %v1447, %v1470
          %v1475 = vmul.f32 %v1448, %v1470
          %v1476 = vmul.f32 %v1449, %v1470
          %v1477 = vmul.f32 %v1450, %v1470
          %v1478 = vmul.f32 %v1451, %v1470
          %v1479 = vmul.f32 %v1452, %v1470
          %v1480 = vmul.f32 %v1453, %v1470
          %v1481 = vmul.f32 %v1454, %v1470
          %v1482 = vmul.f32 %v1455, %v1470
          %v1483 = vmul.f32 %v1456, %v1470
          %v1484 = vmul.f32 %v1457, %v1470
          %v1485 = vmul.f32 %v1458, %v1470
          %v1486 = vmul.f32 %v1459, %v1470
          %v1487 = vmul.f32 %v1460, %v1470
          %v1488 = vmul.f32 %v1461, %v1470
          %v1489 = vmul.f32 %v1462, %v1470
          %v1490 = vmul.f32 %v1463, %v1470
          %v1491 = vmul.f32 %v1464, %v1470
          %v1492 = vmul.f32 %v1465, %v1470
          %v1493 = vmul.f32 %v1466, %v1470
          %v1494 = vmul.f32 %v1467, %v1470
          %v1495 = vadd.f32 %v1420, %v1471
          %v1496 = vadd.f32 %v1421, %v1472
          %v1497 = vadd.f32 %v1422, %v1473
          %v1498 = vadd.f32 %v1423, %v1474
          %v1499 = vadd.f32 %v1424, %v1475
          %v1500 = vadd.f32 %v1425, %v1476
          %v1501 = vadd.f32 %v1426, %v1477
          %v1502 = vadd.f32 %v1427, %v1478
          %v1503 = vadd.f32 %v1428, %v1479
          %v1504 = vadd.f32 %v1429, %v1480
          %v1505 = vadd.f32 %v1430, %v1481
          %v1506 = vadd.f32 %v1431, %v1482
          %v1507 = vadd.f32 %v1432, %v1483
          %v1508 = vadd.f32 %v1433, %v1484
          %v1509 = vadd.f32 %v1434, %v1485
          %v1510 = vadd.f32 %v1435, %v1486
          %v1511 = vadd.f32 %v1436, %v1487
          %v1512 = vadd.f32 %v1437, %v1488
          %v1513 = vadd.f32 %v1438, %v1489
          %v1514 = vadd.f32 %v1439, %v1490
          %v1515 = vadd.f32 %v1440, %v1491
          %v1516 = vadd.f32 %v1441, %v1492
          %v1517 = vadd.f32 %v1442, %v1493
          %v1518 = vadd.f32 %v1443, %v1494
          %v1519 = vld [vmem:[%s1293 + $0x3] sm:$0xff]
          %v1520 = vld [vmem:[%s1293 + $0xb] sm:$0xf]
          %v1521 = vld [vmem:[%s1293 + $0x13] sm:$0xff]
          %v1522 = vld [vmem:[%s1293 + $0x1b] sm:$0xf]
          %v1523 = vld [vmem:[%s1293 + $0x23] sm:$0xff]
          %v1524 = vld [vmem:[%s1293 + $0x2b] sm:$0xf]
          %v1525 = vld [vmem:[%s1293 + $0x33] sm:$0xff]
          %v1526 = vld [vmem:[%s1293 + $0x3b] sm:$0xf]
          %v1527 = vld [vmem:[%s1293 + $0x43] sm:$0xff]
          %v1528 = vld [vmem:[%s1293 + $0x4b] sm:$0xf]
          %v1529 = vld [vmem:[%s1293 + $0x53] sm:$0xff]
          %v1530 = vld [vmem:[%s1293 + $0x5b] sm:$0xf]
          %v1531 = vld [vmem:[%s1293 + $0x63] sm:$0xff]
          %v1532 = vld [vmem:[%s1293 + $0x6b] sm:$0xf]
          %v1533 = vld [vmem:[%s1293 + $0x73] sm:$0xff]
          %v1534 = vld [vmem:[%s1293 + $0x7b] sm:$0xf]
          %v1535 = vld [vmem:[%s1293 + $0x83] sm:$0xff]
          %v1536 = vld [vmem:[%s1293 + $0x8b] sm:$0xf]
          %v1537 = vld [vmem:[%s1293 + $0x93] sm:$0xff]
          %v1538 = vld [vmem:[%s1293 + $0x9b] sm:$0xf]
          %v1539 = vld [vmem:[%s1293 + $0xa3] sm:$0xff]
          %v1540 = vld [vmem:[%s1293 + $0xab] sm:$0xf]
          %v1541 = vld [vmem:[%s1293 + $0xb3] sm:$0xff]
          %v1542 = vld [vmem:[%s1293 + $0xbb] sm:$0xf]
          %s1543 = sadd.s32 %s538, 104
          %s1544 = sld [smem:[#allocation6 + %s1543]]
          %v1545 = vstv %s1544
          %v1546 = vmul.f32 %v1519, %v1545
          %v1547 = vmul.f32 %v1520, %v1545
          %v1548 = vmul.f32 %v1521, %v1545
          %v1549 = vmul.f32 %v1522, %v1545
          %v1550 = vmul.f32 %v1523, %v1545
          %v1551 = vmul.f32 %v1524, %v1545
          %v1552 = vmul.f32 %v1525, %v1545
          %v1553 = vmul.f32 %v1526, %v1545
          %v1554 = vmul.f32 %v1527, %v1545
          %v1555 = vmul.f32 %v1528, %v1545
          %v1556 = vmul.f32 %v1529, %v1545
          %v1557 = vmul.f32 %v1530, %v1545
          %v1558 = vmul.f32 %v1531, %v1545
          %v1559 = vmul.f32 %v1532, %v1545
          %v1560 = vmul.f32 %v1533, %v1545
          %v1561 = vmul.f32 %v1534, %v1545
          %v1562 = vmul.f32 %v1535, %v1545
          %v1563 = vmul.f32 %v1536, %v1545
          %v1564 = vmul.f32 %v1537, %v1545
          %v1565 = vmul.f32 %v1538, %v1545
          %v1566 = vmul.f32 %v1539, %v1545
          %v1567 = vmul.f32 %v1540, %v1545
          %v1568 = vmul.f32 %v1541, %v1545
          %v1569 = vmul.f32 %v1542, %v1545
          %v1570 = vadd.f32 %v1495, %v1546
          %v1571 = vadd.f32 %v1496, %v1547
          %v1572 = vadd.f32 %v1497, %v1548
          %v1573 = vadd.f32 %v1498, %v1549
          %v1574 = vadd.f32 %v1499, %v1550
          %v1575 = vadd.f32 %v1500, %v1551
          %v1576 = vadd.f32 %v1501, %v1552
          %v1577 = vadd.f32 %v1502, %v1553
          %v1578 = vadd.f32 %v1503, %v1554
          %v1579 = vadd.f32 %v1504, %v1555
          %v1580 = vadd.f32 %v1505, %v1556
          %v1581 = vadd.f32 %v1506, %v1557
          %v1582 = vadd.f32 %v1507, %v1558
          %v1583 = vadd.f32 %v1508, %v1559
          %v1584 = vadd.f32 %v1509, %v1560
          %v1585 = vadd.f32 %v1510, %v1561
          %v1586 = vadd.f32 %v1511, %v1562
          %v1587 = vadd.f32 %v1512, %v1563
          %v1588 = vadd.f32 %v1513, %v1564
          %v1589 = vadd.f32 %v1514, %v1565
          %v1590 = vadd.f32 %v1515, %v1566
          %v1591 = vadd.f32 %v1516, %v1567
          %v1592 = vadd.f32 %v1517, %v1568
          %v1593 = vadd.f32 %v1518, %v1569
          %v1594 = vld [vmem:[%s1293 + $0x4] sm:$0xff]
          %v1595 = vld [vmem:[%s1293 + $0xc] sm:$0xf]
          %v1596 = vld [vmem:[%s1293 + $0x14] sm:$0xff]
          %v1597 = vld [vmem:[%s1293 + $0x1c] sm:$0xf]
          %v1598 = vld [vmem:[%s1293 + $0x24] sm:$0xff]
          %v1599 = vld [vmem:[%s1293 + $0x2c] sm:$0xf]
          %v1600 = vld [vmem:[%s1293 + $0x34] sm:$0xff]
          %v1601 = vld [vmem:[%s1293 + $0x3c] sm:$0xf]
          %v1602 = vld [vmem:[%s1293 + $0x44] sm:$0xff]
          %v1603 = vld [vmem:[%s1293 + $0x4c] sm:$0xf]
          %v1604 = vld [vmem:[%s1293 + $0x54] sm:$0xff]
          %v1605 = vld [vmem:[%s1293 + $0x5c] sm:$0xf]
          %v1606 = vld [vmem:[%s1293 + $0x64] sm:$0xff]
          %v1607 = vld [vmem:[%s1293 + $0x6c] sm:$0xf]
          %v1608 = vld [vmem:[%s1293 + $0x74] sm:$0xff]
          %v1609 = vld [vmem:[%s1293 + $0x7c] sm:$0xf]
          %v1610 = vld [vmem:[%s1293 + $0x84] sm:$0xff]
          %v1611 = vld [vmem:[%s1293 + $0x8c] sm:$0xf]
          %v1612 = vld [vmem:[%s1293 + $0x94] sm:$0xff]
          %v1613 = vld [vmem:[%s1293 + $0x9c] sm:$0xf]
          %v1614 = vld [vmem:[%s1293 + $0xa4] sm:$0xff]
          %v1615 = vld [vmem:[%s1293 + $0xac] sm:$0xf]
          %v1616 = vld [vmem:[%s1293 + $0xb4] sm:$0xff]
          %v1617 = vld [vmem:[%s1293 + $0xbc] sm:$0xf]
          %s1618 = sadd.s32 %s538, 112
          %s1619 = sld [smem:[#allocation6 + %s1618]]
          %v1620 = vstv %s1619
          %v1621 = vmul.f32 %v1594, %v1620
          %v1622 = vmul.f32 %v1595, %v1620
          %v1623 = vmul.f32 %v1596, %v1620
          %v1624 = vmul.f32 %v1597, %v1620
          %v1625 = vmul.f32 %v1598, %v1620
          %v1626 = vmul.f32 %v1599, %v1620
          %v1627 = vmul.f32 %v1600, %v1620
          %v1628 = vmul.f32 %v1601, %v1620
          %v1629 = vmul.f32 %v1602, %v1620
          %v1630 = vmul.f32 %v1603, %v1620
          %v1631 = vmul.f32 %v1604, %v1620
          %v1632 = vmul.f32 %v1605, %v1620
          %v1633 = vmul.f32 %v1606, %v1620
          %v1634 = vmul.f32 %v1607, %v1620
          %v1635 = vmul.f32 %v1608, %v1620
          %v1636 = vmul.f32 %v1609, %v1620
          %v1637 = vmul.f32 %v1610, %v1620
          %v1638 = vmul.f32 %v1611, %v1620
          %v1639 = vmul.f32 %v1612, %v1620
          %v1640 = vmul.f32 %v1613, %v1620
          %v1641 = vmul.f32 %v1614, %v1620
          %v1642 = vmul.f32 %v1615, %v1620
          %v1643 = vmul.f32 %v1616, %v1620
          %v1644 = vmul.f32 %v1617, %v1620
          %v1645 = vadd.f32 %v1570, %v1621
          %v1646 = vadd.f32 %v1571, %v1622
          %v1647 = vadd.f32 %v1572, %v1623
          %v1648 = vadd.f32 %v1573, %v1624
          %v1649 = vadd.f32 %v1574, %v1625
          %v1650 = vadd.f32 %v1575, %v1626
          %v1651 = vadd.f32 %v1576, %v1627
          %v1652 = vadd.f32 %v1577, %v1628
          %v1653 = vadd.f32 %v1578, %v1629
          %v1654 = vadd.f32 %v1579, %v1630
          %v1655 = vadd.f32 %v1580, %v1631
          %v1656 = vadd.f32 %v1581, %v1632
          %v1657 = vadd.f32 %v1582, %v1633
          %v1658 = vadd.f32 %v1583, %v1634
          %v1659 = vadd.f32 %v1584, %v1635
          %v1660 = vadd.f32 %v1585, %v1636
          %v1661 = vadd.f32 %v1586, %v1637
          %v1662 = vadd.f32 %v1587, %v1638
          %v1663 = vadd.f32 %v1588, %v1639
          %v1664 = vadd.f32 %v1589, %v1640
          %v1665 = vadd.f32 %v1590, %v1641
          %v1666 = vadd.f32 %v1591, %v1642
          %v1667 = vadd.f32 %v1592, %v1643
          %v1668 = vadd.f32 %v1593, %v1644
          %s1669 = scalar_lea.vmem %s488, 48 [#allocation5]
          %v1670 = vld [vmem:[%s1669] sm:$0xff]
          %v1671 = vld [vmem:[%s1669 + $0x8] sm:$0xf]
          %v1672 = vld [vmem:[%s1669 + $0x10] sm:$0xff]
          %v1673 = vld [vmem:[%s1669 + $0x18] sm:$0xf]
          %v1674 = vld [vmem:[%s1669 + $0x20] sm:$0xff]
          %v1675 = vld [vmem:[%s1669 + $0x28] sm:$0xf]
          %v1676 = vld [vmem:[%s1669 + $0x30] sm:$0xff]
          %v1677 = vld [vmem:[%s1669 + $0x38] sm:$0xf]
          %v1678 = vld [vmem:[%s1669 + $0x40] sm:$0xff]
          %v1679 = vld [vmem:[%s1669 + $0x48] sm:$0xf]
          %v1680 = vld [vmem:[%s1669 + $0x50] sm:$0xff]
          %v1681 = vld [vmem:[%s1669 + $0x58] sm:$0xf]
          %v1682 = vld [vmem:[%s1669 + $0x60] sm:$0xff]
          %v1683 = vld [vmem:[%s1669 + $0x68] sm:$0xf]
          %v1684 = vld [vmem:[%s1669 + $0x70] sm:$0xff]
          %v1685 = vld [vmem:[%s1669 + $0x78] sm:$0xf]
          %v1686 = vld [vmem:[%s1669 + $0x80] sm:$0xff]
          %v1687 = vld [vmem:[%s1669 + $0x88] sm:$0xf]
          %v1688 = vld [vmem:[%s1669 + $0x90] sm:$0xff]
          %v1689 = vld [vmem:[%s1669 + $0x98] sm:$0xf]
          %v1690 = vld [vmem:[%s1669 + $0xa0] sm:$0xff]
          %v1691 = vld [vmem:[%s1669 + $0xa8] sm:$0xf]
          %v1692 = vld [vmem:[%s1669 + $0xb0] sm:$0xff]
          %v1693 = vld [vmem:[%s1669 + $0xb8] sm:$0xf]
          %s1694 = sadd.s32 %s538, 120
          %s1695 = sld [smem:[#allocation6 + %s1694]]
          %v1696 = vstv %s1695
          %v1697 = vmul.f32 %v1670, %v1696
          %v1698 = vmul.f32 %v1671, %v1696
          %v1699 = vmul.f32 %v1672, %v1696
          %v1700 = vmul.f32 %v1673, %v1696
          %v1701 = vmul.f32 %v1674, %v1696
          %v1702 = vmul.f32 %v1675, %v1696
          %v1703 = vmul.f32 %v1676, %v1696
          %v1704 = vmul.f32 %v1677, %v1696
          %v1705 = vmul.f32 %v1678, %v1696
          %v1706 = vmul.f32 %v1679, %v1696
          %v1707 = vmul.f32 %v1680, %v1696
          %v1708 = vmul.f32 %v1681, %v1696
          %v1709 = vmul.f32 %v1682, %v1696
          %v1710 = vmul.f32 %v1683, %v1696
          %v1711 = vmul.f32 %v1684, %v1696
          %v1712 = vmul.f32 %v1685, %v1696
          %v1713 = vmul.f32 %v1686, %v1696
          %v1714 = vmul.f32 %v1687, %v1696
          %v1715 = vmul.f32 %v1688, %v1696
          %v1716 = vmul.f32 %v1689, %v1696
          %v1717 = vmul.f32 %v1690, %v1696
          %v1718 = vmul.f32 %v1691, %v1696
          %v1719 = vmul.f32 %v1692, %v1696
          %v1720 = vmul.f32 %v1693, %v1696
          %v1721 = vadd.f32 %v1645, %v1697
          %v1722 = vadd.f32 %v1646, %v1698
          %v1723 = vadd.f32 %v1647, %v1699
          %v1724 = vadd.f32 %v1648, %v1700
          %v1725 = vadd.f32 %v1649, %v1701
          %v1726 = vadd.f32 %v1650, %v1702
          %v1727 = vadd.f32 %v1651, %v1703
          %v1728 = vadd.f32 %v1652, %v1704
          %v1729 = vadd.f32 %v1653, %v1705
          %v1730 = vadd.f32 %v1654, %v1706
          %v1731 = vadd.f32 %v1655, %v1707
          %v1732 = vadd.f32 %v1656, %v1708
          %v1733 = vadd.f32 %v1657, %v1709
          %v1734 = vadd.f32 %v1658, %v1710
          %v1735 = vadd.f32 %v1659, %v1711
          %v1736 = vadd.f32 %v1660, %v1712
          %v1737 = vadd.f32 %v1661, %v1713
          %v1738 = vadd.f32 %v1662, %v1714
          %v1739 = vadd.f32 %v1663, %v1715
          %v1740 = vadd.f32 %v1664, %v1716
          %v1741 = vadd.f32 %v1665, %v1717
          %v1742 = vadd.f32 %v1666, %v1718
          %v1743 = vadd.f32 %v1667, %v1719
          %v1744 = vadd.f32 %v1668, %v1720
          %v1745 = vld [vmem:[%s1669 + $0x1] sm:$0xff]
          %v1746 = vld [vmem:[%s1669 + $0x9] sm:$0xf]
          %v1747 = vld [vmem:[%s1669 + $0x11] sm:$0xff]
          %v1748 = vld [vmem:[%s1669 + $0x19] sm:$0xf]
          %v1749 = vld [vmem:[%s1669 + $0x21] sm:$0xff]
          %v1750 = vld [vmem:[%s1669 + $0x29] sm:$0xf]
          %v1751 = vld [vmem:[%s1669 + $0x31] sm:$0xff]
          %v1752 = vld [vmem:[%s1669 + $0x39] sm:$0xf]
          %v1753 = vld [vmem:[%s1669 + $0x41] sm:$0xff]
          %v1754 = vld [vmem:[%s1669 + $0x49] sm:$0xf]
          %v1755 = vld [vmem:[%s1669 + $0x51] sm:$0xff]
          %v1756 = vld [vmem:[%s1669 + $0x59] sm:$0xf]
          %v1757 = vld [vmem:[%s1669 + $0x61] sm:$0xff]
          %v1758 = vld [vmem:[%s1669 + $0x69] sm:$0xf]
          %v1759 = vld [vmem:[%s1669 + $0x71] sm:$0xff]
          %v1760 = vld [vmem:[%s1669 + $0x79] sm:$0xf]
          %v1761 = vld [vmem:[%s1669 + $0x81] sm:$0xff]
          %v1762 = vld [vmem:[%s1669 + $0x89] sm:$0xf]
          %v1763 = vld [vmem:[%s1669 + $0x91] sm:$0xff]
          %v1764 = vld [vmem:[%s1669 + $0x99] sm:$0xf]
          %v1765 = vld [vmem:[%s1669 + $0xa1] sm:$0xff]
          %v1766 = vld [vmem:[%s1669 + $0xa9] sm:$0xf]
          %v1767 = vld [vmem:[%s1669 + $0xb1] sm:$0xff]
          %v1768 = vld [vmem:[%s1669 + $0xb9] sm:$0xf]
          %s1769 = sadd.s32 %s538, 128
          %s1770 = sld [smem:[#allocation6 + %s1769]]
          %v1771 = vstv %s1770
          %v1772 = vmul.f32 %v1745, %v1771
          %v1773 = vmul.f32 %v1746, %v1771
          %v1774 = vmul.f32 %v1747, %v1771
          %v1775 = vmul.f32 %v1748, %v1771
          %v1776 = vmul.f32 %v1749, %v1771
          %v1777 = vmul.f32 %v1750, %v1771
          %v1778 = vmul.f32 %v1751, %v1771
          %v1779 = vmul.f32 %v1752, %v1771
          %v1780 = vmul.f32 %v1753, %v1771
          %v1781 = vmul.f32 %v1754, %v1771
          %v1782 = vmul.f32 %v1755, %v1771
          %v1783 = vmul.f32 %v1756, %v1771
          %v1784 = vmul.f32 %v1757, %v1771
          %v1785 = vmul.f32 %v1758, %v1771
          %v1786 = vmul.f32 %v1759, %v1771
          %v1787 = vmul.f32 %v1760, %v1771
          %v1788 = vmul.f32 %v1761, %v1771
          %v1789 = vmul.f32 %v1762, %v1771
          %v1790 = vmul.f32 %v1763, %v1771
          %v1791 = vmul.f32 %v1764, %v1771
          %v1792 = vmul.f32 %v1765, %v1771
          %v1793 = vmul.f32 %v1766, %v1771
          %v1794 = vmul.f32 %v1767, %v1771
          %v1795 = vmul.f32 %v1768, %v1771
          %v1796 = vadd.f32 %v1721, %v1772
          %v1797 = vadd.f32 %v1722, %v1773
          %v1798 = vadd.f32 %v1723, %v1774
          %v1799 = vadd.f32 %v1724, %v1775
          %v1800 = vadd.f32 %v1725, %v1776
          %v1801 = vadd.f32 %v1726, %v1777
          %v1802 = vadd.f32 %v1727, %v1778
          %v1803 = vadd.f32 %v1728, %v1779
          %v1804 = vadd.f32 %v1729, %v1780
          %v1805 = vadd.f32 %v1730, %v1781
          %v1806 = vadd.f32 %v1731, %v1782
          %v1807 = vadd.f32 %v1732, %v1783
          %v1808 = vadd.f32 %v1733, %v1784
          %v1809 = vadd.f32 %v1734, %v1785
          %v1810 = vadd.f32 %v1735, %v1786
          %v1811 = vadd.f32 %v1736, %v1787
          %v1812 = vadd.f32 %v1737, %v1788
          %v1813 = vadd.f32 %v1738, %v1789
          %v1814 = vadd.f32 %v1739, %v1790
          %v1815 = vadd.f32 %v1740, %v1791
          %v1816 = vadd.f32 %v1741, %v1792
          %v1817 = vadd.f32 %v1742, %v1793
          %v1818 = vadd.f32 %v1743, %v1794
          %v1819 = vadd.f32 %v1744, %v1795
          %v1820 = vld [vmem:[%s1669 + $0x2] sm:$0xff]
          %v1821 = vld [vmem:[%s1669 + $0xa] sm:$0xf]
          %v1822 = vld [vmem:[%s1669 + $0x12] sm:$0xff]
          %v1823 = vld [vmem:[%s1669 + $0x1a] sm:$0xf]
          %v1824 = vld [vmem:[%s1669 + $0x22] sm:$0xff]
          %v1825 = vld [vmem:[%s1669 + $0x2a] sm:$0xf]
          %v1826 = vld [vmem:[%s1669 + $0x32] sm:$0xff]
          %v1827 = vld [vmem:[%s1669 + $0x3a] sm:$0xf]
          %v1828 = vld [vmem:[%s1669 + $0x42] sm:$0xff]
          %v1829 = vld [vmem:[%s1669 + $0x4a] sm:$0xf]
          %v1830 = vld [vmem:[%s1669 + $0x52] sm:$0xff]
          %v1831 = vld [vmem:[%s1669 + $0x5a] sm:$0xf]
          %v1832 = vld [vmem:[%s1669 + $0x62] sm:$0xff]
          %v1833 = vld [vmem:[%s1669 + $0x6a] sm:$0xf]
          %v1834 = vld [vmem:[%s1669 + $0x72] sm:$0xff]
          %v1835 = vld [vmem:[%s1669 + $0x7a] sm:$0xf]
          %v1836 = vld [vmem:[%s1669 + $0x82] sm:$0xff]
          %v1837 = vld [vmem:[%s1669 + $0x8a] sm:$0xf]
          %v1838 = vld [vmem:[%s1669 + $0x92] sm:$0xff]
          %v1839 = vld [vmem:[%s1669 + $0x9a] sm:$0xf]
          %v1840 = vld [vmem:[%s1669 + $0xa2] sm:$0xff]
          %v1841 = vld [vmem:[%s1669 + $0xaa] sm:$0xf]
          %v1842 = vld [vmem:[%s1669 + $0xb2] sm:$0xff]
          %v1843 = vld [vmem:[%s1669 + $0xba] sm:$0xf]
          %s1844 = sadd.s32 %s538, 136
          %s1845 = sld [smem:[#allocation6 + %s1844]]
          %v1846 = vstv %s1845
          %v1847 = vmul.f32 %v1820, %v1846
          %v1848 = vmul.f32 %v1821, %v1846
          %v1849 = vmul.f32 %v1822, %v1846
          %v1850 = vmul.f32 %v1823, %v1846
          %v1851 = vmul.f32 %v1824, %v1846
          %v1852 = vmul.f32 %v1825, %v1846
          %v1853 = vmul.f32 %v1826, %v1846
          %v1854 = vmul.f32 %v1827, %v1846
          %v1855 = vmul.f32 %v1828, %v1846
          %v1856 = vmul.f32 %v1829, %v1846
          %v1857 = vmul.f32 %v1830, %v1846
          %v1858 = vmul.f32 %v1831, %v1846
          %v1859 = vmul.f32 %v1832, %v1846
          %v1860 = vmul.f32 %v1833, %v1846
          %v1861 = vmul.f32 %v1834, %v1846
          %v1862 = vmul.f32 %v1835, %v1846
          %v1863 = vmul.f32 %v1836, %v1846
          %v1864 = vmul.f32 %v1837, %v1846
          %v1865 = vmul.f32 %v1838, %v1846
          %v1866 = vmul.f32 %v1839, %v1846
          %v1867 = vmul.f32 %v1840, %v1846
          %v1868 = vmul.f32 %v1841, %v1846
          %v1869 = vmul.f32 %v1842, %v1846
          %v1870 = vmul.f32 %v1843, %v1846
          %v1871 = vadd.f32 %v1796, %v1847
          %v1872 = vadd.f32 %v1797, %v1848
          %v1873 = vadd.f32 %v1798, %v1849
          %v1874 = vadd.f32 %v1799, %v1850
          %v1875 = vadd.f32 %v1800, %v1851
          %v1876 = vadd.f32 %v1801, %v1852
          %v1877 = vadd.f32 %v1802, %v1853
          %v1878 = vadd.f32 %v1803, %v1854
          %v1879 = vadd.f32 %v1804, %v1855
          %v1880 = vadd.f32 %v1805, %v1856
          %v1881 = vadd.f32 %v1806, %v1857
          %v1882 = vadd.f32 %v1807, %v1858
          %v1883 = vadd.f32 %v1808, %v1859
          %v1884 = vadd.f32 %v1809, %v1860
          %v1885 = vadd.f32 %v1810, %v1861
          %v1886 = vadd.f32 %v1811, %v1862
          %v1887 = vadd.f32 %v1812, %v1863
          %v1888 = vadd.f32 %v1813, %v1864
          %v1889 = vadd.f32 %v1814, %v1865
          %v1890 = vadd.f32 %v1815, %v1866
          %v1891 = vadd.f32 %v1816, %v1867
          %v1892 = vadd.f32 %v1817, %v1868
          %v1893 = vadd.f32 %v1818, %v1869
          %v1894 = vadd.f32 %v1819, %v1870
          %v1895 = vld [vmem:[%s1669 + $0x3] sm:$0xff]
          %v1896 = vld [vmem:[%s1669 + $0xb] sm:$0xf]
          %v1897 = vld [vmem:[%s1669 + $0x13] sm:$0xff]
          %v1898 = vld [vmem:[%s1669 + $0x1b] sm:$0xf]
          %v1899 = vld [vmem:[%s1669 + $0x23] sm:$0xff]
          %v1900 = vld [vmem:[%s1669 + $0x2b] sm:$0xf]
          %v1901 = vld [vmem:[%s1669 + $0x33] sm:$0xff]
          %v1902 = vld [vmem:[%s1669 + $0x3b] sm:$0xf]
          %v1903 = vld [vmem:[%s1669 + $0x43] sm:$0xff]
          %v1904 = vld [vmem:[%s1669 + $0x4b] sm:$0xf]
          %v1905 = vld [vmem:[%s1669 + $0x53] sm:$0xff]
          %v1906 = vld [vmem:[%s1669 + $0x5b] sm:$0xf]
          %v1907 = vld [vmem:[%s1669 + $0x63] sm:$0xff]
          %v1908 = vld [vmem:[%s1669 + $0x6b] sm:$0xf]
          %v1909 = vld [vmem:[%s1669 + $0x73] sm:$0xff]
          %v1910 = vld [vmem:[%s1669 + $0x7b] sm:$0xf]
          %v1911 = vld [vmem:[%s1669 + $0x83] sm:$0xff]
          %v1912 = vld [vmem:[%s1669 + $0x8b] sm:$0xf]
          %v1913 = vld [vmem:[%s1669 + $0x93] sm:$0xff]
          %v1914 = vld [vmem:[%s1669 + $0x9b] sm:$0xf]
          %v1915 = vld [vmem:[%s1669 + $0xa3] sm:$0xff]
          %v1916 = vld [vmem:[%s1669 + $0xab] sm:$0xf]
          %v1917 = vld [vmem:[%s1669 + $0xb3] sm:$0xff]
          %v1918 = vld [vmem:[%s1669 + $0xbb] sm:$0xf]
          %s1919 = sadd.s32 %s538, 144
          %s1920 = sld [smem:[#allocation6 + %s1919]]
          %v1921 = vstv %s1920
          %v1922 = vmul.f32 %v1895, %v1921
          %v1923 = vmul.f32 %v1896, %v1921
          %v1924 = vmul.f32 %v1897, %v1921
          %v1925 = vmul.f32 %v1898, %v1921
          %v1926 = vmul.f32 %v1899, %v1921
          %v1927 = vmul.f32 %v1900, %v1921
          %v1928 = vmul.f32 %v1901, %v1921
          %v1929 = vmul.f32 %v1902, %v1921
          %v1930 = vmul.f32 %v1903, %v1921
          %v1931 = vmul.f32 %v1904, %v1921
          %v1932 = vmul.f32 %v1905, %v1921
          %v1933 = vmul.f32 %v1906, %v1921
          %v1934 = vmul.f32 %v1907, %v1921
          %v1935 = vmul.f32 %v1908, %v1921
          %v1936 = vmul.f32 %v1909, %v1921
          %v1937 = vmul.f32 %v1910, %v1921
          %v1938 = vmul.f32 %v1911, %v1921
          %v1939 = vmul.f32 %v1912, %v1921
          %v1940 = vmul.f32 %v1913, %v1921
          %v1941 = vmul.f32 %v1914, %v1921
          %v1942 = vmul.f32 %v1915, %v1921
          %v1943 = vmul.f32 %v1916, %v1921
          %v1944 = vmul.f32 %v1917, %v1921
          %v1945 = vmul.f32 %v1918, %v1921
          %v1946 = vadd.f32 %v1871, %v1922
          %v1947 = vadd.f32 %v1872, %v1923
          %v1948 = vadd.f32 %v1873, %v1924
          %v1949 = vadd.f32 %v1874, %v1925
          %v1950 = vadd.f32 %v1875, %v1926
          %v1951 = vadd.f32 %v1876, %v1927
          %v1952 = vadd.f32 %v1877, %v1928
          %v1953 = vadd.f32 %v1878, %v1929
          %v1954 = vadd.f32 %v1879, %v1930
          %v1955 = vadd.f32 %v1880, %v1931
          %v1956 = vadd.f32 %v1881, %v1932
          %v1957 = vadd.f32 %v1882, %v1933
          %v1958 = vadd.f32 %v1883, %v1934
          %v1959 = vadd.f32 %v1884, %v1935
          %v1960 = vadd.f32 %v1885, %v1936
          %v1961 = vadd.f32 %v1886, %v1937
          %v1962 = vadd.f32 %v1887, %v1938
          %v1963 = vadd.f32 %v1888, %v1939
          %v1964 = vadd.f32 %v1889, %v1940
          %v1965 = vadd.f32 %v1890, %v1941
          %v1966 = vadd.f32 %v1891, %v1942
          %v1967 = vadd.f32 %v1892, %v1943
          %v1968 = vadd.f32 %v1893, %v1944
          %v1969 = vadd.f32 %v1894, %v1945
          %v1970 = vld [vmem:[%s1669 + $0x4] sm:$0xff]
          %v1971 = vld [vmem:[%s1669 + $0xc] sm:$0xf]
          %v1972 = vld [vmem:[%s1669 + $0x14] sm:$0xff]
          %v1973 = vld [vmem:[%s1669 + $0x1c] sm:$0xf]
          %v1974 = vld [vmem:[%s1669 + $0x24] sm:$0xff]
          %v1975 = vld [vmem:[%s1669 + $0x2c] sm:$0xf]
          %v1976 = vld [vmem:[%s1669 + $0x34] sm:$0xff]
          %v1977 = vld [vmem:[%s1669 + $0x3c] sm:$0xf]
          %v1978 = vld [vmem:[%s1669 + $0x44] sm:$0xff]
          %v1979 = vld [vmem:[%s1669 + $0x4c] sm:$0xf]
          %v1980 = vld [vmem:[%s1669 + $0x54] sm:$0xff]
          %v1981 = vld [vmem:[%s1669 + $0x5c] sm:$0xf]
          %v1982 = vld [vmem:[%s1669 + $0x64] sm:$0xff]
          %v1983 = vld [vmem:[%s1669 + $0x6c] sm:$0xf]
          %v1984 = vld [vmem:[%s1669 + $0x74] sm:$0xff]
          %v1985 = vld [vmem:[%s1669 + $0x7c] sm:$0xf]
          %v1986 = vld [vmem:[%s1669 + $0x84] sm:$0xff]
          %v1987 = vld [vmem:[%s1669 + $0x8c] sm:$0xf]
          %v1988 = vld [vmem:[%s1669 + $0x94] sm:$0xff]
          %v1989 = vld [vmem:[%s1669 + $0x9c] sm:$0xf]
          %v1990 = vld [vmem:[%s1669 + $0xa4] sm:$0xff]
          %v1991 = vld [vmem:[%s1669 + $0xac] sm:$0xf]
          %v1992 = vld [vmem:[%s1669 + $0xb4] sm:$0xff]
          %v1993 = vld [vmem:[%s1669 + $0xbc] sm:$0xf]
          %s1994 = sadd.s32 %s538, 152
          %s1995 = sld [smem:[#allocation6 + %s1994]]
          %v1996 = vstv %s1995
          %v1997 = vmul.f32 %v1970, %v1996
          %v1998 = vmul.f32 %v1971, %v1996
          %v1999 = vmul.f32 %v1972, %v1996
          %v2000 = vmul.f32 %v1973, %v1996
          %v2001 = vmul.f32 %v1974, %v1996
          %v2002 = vmul.f32 %v1975, %v1996
          %v2003 = vmul.f32 %v1976, %v1996
          %v2004 = vmul.f32 %v1977, %v1996
          %v2005 = vmul.f32 %v1978, %v1996
          %v2006 = vmul.f32 %v1979, %v1996
          %v2007 = vmul.f32 %v1980, %v1996
          %v2008 = vmul.f32 %v1981, %v1996
          %v2009 = vmul.f32 %v1982, %v1996
          %v2010 = vmul.f32 %v1983, %v1996
          %v2011 = vmul.f32 %v1984, %v1996
          %v2012 = vmul.f32 %v1985, %v1996
          %v2013 = vmul.f32 %v1986, %v1996
          %v2014 = vmul.f32 %v1987, %v1996
          %v2015 = vmul.f32 %v1988, %v1996
          %v2016 = vmul.f32 %v1989, %v1996
          %v2017 = vmul.f32 %v1990, %v1996
          %v2018 = vmul.f32 %v1991, %v1996
          %v2019 = vmul.f32 %v1992, %v1996
          %v2020 = vmul.f32 %v1993, %v1996
          %v2021 = vadd.f32 %v1946, %v1997
          %v2022 = vadd.f32 %v1947, %v1998
          %v2023 = vadd.f32 %v1948, %v1999
          %v2024 = vadd.f32 %v1949, %v2000
          %v2025 = vadd.f32 %v1950, %v2001
          %v2026 = vadd.f32 %v1951, %v2002
          %v2027 = vadd.f32 %v1952, %v2003
          %v2028 = vadd.f32 %v1953, %v2004
          %v2029 = vadd.f32 %v1954, %v2005
          %v2030 = vadd.f32 %v1955, %v2006
          %v2031 = vadd.f32 %v1956, %v2007
          %v2032 = vadd.f32 %v1957, %v2008
          %v2033 = vadd.f32 %v1958, %v2009
          %v2034 = vadd.f32 %v1959, %v2010
          %v2035 = vadd.f32 %v1960, %v2011
          %v2036 = vadd.f32 %v1961, %v2012
          %v2037 = vadd.f32 %v1962, %v2013
          %v2038 = vadd.f32 %v1963, %v2014
          %v2039 = vadd.f32 %v1964, %v2015
          %v2040 = vadd.f32 %v1965, %v2016
          %v2041 = vadd.f32 %v1966, %v2017
          %v2042 = vadd.f32 %v1967, %v2018
          %v2043 = vadd.f32 %v1968, %v2019
          %v2044 = vadd.f32 %v1969, %v2020
          %s2045 = scalar_lea.vmem %s488, 64 [#allocation5]
          %v2046 = vld [vmem:[%s2045] sm:$0xff]
          %v2047 = vld [vmem:[%s2045 + $0x8] sm:$0xf]
          %v2048 = vld [vmem:[%s2045 + $0x10] sm:$0xff]
          %v2049 = vld [vmem:[%s2045 + $0x18] sm:$0xf]
          %v2050 = vld [vmem:[%s2045 + $0x20] sm:$0xff]
          %v2051 = vld [vmem:[%s2045 + $0x28] sm:$0xf]
          %v2052 = vld [vmem:[%s2045 + $0x30] sm:$0xff]
          %v2053 = vld [vmem:[%s2045 + $0x38] sm:$0xf]
          %v2054 = vld [vmem:[%s2045 + $0x40] sm:$0xff]
          %v2055 = vld [vmem:[%s2045 + $0x48] sm:$0xf]
          %v2056 = vld [vmem:[%s2045 + $0x50] sm:$0xff]
          %v2057 = vld [vmem:[%s2045 + $0x58] sm:$0xf]
          %v2058 = vld [vmem:[%s2045 + $0x60] sm:$0xff]
          %v2059 = vld [vmem:[%s2045 + $0x68] sm:$0xf]
          %v2060 = vld [vmem:[%s2045 + $0x70] sm:$0xff]
          %v2061 = vld [vmem:[%s2045 + $0x78] sm:$0xf]
          %v2062 = vld [vmem:[%s2045 + $0x80] sm:$0xff]
          %v2063 = vld [vmem:[%s2045 + $0x88] sm:$0xf]
          %v2064 = vld [vmem:[%s2045 + $0x90] sm:$0xff]
          %v2065 = vld [vmem:[%s2045 + $0x98] sm:$0xf]
          %v2066 = vld [vmem:[%s2045 + $0xa0] sm:$0xff]
          %v2067 = vld [vmem:[%s2045 + $0xa8] sm:$0xf]
          %v2068 = vld [vmem:[%s2045 + $0xb0] sm:$0xff]
          %v2069 = vld [vmem:[%s2045 + $0xb8] sm:$0xf]
          %s2070 = sadd.s32 %s538, 160
          %s2071 = sld [smem:[#allocation6 + %s2070]]
          %v2072 = vstv %s2071
          %v2073 = vmul.f32 %v2046, %v2072
          %v2074 = vmul.f32 %v2047, %v2072
          %v2075 = vmul.f32 %v2048, %v2072
          %v2076 = vmul.f32 %v2049, %v2072
          %v2077 = vmul.f32 %v2050, %v2072
          %v2078 = vmul.f32 %v2051, %v2072
          %v2079 = vmul.f32 %v2052, %v2072
          %v2080 = vmul.f32 %v2053, %v2072
          %v2081 = vmul.f32 %v2054, %v2072
          %v2082 = vmul.f32 %v2055, %v2072
          %v2083 = vmul.f32 %v2056, %v2072
          %v2084 = vmul.f32 %v2057, %v2072
          %v2085 = vmul.f32 %v2058, %v2072
          %v2086 = vmul.f32 %v2059, %v2072
          %v2087 = vmul.f32 %v2060, %v2072
          %v2088 = vmul.f32 %v2061, %v2072
          %v2089 = vmul.f32 %v2062, %v2072
          %v2090 = vmul.f32 %v2063, %v2072
          %v2091 = vmul.f32 %v2064, %v2072
          %v2092 = vmul.f32 %v2065, %v2072
          %v2093 = vmul.f32 %v2066, %v2072
          %v2094 = vmul.f32 %v2067, %v2072
          %v2095 = vmul.f32 %v2068, %v2072
          %v2096 = vmul.f32 %v2069, %v2072
          %v2097 = vadd.f32 %v2021, %v2073
          %v2098 = vadd.f32 %v2022, %v2074
          %v2099 = vadd.f32 %v2023, %v2075
          %v2100 = vadd.f32 %v2024, %v2076
          %v2101 = vadd.f32 %v2025, %v2077
          %v2102 = vadd.f32 %v2026, %v2078
          %v2103 = vadd.f32 %v2027, %v2079
          %v2104 = vadd.f32 %v2028, %v2080
          %v2105 = vadd.f32 %v2029, %v2081
          %v2106 = vadd.f32 %v2030, %v2082
          %v2107 = vadd.f32 %v2031, %v2083
          %v2108 = vadd.f32 %v2032, %v2084
          %v2109 = vadd.f32 %v2033, %v2085
          %v2110 = vadd.f32 %v2034, %v2086
          %v2111 = vadd.f32 %v2035, %v2087
          %v2112 = vadd.f32 %v2036, %v2088
          %v2113 = vadd.f32 %v2037, %v2089
          %v2114 = vadd.f32 %v2038, %v2090
          %v2115 = vadd.f32 %v2039, %v2091
          %v2116 = vadd.f32 %v2040, %v2092
          %v2117 = vadd.f32 %v2041, %v2093
          %v2118 = vadd.f32 %v2042, %v2094
          %v2119 = vadd.f32 %v2043, %v2095
          %v2120 = vadd.f32 %v2044, %v2096
          %v2121 = vld [vmem:[%s2045 + $0x1] sm:$0xff]
          %v2122 = vld [vmem:[%s2045 + $0x9] sm:$0xf]
          %v2123 = vld [vmem:[%s2045 + $0x11] sm:$0xff]
          %v2124 = vld [vmem:[%s2045 + $0x19] sm:$0xf]
          %v2125 = vld [vmem:[%s2045 + $0x21] sm:$0xff]
          %v2126 = vld [vmem:[%s2045 + $0x29] sm:$0xf]
          %v2127 = vld [vmem:[%s2045 + $0x31] sm:$0xff]
          %v2128 = vld [vmem:[%s2045 + $0x39] sm:$0xf]
          %v2129 = vld [vmem:[%s2045 + $0x41] sm:$0xff]
          %v2130 = vld [vmem:[%s2045 + $0x49] sm:$0xf]
          %v2131 = vld [vmem:[%s2045 + $0x51] sm:$0xff]
          %v2132 = vld [vmem:[%s2045 + $0x59] sm:$0xf]
          %v2133 = vld [vmem:[%s2045 + $0x61] sm:$0xff]
          %v2134 = vld [vmem:[%s2045 + $0x69] sm:$0xf]
          %v2135 = vld [vmem:[%s2045 + $0x71] sm:$0xff]
          %v2136 = vld [vmem:[%s2045 + $0x79] sm:$0xf]
          %v2137 = vld [vmem:[%s2045 + $0x81] sm:$0xff]
          %v2138 = vld [vmem:[%s2045 + $0x89] sm:$0xf]
          %v2139 = vld [vmem:[%s2045 + $0x91] sm:$0xff]
          %v2140 = vld [vmem:[%s2045 + $0x99] sm:$0xf]
          %v2141 = vld [vmem:[%s2045 + $0xa1] sm:$0xff]
          %v2142 = vld [vmem:[%s2045 + $0xa9] sm:$0xf]
          %v2143 = vld [vmem:[%s2045 + $0xb1] sm:$0xff]
          %v2144 = vld [vmem:[%s2045 + $0xb9] sm:$0xf]
          %s2145 = sadd.s32 %s538, 168
          %s2146 = sld [smem:[#allocation6 + %s2145]]
          %v2147 = vstv %s2146
          %v2148 = vmul.f32 %v2121, %v2147
          %v2149 = vmul.f32 %v2122, %v2147
          %v2150 = vmul.f32 %v2123, %v2147
          %v2151 = vmul.f32 %v2124, %v2147
          %v2152 = vmul.f32 %v2125, %v2147
          %v2153 = vmul.f32 %v2126, %v2147
          %v2154 = vmul.f32 %v2127, %v2147
          %v2155 = vmul.f32 %v2128, %v2147
          %v2156 = vmul.f32 %v2129, %v2147
          %v2157 = vmul.f32 %v2130, %v2147
          %v2158 = vmul.f32 %v2131, %v2147
          %v2159 = vmul.f32 %v2132, %v2147
          %v2160 = vmul.f32 %v2133, %v2147
          %v2161 = vmul.f32 %v2134, %v2147
          %v2162 = vmul.f32 %v2135, %v2147
          %v2163 = vmul.f32 %v2136, %v2147
          %v2164 = vmul.f32 %v2137, %v2147
          %v2165 = vmul.f32 %v2138, %v2147
          %v2166 = vmul.f32 %v2139, %v2147
          %v2167 = vmul.f32 %v2140, %v2147
          %v2168 = vmul.f32 %v2141, %v2147
          %v2169 = vmul.f32 %v2142, %v2147
          %v2170 = vmul.f32 %v2143, %v2147
          %v2171 = vmul.f32 %v2144, %v2147
          %v2172 = vadd.f32 %v2097, %v2148
          %v2173 = vadd.f32 %v2098, %v2149
          %v2174 = vadd.f32 %v2099, %v2150
          %v2175 = vadd.f32 %v2100, %v2151
          %v2176 = vadd.f32 %v2101, %v2152
          %v2177 = vadd.f32 %v2102, %v2153
          %v2178 = vadd.f32 %v2103, %v2154
          %v2179 = vadd.f32 %v2104, %v2155
          %v2180 = vadd.f32 %v2105, %v2156
          %v2181 = vadd.f32 %v2106, %v2157
          %v2182 = vadd.f32 %v2107, %v2158
          %v2183 = vadd.f32 %v2108, %v2159
          %v2184 = vadd.f32 %v2109, %v2160
          %v2185 = vadd.f32 %v2110, %v2161
          %v2186 = vadd.f32 %v2111, %v2162
          %v2187 = vadd.f32 %v2112, %v2163
          %v2188 = vadd.f32 %v2113, %v2164
          %v2189 = vadd.f32 %v2114, %v2165
          %v2190 = vadd.f32 %v2115, %v2166
          %v2191 = vadd.f32 %v2116, %v2167
          %v2192 = vadd.f32 %v2117, %v2168
          %v2193 = vadd.f32 %v2118, %v2169
          %v2194 = vadd.f32 %v2119, %v2170
          %v2195 = vadd.f32 %v2120, %v2171
          %v2196 = vld [vmem:[%s2045 + $0x2] sm:$0xff]
          %v2197 = vld [vmem:[%s2045 + $0xa] sm:$0xf]
          %v2198 = vld [vmem:[%s2045 + $0x12] sm:$0xff]
          %v2199 = vld [vmem:[%s2045 + $0x1a] sm:$0xf]
          %v2200 = vld [vmem:[%s2045 + $0x22] sm:$0xff]
          %v2201 = vld [vmem:[%s2045 + $0x2a] sm:$0xf]
          %v2202 = vld [vmem:[%s2045 + $0x32] sm:$0xff]
          %v2203 = vld [vmem:[%s2045 + $0x3a] sm:$0xf]
          %v2204 = vld [vmem:[%s2045 + $0x42] sm:$0xff]
          %v2205 = vld [vmem:[%s2045 + $0x4a] sm:$0xf]
          %v2206 = vld [vmem:[%s2045 + $0x52] sm:$0xff]
          %v2207 = vld [vmem:[%s2045 + $0x5a] sm:$0xf]
          %v2208 = vld [vmem:[%s2045 + $0x62] sm:$0xff]
          %v2209 = vld [vmem:[%s2045 + $0x6a] sm:$0xf]
          %v2210 = vld [vmem:[%s2045 + $0x72] sm:$0xff]
          %v2211 = vld [vmem:[%s2045 + $0x7a] sm:$0xf]
          %v2212 = vld [vmem:[%s2045 + $0x82] sm:$0xff]
          %v2213 = vld [vmem:[%s2045 + $0x8a] sm:$0xf]
          %v2214 = vld [vmem:[%s2045 + $0x92] sm:$0xff]
          %v2215 = vld [vmem:[%s2045 + $0x9a] sm:$0xf]
          %v2216 = vld [vmem:[%s2045 + $0xa2] sm:$0xff]
          %v2217 = vld [vmem:[%s2045 + $0xaa] sm:$0xf]
          %v2218 = vld [vmem:[%s2045 + $0xb2] sm:$0xff]
          %v2219 = vld [vmem:[%s2045 + $0xba] sm:$0xf]
          %s2220 = sadd.s32 %s538, 176
          %s2221 = sld [smem:[#allocation6 + %s2220]]
          %v2222 = vstv %s2221
          %v2223 = vmul.f32 %v2196, %v2222
          %v2224 = vmul.f32 %v2197, %v2222
          %v2225 = vmul.f32 %v2198, %v2222
          %v2226 = vmul.f32 %v2199, %v2222
          %v2227 = vmul.f32 %v2200, %v2222
          %v2228 = vmul.f32 %v2201, %v2222
          %v2229 = vmul.f32 %v2202, %v2222
          %v2230 = vmul.f32 %v2203, %v2222
          %v2231 = vmul.f32 %v2204, %v2222
          %v2232 = vmul.f32 %v2205, %v2222
          %v2233 = vmul.f32 %v2206, %v2222
          %v2234 = vmul.f32 %v2207, %v2222
          %v2235 = vmul.f32 %v2208, %v2222
          %v2236 = vmul.f32 %v2209, %v2222
          %v2237 = vmul.f32 %v2210, %v2222
          %v2238 = vmul.f32 %v2211, %v2222
          %v2239 = vmul.f32 %v2212, %v2222
          %v2240 = vmul.f32 %v2213, %v2222
          %v2241 = vmul.f32 %v2214, %v2222
          %v2242 = vmul.f32 %v2215, %v2222
          %v2243 = vmul.f32 %v2216, %v2222
          %v2244 = vmul.f32 %v2217, %v2222
          %v2245 = vmul.f32 %v2218, %v2222
          %v2246 = vmul.f32 %v2219, %v2222
          %v2247 = vadd.f32 %v2172, %v2223
          %v2248 = vadd.f32 %v2173, %v2224
          %v2249 = vadd.f32 %v2174, %v2225
          %v2250 = vadd.f32 %v2175, %v2226
          %v2251 = vadd.f32 %v2176, %v2227
          %v2252 = vadd.f32 %v2177, %v2228
          %v2253 = vadd.f32 %v2178, %v2229
          %v2254 = vadd.f32 %v2179, %v2230
          %v2255 = vadd.f32 %v2180, %v2231
          %v2256 = vadd.f32 %v2181, %v2232
          %v2257 = vadd.f32 %v2182, %v2233
          %v2258 = vadd.f32 %v2183, %v2234
          %v2259 = vadd.f32 %v2184, %v2235
          %v2260 = vadd.f32 %v2185, %v2236
          %v2261 = vadd.f32 %v2186, %v2237
          %v2262 = vadd.f32 %v2187, %v2238
          %v2263 = vadd.f32 %v2188, %v2239
          %v2264 = vadd.f32 %v2189, %v2240
          %v2265 = vadd.f32 %v2190, %v2241
          %v2266 = vadd.f32 %v2191, %v2242
          %v2267 = vadd.f32 %v2192, %v2243
          %v2268 = vadd.f32 %v2193, %v2244
          %v2269 = vadd.f32 %v2194, %v2245
          %v2270 = vadd.f32 %v2195, %v2246
          %v2271 = vld [vmem:[%s2045 + $0x3] sm:$0xff]
          %v2272 = vld [vmem:[%s2045 + $0xb] sm:$0xf]
          %v2273 = vld [vmem:[%s2045 + $0x13] sm:$0xff]
          %v2274 = vld [vmem:[%s2045 + $0x1b] sm:$0xf]
          %v2275 = vld [vmem:[%s2045 + $0x23] sm:$0xff]
          %v2276 = vld [vmem:[%s2045 + $0x2b] sm:$0xf]
          %v2277 = vld [vmem:[%s2045 + $0x33] sm:$0xff]
          %v2278 = vld [vmem:[%s2045 + $0x3b] sm:$0xf]
          %v2279 = vld [vmem:[%s2045 + $0x43] sm:$0xff]
          %v2280 = vld [vmem:[%s2045 + $0x4b] sm:$0xf]
          %v2281 = vld [vmem:[%s2045 + $0x53] sm:$0xff]
          %v2282 = vld [vmem:[%s2045 + $0x5b] sm:$0xf]
          %v2283 = vld [vmem:[%s2045 + $0x63] sm:$0xff]
          %v2284 = vld [vmem:[%s2045 + $0x6b] sm:$0xf]
          %v2285 = vld [vmem:[%s2045 + $0x73] sm:$0xff]
          %v2286 = vld [vmem:[%s2045 + $0x7b] sm:$0xf]
          %v2287 = vld [vmem:[%s2045 + $0x83] sm:$0xff]
          %v2288 = vld [vmem:[%s2045 + $0x8b] sm:$0xf]
          %v2289 = vld [vmem:[%s2045 + $0x93] sm:$0xff]
          %v2290 = vld [vmem:[%s2045 + $0x9b] sm:$0xf]
          %v2291 = vld [vmem:[%s2045 + $0xa3] sm:$0xff]
          %v2292 = vld [vmem:[%s2045 + $0xab] sm:$0xf]
          %v2293 = vld [vmem:[%s2045 + $0xb3] sm:$0xff]
          %v2294 = vld [vmem:[%s2045 + $0xbb] sm:$0xf]
          %s2295 = sadd.s32 %s538, 184
          %s2296 = sld [smem:[#allocation6 + %s2295]]
          %v2297 = vstv %s2296
          %v2298 = vmul.f32 %v2271, %v2297
          %v2299 = vmul.f32 %v2272, %v2297
          %v2300 = vmul.f32 %v2273, %v2297
          %v2301 = vmul.f32 %v2274, %v2297
          %v2302 = vmul.f32 %v2275, %v2297
          %v2303 = vmul.f32 %v2276, %v2297
          %v2304 = vmul.f32 %v2277, %v2297
          %v2305 = vmul.f32 %v2278, %v2297
          %v2306 = vmul.f32 %v2279, %v2297
          %v2307 = vmul.f32 %v2280, %v2297
          %v2308 = vmul.f32 %v2281, %v2297
          %v2309 = vmul.f32 %v2282, %v2297
          %v2310 = vmul.f32 %v2283, %v2297
          %v2311 = vmul.f32 %v2284, %v2297
          %v2312 = vmul.f32 %v2285, %v2297
          %v2313 = vmul.f32 %v2286, %v2297
          %v2314 = vmul.f32 %v2287, %v2297
          %v2315 = vmul.f32 %v2288, %v2297
          %v2316 = vmul.f32 %v2289, %v2297
          %v2317 = vmul.f32 %v2290, %v2297
          %v2318 = vmul.f32 %v2291, %v2297
          %v2319 = vmul.f32 %v2292, %v2297
          %v2320 = vmul.f32 %v2293, %v2297
          %v2321 = vmul.f32 %v2294, %v2297
          %v2322 = vadd.f32 %v2247, %v2298
          %v2323 = vadd.f32 %v2248, %v2299
          %v2324 = vadd.f32 %v2249, %v2300
          %v2325 = vadd.f32 %v2250, %v2301
          %v2326 = vadd.f32 %v2251, %v2302
          %v2327 = vadd.f32 %v2252, %v2303
          %v2328 = vadd.f32 %v2253, %v2304
          %v2329 = vadd.f32 %v2254, %v2305
          %v2330 = vadd.f32 %v2255, %v2306
          %v2331 = vadd.f32 %v2256, %v2307
          %v2332 = vadd.f32 %v2257, %v2308
          %v2333 = vadd.f32 %v2258, %v2309
          %v2334 = vadd.f32 %v2259, %v2310
          %v2335 = vadd.f32 %v2260, %v2311
          %v2336 = vadd.f32 %v2261, %v2312
          %v2337 = vadd.f32 %v2262, %v2313
          %v2338 = vadd.f32 %v2263, %v2314
          %v2339 = vadd.f32 %v2264, %v2315
          %v2340 = vadd.f32 %v2265, %v2316
          %v2341 = vadd.f32 %v2266, %v2317
          %v2342 = vadd.f32 %v2267, %v2318
          %v2343 = vadd.f32 %v2268, %v2319
          %v2344 = vadd.f32 %v2269, %v2320
          %v2345 = vadd.f32 %v2270, %v2321
          %v2346 = vld [vmem:[%s2045 + $0x4] sm:$0xff]
          %v2347 = vld [vmem:[%s2045 + $0xc] sm:$0xf]
          %v2348 = vld [vmem:[%s2045 + $0x14] sm:$0xff]
          %v2349 = vld [vmem:[%s2045 + $0x1c] sm:$0xf]
          %v2350 = vld [vmem:[%s2045 + $0x24] sm:$0xff]
          %v2351 = vld [vmem:[%s2045 + $0x2c] sm:$0xf]
          %v2352 = vld [vmem:[%s2045 + $0x34] sm:$0xff]
          %v2353 = vld [vmem:[%s2045 + $0x3c] sm:$0xf]
          %v2354 = vld [vmem:[%s2045 + $0x44] sm:$0xff]
          %v2355 = vld [vmem:[%s2045 + $0x4c] sm:$0xf]
          %v2356 = vld [vmem:[%s2045 + $0x54] sm:$0xff]
          %v2357 = vld [vmem:[%s2045 + $0x5c] sm:$0xf]
          %v2358 = vld [vmem:[%s2045 + $0x64] sm:$0xff]
          %v2359 = vld [vmem:[%s2045 + $0x6c] sm:$0xf]
          %v2360 = vld [vmem:[%s2045 + $0x74] sm:$0xff]
          %v2361 = vld [vmem:[%s2045 + $0x7c] sm:$0xf]
          %v2362 = vld [vmem:[%s2045 + $0x84] sm:$0xff]
          %v2363 = vld [vmem:[%s2045 + $0x8c] sm:$0xf]
          %v2364 = vld [vmem:[%s2045 + $0x94] sm:$0xff]
          %v2365 = vld [vmem:[%s2045 + $0x9c] sm:$0xf]
          %v2366 = vld [vmem:[%s2045 + $0xa4] sm:$0xff]
          %v2367 = vld [vmem:[%s2045 + $0xac] sm:$0xf]
          %v2368 = vld [vmem:[%s2045 + $0xb4] sm:$0xff]
          %v2369 = vld [vmem:[%s2045 + $0xbc] sm:$0xf]
          %s2370 = sadd.s32 %s538, 192
          %s2371 = sld [smem:[#allocation6 + %s2370]]
          %v2372 = vstv %s2371
          %v2373 = vmul.f32 %v2346, %v2372
          %v2374 = vmul.f32 %v2347, %v2372
          %v2375 = vmul.f32 %v2348, %v2372
          %v2376 = vmul.f32 %v2349, %v2372
          %v2377 = vmul.f32 %v2350, %v2372
          %v2378 = vmul.f32 %v2351, %v2372
          %v2379 = vmul.f32 %v2352, %v2372
          %v2380 = vmul.f32 %v2353, %v2372
          %v2381 = vmul.f32 %v2354, %v2372
          %v2382 = vmul.f32 %v2355, %v2372
          %v2383 = vmul.f32 %v2356, %v2372
          %v2384 = vmul.f32 %v2357, %v2372
          %v2385 = vmul.f32 %v2358, %v2372
          %v2386 = vmul.f32 %v2359, %v2372
          %v2387 = vmul.f32 %v2360, %v2372
          %v2388 = vmul.f32 %v2361, %v2372
          %v2389 = vmul.f32 %v2362, %v2372
          %v2390 = vmul.f32 %v2363, %v2372
          %v2391 = vmul.f32 %v2364, %v2372
          %v2392 = vmul.f32 %v2365, %v2372
          %v2393 = vmul.f32 %v2366, %v2372
          %v2394 = vmul.f32 %v2367, %v2372
          %v2395 = vmul.f32 %v2368, %v2372
          %v2396 = vmul.f32 %v2369, %v2372
          %v2397 = vadd.f32 %v2322, %v2373
          %v2398 = vadd.f32 %v2323, %v2374
          %v2399 = vadd.f32 %v2324, %v2375
          %v2400 = vadd.f32 %v2325, %v2376
          %v2401 = vadd.f32 %v2326, %v2377
          %v2402 = vadd.f32 %v2327, %v2378
          %v2403 = vadd.f32 %v2328, %v2379
          %v2404 = vadd.f32 %v2329, %v2380
          %v2405 = vadd.f32 %v2330, %v2381
          %v2406 = vadd.f32 %v2331, %v2382
          %v2407 = vadd.f32 %v2332, %v2383
          %v2408 = vadd.f32 %v2333, %v2384
          %v2409 = vadd.f32 %v2334, %v2385
          %v2410 = vadd.f32 %v2335, %v2386
          %v2411 = vadd.f32 %v2336, %v2387
          %v2412 = vadd.f32 %v2337, %v2388
          %v2413 = vadd.f32 %v2338, %v2389
          %v2414 = vadd.f32 %v2339, %v2390
          %v2415 = vadd.f32 %v2340, %v2391
          %v2416 = vadd.f32 %v2341, %v2392
          %v2417 = vadd.f32 %v2342, %v2393
          %v2418 = vadd.f32 %v2343, %v2394
          %v2419 = vadd.f32 %v2344, %v2395
          %v2420 = vadd.f32 %v2345, %v2396
          %s2421 = sld [smem:[#allocation8 + %s538]]
          %v2422 = vstv %s2421
          %v2423 = vadd.f32 %v2397, %v2422
          %v2424 = vadd.f32 %v2398, %v2422
          %v2425 = vadd.f32 %v2399, %v2422
          %v2426 = vadd.f32 %v2400, %v2422
          %v2427 = vadd.f32 %v2401, %v2422
          %v2428 = vadd.f32 %v2402, %v2422
          %v2429 = vadd.f32 %v2403, %v2422
          %v2430 = vadd.f32 %v2404, %v2422
          %v2431 = vadd.f32 %v2405, %v2422
          %v2432 = vadd.f32 %v2406, %v2422
          %v2433 = vadd.f32 %v2407, %v2422
          %v2434 = vadd.f32 %v2408, %v2422
          %v2435 = vadd.f32 %v2409, %v2422
          %v2436 = vadd.f32 %v2410, %v2422
          %v2437 = vadd.f32 %v2411, %v2422
          %v2438 = vadd.f32 %v2412, %v2422
          %v2439 = vadd.f32 %v2413, %v2422
          %v2440 = vadd.f32 %v2414, %v2422
          %v2441 = vadd.f32 %v2415, %v2422
          %v2442 = vadd.f32 %v2416, %v2422
          %v2443 = vadd.f32 %v2417, %v2422
          %v2444 = vadd.f32 %v2418, %v2422
          %v2445 = vadd.f32 %v2419, %v2422
          %v2446 = vadd.f32 %v2420, %v2422
          %v2447 = vmax.f32 %v2423, 0.0
          %v2448 = vmax.f32 %v2424, 0.0
          %v2449 = vmax.f32 %v2425, 0.0
          %v2450 = vmax.f32 %v2426, 0.0
          %v2451 = vmax.f32 %v2427, 0.0
          %v2452 = vmax.f32 %v2428, 0.0
          %v2453 = vmax.f32 %v2429, 0.0
          %v2454 = vmax.f32 %v2430, 0.0
          %v2455 = vmax.f32 %v2431, 0.0
          %v2456 = vmax.f32 %v2432, 0.0
          %v2457 = vmax.f32 %v2433, 0.0
          %v2458 = vmax.f32 %v2434, 0.0
          %v2459 = vmax.f32 %v2435, 0.0
          %v2460 = vmax.f32 %v2436, 0.0
          %v2461 = vmax.f32 %v2437, 0.0
          %v2462 = vmax.f32 %v2438, 0.0
          %v2463 = vmax.f32 %v2439, 0.0
          %v2464 = vmax.f32 %v2440, 0.0
          %v2465 = vmax.f32 %v2441, 0.0
          %v2466 = vmax.f32 %v2442, 0.0
          %v2467 = vmax.f32 %v2443, 0.0
          %v2468 = vmax.f32 %v2444, 0.0
          %v2469 = vmax.f32 %v2445, 0.0
          %v2470 = vmax.f32 %v2446, 0.0
          %v2471 = vmax.f32 %v2447, %v2449
          %vm2472 = vcmask 1043456
          %v2473 = vsel %vm2472, %v2448, -inf
          %v2474 = vsel %vm2472, %v2450, -inf
          %v2475 = vmax.f32 %v2473, %v2474
          %v2476 = vmax.f32 %v2451, %v2453
          %v2477 = vsel %vm2472, %v2452, -inf
          %v2478 = vsel %vm2472, %v2454, -inf
          %v2479 = vmax.f32 %v2477, %v2478
          %v2480 = vmax.f32 %v2455, %v2457
          %v2481 = vsel %vm2472, %v2456, -inf
          %v2482 = vsel %vm2472, %v2458, -inf
          %v2483 = vmax.f32 %v2481, %v2482
          %v2484 = vmax.f32 %v2459, %v2461
          %v2485 = vsel %vm2472, %v2460, -inf
          %v2486 = vsel %vm2472, %v2462, -inf
          %v2487 = vmax.f32 %v2485, %v2486
          %v2488 = vmax.f32 %v2463, %v2465
          %v2489 = vsel %vm2472, %v2464, -inf
          %v2490 = vsel %vm2472, %v2466, -inf
          %v2491 = vmax.f32 %v2489, %v2490
          %v2492 = vmax.f32 %v2467, %v2469
          %v2493 = vsel %vm2472, %v2468, -inf
          %v2494 = vsel %vm2472, %v2470, -inf
          %v2495 = vmax.f32 %v2493, %v2494
          %v2508 = vcombine.high %v2471, %v2471
          %v2510 = vunpack.c.l.s4 1983009808
          %v2511 = vunpack.c.0.s8 %v2510
          %v2512 = vlaneseq
          %v2513 = vshrl.u32 %v2512, 7
          %v2514 = vsub.s32 %v2511, %v2513
          %v2515 = vrot.slane %v2471, %v2514
          %v2517 = vunpack.c.l.s4 1983009808
          %v2518 = vunpack.c.0.s8 %v2517
          %v2519 = vlaneseq
          %v2520 = vshrl.u32 %v2519, 7
          %v2521 = vsub.s32 %v2518, %v2520
          %v2522 = vrot.slane %v2508, %v2521
          %v2523 = vcombine.high %v2515, %v2515
          %v2524 = vcombine.high %v2522, %v2522
          %v2526 = vunpack.c.l.s4 1983009808
          %v2527 = vunpack.c.0.s8 %v2526
          %v2528 = vlaneseq
          %v2529 = vshrl.u32 %v2528, 7
          %v2530 = vsub.s32 %v2527, %v2529
          %v2531 = vrot.slane %v2475, %v2530
          %v2532 = vcombine.high %v2531, %v2531
          %v2533 = vcombine.high %v2476, %v2476
          %v2535 = vunpack.c.l.s4 1983009808
          %v2536 = vunpack.c.0.s8 %v2535
          %v2537 = vlaneseq
          %v2538 = vshrl.u32 %v2537, 7
          %v2539 = vsub.s32 %v2536, %v2538
          %v2540 = vrot.slane %v2476, %v2539
          %v2542 = vunpack.c.l.s4 1983009808
          %v2543 = vunpack.c.0.s8 %v2542
          %v2544 = vlaneseq
          %v2545 = vshrl.u32 %v2544, 7
          %v2546 = vsub.s32 %v2543, %v2545
          %v2547 = vrot.slane %v2533, %v2546
          %v2548 = vcombine.high %v2540, %v2540
          %v2549 = vcombine.high %v2547, %v2547
          %v2551 = vunpack.c.l.s4 1983009808
          %v2552 = vunpack.c.0.s8 %v2551
          %v2553 = vlaneseq
          %v2554 = vshrl.u32 %v2553, 7
          %v2555 = vsub.s32 %v2552, %v2554
          %v2556 = vrot.slane %v2479, %v2555
          %v2557 = vcombine.high %v2556, %v2556
          %v2558 = vcombine.high %v2480, %v2480
          %v2560 = vunpack.c.l.s4 1983009808
          %v2561 = vunpack.c.0.s8 %v2560
          %v2562 = vlaneseq
          %v2563 = vshrl.u32 %v2562, 7
          %v2564 = vsub.s32 %v2561, %v2563
          %v2565 = vrot.slane %v2480, %v2564
          %v2567 = vunpack.c.l.s4 1983009808
          %v2568 = vunpack.c.0.s8 %v2567
          %v2569 = vlaneseq
          %v2570 = vshrl.u32 %v2569, 7
          %v2571 = vsub.s32 %v2568, %v2570
          %v2572 = vrot.slane %v2558, %v2571
          %v2573 = vcombine.high %v2565, %v2565
          %v2574 = vcombine.high %v2572, %v2572
          %v2576 = vunpack.c.l.s4 1983009808
          %v2577 = vunpack.c.0.s8 %v2576
          %v2578 = vlaneseq
          %v2579 = vshrl.u32 %v2578, 7
          %v2580 = vsub.s32 %v2577, %v2579
          %v2581 = vrot.slane %v2483, %v2580
          %v2582 = vcombine.high %v2581, %v2581
          %v2583 = vcombine.high %v2484, %v2484
          %v2585 = vunpack.c.l.s4 1983009808
          %v2586 = vunpack.c.0.s8 %v2585
          %v2587 = vlaneseq
          %v2588 = vshrl.u32 %v2587, 7
          %v2589 = vsub.s32 %v2586, %v2588
          %v2590 = vrot.slane %v2484, %v2589
          %v2592 = vunpack.c.l.s4 1983009808
          %v2593 = vunpack.c.0.s8 %v2592
          %v2594 = vlaneseq
          %v2595 = vshrl.u32 %v2594, 7
          %v2596 = vsub.s32 %v2593, %v2595
          %v2597 = vrot.slane %v2583, %v2596
          %v2598 = vcombine.high %v2590, %v2590
          %v2599 = vcombine.high %v2597, %v2597
          %v2601 = vunpack.c.l.s4 1983009808
          %v2602 = vunpack.c.0.s8 %v2601
          %v2603 = vlaneseq
          %v2604 = vshrl.u32 %v2603, 7
          %v2605 = vsub.s32 %v2602, %v2604
          %v2606 = vrot.slane %v2487, %v2605
          %v2607 = vcombine.high %v2606, %v2606
          %v2608 = vcombine.high %v2488, %v2488
          %v2610 = vunpack.c.l.s4 1983009808
          %v2611 = vunpack.c.0.s8 %v2610
          %v2612 = vlaneseq
          %v2613 = vshrl.u32 %v2612, 7
          %v2614 = vsub.s32 %v2611, %v2613
          %v2615 = vrot.slane %v2488, %v2614
          %v2617 = vunpack.c.l.s4 1983009808
          %v2618 = vunpack.c.0.s8 %v2617
          %v2619 = vlaneseq
          %v2620 = vshrl.u32 %v2619, 7
          %v2621 = vsub.s32 %v2618, %v2620
          %v2622 = vrot.slane %v2608, %v2621
          %v2623 = vcombine.high %v2615, %v2615
          %v2624 = vcombine.high %v2622, %v2622
          %v2626 = vunpack.c.l.s4 1983009808
          %v2627 = vunpack.c.0.s8 %v2626
          %v2628 = vlaneseq
          %v2629 = vshrl.u32 %v2628, 7
          %v2630 = vsub.s32 %v2627, %v2629
          %v2631 = vrot.slane %v2491, %v2630
          %v2632 = vcombine.high %v2631, %v2631
          %v2633 = vcombine.high %v2492, %v2492
          %v2635 = vunpack.c.l.s4 1983009808
          %v2636 = vunpack.c.0.s8 %v2635
          %v2637 = vlaneseq
          %v2638 = vshrl.u32 %v2637, 7
          %v2639 = vsub.s32 %v2636, %v2638
          %v2640 = vrot.slane %v2492, %v2639
          %v2642 = vunpack.c.l.s4 1983009808
          %v2643 = vunpack.c.0.s8 %v2642
          %v2644 = vlaneseq
          %v2645 = vshrl.u32 %v2644, 7
          %v2646 = vsub.s32 %v2643, %v2645
          %v2647 = vrot.slane %v2633, %v2646
          %v2648 = vcombine.high %v2640, %v2640
          %v2649 = vcombine.high %v2647, %v2647
          %v2651 = vunpack.c.l.s4 1983009808
          %v2652 = vunpack.c.0.s8 %v2651
          %v2653 = vlaneseq
          %v2654 = vshrl.u32 %v2653, 7
          %v2655 = vsub.s32 %v2652, %v2654
          %v2656 = vrot.slane %v2495, %v2655
          %v2657 = vcombine.high %v2656, %v2656
          %vm2694 = vcmask 1041408
          %v2695 = vsel %vm2694, %v2515, -inf
          %v2696 = vrot.slane %v2695, 4
          %v2697 = vmax.f32 %v2695, %v2696
          %v2698 = vrot.slane %v2697, 2
          %v2699 = vmax.f32 %v2697, %v2698
          %v2700 = vrot.slane %v2699, 1
          %v2701 = vmax.f32 %v2699, %v2700
          %v2702 = vsel %vm2694, %v2523, -inf
          %v2703 = vrot.slane %v2702, 4
          %v2704 = vmax.f32 %v2702, %v2703
          %v2705 = vrot.slane %v2704, 2
          %v2706 = vmax.f32 %v2704, %v2705
          %v2707 = vrot.slane %v2706, 1
          %v2708 = vmax.f32 %v2706, %v2707
          %v2709 = vsel %vm2694, %v2522, -inf
          %v2710 = vrot.slane %v2709, 4
          %v2711 = vmax.f32 %v2709, %v2710
          %v2712 = vrot.slane %v2711, 2
          %v2713 = vmax.f32 %v2711, %v2712
          %v2714 = vrot.slane %v2713, 1
          %v2715 = vmax.f32 %v2713, %v2714
          %v2716 = vsel %vm2694, %v2524, -inf
          %v2717 = vrot.slane %v2716, 4
          %v2718 = vmax.f32 %v2716, %v2717
          %v2719 = vrot.slane %v2718, 2
          %v2720 = vmax.f32 %v2718, %v2719
          %v2721 = vrot.slane %v2720, 1
          %v2722 = vmax.f32 %v2720, %v2721
          %v2723 = vsel %vm2694, %v2531, -inf
          %v2724 = vrot.slane %v2723, 4
          %v2725 = vmax.f32 %v2723, %v2724
          %v2726 = vrot.slane %v2725, 2
          %v2727 = vmax.f32 %v2725, %v2726
          %v2728 = vrot.slane %v2727, 1
          %v2729 = vmax.f32 %v2727, %v2728
          %v2730 = vsel %vm2694, %v2532, -inf
          %v2731 = vrot.slane %v2730, 4
          %v2732 = vmax.f32 %v2730, %v2731
          %v2733 = vrot.slane %v2732, 2
          %v2734 = vmax.f32 %v2732, %v2733
          %v2735 = vrot.slane %v2734, 1
          %v2736 = vmax.f32 %v2734, %v2735
          %v2737 = vsel %vm2694, %v2540, -inf
          %v2738 = vrot.slane %v2737, 4
          %v2739 = vmax.f32 %v2737, %v2738
          %v2740 = vrot.slane %v2739, 2
          %v2741 = vmax.f32 %v2739, %v2740
          %v2742 = vrot.slane %v2741, 1
          %v2743 = vmax.f32 %v2741, %v2742
          %v2744 = vsel %vm2694, %v2548, -inf
          %v2745 = vrot.slane %v2744, 4
          %v2746 = vmax.f32 %v2744, %v2745
          %v2747 = vrot.slane %v2746, 2
          %v2748 = vmax.f32 %v2746, %v2747
          %v2749 = vrot.slane %v2748, 1
          %v2750 = vmax.f32 %v2748, %v2749
          %v2751 = vsel %vm2694, %v2547, -inf
          %v2752 = vrot.slane %v2751, 4
          %v2753 = vmax.f32 %v2751, %v2752
          %v2754 = vrot.slane %v2753, 2
          %v2755 = vmax.f32 %v2753, %v2754
          %v2756 = vrot.slane %v2755, 1
          %v2757 = vmax.f32 %v2755, %v2756
          %v2758 = vsel %vm2694, %v2549, -inf
          %v2759 = vrot.slane %v2758, 4
          %v2760 = vmax.f32 %v2758, %v2759
          %v2761 = vrot.slane %v2760, 2
          %v2762 = vmax.f32 %v2760, %v2761
          %v2763 = vrot.slane %v2762, 1
          %v2764 = vmax.f32 %v2762, %v2763
          %v2765 = vsel %vm2694, %v2556, -inf
          %v2766 = vrot.slane %v2765, 4
          %v2767 = vmax.f32 %v2765, %v2766
          %v2768 = vrot.slane %v2767, 2
          %v2769 = vmax.f32 %v2767, %v2768
          %v2770 = vrot.slane %v2769, 1
          %v2771 = vmax.f32 %v2769, %v2770
          %v2772 = vsel %vm2694, %v2557, -inf
          %v2773 = vrot.slane %v2772, 4
          %v2774 = vmax.f32 %v2772, %v2773
          %v2775 = vrot.slane %v2774, 2
          %v2776 = vmax.f32 %v2774, %v2775
          %v2777 = vrot.slane %v2776, 1
          %v2778 = vmax.f32 %v2776, %v2777
          %v2779 = vsel %vm2694, %v2565, -inf
          %v2780 = vrot.slane %v2779, 4
          %v2781 = vmax.f32 %v2779, %v2780
          %v2782 = vrot.slane %v2781, 2
          %v2783 = vmax.f32 %v2781, %v2782
          %v2784 = vrot.slane %v2783, 1
          %v2785 = vmax.f32 %v2783, %v2784
          %v2786 = vsel %vm2694, %v2573, -inf
          %v2787 = vrot.slane %v2786, 4
          %v2788 = vmax.f32 %v2786, %v2787
          %v2789 = vrot.slane %v2788, 2
          %v2790 = vmax.f32 %v2788, %v2789
          %v2791 = vrot.slane %v2790, 1
          %v2792 = vmax.f32 %v2790, %v2791
          %v2793 = vsel %vm2694, %v2572, -inf
          %v2794 = vrot.slane %v2793, 4
          %v2795 = vmax.f32 %v2793, %v2794
          %v2796 = vrot.slane %v2795, 2
          %v2797 = vmax.f32 %v2795, %v2796
          %v2798 = vrot.slane %v2797, 1
          %v2799 = vmax.f32 %v2797, %v2798
          %v2800 = vsel %vm2694, %v2574, -inf
          %v2801 = vrot.slane %v2800, 4
          %v2802 = vmax.f32 %v2800, %v2801
          %v2803 = vrot.slane %v2802, 2
          %v2804 = vmax.f32 %v2802, %v2803
          %v2805 = vrot.slane %v2804, 1
          %v2806 = vmax.f32 %v2804, %v2805
          %v2807 = vsel %vm2694, %v2581, -inf
          %v2808 = vrot.slane %v2807, 4
          %v2809 = vmax.f32 %v2807, %v2808
          %v2810 = vrot.slane %v2809, 2
          %v2811 = vmax.f32 %v2809, %v2810
          %v2812 = vrot.slane %v2811, 1
          %v2813 = vmax.f32 %v2811, %v2812
          %v2814 = vsel %vm2694, %v2582, -inf
          %v2815 = vrot.slane %v2814, 4
          %v2816 = vmax.f32 %v2814, %v2815
          %v2817 = vrot.slane %v2816, 2
          %v2818 = vmax.f32 %v2816, %v2817
          %v2819 = vrot.slane %v2818, 1
          %v2820 = vmax.f32 %v2818, %v2819
          %v2821 = vsel %vm2694, %v2590, -inf
          %v2822 = vrot.slane %v2821, 4
          %v2823 = vmax.f32 %v2821, %v2822
          %v2824 = vrot.slane %v2823, 2
          %v2825 = vmax.f32 %v2823, %v2824
          %v2826 = vrot.slane %v2825, 1
          %v2827 = vmax.f32 %v2825, %v2826
          %v2828 = vsel %vm2694, %v2598, -inf
          %v2829 = vrot.slane %v2828, 4
          %v2830 = vmax.f32 %v2828, %v2829
          %v2831 = vrot.slane %v2830, 2
          %v2832 = vmax.f32 %v2830, %v2831
          %v2833 = vrot.slane %v2832, 1
          %v2834 = vmax.f32 %v2832, %v2833
          %v2835 = vsel %vm2694, %v2597, -inf
          %v2836 = vrot.slane %v2835, 4
          %v2837 = vmax.f32 %v2835, %v2836
          %v2838 = vrot.slane %v2837, 2
          %v2839 = vmax.f32 %v2837, %v2838
          %v2840 = vrot.slane %v2839, 1
          %v2841 = vmax.f32 %v2839, %v2840
          %v2842 = vsel %vm2694, %v2599, -inf
          %v2843 = vrot.slane %v2842, 4
          %v2844 = vmax.f32 %v2842, %v2843
          %v2845 = vrot.slane %v2844, 2
          %v2846 = vmax.f32 %v2844, %v2845
          %v2847 = vrot.slane %v2846, 1
          %v2848 = vmax.f32 %v2846, %v2847
          %v2849 = vsel %vm2694, %v2606, -inf
          %v2850 = vrot.slane %v2849, 4
          %v2851 = vmax.f32 %v2849, %v2850
          %v2852 = vrot.slane %v2851, 2
          %v2853 = vmax.f32 %v2851, %v2852
          %v2854 = vrot.slane %v2853, 1
          %v2855 = vmax.f32 %v2853, %v2854
          %v2856 = vsel %vm2694, %v2607, -inf
          %v2857 = vrot.slane %v2856, 4
          %v2858 = vmax.f32 %v2856, %v2857
          %v2859 = vrot.slane %v2858, 2
          %v2860 = vmax.f32 %v2858, %v2859
          %v2861 = vrot.slane %v2860, 1
          %v2862 = vmax.f32 %v2860, %v2861
          %v2863 = vsel %vm2694, %v2615, -inf
          %v2864 = vrot.slane %v2863, 4
          %v2865 = vmax.f32 %v2863, %v2864
          %v2866 = vrot.slane %v2865, 2
          %v2867 = vmax.f32 %v2865, %v2866
          %v2868 = vrot.slane %v2867, 1
          %v2869 = vmax.f32 %v2867, %v2868
          %v2870 = vsel %vm2694, %v2623, -inf
          %v2871 = vrot.slane %v2870, 4
          %v2872 = vmax.f32 %v2870, %v2871
          %v2873 = vrot.slane %v2872, 2
          %v2874 = vmax.f32 %v2872, %v2873
          %v2875 = vrot.slane %v2874, 1
          %v2876 = vmax.f32 %v2874, %v2875
          %v2877 = vsel %vm2694, %v2622, -inf
          %v2878 = vrot.slane %v2877, 4
          %v2879 = vmax.f32 %v2877, %v2878
          %v2880 = vrot.slane %v2879, 2
          %v2881 = vmax.f32 %v2879, %v2880
          %v2882 = vrot.slane %v2881, 1
          %v2883 = vmax.f32 %v2881, %v2882
          %v2884 = vsel %vm2694, %v2624, -inf
          %v2885 = vrot.slane %v2884, 4
          %v2886 = vmax.f32 %v2884, %v2885
          %v2887 = vrot.slane %v2886, 2
          %v2888 = vmax.f32 %v2886, %v2887
          %v2889 = vrot.slane %v2888, 1
          %v2890 = vmax.f32 %v2888, %v2889
          %v2891 = vsel %vm2694, %v2631, -inf
          %v2892 = vrot.slane %v2891, 4
          %v2893 = vmax.f32 %v2891, %v2892
          %v2894 = vrot.slane %v2893, 2
          %v2895 = vmax.f32 %v2893, %v2894
          %v2896 = vrot.slane %v2895, 1
          %v2897 = vmax.f32 %v2895, %v2896
          %v2898 = vsel %vm2694, %v2632, -inf
          %v2899 = vrot.slane %v2898, 4
          %v2900 = vmax.f32 %v2898, %v2899
          %v2901 = vrot.slane %v2900, 2
          %v2902 = vmax.f32 %v2900, %v2901
          %v2903 = vrot.slane %v2902, 1
          %v2904 = vmax.f32 %v2902, %v2903
          %v2905 = vsel %vm2694, %v2640, -inf
          %v2906 = vrot.slane %v2905, 4
          %v2907 = vmax.f32 %v2905, %v2906
          %v2908 = vrot.slane %v2907, 2
          %v2909 = vmax.f32 %v2907, %v2908
          %v2910 = vrot.slane %v2909, 1
          %v2911 = vmax.f32 %v2909, %v2910
          %v2912 = vsel %vm2694, %v2648, -inf
          %v2913 = vrot.slane %v2912, 4
          %v2914 = vmax.f32 %v2912, %v2913
          %v2915 = vrot.slane %v2914, 2
          %v2916 = vmax.f32 %v2914, %v2915
          %v2917 = vrot.slane %v2916, 1
          %v2918 = vmax.f32 %v2916, %v2917
          %v2919 = vsel %vm2694, %v2647, -inf
          %v2920 = vrot.slane %v2919, 4
          %v2921 = vmax.f32 %v2919, %v2920
          %v2922 = vrot.slane %v2921, 2
          %v2923 = vmax.f32 %v2921, %v2922
          %v2924 = vrot.slane %v2923, 1
          %v2925 = vmax.f32 %v2923, %v2924
          %v2926 = vsel %vm2694, %v2649, -inf
          %v2927 = vrot.slane %v2926, 4
          %v2928 = vmax.f32 %v2926, %v2927
          %v2929 = vrot.slane %v2928, 2
          %v2930 = vmax.f32 %v2928, %v2929
          %v2931 = vrot.slane %v2930, 1
          %v2932 = vmax.f32 %v2930, %v2931
          %v2933 = vsel %vm2694, %v2656, -inf
          %v2934 = vrot.slane %v2933, 4
          %v2935 = vmax.f32 %v2933, %v2934
          %v2936 = vrot.slane %v2935, 2
          %v2937 = vmax.f32 %v2935, %v2936
          %v2938 = vrot.slane %v2937, 1
          %v2939 = vmax.f32 %v2937, %v2938
          %v2940 = vsel %vm2694, %v2657, -inf
          %v2941 = vrot.slane %v2940, 4
          %v2942 = vmax.f32 %v2940, %v2941
          %v2943 = vrot.slane %v2942, 2
          %v2944 = vmax.f32 %v2942, %v2943
          %v2945 = vrot.slane %v2944, 1
          %v2946 = vmax.f32 %v2944, %v2945
          %vm2983 = vcmask 1041409
          %v2984 = vsel %vm2983, %v2708, %v2701
          %vm2985 = vcmask 1042434
          %v2986 = vsel %vm2985, %v2715, %v2984
          %vm2987 = vcmask 1043459
          %v2988 = vsel %vm2987, %v2722, %v2986
          %vm2989 = vcmask 1044484
          %v2990 = vsel %vm2989, %v2729, %v2988
          %vm2991 = vcmask 1045509
          %v2992 = vsel %vm2991, %v2736, %v2990
          %v2993 = vsel %vm2983, %v2750, %v2743
          %v2994 = vsel %vm2985, %v2757, %v2993
          %v2995 = vsel %vm2987, %v2764, %v2994
          %v2996 = vsel %vm2989, %v2771, %v2995
          %v2997 = vsel %vm2991, %v2778, %v2996
          %v2998 = vsel %vm2983, %v2792, %v2785
          %v2999 = vsel %vm2985, %v2799, %v2998
          %v3000 = vsel %vm2987, %v2806, %v2999
          %v3001 = vsel %vm2989, %v2813, %v3000
          %v3002 = vsel %vm2991, %v2820, %v3001
          %v3003 = vsel %vm2983, %v2834, %v2827
          %v3004 = vsel %vm2985, %v2841, %v3003
          %v3005 = vsel %vm2987, %v2848, %v3004
          %v3006 = vsel %vm2989, %v2855, %v3005
          %v3007 = vsel %vm2991, %v2862, %v3006
          %v3008 = vsel %vm2983, %v2876, %v2869
          %v3009 = vsel %vm2985, %v2883, %v3008
          %v3010 = vsel %vm2987, %v2890, %v3009
          %v3011 = vsel %vm2989, %v2897, %v3010
          %v3012 = vsel %vm2991, %v2904, %v3011
          %v3013 = vsel %vm2983, %v2918, %v2911
          %v3014 = vsel %vm2985, %v2925, %v3013
          %v3015 = vsel %vm2987, %v2932, %v3014
          %v3016 = vsel %vm2989, %v2939, %v3015
          %v3017 = vsel %vm2991, %v2946, %v3016
          %s3024 = smul.u32 %s538, 48
          %s3025 = scalar_lea.vmem [#allocation2], %s3024
          %3026 = vst [vmem:[%s3025] sm:$0x3f] %v2992
          %3027 = vst [vmem:[%s3025 + $0x8] sm:$0x3f] %v2997
          %3028 = vst [vmem:[%s3025 + $0x10] sm:$0x3f] %v3002
          %3029 = vst [vmem:[%s3025 + $0x18] sm:$0x3f] %v3007
          %3030 = vst [vmem:[%s3025 + $0x20] sm:$0x3f] %v3012
          %3031 = vst [vmem:[%s3025 + $0x28] sm:$0x3f] %v3017
        $region115: #{tps_model_forward.1} parent=89 // loop_footer
          %s542 = sadd.s32 1, %s538
        $region116: #{tps_model_forward.1} parent=89 // loop_footer_branch
          %537 = sbr.rel target = $region112
        $region117: #{tps_model_forward.1} parent=89 // loop_exit
          _
        loop: start=0, step=1, limit=16
        $region118: #{tps_model_forward.1} parent=89 // loop_pre_header
          _
        $region119: #{tps_model_forward.1} parent=89 // loop_header
          %s3033 = sphi 0, %s3037
          %p3034 = scmp.ge.s32.totalorder %s3033, 16
        $region120: #{tps_model_forward.1} parent=89 // loop_header_branch
          %3036 = sbr.rel (%p3034) target = $region124
        $region121: #{tps_model_forward.1} parent=89 // loop_body
          %s3038 = sld [smem:[#allocation10 + %s3033]]
          %v3039 = vld [vmem:[#allocation2] sm:$0xf]
          %v3040 = vld [vmem:[#allocation2 + $0x8] sm:$0xf]
          %v3041 = vld [vmem:[#allocation2 + $0x10] sm:$0xf]
          %v3042 = vld [vmem:[#allocation2 + $0x18] sm:$0xf]
          %v3043 = vstv %s3038
          %v3044 = vmul.f32 %v3039, %v3043
          %v3045 = vmul.f32 %v3040, %v3043
          %v3046 = vmul.f32 %v3041, %v3043
          %v3047 = vmul.f32 %v3042, %v3043
          %v3048 = vadd.f32 %v3044, 0.0
          %v3049 = vadd.f32 %v3045, 0.0
          %v3050 = vadd.f32 %v3046, 0.0
          %v3051 = vadd.f32 %v3047, 0.0
          %s3052 = sadd.s32 %s3033, 16
          %s3053 = sld [smem:[#allocation10 + %s3052]]
          %v3054 = vld [vmem:[#allocation2 + $0x1] sm:$0xf]
          %v3055 = vld [vmem:[#allocation2 + $0x9] sm:$0xf]
          %v3056 = vld [vmem:[#allocation2 + $0x11] sm:$0xf]
          %v3057 = vld [vmem:[#allocation2 + $0x19] sm:$0xf]
          %v3058 = vstv %s3053
          %v3059 = vmul.f32 %v3054, %v3058
          %v3060 = vmul.f32 %v3055, %v3058
          %v3061 = vmul.f32 %v3056, %v3058
          %v3062 = vmul.f32 %v3057, %v3058
          %v3063 = vadd.f32 %v3048, %v3059
          %v3064 = vadd.f32 %v3049, %v3060
          %v3065 = vadd.f32 %v3050, %v3061
          %v3066 = vadd.f32 %v3051, %v3062
          %s3067 = sadd.s32 %s3033, 32
          %s3068 = sld [smem:[#allocation10 + %s3067]]
          %v3069 = vld [vmem:[#allocation2 + $0x2] sm:$0xf]
          %v3070 = vld [vmem:[#allocation2 + $0xa] sm:$0xf]
          %v3071 = vld [vmem:[#allocation2 + $0x12] sm:$0xf]
          %v3072 = vld [vmem:[#allocation2 + $0x1a] sm:$0xf]
          %v3073 = vstv %s3068
          %v3074 = vmul.f32 %v3069, %v3073
          %v3075 = vmul.f32 %v3070, %v3073
          %v3076 = vmul.f32 %v3071, %v3073
          %v3077 = vmul.f32 %v3072, %v3073
          %v3078 = vadd.f32 %v3063, %v3074
          %v3079 = vadd.f32 %v3064, %v3075
          %v3080 = vadd.f32 %v3065, %v3076
          %v3081 = vadd.f32 %v3066, %v3077
          %s3082 = sadd.s32 %s3033, 48
          %s3083 = sld [smem:[#allocation10 + %s3082]]
          %s3084 = scalar_lea.vmem [#allocation2], 8
          %v3085 = vld [vmem:[%s3084] sm:$0xf]
          %v3086 = vld [vmem:[%s3084 + $0x8] sm:$0xf]
          %v3087 = vld [vmem:[%s3084 + $0x10] sm:$0xf]
          %v3088 = vld [vmem:[%s3084 + $0x18] sm:$0xf]
          %v3089 = vstv %s3083
          %v3090 = vmul.f32 %v3085, %v3089
          %v3091 = vmul.f32 %v3086, %v3089
          %v3092 = vmul.f32 %v3087, %v3089
          %v3093 = vmul.f32 %v3088, %v3089
          %v3094 = vadd.f32 %v3078, %v3090
          %v3095 = vadd.f32 %v3079, %v3091
          %v3096 = vadd.f32 %v3080, %v3092
          %v3097 = vadd.f32 %v3081, %v3093
          %s3098 = sadd.s32 %s3033, 64
          %s3099 = sld [smem:[#allocation10 + %s3098]]
          %v3100 = vld [vmem:[%s3084 + $0x1] sm:$0xf]
          %v3101 = vld [vmem:[%s3084 + $0x9] sm:$0xf]
          %v3102 = vld [vmem:[%s3084 + $0x11] sm:$0xf]
          %v3103 = vld [vmem:[%s3084 + $0x19] sm:$0xf]
          %v3104 = vstv %s3099
          %v3105 = vmul.f32 %v3100, %v3104
          %v3106 = vmul.f32 %v3101, %v3104
          %v3107 = vmul.f32 %v3102, %v3104
          %v3108 = vmul.f32 %v3103, %v3104
          %v3109 = vadd.f32 %v3094, %v3105
          %v3110 = vadd.f32 %v3095, %v3106
          %v3111 = vadd.f32 %v3096, %v3107
          %v3112 = vadd.f32 %v3097, %v3108
          %s3113 = sadd.s32 %s3033, 80
          %s3114 = sld [smem:[#allocation10 + %s3113]]
          %v3115 = vld [vmem:[%s3084 + $0x2] sm:$0xf]
          %v3116 = vld [vmem:[%s3084 + $0xa] sm:$0xf]
          %v3117 = vld [vmem:[%s3084 + $0x12] sm:$0xf]
          %v3118 = vld [vmem:[%s3084 + $0x1a] sm:$0xf]
          %v3119 = vstv %s3114
          %v3120 = vmul.f32 %v3115, %v3119
          %v3121 = vmul.f32 %v3116, %v3119
          %v3122 = vmul.f32 %v3117, %v3119
          %v3123 = vmul.f32 %v3118, %v3119
          %v3124 = vadd.f32 %v3109, %v3120
          %v3125 = vadd.f32 %v3110, %v3121
          %v3126 = vadd.f32 %v3111, %v3122
          %v3127 = vadd.f32 %v3112, %v3123
          %s3128 = sadd.s32 %s3033, 96
          %s3129 = sld [smem:[#allocation10 + %s3128]]
          %s3130 = scalar_lea.vmem [#allocation2], 16
          %v3131 = vld [vmem:[%s3130] sm:$0xf]
          %v3132 = vld [vmem:[%s3130 + $0x8] sm:$0xf]
          %v3133 = vld [vmem:[%s3130 + $0x10] sm:$0xf]
          %v3134 = vld [vmem:[%s3130 + $0x18] sm:$0xf]
          %v3135 = vstv %s3129
          %v3136 = vmul.f32 %v3131, %v3135
          %v3137 = vmul.f32 %v3132, %v3135
          %v3138 = vmul.f32 %v3133, %v3135
          %v3139 = vmul.f32 %v3134, %v3135
          %v3140 = vadd.f32 %v3124, %v3136
          %v3141 = vadd.f32 %v3125, %v3137
          %v3142 = vadd.f32 %v3126, %v3138
          %v3143 = vadd.f32 %v3127, %v3139
          %s3144 = sadd.s32 %s3033, 112
          %s3145 = sld [smem:[#allocation10 + %s3144]]
          %v3146 = vld [vmem:[%s3130 + $0x1] sm:$0xf]
          %v3147 = vld [vmem:[%s3130 + $0x9] sm:$0xf]
          %v3148 = vld [vmem:[%s3130 + $0x11] sm:$0xf]
          %v3149 = vld [vmem:[%s3130 + $0x19] sm:$0xf]
          %v3150 = vstv %s3145
          %v3151 = vmul.f32 %v3146, %v3150
          %v3152 = vmul.f32 %v3147, %v3150
          %v3153 = vmul.f32 %v3148, %v3150
          %v3154 = vmul.f32 %v3149, %v3150
          %v3155 = vadd.f32 %v3140, %v3151
          %v3156 = vadd.f32 %v3141, %v3152
          %v3157 = vadd.f32 %v3142, %v3153
          %v3158 = vadd.f32 %v3143, %v3154
          %s3159 = sadd.s32 %s3033, 128
          %s3160 = sld [smem:[#allocation10 + %s3159]]
          %v3161 = vld [vmem:[%s3130 + $0x2] sm:$0xf]
          %v3162 = vld [vmem:[%s3130 + $0xa] sm:$0xf]
          %v3163 = vld [vmem:[%s3130 + $0x12] sm:$0xf]
          %v3164 = vld [vmem:[%s3130 + $0x1a] sm:$0xf]
          %v3165 = vstv %s3160
          %v3166 = vmul.f32 %v3161, %v3165
          %v3167 = vmul.f32 %v3162, %v3165
          %v3168 = vmul.f32 %v3163, %v3165
          %v3169 = vmul.f32 %v3164, %v3165
          %v3170 = vadd.f32 %v3155, %v3166
          %v3171 = vadd.f32 %v3156, %v3167
          %v3172 = vadd.f32 %v3157, %v3168
          %v3173 = vadd.f32 %v3158, %v3169
          %s3174 = sadd.s32 %s3033, 144
          %s3175 = sld [smem:[#allocation10 + %s3174]]
          %s3176 = scalar_lea.vmem [#allocation2], 48
          %v3177 = vld [vmem:[%s3176] sm:$0xf]
          %v3178 = vld [vmem:[%s3176 + $0x8] sm:$0xf]
          %v3179 = vld [vmem:[%s3176 + $0x10] sm:$0xf]
          %v3180 = vld [vmem:[%s3176 + $0x18] sm:$0xf]
          %v3181 = vstv %s3175
          %v3182 = vmul.f32 %v3177, %v3181
          %v3183 = vmul.f32 %v3178, %v3181
          %v3184 = vmul.f32 %v3179, %v3181
          %v3185 = vmul.f32 %v3180, %v3181
          %v3186 = vadd.f32 %v3170, %v3182
          %v3187 = vadd.f32 %v3171, %v3183
          %v3188 = vadd.f32 %v3172, %v3184
          %v3189 = vadd.f32 %v3173, %v3185
          %s3190 = sadd.s32 %s3033, 160
          %s3191 = sld [smem:[#allocation10 + %s3190]]
          %v3192 = vld [vmem:[%s3176 + $0x1] sm:$0xf]
          %v3193 = vld [vmem:[%s3176 + $0x9] sm:$0xf]
          %v3194 = vld [vmem:[%s3176 + $0x11] sm:$0xf]
          %v3195 = vld [vmem:[%s3176 + $0x19] sm:$0xf]
          %v3196 = vstv %s3191
          %v3197 = vmul.f32 %v3192, %v3196
          %v3198 = vmul.f32 %v3193, %v3196
          %v3199 = vmul.f32 %v3194, %v3196
          %v3200 = vmul.f32 %v3195, %v3196
          %v3201 = vadd.f32 %v3186, %v3197
          %v3202 = vadd.f32 %v3187, %v3198
          %v3203 = vadd.f32 %v3188, %v3199
          %v3204 = vadd.f32 %v3189, %v3200
          %s3205 = sadd.s32 %s3033, 176
          %s3206 = sld [smem:[#allocation10 + %s3205]]
          %v3207 = vld [vmem:[%s3176 + $0x2] sm:$0xf]
          %v3208 = vld [vmem:[%s3176 + $0xa] sm:$0xf]
          %v3209 = vld [vmem:[%s3176 + $0x12] sm:$0xf]
          %v3210 = vld [vmem:[%s3176 + $0x1a] sm:$0xf]
          %v3211 = vstv %s3206
          %v3212 = vmul.f32 %v3207, %v3211
          %v3213 = vmul.f32 %v3208, %v3211
          %v3214 = vmul.f32 %v3209, %v3211
          %v3215 = vmul.f32 %v3210, %v3211
          %v3216 = vadd.f32 %v3201, %v3212
          %v3217 = vadd.f32 %v3202, %v3213
          %v3218 = vadd.f32 %v3203, %v3214
          %v3219 = vadd.f32 %v3204, %v3215
          %s3220 = sadd.s32 %s3033, 192
          %s3221 = sld [smem:[#allocation10 + %s3220]]
          %s3222 = scalar_lea.vmem [#allocation2], 56
          %v3223 = vld [vmem:[%s3222] sm:$0xf]
          %v3224 = vld [vmem:[%s3222 + $0x8] sm:$0xf]
          %v3225 = vld [vmem:[%s3222 + $0x10] sm:$0xf]
          %v3226 = vld [vmem:[%s3222 + $0x18] sm:$0xf]
          %v3227 = vstv %s3221
          %v3228 = vmul.f32 %v3223, %v3227
          %v3229 = vmul.f32 %v3224, %v3227
          %v3230 = vmul.f32 %v3225, %v3227
          %v3231 = vmul.f32 %v3226, %v3227
          %v3232 = vadd.f32 %v3216, %v3228
          %v3233 = vadd.f32 %v3217, %v3229
          %v3234 = vadd.f32 %v3218, %v3230
          %v3235 = vadd.f32 %v3219, %v3231
          %s3236 = sadd.s32 %s3033, 208
          %s3237 = sld [smem:[#allocation10 + %s3236]]
          %v3238 = vld [vmem:[%s3222 + $0x1] sm:$0xf]
          %v3239 = vld [vmem:[%s3222 + $0x9] sm:$0xf]
          %v3240 = vld [vmem:[%s3222 + $0x11] sm:$0xf]
          %v3241 = vld [vmem:[%s3222 + $0x19] sm:$0xf]
          %v3242 = vstv %s3237
          %v3243 = vmul.f32 %v3238, %v3242
          %v3244 = vmul.f32 %v3239, %v3242
          %v3245 = vmul.f32 %v3240, %v3242
          %v3246 = vmul.f32 %v3241, %v3242
          %v3247 = vadd.f32 %v3232, %v3243
          %v3248 = vadd.f32 %v3233, %v3244
          %v3249 = vadd.f32 %v3234, %v3245
          %v3250 = vadd.f32 %v3235, %v3246
          %s3251 = sadd.s32 %s3033, 224
          %s3252 = sld [smem:[#allocation10 + %s3251]]
          %v3253 = vld [vmem:[%s3222 + $0x2] sm:$0xf]
          %v3254 = vld [vmem:[%s3222 + $0xa] sm:$0xf]
          %v3255 = vld [vmem:[%s3222 + $0x12] sm:$0xf]
          %v3256 = vld [vmem:[%s3222 + $0x1a] sm:$0xf]
          %v3257 = vstv %s3252
          %v3258 = vmul.f32 %v3253, %v3257
          %v3259 = vmul.f32 %v3254, %v3257
          %v3260 = vmul.f32 %v3255, %v3257
          %v3261 = vmul.f32 %v3256, %v3257
          %v3262 = vadd.f32 %v3247, %v3258
          %v3263 = vadd.f32 %v3248, %v3259
          %v3264 = vadd.f32 %v3249, %v3260
          %v3265 = vadd.f32 %v3250, %v3261
          %s3266 = sadd.s32 %s3033, 240
          %s3267 = sld [smem:[#allocation10 + %s3266]]
          %s3268 = scalar_lea.vmem [#allocation2], 64
          %v3269 = vld [vmem:[%s3268] sm:$0xf]
          %v3270 = vld [vmem:[%s3268 + $0x8] sm:$0xf]
          %v3271 = vld [vmem:[%s3268 + $0x10] sm:$0xf]
          %v3272 = vld [vmem:[%s3268 + $0x18] sm:$0xf]
          %v3273 = vstv %s3267
          %v3274 = vmul.f32 %v3269, %v3273
          %v3275 = vmul.f32 %v3270, %v3273
          %v3276 = vmul.f32 %v3271, %v3273
          %v3277 = vmul.f32 %v3272, %v3273
          %v3278 = vadd.f32 %v3262, %v3274
          %v3279 = vadd.f32 %v3263, %v3275
          %v3280 = vadd.f32 %v3264, %v3276
          %v3281 = vadd.f32 %v3265, %v3277
          %s3282 = sadd.s32 %s3033, 256
          %s3283 = sld [smem:[#allocation10 + %s3282]]
          %v3284 = vld [vmem:[%s3268 + $0x1] sm:$0xf]
          %v3285 = vld [vmem:[%s3268 + $0x9] sm:$0xf]
          %v3286 = vld [vmem:[%s3268 + $0x11] sm:$0xf]
          %v3287 = vld [vmem:[%s3268 + $0x19] sm:$0xf]
          %v3288 = vstv %s3283
          %v3289 = vmul.f32 %v3284, %v3288
          %v3290 = vmul.f32 %v3285, %v3288
          %v3291 = vmul.f32 %v3286, %v3288
          %v3292 = vmul.f32 %v3287, %v3288
          %v3293 = vadd.f32 %v3278, %v3289
          %v3294 = vadd.f32 %v3279, %v3290
          %v3295 = vadd.f32 %v3280, %v3291
          %v3296 = vadd.f32 %v3281, %v3292
          %s3297 = sadd.s32 %s3033, 272
          %s3298 = sld [smem:[#allocation10 + %s3297]]
          %v3299 = vld [vmem:[%s3268 + $0x2] sm:$0xf]
          %v3300 = vld [vmem:[%s3268 + $0xa] sm:$0xf]
          %v3301 = vld [vmem:[%s3268 + $0x12] sm:$0xf]
          %v3302 = vld [vmem:[%s3268 + $0x1a] sm:$0xf]
          %v3303 = vstv %s3298
          %v3304 = vmul.f32 %v3299, %v3303
          %v3305 = vmul.f32 %v3300, %v3303
          %v3306 = vmul.f32 %v3301, %v3303
          %v3307 = vmul.f32 %v3302, %v3303
          %v3308 = vadd.f32 %v3293, %v3304
          %v3309 = vadd.f32 %v3294, %v3305
          %v3310 = vadd.f32 %v3295, %v3306
          %v3311 = vadd.f32 %v3296, %v3307
          %s3312 = sadd.s32 %s3033, 288
          %s3313 = sld [smem:[#allocation10 + %s3312]]
          %s3314 = scalar_lea.vmem [#allocation2], 96
          %v3315 = vld [vmem:[%s3314] sm:$0xf]
          %v3316 = vld [vmem:[%s3314 + $0x8] sm:$0xf]
          %v3317 = vld [vmem:[%s3314 + $0x10] sm:$0xf]
          %v3318 = vld [vmem:[%s3314 + $0x18] sm:$0xf]
          %v3319 = vstv %s3313
          %v3320 = vmul.f32 %v3315, %v3319
          %v3321 = vmul.f32 %v3316, %v3319
          %v3322 = vmul.f32 %v3317, %v3319
          %v3323 = vmul.f32 %v3318, %v3319
          %v3324 = vadd.f32 %v3308, %v3320
          %v3325 = vadd.f32 %v3309, %v3321
          %v3326 = vadd.f32 %v3310, %v3322
          %v3327 = vadd.f32 %v3311, %v3323
          %s3328 = sadd.s32 %s3033, 304
          %s3329 = sld [smem:[#allocation10 + %s3328]]
          %v3330 = vld [vmem:[%s3314 + $0x1] sm:$0xf]
          %v3331 = vld [vmem:[%s3314 + $0x9] sm:$0xf]
          %v3332 = vld [vmem:[%s3314 + $0x11] sm:$0xf]
          %v3333 = vld [vmem:[%s3314 + $0x19] sm:$0xf]
          %v3334 = vstv %s3329
          %v3335 = vmul.f32 %v3330, %v3334
          %v3336 = vmul.f32 %v3331, %v3334
          %v3337 = vmul.f32 %v3332, %v3334
          %v3338 = vmul.f32 %v3333, %v3334
          %v3339 = vadd.f32 %v3324, %v3335
          %v3340 = vadd.f32 %v3325, %v3336
          %v3341 = vadd.f32 %v3326, %v3337
          %v3342 = vadd.f32 %v3327, %v3338
          %s3343 = sadd.s32 %s3033, 320
          %s3344 = sld [smem:[#allocation10 + %s3343]]
          %v3345 = vld [vmem:[%s3314 + $0x2] sm:$0xf]
          %v3346 = vld [vmem:[%s3314 + $0xa] sm:$0xf]
          %v3347 = vld [vmem:[%s3314 + $0x12] sm:$0xf]
          %v3348 = vld [vmem:[%s3314 + $0x1a] sm:$0xf]
          %v3349 = vstv %s3344
          %v3350 = vmul.f32 %v3345, %v3349
          %v3351 = vmul.f32 %v3346, %v3349
          %v3352 = vmul.f32 %v3347, %v3349
          %v3353 = vmul.f32 %v3348, %v3349
          %v3354 = vadd.f32 %v3339, %v3350
          %v3355 = vadd.f32 %v3340, %v3351
          %v3356 = vadd.f32 %v3341, %v3352
          %v3357 = vadd.f32 %v3342, %v3353
          %s3358 = sadd.s32 %s3033, 336
          %s3359 = sld [smem:[#allocation10 + %s3358]]
          %s3360 = scalar_lea.vmem [#allocation2], 104
          %v3361 = vld [vmem:[%s3360] sm:$0xf]
          %v3362 = vld [vmem:[%s3360 + $0x8] sm:$0xf]
          %v3363 = vld [vmem:[%s3360 + $0x10] sm:$0xf]
          %v3364 = vld [vmem:[%s3360 + $0x18] sm:$0xf]
          %v3365 = vstv %s3359
          %v3366 = vmul.f32 %v3361, %v3365
          %v3367 = vmul.f32 %v3362, %v3365
          %v3368 = vmul.f32 %v3363, %v3365
          %v3369 = vmul.f32 %v3364, %v3365
          %v3370 = vadd.f32 %v3354, %v3366
          %v3371 = vadd.f32 %v3355, %v3367
          %v3372 = vadd.f32 %v3356, %v3368
          %v3373 = vadd.f32 %v3357, %v3369
          %s3374 = sadd.s32 %s3033, 352
          %s3375 = sld [smem:[#allocation10 + %s3374]]
          %v3376 = vld [vmem:[%s3360 + $0x1] sm:$0xf]
          %v3377 = vld [vmem:[%s3360 + $0x9] sm:$0xf]
          %v3378 = vld [vmem:[%s3360 + $0x11] sm:$0xf]
          %v3379 = vld [vmem:[%s3360 + $0x19] sm:$0xf]
          %v3380 = vstv %s3375
          %v3381 = vmul.f32 %v3376, %v3380
          %v3382 = vmul.f32 %v3377, %v3380
          %v3383 = vmul.f32 %v3378, %v3380
          %v3384 = vmul.f32 %v3379, %v3380
          %v3385 = vadd.f32 %v3370, %v3381
          %v3386 = vadd.f32 %v3371, %v3382
          %v3387 = vadd.f32 %v3372, %v3383
          %v3388 = vadd.f32 %v3373, %v3384
          %s3389 = sadd.s32 %s3033, 368
          %s3390 = sld [smem:[#allocation10 + %s3389]]
          %v3391 = vld [vmem:[%s3360 + $0x2] sm:$0xf]
          %v3392 = vld [vmem:[%s3360 + $0xa] sm:$0xf]
          %v3393 = vld [vmem:[%s3360 + $0x12] sm:$0xf]
          %v3394 = vld [vmem:[%s3360 + $0x1a] sm:$0xf]
          %v3395 = vstv %s3390
          %v3396 = vmul.f32 %v3391, %v3395
          %v3397 = vmul.f32 %v3392, %v3395
          %v3398 = vmul.f32 %v3393, %v3395
          %v3399 = vmul.f32 %v3394, %v3395
          %v3400 = vadd.f32 %v3385, %v3396
          %v3401 = vadd.f32 %v3386, %v3397
          %v3402 = vadd.f32 %v3387, %v3398
          %v3403 = vadd.f32 %v3388, %v3399
          %s3404 = sadd.s32 %s3033, 384
          %s3405 = sld [smem:[#allocation10 + %s3404]]
          %s3406 = scalar_lea.vmem [#allocation2], 112
          %v3407 = vld [vmem:[%s3406] sm:$0xf]
          %v3408 = vld [vmem:[%s3406 + $0x8] sm:$0xf]
          %v3409 = vld [vmem:[%s3406 + $0x10] sm:$0xf]
          %v3410 = vld [vmem:[%s3406 + $0x18] sm:$0xf]
          %v3411 = vstv %s3405
          %v3412 = vmul.f32 %v3407, %v3411
          %v3413 = vmul.f32 %v3408, %v3411
          %v3414 = vmul.f32 %v3409, %v3411
          %v3415 = vmul.f32 %v3410, %v3411
          %v3416 = vadd.f32 %v3400, %v3412
          %v3417 = vadd.f32 %v3401, %v3413
          %v3418 = vadd.f32 %v3402, %v3414
          %v3419 = vadd.f32 %v3403, %v3415
          %s3420 = sadd.s32 %s3033, 400
          %s3421 = sld [smem:[#allocation10 + %s3420]]
          %v3422 = vld [vmem:[%s3406 + $0x1] sm:$0xf]
          %v3423 = vld [vmem:[%s3406 + $0x9] sm:$0xf]
          %v3424 = vld [vmem:[%s3406 + $0x11] sm:$0xf]
          %v3425 = vld [vmem:[%s3406 + $0x19] sm:$0xf]
          %v3426 = vstv %s3421
          %v3427 = vmul.f32 %v3422, %v3426
          %v3428 = vmul.f32 %v3423, %v3426
          %v3429 = vmul.f32 %v3424, %v3426
          %v3430 = vmul.f32 %v3425, %v3426
          %v3431 = vadd.f32 %v3416, %v3427
          %v3432 = vadd.f32 %v3417, %v3428
          %v3433 = vadd.f32 %v3418, %v3429
          %v3434 = vadd.f32 %v3419, %v3430
          %s3435 = sadd.s32 %s3033, 416
          %s3436 = sld [smem:[#allocation10 + %s3435]]
          %v3437 = vld [vmem:[%s3406 + $0x2] sm:$0xf]
          %v3438 = vld [vmem:[%s3406 + $0xa] sm:$0xf]
          %v3439 = vld [vmem:[%s3406 + $0x12] sm:$0xf]
          %v3440 = vld [vmem:[%s3406 + $0x1a] sm:$0xf]
          %v3441 = vstv %s3436
          %v3442 = vmul.f32 %v3437, %v3441
          %v3443 = vmul.f32 %v3438, %v3441
          %v3444 = vmul.f32 %v3439, %v3441
          %v3445 = vmul.f32 %v3440, %v3441
          %v3446 = vadd.f32 %v3431, %v3442
          %v3447 = vadd.f32 %v3432, %v3443
          %v3448 = vadd.f32 %v3433, %v3444
          %v3449 = vadd.f32 %v3434, %v3445
          %s3450 = sadd.s32 %s3033, 432
          %s3451 = sld [smem:[#allocation10 + %s3450]]
          %s3452 = scalar_lea.vmem [#allocation2], 144
          %v3453 = vld [vmem:[%s3452] sm:$0xf]
          %v3454 = vld [vmem:[%s3452 + $0x8] sm:$0xf]
          %v3455 = vld [vmem:[%s3452 + $0x10] sm:$0xf]
          %v3456 = vld [vmem:[%s3452 + $0x18] sm:$0xf]
          %v3457 = vstv %s3451
          %v3458 = vmul.f32 %v3453, %v3457
          %v3459 = vmul.f32 %v3454, %v3457
          %v3460 = vmul.f32 %v3455, %v3457
          %v3461 = vmul.f32 %v3456, %v3457
          %v3462 = vadd.f32 %v3446, %v3458
          %v3463 = vadd.f32 %v3447, %v3459
          %v3464 = vadd.f32 %v3448, %v3460
          %v3465 = vadd.f32 %v3449, %v3461
          %s3466 = sadd.s32 %s3033, 448
          %s3467 = sld [smem:[#allocation10 + %s3466]]
          %v3468 = vld [vmem:[%s3452 + $0x1] sm:$0xf]
          %v3469 = vld [vmem:[%s3452 + $0x9] sm:$0xf]
          %v3470 = vld [vmem:[%s3452 + $0x11] sm:$0xf]
          %v3471 = vld [vmem:[%s3452 + $0x19] sm:$0xf]
          %v3472 = vstv %s3467
          %v3473 = vmul.f32 %v3468, %v3472
          %v3474 = vmul.f32 %v3469, %v3472
          %v3475 = vmul.f32 %v3470, %v3472
          %v3476 = vmul.f32 %v3471, %v3472
          %v3477 = vadd.f32 %v3462, %v3473
          %v3478 = vadd.f32 %v3463, %v3474
          %v3479 = vadd.f32 %v3464, %v3475
          %v3480 = vadd.f32 %v3465, %v3476
          %s3481 = sadd.s32 %s3033, 464
          %s3482 = sld [smem:[#allocation10 + %s3481]]
          %v3483 = vld [vmem:[%s3452 + $0x2] sm:$0xf]
          %v3484 = vld [vmem:[%s3452 + $0xa] sm:$0xf]
          %v3485 = vld [vmem:[%s3452 + $0x12] sm:$0xf]
          %v3486 = vld [vmem:[%s3452 + $0x1a] sm:$0xf]
          %v3487 = vstv %s3482
          %v3488 = vmul.f32 %v3483, %v3487
          %v3489 = vmul.f32 %v3484, %v3487
          %v3490 = vmul.f32 %v3485, %v3487
          %v3491 = vmul.f32 %v3486, %v3487
          %v3492 = vadd.f32 %v3477, %v3488
          %v3493 = vadd.f32 %v3478, %v3489
          %v3494 = vadd.f32 %v3479, %v3490
          %v3495 = vadd.f32 %v3480, %v3491
          %s3496 = sadd.s32 %s3033, 480
          %s3497 = sld [smem:[#allocation10 + %s3496]]
          %s3498 = scalar_lea.vmem [#allocation2], 152
          %v3499 = vld [vmem:[%s3498] sm:$0xf]
          %v3500 = vld [vmem:[%s3498 + $0x8] sm:$0xf]
          %v3501 = vld [vmem:[%s3498 + $0x10] sm:$0xf]
          %v3502 = vld [vmem:[%s3498 + $0x18] sm:$0xf]
          %v3503 = vstv %s3497
          %v3504 = vmul.f32 %v3499, %v3503
          %v3505 = vmul.f32 %v3500, %v3503
          %v3506 = vmul.f32 %v3501, %v3503
          %v3507 = vmul.f32 %v3502, %v3503
          %v3508 = vadd.f32 %v3492, %v3504
          %v3509 = vadd.f32 %v3493, %v3505
          %v3510 = vadd.f32 %v3494, %v3506
          %v3511 = vadd.f32 %v3495, %v3507
          %s3512 = sadd.s32 %s3033, 496
          %s3513 = sld [smem:[#allocation10 + %s3512]]
          %v3514 = vld [vmem:[%s3498 + $0x1] sm:$0xf]
          %v3515 = vld [vmem:[%s3498 + $0x9] sm:$0xf]
          %v3516 = vld [vmem:[%s3498 + $0x11] sm:$0xf]
          %v3517 = vld [vmem:[%s3498 + $0x19] sm:$0xf]
          %v3518 = vstv %s3513
          %v3519 = vmul.f32 %v3514, %v3518
          %v3520 = vmul.f32 %v3515, %v3518
          %v3521 = vmul.f32 %v3516, %v3518
          %v3522 = vmul.f32 %v3517, %v3518
          %v3523 = vadd.f32 %v3508, %v3519
          %v3524 = vadd.f32 %v3509, %v3520
          %v3525 = vadd.f32 %v3510, %v3521
          %v3526 = vadd.f32 %v3511, %v3522
          %s3527 = sadd.s32 %s3033, 512
          %s3528 = sld [smem:[#allocation10 + %s3527]]
          %v3529 = vld [vmem:[%s3498 + $0x2] sm:$0xf]
          %v3530 = vld [vmem:[%s3498 + $0xa] sm:$0xf]
          %v3531 = vld [vmem:[%s3498 + $0x12] sm:$0xf]
          %v3532 = vld [vmem:[%s3498 + $0x1a] sm:$0xf]
          %v3533 = vstv %s3528
          %v3534 = vmul.f32 %v3529, %v3533
          %v3535 = vmul.f32 %v3530, %v3533
          %v3536 = vmul.f32 %v3531, %v3533
          %v3537 = vmul.f32 %v3532, %v3533
          %v3538 = vadd.f32 %v3523, %v3534
          %v3539 = vadd.f32 %v3524, %v3535
          %v3540 = vadd.f32 %v3525, %v3536
          %v3541 = vadd.f32 %v3526, %v3537
          %s3542 = sadd.s32 %s3033, 528
          %s3543 = sld [smem:[#allocation10 + %s3542]]
          %s3544 = scalar_lea.vmem [#allocation2], 160
          %v3545 = vld [vmem:[%s3544] sm:$0xf]
          %v3546 = vld [vmem:[%s3544 + $0x8] sm:$0xf]
          %v3547 = vld [vmem:[%s3544 + $0x10] sm:$0xf]
          %v3548 = vld [vmem:[%s3544 + $0x18] sm:$0xf]
          %v3549 = vstv %s3543
          %v3550 = vmul.f32 %v3545, %v3549
          %v3551 = vmul.f32 %v3546, %v3549
          %v3552 = vmul.f32 %v3547, %v3549
          %v3553 = vmul.f32 %v3548, %v3549
          %v3554 = vadd.f32 %v3538, %v3550
          %v3555 = vadd.f32 %v3539, %v3551
          %v3556 = vadd.f32 %v3540, %v3552
          %v3557 = vadd.f32 %v3541, %v3553
          %s3558 = sadd.s32 %s3033, 544
          %s3559 = sld [smem:[#allocation10 + %s3558]]
          %v3560 = vld [vmem:[%s3544 + $0x1] sm:$0xf]
          %v3561 = vld [vmem:[%s3544 + $0x9] sm:$0xf]
          %v3562 = vld [vmem:[%s3544 + $0x11] sm:$0xf]
          %v3563 = vld [vmem:[%s3544 + $0x19] sm:$0xf]
          %v3564 = vstv %s3559
          %v3565 = vmul.f32 %v3560, %v3564
          %v3566 = vmul.f32 %v3561, %v3564
          %v3567 = vmul.f32 %v3562, %v3564
          %v3568 = vmul.f32 %v3563, %v3564
          %v3569 = vadd.f32 %v3554, %v3565
          %v3570 = vadd.f32 %v3555, %v3566
          %v3571 = vadd.f32 %v3556, %v3567
          %v3572 = vadd.f32 %v3557, %v3568
          %s3573 = sadd.s32 %s3033, 560
          %s3574 = sld [smem:[#allocation10 + %s3573]]
          %v3575 = vld [vmem:[%s3544 + $0x2] sm:$0xf]
          %v3576 = vld [vmem:[%s3544 + $0xa] sm:$0xf]
          %v3577 = vld [vmem:[%s3544 + $0x12] sm:$0xf]
          %v3578 = vld [vmem:[%s3544 + $0x1a] sm:$0xf]
          %v3579 = vstv %s3574
          %v3580 = vmul.f32 %v3575, %v3579
          %v3581 = vmul.f32 %v3576, %v3579
          %v3582 = vmul.f32 %v3577, %v3579
          %v3583 = vmul.f32 %v3578, %v3579
          %v3584 = vadd.f32 %v3569, %v3580
          %v3585 = vadd.f32 %v3570, %v3581
          %v3586 = vadd.f32 %v3571, %v3582
          %v3587 = vadd.f32 %v3572, %v3583
          %s3588 = sadd.s32 %s3033, 576
          %s3589 = sld [smem:[#allocation10 + %s3588]]
          %s3590 = scalar_lea.vmem [#allocation2], 192
          %v3591 = vld [vmem:[%s3590] sm:$0xf]
          %v3592 = vld [vmem:[%s3590 + $0x8] sm:$0xf]
          %v3593 = vld [vmem:[%s3590 + $0x10] sm:$0xf]
          %v3594 = vld [vmem:[%s3590 + $0x18] sm:$0xf]
          %v3595 = vstv %s3589
          %v3596 = vmul.f32 %v3591, %v3595
          %v3597 = vmul.f32 %v3592, %v3595
          %v3598 = vmul.f32 %v3593, %v3595
          %v3599 = vmul.f32 %v3594, %v3595
          %v3600 = vadd.f32 %v3584, %v3596
          %v3601 = vadd.f32 %v3585, %v3597
          %v3602 = vadd.f32 %v3586, %v3598
          %v3603 = vadd.f32 %v3587, %v3599
          %s3604 = sadd.s32 %s3033, 592
          %s3605 = sld [smem:[#allocation10 + %s3604]]
          %v3606 = vld [vmem:[%s3590 + $0x1] sm:$0xf]
          %v3607 = vld [vmem:[%s3590 + $0x9] sm:$0xf]
          %v3608 = vld [vmem:[%s3590 + $0x11] sm:$0xf]
          %v3609 = vld [vmem:[%s3590 + $0x19] sm:$0xf]
          %v3610 = vstv %s3605
          %v3611 = vmul.f32 %v3606, %v3610
          %v3612 = vmul.f32 %v3607, %v3610
          %v3613 = vmul.f32 %v3608, %v3610
          %v3614 = vmul.f32 %v3609, %v3610
          %v3615 = vadd.f32 %v3600, %v3611
          %v3616 = vadd.f32 %v3601, %v3612
          %v3617 = vadd.f32 %v3602, %v3613
          %v3618 = vadd.f32 %v3603, %v3614
          %s3619 = sadd.s32 %s3033, 608
          %s3620 = sld [smem:[#allocation10 + %s3619]]
          %v3621 = vld [vmem:[%s3590 + $0x2] sm:$0xf]
          %v3622 = vld [vmem:[%s3590 + $0xa] sm:$0xf]
          %v3623 = vld [vmem:[%s3590 + $0x12] sm:$0xf]
          %v3624 = vld [vmem:[%s3590 + $0x1a] sm:$0xf]
          %v3625 = vstv %s3620
          %v3626 = vmul.f32 %v3621, %v3625
          %v3627 = vmul.f32 %v3622, %v3625
          %v3628 = vmul.f32 %v3623, %v3625
          %v3629 = vmul.f32 %v3624, %v3625
          %v3630 = vadd.f32 %v3615, %v3626
          %v3631 = vadd.f32 %v3616, %v3627
          %v3632 = vadd.f32 %v3617, %v3628
          %v3633 = vadd.f32 %v3618, %v3629
          %s3634 = sadd.s32 %s3033, 624
          %s3635 = sld [smem:[#allocation10 + %s3634]]
          %s3636 = scalar_lea.vmem [#allocation2], 200
          %v3637 = vld [vmem:[%s3636] sm:$0xf]
          %v3638 = vld [vmem:[%s3636 + $0x8] sm:$0xf]
          %v3639 = vld [vmem:[%s3636 + $0x10] sm:$0xf]
          %v3640 = vld [vmem:[%s3636 + $0x18] sm:$0xf]
          %v3641 = vstv %s3635
          %v3642 = vmul.f32 %v3637, %v3641
          %v3643 = vmul.f32 %v3638, %v3641
          %v3644 = vmul.f32 %v3639, %v3641
          %v3645 = vmul.f32 %v3640, %v3641
          %v3646 = vadd.f32 %v3630, %v3642
          %v3647 = vadd.f32 %v3631, %v3643
          %v3648 = vadd.f32 %v3632, %v3644
          %v3649 = vadd.f32 %v3633, %v3645
          %s3650 = sadd.s32 %s3033, 640
          %s3651 = sld [smem:[#allocation10 + %s3650]]
          %v3652 = vld [vmem:[%s3636 + $0x1] sm:$0xf]
          %v3653 = vld [vmem:[%s3636 + $0x9] sm:$0xf]
          %v3654 = vld [vmem:[%s3636 + $0x11] sm:$0xf]
          %v3655 = vld [vmem:[%s3636 + $0x19] sm:$0xf]
          %v3656 = vstv %s3651
          %v3657 = vmul.f32 %v3652, %v3656
          %v3658 = vmul.f32 %v3653, %v3656
          %v3659 = vmul.f32 %v3654, %v3656
          %v3660 = vmul.f32 %v3655, %v3656
          %v3661 = vadd.f32 %v3646, %v3657
          %v3662 = vadd.f32 %v3647, %v3658
          %v3663 = vadd.f32 %v3648, %v3659
          %v3664 = vadd.f32 %v3649, %v3660
          %s3665 = sadd.s32 %s3033, 656
          %s3666 = sld [smem:[#allocation10 + %s3665]]
          %v3667 = vld [vmem:[%s3636 + $0x2] sm:$0xf]
          %v3668 = vld [vmem:[%s3636 + $0xa] sm:$0xf]
          %v3669 = vld [vmem:[%s3636 + $0x12] sm:$0xf]
          %v3670 = vld [vmem:[%s3636 + $0x1a] sm:$0xf]
          %v3671 = vstv %s3666
          %v3672 = vmul.f32 %v3667, %v3671
          %v3673 = vmul.f32 %v3668, %v3671
          %v3674 = vmul.f32 %v3669, %v3671
          %v3675 = vmul.f32 %v3670, %v3671
          %v3676 = vadd.f32 %v3661, %v3672
          %v3677 = vadd.f32 %v3662, %v3673
          %v3678 = vadd.f32 %v3663, %v3674
          %v3679 = vadd.f32 %v3664, %v3675
          %s3680 = sadd.s32 %s3033, 672
          %s3681 = sld [smem:[#allocation10 + %s3680]]
          %s3682 = scalar_lea.vmem [#allocation2], 208
          %v3683 = vld [vmem:[%s3682] sm:$0xf]
          %v3684 = vld [vmem:[%s3682 + $0x8] sm:$0xf]
          %v3685 = vld [vmem:[%s3682 + $0x10] sm:$0xf]
          %v3686 = vld [vmem:[%s3682 + $0x18] sm:$0xf]
          %v3687 = vstv %s3681
          %v3688 = vmul.f32 %v3683, %v3687
          %v3689 = vmul.f32 %v3684, %v3687
          %v3690 = vmul.f32 %v3685, %v3687
          %v3691 = vmul.f32 %v3686, %v3687
          %v3692 = vadd.f32 %v3676, %v3688
          %v3693 = vadd.f32 %v3677, %v3689
          %v3694 = vadd.f32 %v3678, %v3690
          %v3695 = vadd.f32 %v3679, %v3691
          %s3696 = sadd.s32 %s3033, 688
          %s3697 = sld [smem:[#allocation10 + %s3696]]
          %v3698 = vld [vmem:[%s3682 + $0x1] sm:$0xf]
          %v3699 = vld [vmem:[%s3682 + $0x9] sm:$0xf]
          %v3700 = vld [vmem:[%s3682 + $0x11] sm:$0xf]
          %v3701 = vld [vmem:[%s3682 + $0x19] sm:$0xf]
          %v3702 = vstv %s3697
          %v3703 = vmul.f32 %v3698, %v3702
          %v3704 = vmul.f32 %v3699, %v3702
          %v3705 = vmul.f32 %v3700, %v3702
          %v3706 = vmul.f32 %v3701, %v3702
          %v3707 = vadd.f32 %v3692, %v3703
          %v3708 = vadd.f32 %v3693, %v3704
          %v3709 = vadd.f32 %v3694, %v3705
          %v3710 = vadd.f32 %v3695, %v3706
          %s3711 = sadd.s32 %s3033, 704
          %s3712 = sld [smem:[#allocation10 + %s3711]]
          %v3713 = vld [vmem:[%s3682 + $0x2] sm:$0xf]
          %v3714 = vld [vmem:[%s3682 + $0xa] sm:$0xf]
          %v3715 = vld [vmem:[%s3682 + $0x12] sm:$0xf]
          %v3716 = vld [vmem:[%s3682 + $0x1a] sm:$0xf]
          %v3717 = vstv %s3712
          %v3718 = vmul.f32 %v3713, %v3717
          %v3719 = vmul.f32 %v3714, %v3717
          %v3720 = vmul.f32 %v3715, %v3717
          %v3721 = vmul.f32 %v3716, %v3717
          %v3722 = vadd.f32 %v3707, %v3718
          %v3723 = vadd.f32 %v3708, %v3719
          %v3724 = vadd.f32 %v3709, %v3720
          %v3725 = vadd.f32 %v3710, %v3721
          %s3726 = sadd.s32 %s3033, 720
          %s3727 = sld [smem:[#allocation10 + %s3726]]
          %s3728 = scalar_lea.vmem [#allocation2], 240
          %v3729 = vld [vmem:[%s3728] sm:$0xf]
          %v3730 = vld [vmem:[%s3728 + $0x8] sm:$0xf]
          %v3731 = vld [vmem:[%s3728 + $0x10] sm:$0xf]
          %v3732 = vld [vmem:[%s3728 + $0x18] sm:$0xf]
          %v3733 = vstv %s3727
          %v3734 = vmul.f32 %v3729, %v3733
          %v3735 = vmul.f32 %v3730, %v3733
          %v3736 = vmul.f32 %v3731, %v3733
          %v3737 = vmul.f32 %v3732, %v3733
          %v3738 = vadd.f32 %v3722, %v3734
          %v3739 = vadd.f32 %v3723, %v3735
          %v3740 = vadd.f32 %v3724, %v3736
          %v3741 = vadd.f32 %v3725, %v3737
          %s3742 = sadd.s32 %s3033, 736
          %s3743 = sld [smem:[#allocation10 + %s3742]]
          %v3744 = vld [vmem:[%s3728 + $0x1] sm:$0xf]
          %v3745 = vld [vmem:[%s3728 + $0x9] sm:$0xf]
          %v3746 = vld [vmem:[%s3728 + $0x11] sm:$0xf]
          %v3747 = vld [vmem:[%s3728 + $0x19] sm:$0xf]
          %v3748 = vstv %s3743
          %v3749 = vmul.f32 %v3744, %v3748
          %v3750 = vmul.f32 %v3745, %v3748
          %v3751 = vmul.f32 %v3746, %v3748
          %v3752 = vmul.f32 %v3747, %v3748
          %v3753 = vadd.f32 %v3738, %v3749
          %v3754 = vadd.f32 %v3739, %v3750
          %v3755 = vadd.f32 %v3740, %v3751
          %v3756 = vadd.f32 %v3741, %v3752
          %s3757 = sadd.s32 %s3033, 752
          %s3758 = sld [smem:[#allocation10 + %s3757]]
          %v3759 = vld [vmem:[%s3728 + $0x2] sm:$0xf]
          %v3760 = vld [vmem:[%s3728 + $0xa] sm:$0xf]
          %v3761 = vld [vmem:[%s3728 + $0x12] sm:$0xf]
          %v3762 = vld [vmem:[%s3728 + $0x1a] sm:$0xf]
          %v3763 = vstv %s3758
          %v3764 = vmul.f32 %v3759, %v3763
          %v3765 = vmul.f32 %v3760, %v3763
          %v3766 = vmul.f32 %v3761, %v3763
          %v3767 = vmul.f32 %v3762, %v3763
          %v3768 = vadd.f32 %v3753, %v3764
          %v3769 = vadd.f32 %v3754, %v3765
          %v3770 = vadd.f32 %v3755, %v3766
          %v3771 = vadd.f32 %v3756, %v3767
          %s3772 = sadd.s32 %s3033, 768
          %s3773 = sld [smem:[#allocation10 + %s3772]]
          %s3774 = scalar_lea.vmem [#allocation2], 248
          %v3775 = vld [vmem:[%s3774] sm:$0xf]
          %v3776 = vld [vmem:[%s3774 + $0x8] sm:$0xf]
          %v3777 = vld [vmem:[%s3774 + $0x10] sm:$0xf]
          %v3778 = vld [vmem:[%s3774 + $0x18] sm:$0xf]
          %v3779 = vstv %s3773
          %v3780 = vmul.f32 %v3775, %v3779
          %v3781 = vmul.f32 %v3776, %v3779
          %v3782 = vmul.f32 %v3777, %v3779
          %v3783 = vmul.f32 %v3778, %v3779
          %v3784 = vadd.f32 %v3768, %v3780
          %v3785 = vadd.f32 %v3769, %v3781
          %v3786 = vadd.f32 %v3770, %v3782
          %v3787 = vadd.f32 %v3771, %v3783
          %s3788 = sadd.s32 %s3033, 784
          %s3789 = sld [smem:[#allocation10 + %s3788]]
          %v3790 = vld [vmem:[%s3774 + $0x1] sm:$0xf]
          %v3791 = vld [vmem:[%s3774 + $0x9] sm:$0xf]
          %v3792 = vld [vmem:[%s3774 + $0x11] sm:$0xf]
          %v3793 = vld [vmem:[%s3774 + $0x19] sm:$0xf]
          %v3794 = vstv %s3789
          %v3795 = vmul.f32 %v3790, %v3794
          %v3796 = vmul.f32 %v3791, %v3794
          %v3797 = vmul.f32 %v3792, %v3794
          %v3798 = vmul.f32 %v3793, %v3794
          %v3799 = vadd.f32 %v3784, %v3795
          %v3800 = vadd.f32 %v3785, %v3796
          %v3801 = vadd.f32 %v3786, %v3797
          %v3802 = vadd.f32 %v3787, %v3798
          %s3803 = sadd.s32 %s3033, 800
          %s3804 = sld [smem:[#allocation10 + %s3803]]
          %v3805 = vld [vmem:[%s3774 + $0x2] sm:$0xf]
          %v3806 = vld [vmem:[%s3774 + $0xa] sm:$0xf]
          %v3807 = vld [vmem:[%s3774 + $0x12] sm:$0xf]
          %v3808 = vld [vmem:[%s3774 + $0x1a] sm:$0xf]
          %v3809 = vstv %s3804
          %v3810 = vmul.f32 %v3805, %v3809
          %v3811 = vmul.f32 %v3806, %v3809
          %v3812 = vmul.f32 %v3807, %v3809
          %v3813 = vmul.f32 %v3808, %v3809
          %v3814 = vadd.f32 %v3799, %v3810
          %v3815 = vadd.f32 %v3800, %v3811
          %v3816 = vadd.f32 %v3801, %v3812
          %v3817 = vadd.f32 %v3802, %v3813
          %s3818 = sadd.s32 %s3033, 816
          %s3819 = sld [smem:[#allocation10 + %s3818]]
          %s3820 = scalar_lea.vmem [#allocation2], 256
          %v3821 = vld [vmem:[%s3820] sm:$0xf]
          %v3822 = vld [vmem:[%s3820 + $0x8] sm:$0xf]
          %v3823 = vld [vmem:[%s3820 + $0x10] sm:$0xf]
          %v3824 = vld [vmem:[%s3820 + $0x18] sm:$0xf]
          %v3825 = vstv %s3819
          %v3826 = vmul.f32 %v3821, %v3825
          %v3827 = vmul.f32 %v3822, %v3825
          %v3828 = vmul.f32 %v3823, %v3825
          %v3829 = vmul.f32 %v3824, %v3825
          %v3830 = vadd.f32 %v3814, %v3826
          %v3831 = vadd.f32 %v3815, %v3827
          %v3832 = vadd.f32 %v3816, %v3828
          %v3833 = vadd.f32 %v3817, %v3829
          %s3834 = sadd.s32 %s3033, 832
          %s3835 = sld [smem:[#allocation10 + %s3834]]
          %v3836 = vld [vmem:[%s3820 + $0x1] sm:$0xf]
          %v3837 = vld [vmem:[%s3820 + $0x9] sm:$0xf]
          %v3838 = vld [vmem:[%s3820 + $0x11] sm:$0xf]
          %v3839 = vld [vmem:[%s3820 + $0x19] sm:$0xf]
          %v3840 = vstv %s3835
          %v3841 = vmul.f32 %v3836, %v3840
          %v3842 = vmul.f32 %v3837, %v3840
          %v3843 = vmul.f32 %v3838, %v3840
          %v3844 = vmul.f32 %v3839, %v3840
          %v3845 = vadd.f32 %v3830, %v3841
          %v3846 = vadd.f32 %v3831, %v3842
          %v3847 = vadd.f32 %v3832, %v3843
          %v3848 = vadd.f32 %v3833, %v3844
          %s3849 = sadd.s32 %s3033, 848
          %s3850 = sld [smem:[#allocation10 + %s3849]]
          %v3851 = vld [vmem:[%s3820 + $0x2] sm:$0xf]
          %v3852 = vld [vmem:[%s3820 + $0xa] sm:$0xf]
          %v3853 = vld [vmem:[%s3820 + $0x12] sm:$0xf]
          %v3854 = vld [vmem:[%s3820 + $0x1a] sm:$0xf]
          %v3855 = vstv %s3850
          %v3856 = vmul.f32 %v3851, %v3855
          %v3857 = vmul.f32 %v3852, %v3855
          %v3858 = vmul.f32 %v3853, %v3855
          %v3859 = vmul.f32 %v3854, %v3855
          %v3860 = vadd.f32 %v3845, %v3856
          %v3861 = vadd.f32 %v3846, %v3857
          %v3862 = vadd.f32 %v3847, %v3858
          %v3863 = vadd.f32 %v3848, %v3859
          %s3864 = sadd.s32 %s3033, 864
          %s3865 = sld [smem:[#allocation10 + %s3864]]
          %s3866 = scalar_lea.vmem [#allocation2], 288
          %v3867 = vld [vmem:[%s3866] sm:$0xf]
          %v3868 = vld [vmem:[%s3866 + $0x8] sm:$0xf]
          %v3869 = vld [vmem:[%s3866 + $0x10] sm:$0xf]
          %v3870 = vld [vmem:[%s3866 + $0x18] sm:$0xf]
          %v3871 = vstv %s3865
          %v3872 = vmul.f32 %v3867, %v3871
          %v3873 = vmul.f32 %v3868, %v3871
          %v3874 = vmul.f32 %v3869, %v3871
          %v3875 = vmul.f32 %v3870, %v3871
          %v3876 = vadd.f32 %v3860, %v3872
          %v3877 = vadd.f32 %v3861, %v3873
          %v3878 = vadd.f32 %v3862, %v3874
          %v3879 = vadd.f32 %v3863, %v3875
          %s3880 = sadd.s32 %s3033, 880
          %s3881 = sld [smem:[#allocation10 + %s3880]]
          %v3882 = vld [vmem:[%s3866 + $0x1] sm:$0xf]
          %v3883 = vld [vmem:[%s3866 + $0x9] sm:$0xf]
          %v3884 = vld [vmem:[%s3866 + $0x11] sm:$0xf]
          %v3885 = vld [vmem:[%s3866 + $0x19] sm:$0xf]
          %v3886 = vstv %s3881
          %v3887 = vmul.f32 %v3882, %v3886
          %v3888 = vmul.f32 %v3883, %v3886
          %v3889 = vmul.f32 %v3884, %v3886
          %v3890 = vmul.f32 %v3885, %v3886
          %v3891 = vadd.f32 %v3876, %v3887
          %v3892 = vadd.f32 %v3877, %v3888
          %v3893 = vadd.f32 %v3878, %v3889
          %v3894 = vadd.f32 %v3879, %v3890
          %s3895 = sadd.s32 %s3033, 896
          %s3896 = sld [smem:[#allocation10 + %s3895]]
          %v3897 = vld [vmem:[%s3866 + $0x2] sm:$0xf]
          %v3898 = vld [vmem:[%s3866 + $0xa] sm:$0xf]
          %v3899 = vld [vmem:[%s3866 + $0x12] sm:$0xf]
          %v3900 = vld [vmem:[%s3866 + $0x1a] sm:$0xf]
          %v3901 = vstv %s3896
          %v3902 = vmul.f32 %v3897, %v3901
          %v3903 = vmul.f32 %v3898, %v3901
          %v3904 = vmul.f32 %v3899, %v3901
          %v3905 = vmul.f32 %v3900, %v3901
          %v3906 = vadd.f32 %v3891, %v3902
          %v3907 = vadd.f32 %v3892, %v3903
          %v3908 = vadd.f32 %v3893, %v3904
          %v3909 = vadd.f32 %v3894, %v3905
          %s3910 = sadd.s32 %s3033, 912
          %s3911 = sld [smem:[#allocation10 + %s3910]]
          %s3912 = scalar_lea.vmem [#allocation2], 296
          %v3913 = vld [vmem:[%s3912] sm:$0xf]
          %v3914 = vld [vmem:[%s3912 + $0x8] sm:$0xf]
          %v3915 = vld [vmem:[%s3912 + $0x10] sm:$0xf]
          %v3916 = vld [vmem:[%s3912 + $0x18] sm:$0xf]
          %v3917 = vstv %s3911
          %v3918 = vmul.f32 %v3913, %v3917
          %v3919 = vmul.f32 %v3914, %v3917
          %v3920 = vmul.f32 %v3915, %v3917
          %v3921 = vmul.f32 %v3916, %v3917
          %v3922 = vadd.f32 %v3906, %v3918
          %v3923 = vadd.f32 %v3907, %v3919
          %v3924 = vadd.f32 %v3908, %v3920
          %v3925 = vadd.f32 %v3909, %v3921
          %s3926 = sadd.s32 %s3033, 928
          %s3927 = sld [smem:[#allocation10 + %s3926]]
          %v3928 = vld [vmem:[%s3912 + $0x1] sm:$0xf]
          %v3929 = vld [vmem:[%s3912 + $0x9] sm:$0xf]
          %v3930 = vld [vmem:[%s3912 + $0x11] sm:$0xf]
          %v3931 = vld [vmem:[%s3912 + $0x19] sm:$0xf]
          %v3932 = vstv %s3927
          %v3933 = vmul.f32 %v3928, %v3932
          %v3934 = vmul.f32 %v3929, %v3932
          %v3935 = vmul.f32 %v3930, %v3932
          %v3936 = vmul.f32 %v3931, %v3932
          %v3937 = vadd.f32 %v3922, %v3933
          %v3938 = vadd.f32 %v3923, %v3934
          %v3939 = vadd.f32 %v3924, %v3935
          %v3940 = vadd.f32 %v3925, %v3936
          %s3941 = sadd.s32 %s3033, 944
          %s3942 = sld [smem:[#allocation10 + %s3941]]
          %v3943 = vld [vmem:[%s3912 + $0x2] sm:$0xf]
          %v3944 = vld [vmem:[%s3912 + $0xa] sm:$0xf]
          %v3945 = vld [vmem:[%s3912 + $0x12] sm:$0xf]
          %v3946 = vld [vmem:[%s3912 + $0x1a] sm:$0xf]
          %v3947 = vstv %s3942
          %v3948 = vmul.f32 %v3943, %v3947
          %v3949 = vmul.f32 %v3944, %v3947
          %v3950 = vmul.f32 %v3945, %v3947
          %v3951 = vmul.f32 %v3946, %v3947
          %v3952 = vadd.f32 %v3937, %v3948
          %v3953 = vadd.f32 %v3938, %v3949
          %v3954 = vadd.f32 %v3939, %v3950
          %v3955 = vadd.f32 %v3940, %v3951
          %s3956 = sadd.s32 %s3033, 960
          %s3957 = sld [smem:[#allocation10 + %s3956]]
          %s3958 = scalar_lea.vmem [#allocation2], 304
          %v3959 = vld [vmem:[%s3958] sm:$0xf]
          %v3960 = vld [vmem:[%s3958 + $0x8] sm:$0xf]
          %v3961 = vld [vmem:[%s3958 + $0x10] sm:$0xf]
          %v3962 = vld [vmem:[%s3958 + $0x18] sm:$0xf]
          %v3963 = vstv %s3957
          %v3964 = vmul.f32 %v3959, %v3963
          %v3965 = vmul.f32 %v3960, %v3963
          %v3966 = vmul.f32 %v3961, %v3963
          %v3967 = vmul.f32 %v3962, %v3963
          %v3968 = vadd.f32 %v3952, %v3964
          %v3969 = vadd.f32 %v3953, %v3965
          %v3970 = vadd.f32 %v3954, %v3966
          %v3971 = vadd.f32 %v3955, %v3967
          %s3972 = sadd.s32 %s3033, 976
          %s3973 = sld [smem:[#allocation10 + %s3972]]
          %v3974 = vld [vmem:[%s3958 + $0x1] sm:$0xf]
          %v3975 = vld [vmem:[%s3958 + $0x9] sm:$0xf]
          %v3976 = vld [vmem:[%s3958 + $0x11] sm:$0xf]
          %v3977 = vld [vmem:[%s3958 + $0x19] sm:$0xf]
          %v3978 = vstv %s3973
          %v3979 = vmul.f32 %v3974, %v3978
          %v3980 = vmul.f32 %v3975, %v3978
          %v3981 = vmul.f32 %v3976, %v3978
          %v3982 = vmul.f32 %v3977, %v3978
          %v3983 = vadd.f32 %v3968, %v3979
          %v3984 = vadd.f32 %v3969, %v3980
          %v3985 = vadd.f32 %v3970, %v3981
          %v3986 = vadd.f32 %v3971, %v3982
          %s3987 = sadd.s32 %s3033, 992
          %s3988 = sld [smem:[#allocation10 + %s3987]]
          %v3989 = vld [vmem:[%s3958 + $0x2] sm:$0xf]
          %v3990 = vld [vmem:[%s3958 + $0xa] sm:$0xf]
          %v3991 = vld [vmem:[%s3958 + $0x12] sm:$0xf]
          %v3992 = vld [vmem:[%s3958 + $0x1a] sm:$0xf]
          %v3993 = vstv %s3988
          %v3994 = vmul.f32 %v3989, %v3993
          %v3995 = vmul.f32 %v3990, %v3993
          %v3996 = vmul.f32 %v3991, %v3993
          %v3997 = vmul.f32 %v3992, %v3993
          %v3998 = vadd.f32 %v3983, %v3994
          %v3999 = vadd.f32 %v3984, %v3995
          %v4000 = vadd.f32 %v3985, %v3996
          %v4001 = vadd.f32 %v3986, %v3997
          %s4002 = sadd.s32 %s3033, 1008
          %s4003 = sld [smem:[#allocation10 + %s4002]]
          %s4004 = scalar_lea.vmem [#allocation2], 336
          %v4005 = vld [vmem:[%s4004] sm:$0xf]
          %v4006 = vld [vmem:[%s4004 + $0x8] sm:$0xf]
          %v4007 = vld [vmem:[%s4004 + $0x10] sm:$0xf]
          %v4008 = vld [vmem:[%s4004 + $0x18] sm:$0xf]
          %v4009 = vstv %s4003
          %v4010 = vmul.f32 %v4005, %v4009
          %v4011 = vmul.f32 %v4006, %v4009
          %v4012 = vmul.f32 %v4007, %v4009
          %v4013 = vmul.f32 %v4008, %v4009
          %v4014 = vadd.f32 %v3998, %v4010
          %v4015 = vadd.f32 %v3999, %v4011
          %v4016 = vadd.f32 %v4000, %v4012
          %v4017 = vadd.f32 %v4001, %v4013
          %s4018 = sadd.s32 %s3033, 1024
          %s4019 = sld [smem:[#allocation10 + %s4018]]
          %v4020 = vld [vmem:[%s4004 + $0x1] sm:$0xf]
          %v4021 = vld [vmem:[%s4004 + $0x9] sm:$0xf]
          %v4022 = vld [vmem:[%s4004 + $0x11] sm:$0xf]
          %v4023 = vld [vmem:[%s4004 + $0x19] sm:$0xf]
          %v4024 = vstv %s4019
          %v4025 = vmul.f32 %v4020, %v4024
          %v4026 = vmul.f32 %v4021, %v4024
          %v4027 = vmul.f32 %v4022, %v4024
          %v4028 = vmul.f32 %v4023, %v4024
          %v4029 = vadd.f32 %v4014, %v4025
          %v4030 = vadd.f32 %v4015, %v4026
          %v4031 = vadd.f32 %v4016, %v4027
          %v4032 = vadd.f32 %v4017, %v4028
          %s4033 = sadd.s32 %s3033, 1040
          %s4034 = sld [smem:[#allocation10 + %s4033]]
          %v4035 = vld [vmem:[%s4004 + $0x2] sm:$0xf]
          %v4036 = vld [vmem:[%s4004 + $0xa] sm:$0xf]
          %v4037 = vld [vmem:[%s4004 + $0x12] sm:$0xf]
          %v4038 = vld [vmem:[%s4004 + $0x1a] sm:$0xf]
          %v4039 = vstv %s4034
          %v4040 = vmul.f32 %v4035, %v4039
          %v4041 = vmul.f32 %v4036, %v4039
          %v4042 = vmul.f32 %v4037, %v4039
          %v4043 = vmul.f32 %v4038, %v4039
          %v4044 = vadd.f32 %v4029, %v4040
          %v4045 = vadd.f32 %v4030, %v4041
          %v4046 = vadd.f32 %v4031, %v4042
          %v4047 = vadd.f32 %v4032, %v4043
          %s4048 = sadd.s32 %s3033, 1056
          %s4049 = sld [smem:[#allocation10 + %s4048]]
          %s4050 = scalar_lea.vmem [#allocation2], 344
          %v4051 = vld [vmem:[%s4050] sm:$0xf]
          %v4052 = vld [vmem:[%s4050 + $0x8] sm:$0xf]
          %v4053 = vld [vmem:[%s4050 + $0x10] sm:$0xf]
          %v4054 = vld [vmem:[%s4050 + $0x18] sm:$0xf]
          %v4055 = vstv %s4049
          %v4056 = vmul.f32 %v4051, %v4055
          %v4057 = vmul.f32 %v4052, %v4055
          %v4058 = vmul.f32 %v4053, %v4055
          %v4059 = vmul.f32 %v4054, %v4055
          %v4060 = vadd.f32 %v4044, %v4056
          %v4061 = vadd.f32 %v4045, %v4057
          %v4062 = vadd.f32 %v4046, %v4058
          %v4063 = vadd.f32 %v4047, %v4059
          %s4064 = sadd.s32 %s3033, 1072
          %s4065 = sld [smem:[#allocation10 + %s4064]]
          %v4066 = vld [vmem:[%s4050 + $0x1] sm:$0xf]
          %v4067 = vld [vmem:[%s4050 + $0x9] sm:$0xf]
          %v4068 = vld [vmem:[%s4050 + $0x11] sm:$0xf]
          %v4069 = vld [vmem:[%s4050 + $0x19] sm:$0xf]
          %v4070 = vstv %s4065
          %v4071 = vmul.f32 %v4066, %v4070
          %v4072 = vmul.f32 %v4067, %v4070
          %v4073 = vmul.f32 %v4068, %v4070
          %v4074 = vmul.f32 %v4069, %v4070
          %v4075 = vadd.f32 %v4060, %v4071
          %v4076 = vadd.f32 %v4061, %v4072
          %v4077 = vadd.f32 %v4062, %v4073
          %v4078 = vadd.f32 %v4063, %v4074
          %s4079 = sadd.s32 %s3033, 1088
          %s4080 = sld [smem:[#allocation10 + %s4079]]
          %v4081 = vld [vmem:[%s4050 + $0x2] sm:$0xf]
          %v4082 = vld [vmem:[%s4050 + $0xa] sm:$0xf]
          %v4083 = vld [vmem:[%s4050 + $0x12] sm:$0xf]
          %v4084 = vld [vmem:[%s4050 + $0x1a] sm:$0xf]
          %v4085 = vstv %s4080
          %v4086 = vmul.f32 %v4081, %v4085
          %v4087 = vmul.f32 %v4082, %v4085
          %v4088 = vmul.f32 %v4083, %v4085
          %v4089 = vmul.f32 %v4084, %v4085
          %v4090 = vadd.f32 %v4075, %v4086
          %v4091 = vadd.f32 %v4076, %v4087
          %v4092 = vadd.f32 %v4077, %v4088
          %v4093 = vadd.f32 %v4078, %v4089
          %s4094 = sadd.s32 %s3033, 1104
          %s4095 = sld [smem:[#allocation10 + %s4094]]
          %s4096 = scalar_lea.vmem [#allocation2], 352
          %v4097 = vld [vmem:[%s4096] sm:$0xf]
          %v4098 = vld [vmem:[%s4096 + $0x8] sm:$0xf]
          %v4099 = vld [vmem:[%s4096 + $0x10] sm:$0xf]
          %v4100 = vld [vmem:[%s4096 + $0x18] sm:$0xf]
          %v4101 = vstv %s4095
          %v4102 = vmul.f32 %v4097, %v4101
          %v4103 = vmul.f32 %v4098, %v4101
          %v4104 = vmul.f32 %v4099, %v4101
          %v4105 = vmul.f32 %v4100, %v4101
          %v4106 = vadd.f32 %v4090, %v4102
          %v4107 = vadd.f32 %v4091, %v4103
          %v4108 = vadd.f32 %v4092, %v4104
          %v4109 = vadd.f32 %v4093, %v4105
          %s4110 = sadd.s32 %s3033, 1120
          %s4111 = sld [smem:[#allocation10 + %s4110]]
          %v4112 = vld [vmem:[%s4096 + $0x1] sm:$0xf]
          %v4113 = vld [vmem:[%s4096 + $0x9] sm:$0xf]
          %v4114 = vld [vmem:[%s4096 + $0x11] sm:$0xf]
          %v4115 = vld [vmem:[%s4096 + $0x19] sm:$0xf]
          %v4116 = vstv %s4111
          %v4117 = vmul.f32 %v4112, %v4116
          %v4118 = vmul.f32 %v4113, %v4116
          %v4119 = vmul.f32 %v4114, %v4116
          %v4120 = vmul.f32 %v4115, %v4116
          %v4121 = vadd.f32 %v4106, %v4117
          %v4122 = vadd.f32 %v4107, %v4118
          %v4123 = vadd.f32 %v4108, %v4119
          %v4124 = vadd.f32 %v4109, %v4120
          %s4125 = sadd.s32 %s3033, 1136
          %s4126 = sld [smem:[#allocation10 + %s4125]]
          %v4127 = vld [vmem:[%s4096 + $0x2] sm:$0xf]
          %v4128 = vld [vmem:[%s4096 + $0xa] sm:$0xf]
          %v4129 = vld [vmem:[%s4096 + $0x12] sm:$0xf]
          %v4130 = vld [vmem:[%s4096 + $0x1a] sm:$0xf]
          %v4131 = vstv %s4126
          %v4132 = vmul.f32 %v4127, %v4131
          %v4133 = vmul.f32 %v4128, %v4131
          %v4134 = vmul.f32 %v4129, %v4131
          %v4135 = vmul.f32 %v4130, %v4131
          %v4136 = vadd.f32 %v4121, %v4132
          %v4137 = vadd.f32 %v4122, %v4133
          %v4138 = vadd.f32 %v4123, %v4134
          %v4139 = vadd.f32 %v4124, %v4135
          %s4140 = sld [smem:[#allocation11 + %s3033]]
          %v4141 = vstv %s4140
          %v4142 = vadd.f32 %v4136, %v4141
          %v4143 = vadd.f32 %v4137, %v4141
          %v4144 = vadd.f32 %v4138, %v4141
          %v4145 = vadd.f32 %v4139, %v4141
          %v4146 = vmax.f32 %v4142, 0.0
          %v4147 = vmax.f32 %v4143, 0.0
          %v4148 = vmax.f32 %v4144, 0.0
          %v4149 = vmax.f32 %v4145, 0.0
          %vm4150 = vcmask 1043456
          %v4151 = vsel %vm4150, %v4146, -inf
          %v4152 = vsel %vm4150, %v4147, -inf
          %v4153 = vmax.f32 %v4151, %v4152
          %v4154 = vsel %vm4150, %v4148, -inf
          %v4155 = vsel %vm4150, %v4149, -inf
          %v4156 = vmax.f32 %v4154, %v4155
          %v4160 = vunpack.c.l.s4 1983009808
          %v4161 = vunpack.c.0.s8 %v4160
          %v4162 = vlaneseq
          %v4163 = vshrl.u32 %v4162, 7
          %v4164 = vsub.s32 %v4161, %v4163
          %v4165 = vrot.slane %v4153, %v4164
          %v4166 = vcombine.high %v4165, %v4165
          %v4168 = vunpack.c.l.s4 1983009808
          %v4169 = vunpack.c.0.s8 %v4168
          %v4170 = vlaneseq
          %v4171 = vshrl.u32 %v4170, 7
          %v4172 = vsub.s32 %v4169, %v4171
          %v4173 = vrot.slane %v4156, %v4172
          %v4174 = vcombine.high %v4173, %v4173
          %vm4179 = vcmask 1041408
          %v4180 = vsel %vm4179, %v4165, -inf
          %v4181 = vrot.slane %v4180, 4
          %v4182 = vmax.f32 %v4180, %v4181
          %v4183 = vrot.slane %v4182, 2
          %v4184 = vmax.f32 %v4182, %v4183
          %v4185 = vrot.slane %v4184, 1
          %v4186 = vmax.f32 %v4184, %v4185
          %v4187 = vsel %vm4179, %v4166, -inf
          %v4188 = vrot.slane %v4187, 4
          %v4189 = vmax.f32 %v4187, %v4188
          %v4190 = vrot.slane %v4189, 2
          %v4191 = vmax.f32 %v4189, %v4190
          %v4192 = vrot.slane %v4191, 1
          %v4193 = vmax.f32 %v4191, %v4192
          %v4194 = vsel %vm4179, %v4173, -inf
          %v4195 = vrot.slane %v4194, 4
          %v4196 = vmax.f32 %v4194, %v4195
          %v4197 = vrot.slane %v4196, 2
          %v4198 = vmax.f32 %v4196, %v4197
          %v4199 = vrot.slane %v4198, 1
          %v4200 = vmax.f32 %v4198, %v4199
          %v4201 = vsel %vm4179, %v4174, -inf
          %v4202 = vrot.slane %v4201, 4
          %v4203 = vmax.f32 %v4201, %v4202
          %v4204 = vrot.slane %v4203, 2
          %v4205 = vmax.f32 %v4203, %v4204
          %v4206 = vrot.slane %v4205, 1
          %v4207 = vmax.f32 %v4205, %v4206
          %vm4212 = vcmask 1041409
          %v4213 = vsel %vm4212, %v4193, %v4186
          %v4214 = vsel %vm4212, %v4207, %v4200
          %s4217 = smul.u32 %s3033, 4
          %s4218 = scalar_lea.vmem [#allocation3], %s4217
          %4219 = vst [vmem:[%s4218] sm:$0x3] %v4213
          %4220 = vst [vmem:[%s4218 + $0x2] sm:$0x3] %v4214
        $region122: #{tps_model_forward.1} parent=89 // loop_footer
          %s3037 = sadd.s32 1, %s3033
        $region123: #{tps_model_forward.1} parent=89 // loop_footer_branch
          %3032 = sbr.rel target = $region119
        $region124: #{tps_model_forward.1} parent=89 // loop_exit
          _
        %v4221 = vld [vmem:[#allocation3] sm:$0x3]
        %4222 = vst [vmem:[#allocation4] sm:$0x3] %v4221
        %s4223 = scalar_lea.vmem [#allocation3], 2
        %v4224 = vld [vmem:[%s4223] sm:$0x3]
        %4225 = vst [vmem:[#allocation4 + $0x2] sm:$0x3] %v4224
        %s4226 = scalar_lea.vmem [#allocation3], 4
        %v4227 = vld [vmem:[%s4226] sm:$0x3]
        %4228 = vst [vmem:[#allocation4 + $0x4] sm:$0x3] %v4227
        %s4229 = scalar_lea.vmem [#allocation3], 6
        %v4230 = vld [vmem:[%s4229] sm:$0x3]
        %4231 = vst [vmem:[#allocation4 + $0x6] sm:$0x3] %v4230
        %s4232 = scalar_lea.vmem [#allocation3], 8
        %v4233 = vld [vmem:[%s4232] sm:$0x3]
        %4234 = vst [vmem:[#allocation4 + $0x8] sm:$0x3] %v4233
        %s4235 = scalar_lea.vmem [#allocation3], 10
        %v4236 = vld [vmem:[%s4235] sm:$0x3]
        %4237 = vst [vmem:[#allocation4 + $0xa] sm:$0x3] %v4236
        %s4238 = scalar_lea.vmem [#allocation3], 12
        %v4239 = vld [vmem:[%s4238] sm:$0x3]
        %4240 = vst [vmem:[#allocation4 + $0xc] sm:$0x3] %v4239
        %s4241 = scalar_lea.vmem [#allocation3], 14
        %v4242 = vld [vmem:[%s4241] sm:$0x3]
        %4243 = vst [vmem:[#allocation4 + $0xe] sm:$0x3] %v4242
        %s4244 = scalar_lea.vmem [#allocation3], 16
        %v4245 = vld [vmem:[%s4244] sm:$0x3]
        %4246 = vst [vmem:[#allocation4 + $0x10] sm:$0x3] %v4245
        %s4247 = scalar_lea.vmem [#allocation3], 18
        %v4248 = vld [vmem:[%s4247] sm:$0x3]
        %4249 = vst [vmem:[#allocation4 + $0x12] sm:$0x3] %v4248
        %s4250 = scalar_lea.vmem [#allocation3], 20
        %v4251 = vld [vmem:[%s4250] sm:$0x3]
        %4252 = vst [vmem:[#allocation4 + $0x14] sm:$0x3] %v4251
        %s4253 = scalar_lea.vmem [#allocation3], 22
        %v4254 = vld [vmem:[%s4253] sm:$0x3]
        %4255 = vst [vmem:[#allocation4 + $0x16] sm:$0x3] %v4254
        %s4256 = scalar_lea.vmem [#allocation3], 24
        %v4257 = vld [vmem:[%s4256] sm:$0x3]
        %4258 = vst [vmem:[#allocation4 + $0x18] sm:$0x3] %v4257
        %s4259 = scalar_lea.vmem [#allocation3], 26
        %v4260 = vld [vmem:[%s4259] sm:$0x3]
        %4261 = vst [vmem:[#allocation4 + $0x1a] sm:$0x3] %v4260
        %s4262 = scalar_lea.vmem [#allocation3], 28
        %v4263 = vld [vmem:[%s4262] sm:$0x3]
        %4264 = vst [vmem:[#allocation4 + $0x1c] sm:$0x3] %v4263
        %s4265 = scalar_lea.vmem [#allocation3], 30
        %v4266 = vld [vmem:[%s4265] sm:$0x3]
        %4267 = vst [vmem:[#allocation4 + $0x1e] sm:$0x3] %v4266
        %s4268 = scalar_lea.vmem [#allocation3], 32
        %v4269 = vld [vmem:[%s4268] sm:$0x3]
        %4270 = vst [vmem:[#allocation4 + $0x20] sm:$0x3] %v4269
        %s4271 = scalar_lea.vmem [#allocation3], 34
        %v4272 = vld [vmem:[%s4271] sm:$0x3]
        %4273 = vst [vmem:[#allocation4 + $0x22] sm:$0x3] %v4272
        %s4274 = scalar_lea.vmem [#allocation3], 36
        %v4275 = vld [vmem:[%s4274] sm:$0x3]
        %4276 = vst [vmem:[#allocation4 + $0x24] sm:$0x3] %v4275
        %s4277 = scalar_lea.vmem [#allocation3], 38
        %v4278 = vld [vmem:[%s4277] sm:$0x3]
        %4279 = vst [vmem:[#allocation4 + $0x26] sm:$0x3] %v4278
        %s4280 = scalar_lea.vmem [#allocation3], 40
        %v4281 = vld [vmem:[%s4280] sm:$0x3]
        %4282 = vst [vmem:[#allocation4 + $0x28] sm:$0x3] %v4281
        %s4283 = scalar_lea.vmem [#allocation3], 42
        %v4284 = vld [vmem:[%s4283] sm:$0x3]
        %4285 = vst [vmem:[#allocation4 + $0x2a] sm:$0x3] %v4284
        %s4286 = scalar_lea.vmem [#allocation3], 44
        %v4287 = vld [vmem:[%s4286] sm:$0x3]
        %4288 = vst [vmem:[#allocation4 + $0x2c] sm:$0x3] %v4287
        %s4289 = scalar_lea.vmem [#allocation3], 46
        %v4290 = vld [vmem:[%s4289] sm:$0x3]
        %4291 = vst [vmem:[#allocation4 + $0x2e] sm:$0x3] %v4290
        %s4292 = scalar_lea.vmem [#allocation3], 48
        %v4293 = vld [vmem:[%s4292] sm:$0x3]
        %4294 = vst [vmem:[#allocation4 + $0x30] sm:$0x3] %v4293
        %s4295 = scalar_lea.vmem [#allocation3], 50
        %v4296 = vld [vmem:[%s4295] sm:$0x3]
        %4297 = vst [vmem:[#allocation4 + $0x32] sm:$0x3] %v4296
        %s4298 = scalar_lea.vmem [#allocation3], 52
        %v4299 = vld [vmem:[%s4298] sm:$0x3]
        %4300 = vst [vmem:[#allocation4 + $0x34] sm:$0x3] %v4299
        %s4301 = scalar_lea.vmem [#allocation3], 54
        %v4302 = vld [vmem:[%s4301] sm:$0x3]
        %4303 = vst [vmem:[#allocation4 + $0x36] sm:$0x3] %v4302
        %s4304 = scalar_lea.vmem [#allocation3], 56
        %v4305 = vld [vmem:[%s4304] sm:$0x3]
        %4306 = vst [vmem:[#allocation4 + $0x38] sm:$0x3] %v4305
        %s4307 = scalar_lea.vmem [#allocation3], 58
        %v4308 = vld [vmem:[%s4307] sm:$0x3]
        %4309 = vst [vmem:[#allocation4 + $0x3a] sm:$0x3] %v4308
        %s4310 = scalar_lea.vmem [#allocation3], 60
        %v4311 = vld [vmem:[%s4310] sm:$0x3]
        %4312 = vst [vmem:[#allocation4 + $0x3c] sm:$0x3] %v4311
        %s4313 = scalar_lea.vmem [#allocation3], 62
        %v4314 = vld [vmem:[%s4313] sm:$0x3]
        %4315 = vst [vmem:[#allocation4 + $0x3e] sm:$0x3] %v4314
        %v4316 = vld [vmem:[#allocation4] sm:$0xff]
        %v4317 = vld [vmem:[#allocation4 + $0x8] sm:$0xff]
        %v4318 = vld [vmem:[#allocation4 + $0x10] sm:$0xff]
        %v4319 = vld [vmem:[#allocation4 + $0x18] sm:$0xff]
        %v4320 = vld [vmem:[#allocation4 + $0x20] sm:$0xff]
        %v4321 = vld [vmem:[#allocation4 + $0x28] sm:$0xff]
        %v4322 = vld [vmem:[#allocation4 + $0x30] sm:$0xff]
        %v4323 = vld [vmem:[#allocation4 + $0x38] sm:$0xff]
        %v4324 = vld [vmem:[%s5] sm:$0xff]
        %v4325 = vld [vmem:[%s5 + $0x8] sm:$0xff]
        %v4326 = vld [vmem:[%s5 + $0x10] sm:$0xff]
        %v4327 = vld [vmem:[%s5 + $0x18] sm:$0xff]
        %v4328 = vld [vmem:[%s6] sm:$0xff]
        %v4329 = vld [vmem:[%s6 + $0x8] sm:$0xff]
        %v4330 = vld [vmem:[%s6 + $0x10] sm:$0xff]
        %v4331 = vld [vmem:[%s6 + $0x18] sm:$0xff]
        %4333 = vset.pattern.permute.xlu0 0
        %4334 = vperm.xlu0 %4333, %v4328
        %v4335 = vpop.permute.xlu0 %4334
        %4338 = vset.pattern.permute.xlu0 0
        %4339 = vperm.xlu0 %4338, %v4329
        %v4340 = vpop.permute.xlu0 %4339
        %4343 = vset.pattern.permute.xlu0 0
        %4344 = vperm.xlu0 %4343, %v4330
        %v4345 = vpop.permute.xlu0 %4344
        %4348 = vset.pattern.permute.xlu0 0
        %4349 = vperm.xlu0 %4348, %v4331
        %v4350 = vpop.permute.xlu0 %4349
        %vm4352 = vcmask 523264
        %v4354 = vsel %vm4352, %v4324, 0
        %v4357 = vsel %vm4352, %v4325, 0
        %v4360 = vsel %vm4352, %v4326, 0
        %v4363 = vsel %vm4352, %v4327, 0
        %4365 = vmatprep.subr.mxu0 0.0
        %4366 = vmatpush1.msra.mxu0 %v4316
        %4367 = vmatprep.subr.mxu0 0.0
        %4368 = vmatpush1.msra.mxu0 %v4317
        %4369 = vmatprep.subr.mxu0 0.0
        %4370 = vmatpush1.msra.mxu0 %v4318
        %4371 = vmatprep.subr.mxu0 0.0
        %4372 = vmatpush1.msra.mxu0 %v4319
        %4373 = vmatprep.subr.mxu0 0.0
        %4374 = vmatpush1.msra.mxu0 %v4320
        %4375 = vmatprep.subr.mxu0 0.0
        %4376 = vmatpush1.msra.mxu0 %v4321
        %4377 = vmatprep.subr.mxu0 0.0
        %4378 = vmatpush1.msra.mxu0 %v4322
        %4379 = vmatprep.subr.mxu0 0.0
        %4380 = vmatpush1.msra.mxu0 %v4323
        %4381 = vmatprep.subr.mxu0 0.0
        %4382 = vmatpush1.msra.mxu0 0.0
        %4383 = vmatprep.subr.mxu0 0.0
        %4384 = vmatpush1.msra.mxu0 0.0
        %4385 = vmatprep.subr.mxu0 0.0
        %4386 = vmatpush1.msra.mxu0 0.0
        %4387 = vmatprep.subr.mxu0 0.0
        %4388 = vmatpush1.msra.mxu0 0.0
        %4389 = vmatprep.subr.mxu0 0.0
        %4390 = vmatpush1.msra.mxu0 0.0
        %4391 = vmatprep.subr.mxu0 0.0
        %4392 = vmatpush1.msra.mxu0 0.0
        %4393 = vmatprep.subr.mxu0 0.0
        %4394 = vmatpush1.msra.mxu0 0.0
        %4395 = vmatprep.subr.mxu0 0.0
        %4396 = vmatpush1.msra.mxu0 0.0
        %4397 = vmatprep.subr.mxu0 0.0
        %4398 = vmatpush1.msra.mxu0 0.0
        %4399 = vmatprep.subr.mxu0 0.0
        %4400 = vmatpush1.msra.mxu0 0.0
        %4401 = vmatprep.subr.mxu0 0.0
        %4402 = vmatpush1.msra.mxu0 0.0
        %4403 = vmatprep.subr.mxu0 0.0
        %4404 = vmatpush1.msra.mxu0 0.0
        %4405 = vmatprep.subr.mxu0 0.0
        %4406 = vmatpush1.msra.mxu0 0.0
        %4407 = vmatprep.subr.mxu0 0.0
        %4408 = vmatpush1.msra.mxu0 0.0
        %4409 = vmatprep.subr.mxu0 0.0
        %4410 = vmatpush1.msra.mxu0 0.0
        %4411 = vmatprep.subr.mxu0 0.0
        %4412 = vmatpush1.msra.mxu0 0.0
        %4413 = vmatprep.subr.mxu0 0.0
        %4414 = vmatpush1.msra.mxu0 0.0
        %4415 = vmatprep.subr.mxu0 0.0
        %4416 = vmatpush1.msra.mxu0 0.0
        %4417 = vmatprep.subr.mxu0 0.0
        %4418 = vmatpush1.msra.mxu0 0.0
        %4419 = vmatprep.subr.mxu0 0.0
        %4420 = vmatpush1.msra.mxu0 0.0
        %4421 = vmatprep.subr.mxu0 0.0
        %4422 = vmatpush1.msra.mxu0 0.0
        %4423 = vmatprep.subr.mxu0 0.0
        %4424 = vmatpush1.msra.mxu0 0.0
        %4425 = vmatprep.subr.mxu0 0.0
        %4426 = vmatpush1.msra.mxu0 0.0
        %4427 = vmatprep.subr.mxu0 0.0
        %4428 = vmatpush1.msra.mxu0 0.0
        %4429 = vmatprep.mubr.f32.mxu0 0.0
        %4430 = vmatmul.mubr.f32.gmra.mrb[0].mxu0 %v4354
        %v4431 = vpop.f32.mrb[0].mxu0
        %v4432 = vadd.f32 %v4335, %v4431
        %v4433 = vpop.f32.mrb[0].mxu0
        %4434 = vmatprep.mubr.f32.mxu0 0.0
        %4435 = vmatmul.mubr.f32.gmra.mrb[0].mxu0 %v4357
        %v4436 = vpop.f32.mrb[0].mxu0
        %v4437 = vadd.f32 %v4340, %v4436
        %v4438 = vpop.f32.mrb[0].mxu0
        %4439 = vmatprep.mubr.f32.mxu0 0.0
        %4440 = vmatmul.mubr.f32.gmra.mrb[0].mxu0 %v4360
        %v4441 = vpop.f32.mrb[0].mxu0
        %v4442 = vadd.f32 %v4345, %v4441
        %v4443 = vpop.f32.mrb[0].mxu0
        %4444 = vmatprep.mubr.f32.mxu0 0.0
        %4445 = vmatmul.mubr.f32.gmra.mrb[0].mxu0 %v4363
        %v4446 = vpop.f32.mrb[0].mxu0
        %v4447 = vadd.f32 %v4350, %v4446
        %v4448 = vpop.f32.mrb[0].mxu0
        %4449 = vdwg.mxu0
        %v4450 = vmax.f32 %v4432, 0.0
        %v4451 = vmax.f32 %v4437, 0.0
        %v4452 = vmax.f32 %v4442, 0.0
        %v4453 = vmax.f32 %v4447, 0.0
        %v4454 = vld [vmem:[%s7] sm:$0xff]
        %v4455 = vld [vmem:[%s7 + $0x8] sm:$0xff]
        %v4456 = vld [vmem:[%s8] sm:$0xff]
        %v4457 = vld [vmem:[%s8 + $0x8] sm:$0xff]
        %4459 = vset.pattern.permute.xlu0 0
        %4460 = vperm.xlu0 %4459, %v4456
        %v4461 = vpop.permute.xlu0 %4460
        %4464 = vset.pattern.permute.xlu0 0
        %4465 = vperm.xlu0 %4464, %v4457
        %v4466 = vpop.permute.xlu0 %4465
        %vm4468 = vcmask 261120
        %v4470 = vsel %vm4468, %v4454, 0
        %v4473 = vsel %vm4468, %v4455, 0
        %4475 = vmatprep.subr.mxu0 0.0
        %4476 = vmatpush1.msra.mxu0 %v4450
        %4477 = vmatprep.subr.mxu0 0.0
        %4478 = vmatpush1.msra.mxu0 %v4451
        %4479 = vmatprep.subr.mxu0 0.0
        %4480 = vmatpush1.msra.mxu0 %v4452
        %4481 = vmatprep.subr.mxu0 0.0
        %4482 = vmatpush1.msra.mxu0 %v4453
        %4483 = vmatprep.subr.mxu0 0.0
        %4484 = vmatpush1.msra.mxu0 0.0
        %4485 = vmatprep.subr.mxu0 0.0
        %4486 = vmatpush1.msra.mxu0 0.0
        %4487 = vmatprep.subr.mxu0 0.0
        %4488 = vmatpush1.msra.mxu0 0.0
        %4489 = vmatprep.subr.mxu0 0.0
        %4490 = vmatpush1.msra.mxu0 0.0
        %4491 = vmatprep.subr.mxu0 0.0
        %4492 = vmatpush1.msra.mxu0 0.0
        %4493 = vmatprep.subr.mxu0 0.0
        %4494 = vmatpush1.msra.mxu0 0.0
        %4495 = vmatprep.subr.mxu0 0.0
        %4496 = vmatpush1.msra.mxu0 0.0
        %4497 = vmatprep.subr.mxu0 0.0
        %4498 = vmatpush1.msra.mxu0 0.0
        %4499 = vmatprep.subr.mxu0 0.0
        %4500 = vmatpush1.msra.mxu0 0.0
        %4501 = vmatprep.subr.mxu0 0.0
        %4502 = vmatpush1.msra.mxu0 0.0
        %4503 = vmatprep.subr.mxu0 0.0
        %4504 = vmatpush1.msra.mxu0 0.0
        %4505 = vmatprep.subr.mxu0 0.0
        %4506 = vmatpush1.msra.mxu0 0.0
        %4507 = vmatprep.subr.mxu0 0.0
        %4508 = vmatpush1.msra.mxu0 0.0
        %4509 = vmatprep.subr.mxu0 0.0
        %4510 = vmatpush1.msra.mxu0 0.0
        %4511 = vmatprep.subr.mxu0 0.0
        %4512 = vmatpush1.msra.mxu0 0.0
        %4513 = vmatprep.subr.mxu0 0.0
        %4514 = vmatpush1.msra.mxu0 0.0
        %4515 = vmatprep.subr.mxu0 0.0
        %4516 = vmatpush1.msra.mxu0 0.0
        %4517 = vmatprep.subr.mxu0 0.0
        %4518 = vmatpush1.msra.mxu0 0.0
        %4519 = vmatprep.subr.mxu0 0.0
        %4520 = vmatpush1.msra.mxu0 0.0
        %4521 = vmatprep.subr.mxu0 0.0
        %4522 = vmatpush1.msra.mxu0 0.0
        %4523 = vmatprep.subr.mxu0 0.0
        %4524 = vmatpush1.msra.mxu0 0.0
        %4525 = vmatprep.subr.mxu0 0.0
        %4526 = vmatpush1.msra.mxu0 0.0
        %4527 = vmatprep.subr.mxu0 0.0
        %4528 = vmatpush1.msra.mxu0 0.0
        %4529 = vmatprep.subr.mxu0 0.0
        %4530 = vmatpush1.msra.mxu0 0.0
        %4531 = vmatprep.subr.mxu0 0.0
        %4532 = vmatpush1.msra.mxu0 0.0
        %4533 = vmatprep.subr.mxu0 0.0
        %4534 = vmatpush1.msra.mxu0 0.0
        %4535 = vmatprep.subr.mxu0 0.0
        %4536 = vmatpush1.msra.mxu0 0.0
        %4537 = vmatprep.subr.mxu0 0.0
        %4538 = vmatpush1.msra.mxu0 0.0
        %4539 = vmatprep.mubr.f32.mxu0 0.0
        %4540 = vmatmul.mubr.f32.gmra.mrb[0].mxu0 %v4470
        %v4541 = vpop.f32.mrb[0].mxu0
        %v4542 = vadd.f32 %v4461, %v4541
        %v4543 = vpop.f32.mrb[0].mxu0
        %4544 = vmatprep.mubr.f32.mxu0 0.0
        %4545 = vmatmul.mubr.f32.gmra.mrb[0].mxu0 %v4473
        %v4546 = vpop.f32.mrb[0].mxu0
        %v4547 = vadd.f32 %v4466, %v4546
        %v4548 = vpop.f32.mrb[0].mxu0
        %4549 = vdwg.mxu0
        %v4550 = vtanh.pop %v4542
        %v4551 = vtanh.pop %v4547
        %4552 = vst [vmem:[%s536] sm:$0xff] %v4550
        %4553 = vst [vmem:[%s536 + $0x8] sm:$0xff] %v4551
        %s4554 = sand.u32 %s225, 1
        %s4555 = sand.u32 %s225, 1
        %s4556 = smul.addr %s4555, 16
        %s4557 = scalar_lea.vmem [#allocation13], %s4556
        // Predicated region
        $region125: #{tps_model_forward.1} parent=89 // pred_check
          %p4558 = pneg %p235
        $region126: #{tps_model_forward.1} parent=89 // pred_check_branch
          %4560 = sbr.rel (%p4558) target = $region128
        $region127: #{tps_model_forward.1} parent=89 // pred_region
          %s4561 = smul.addr %s23, 8
          %s4562 = scalar_lea.vmem %s9, %s4561
          // Predicated region
          $region129: #{tps_model_forward.1} parent=127 // pred_check
            _
          $region130: #{tps_model_forward.1} parent=127 // pred_check_branch
            %4564 = sbr.rel (0) target = $region132
          $region131: #{tps_model_forward.1} parent=127 // pred_region
            // Predicated region
            $region133: #{tps_model_forward.1} parent=131 // pred_check
              _
            $region134: #{tps_model_forward.1} parent=131 // pred_check_branch
              %4566 = sbr.rel (0) target = $region136
            $region135: #{tps_model_forward.1} parent=131 // pred_region
              // Predicated region
              $region148: #{tps_model_forward.1} parent=135 // pred_check
                _
              $region149: #{tps_model_forward.1} parent=135 // pred_check_branch
                %4583 = sbr.rel (0) target = $region151
              $region150: #{tps_model_forward.1} parent=135 // pred_region
                loop: start=0, step=1, limit=1
                $region152: #{tps_model_forward.1} parent=150 // loop_pre_header
                  _
                $region153: #{tps_model_forward.1} parent=150 // loop_header
                  %s4585 = sphi 0, %s4589
                  %p4586 = scmp.ge.s32.totalorder %s4585, 1
                  %s4590 = sphi %s4557, %s4557
                  %s4591 = sphi %s4562, %s4562
                $region154: #{tps_model_forward.1} parent=150 // loop_header_branch
                  %4588 = sbr.rel (%p4586) target = $region158
                $region155: #{tps_model_forward.1} parent=150 // loop_body
                  %v4592 = vld [vmem:[%s4590] sm:$0xff]
                  %4593 = vst [vmem:[%s4591] sm:$0xff] %v4592
                  %v4594 = vld [vmem:[%s4590 + $0x8] sm:$0xff]
                  %4595 = vst [vmem:[%s4591 + $0x10] sm:$0xff] %v4594
                $region156: #{tps_model_forward.1} parent=150 // loop_footer
                  %s4589 = sadd.s32 1, %s4585
                $region157: #{tps_model_forward.1} parent=150 // loop_footer_branch
                  %4584 = sbr.rel target = $region153
                $region158: #{tps_model_forward.1} parent=150 // loop_exit
                  _
              $region151: #{tps_model_forward.1} parent=135 // pred_fallthru
                _
              // Predicated region
              $region159: #{tps_model_forward.1} parent=135 // pred_check
                _
              $region160: #{tps_model_forward.1} parent=135 // pred_check_branch
                %4597 = sbr.rel target = $region162
              $region161: #{tps_model_forward.1} parent=135 // pred_region
                _
              $region162: #{tps_model_forward.1} parent=135 // pred_fallthru
                _
            $region136: #{tps_model_forward.1} parent=131 // pred_fallthru
              _
            // Predicated region
            $region137: #{tps_model_forward.1} parent=131 // pred_check
              _
            $region138: #{tps_model_forward.1} parent=131 // pred_check_branch
              %4568 = sbr.rel target = $region140
            $region139: #{tps_model_forward.1} parent=131 // pred_region
              loop: start=0, step=1, limit=1
              $region141: #{tps_model_forward.1} parent=139 // loop_pre_header
                _
              $region142: #{tps_model_forward.1} parent=139 // loop_header
                %s4571 = sphi 0, %s4575
                %p4572 = scmp.ge.s32.totalorder %s4571, 1
                %s4576 = sphi %s4557, %s4557
                %s4577 = sphi %s4562, %s4562
              $region143: #{tps_model_forward.1} parent=139 // loop_header_branch
                %4574 = sbr.rel (%p4572) target = $region147
              $region144: #{tps_model_forward.1} parent=139 // loop_body
                %v4578 = vld [vmem:[%s4576] sm:$0xff]
                %4579 = vst [vmem:[%s4577] sm:$0xff] %v4578
                %v4580 = vld [vmem:[%s4576 + $0x8] sm:$0xff]
                %4581 = vst [vmem:[%s4577 + $0x10] sm:$0xff] %v4580
              $region145: #{tps_model_forward.1} parent=139 // loop_footer
                %s4575 = sadd.s32 1, %s4571
              $region146: #{tps_model_forward.1} parent=139 // loop_footer_branch
                %4570 = sbr.rel target = $region142
              $region147: #{tps_model_forward.1} parent=139 // loop_exit
                _
            $region140: #{tps_model_forward.1} parent=131 // pred_fallthru
              _
          $region132: #{tps_model_forward.1} parent=127 // pred_fallthru
            _
          %4598 = vnop
        $region128: #{tps_model_forward.1} parent=89 // pred_fallthru
          _
      $region90: #{tps_model_forward.1} parent=5 // pred_fallthru
        _
      %p4599 = scmp.le.s32.totalorder 2, %s18
      // Predicated region
      $region163: #{tps_model_forward.1} parent=5 // pred_check
        %p4600 = pneg %p4599
      $region164: #{tps_model_forward.1} parent=5 // pred_check_branch
        %4602 = sbr.rel (%p4600) target = $region166
      $region165: #{tps_model_forward.1} parent=5 // pred_region
        %s4603 = ssub.s32 %s18, 2
        // Predicated region
        $region167: #{tps_model_forward.1} parent=165 // pred_check
          %p4604 = pneg %p241
        $region168: #{tps_model_forward.1} parent=165 // pred_check_branch
          %4606 = sbr.rel (%p4604) target = $region170
        $region169: #{tps_model_forward.1} parent=165 // pred_region
          %s4607 = sand.u32 %s226, 1
          %s4608 = sand.u32 %s226, 1
          %s4609 = smul.addr %s4608, 16
          %s4610 = scalar_lea.vmem [#allocation13], %s4609
        $region170: #{tps_model_forward.1} parent=165 // pred_fallthru
          _
      $region166: #{tps_model_forward.1} parent=5 // pred_fallthru
        _
    $region6: #{tps_model_forward.1} parent=1 // loop_footer
      %s22 = sadd.s32 1, %s18
    $region7: #{tps_model_forward.1} parent=1 // loop_footer_branch
      %17 = sbr.rel target = $region3
    $region8: #{tps_model_forward.1} parent=1 // loop_exit
      _
    %4611 = vsyncpa [#allocation7], 1
    %s4612 = scalar_lea.sflag [#allocation7], 1
    %4613 = vsyncpa %s4612, 1
    %4614 = vsyncpa [#allocation9], 1
    %4615 = vsyncpa [#allocation12], 1

</llo_original>
